<compile_context>
chip_gen: v7x
topology: tpu7x:2x2x1
jax: 0.10.0
libtpu: 0.0.40
codegen_flags: <defaults>
</compile_context>

<pallas_src>
import functools
import math

import jax
import jax.numpy as jnp
from jax.experimental import pallas as pl
from jax.experimental.pallas import tpu as pltpu  # noqa: F401  (TPU backend)


# --------------------------- in-kernel helpers ------------------------------

def _layernorm(x, g, b, eps):
    mean = jnp.mean(x, axis=-1, keepdims=True)
    var = jnp.mean(jnp.square(x - mean), axis=-1, keepdims=True)
    return (x - mean) * jax.lax.rsqrt(var + eps) * g + b


def _mha(q2d, k2d, v2d, w_o, b_o, mask, batch, sq, sk, n_heads, dh):
    """Batched multi-head attention on 2-D (rows = batch*seq) activations.

    Heads are folded into the leading (batch) axis of a single batched einsum
    pair; the output projection is one (M, D) @ (D, D) matmul on the
    lane-concatenated per-head outputs.  Head splitting/merging uses only
    lane slices, leading-dim reshapes and concatenates (layout-safe).
    """
    scale = 1.0 / math.sqrt(dh)

    def split_heads(x2d, s):
        # (batch*s, n_heads*dh) -> (n_heads*batch, s, dh), head-major.
        heads = [x2d[:, h * dh:(h + 1) * dh].reshape(batch, s, dh)
                 for h in range(n_heads)]
        return jnp.concatenate(heads, axis=0)

    q = split_heads(q2d, sq)                     # (H*B, Sq, dh)
    k = split_heads(k2d, sk)                     # (H*B, Sk, dh)
    v = split_heads(v2d, sk)                     # (H*B, Sk, dh)

    s = jnp.einsum("bqd,bkd->bqk", q, k,
                   preferred_element_type=jnp.float32) * scale
    if mask is not None:
        s = s + mask[None, :, :]                 # one broadcast for all heads
    s = s - jnp.max(s, axis=-1, keepdims=True)
    p = jnp.exp(s)
    p = p * pl.reciprocal(jnp.sum(p, axis=-1, keepdims=True), approx=True)
    o = jnp.einsum("bqk,bkd->bqd", p, v,
                   preferred_element_type=jnp.float32)   # (H*B, Sq, dh)

    # reassemble (M, D) = concat_h(o_h) then a single output projection
    o2d = jnp.concatenate(
        [o[h * batch:(h + 1) * batch].reshape(batch * sq, dh)
         for h in range(n_heads)], axis=-1)
    return jnp.dot(o2d, w_o, preferred_element_type=jnp.float32) + b_o


# ------------------------------ Pallas kernels ------------------------------

def _encoder_stack_kernel(src_ref, in_w_ref, in_b_ref, pe_ref,
                          w_qkv_ref, b_qkv_ref, w_o_ref, b_o_ref,
                          ln1_g_ref, ln1_b_ref, w1_ref, b1_ref, w2_ref, b2_ref,
                          ln2_g_ref, ln2_b_ref, o_ref,
                          *, n_layers, batch, seq, n_heads, eps):
    d = in_w_ref.shape[1]
    dh = d // n_heads

    # fused E==1 input projection (broadcast FMA) + positional encoding
    x = (src_ref[...].astype(jnp.float32) * in_w_ref[...] + in_b_ref[...]
         + pe_ref[...])                                             # (B*S, D)

    for l in range(n_layers):                     # unrolled, weights in VMEM
        qkv = jnp.dot(x, w_qkv_ref[l],
                      preferred_element_type=jnp.float32) + b_qkv_ref[l]
        attn = _mha(qkv[:, :d], qkv[:, d:2 * d], qkv[:, 2 * d:],
                    w_o_ref[l], b_o_ref[l], None,
                    batch, seq, seq, n_heads, dh)
        x = _layernorm(x + attn, ln1_g_ref[l], ln1_b_ref[l], eps)

        h = jnp.maximum(jnp.dot(x, w1_ref[l],
                                preferred_element_type=jnp.float32)
                        + b1_ref[l], 0.0)
        ff = jnp.dot(h, w2_ref[l],
                     preferred_element_type=jnp.float32) + b2_ref[l]
        x = _layernorm(x + ff, ln2_g_ref[l], ln2_b_ref[l], eps)

    o_ref[...] = x.astype(o_ref.dtype)


def _decoder_stack_kernel(tgt_ref, in_w_ref, in_b_ref, mem_ref, tgt_mask_ref,
                          mem_mask_ref,
                          sa_w_qkv_ref, sa_b_qkv_ref, sa_w_o_ref, sa_b_o_ref,
                          ln1_g_ref, ln1_b_ref,
                          ca_w_q_ref, ca_b_q_ref, ca_w_kv_ref, ca_b_kv_ref,
                          ca_w_o_ref, ca_b_o_ref, ln2_g_ref, ln2_b_ref,
                          w1_ref, b1_ref, w2_ref, b2_ref, ln3_g_ref, ln3_b_ref,
                          map_w_ref, map_b_ref, o_ref,
                          *, n_layers, batch, tgt_len, src_len, n_heads, eps,
                          use_mem_mask):
    d = in_w_ref.shape[1]
    dh = d // n_heads

    # fused E==1 input projection (broadcast FMA), no positional encoding
    y = tgt_ref[...].astype(jnp.float32) * in_w_ref[...] + in_b_ref[...]
    mem = mem_ref[...].astype(jnp.float32)
    tgt_mask = tgt_mask_ref[...]
    mem_mask = mem_mask_ref[...] if use_mem_mask else None

    for l in range(n_layers):                     # unrolled, weights in VMEM
        # masked self-attention (fused QKV projection)
        qkv = jnp.dot(y, sa_w_qkv_ref[l],
                      preferred_element_type=jnp.float32) + sa_b_qkv_ref[l]
        sa = _mha(qkv[:, :d], qkv[:, d:2 * d], qkv[:, 2 * d:],
                  sa_w_o_ref[l], sa_b_o_ref[l], tgt_mask,
                  batch, tgt_len, tgt_len, n_heads, dh)
        y = _layernorm(y + sa, ln1_g_ref[l], ln1_b_ref[l], eps)

        # cross-attention: Q from decoder state, fused KV from encoder memory
        q = jnp.dot(y, ca_w_q_ref[l],
                    preferred_element_type=jnp.float32) + ca_b_q_ref[l]
        kv = jnp.dot(mem, ca_w_kv_ref[l],
                     preferred_element_type=jnp.float32) + ca_b_kv_ref[l]
        ca = _mha(q, kv[:, :d], kv[:, d:],
                  ca_w_o_ref[l], ca_b_o_ref[l], mem_mask,
                  batch, tgt_len, src_len, n_heads, dh)
        y = _layernorm(y + ca, ln2_g_ref[l], ln2_b_ref[l], eps)

        # feed-forward
        h = jnp.maximum(jnp.dot(y, w1_ref[l],
                                preferred_element_type=jnp.float32)
                        + b1_ref[l], 0.0)
        ff = jnp.dot(h, w2_ref[l],
                     preferred_element_type=jnp.float32) + b2_ref[l]
        y = _layernorm(y + ff, ln3_g_ref[l], ln3_b_ref[l], eps)

    # fused final D -> 1 mapping (broadcast multiply + lane reduction)
    out = jnp.sum(y * map_w_ref[...], axis=-1, keepdims=True) + map_b_ref[...]
    o_ref[...] = out.astype(o_ref.dtype)


# ------------------------------ kernel wrappers ------------------------------

def encoder_stack(src2d, pe_rows, p, *, batch, seq, n_heads):
    m = src2d.shape[0]
    d = p["in_w"].shape[1]
    n_layers = p["w_qkv"].shape[0]
    kernel = functools.partial(_encoder_stack_kernel, n_layers=n_layers,
                               batch=batch, seq=seq, n_heads=n_heads, eps=1e-5)
    return pl.pallas_call(
        kernel,
        out_shape=jax.ShapeDtypeStruct((m, d), jnp.float32),
    )(src2d, p["in_w"], p["in_b"], pe_rows,
      p["w_qkv"], p["b_qkv"], p["w_o"], p["b_o"],
      p["ln1_g"], p["ln1_b"], p["w1"], p["b1"], p["w2"], p["b2"],
      p["ln2_g"], p["ln2_b"])


def decoder_stack(tgt2d, mem2d, tgt_mask, mem_mask, p, *, batch, tgt_len,
                  src_len, n_heads):
    m = tgt2d.shape[0]
    n_layers = p["sa_w_qkv"].shape[0]
    use_mm = mem_mask is not None
    if not use_mm:
        # placeholder ref, never read inside the kernel (use_mem_mask=False)
        mem_mask = jnp.zeros((tgt_len, src_len), jnp.float32)
    kernel = functools.partial(_decoder_stack_kernel, n_layers=n_layers,
                               batch=batch, tgt_len=tgt_len, src_len=src_len,
                               n_heads=n_heads, eps=1e-5, use_mem_mask=use_mm)
    return pl.pallas_call(
        kernel,
        out_shape=jax.ShapeDtypeStruct((m, 1), jnp.float32),
    )(tgt2d, p["in_w"], p["in_b"], mem2d, tgt_mask, mem_mask,
      p["sa_w_qkv"], p["sa_b_qkv"], p["sa_w_o"], p["sa_b_o"],
      p["ln1_g"], p["ln1_b"],
      p["ca_w_q"], p["ca_b_q"], p["ca_w_kv"], p["ca_b_kv"],
      p["ca_w_o"], p["ca_b_o"], p["ln2_g"], p["ln2_b"],
      p["w1"], p["b1"], p["w2"], p["b2"], p["ln3_g"], p["ln3_b"],
      p["map_w_t"], p["map_b"])


# ----------------------------- model forward pass ----------------------------

def positional_encoding(seq_len, d_model):
    pos = jnp.arange(seq_len, dtype=jnp.float32)[:, None]
    div = jnp.exp(jnp.arange(0, d_model, 2, dtype=jnp.float32)
                  * (-math.log(10000.0) / d_model))
    pe = jnp.zeros((seq_len, d_model), jnp.float32)
    pe = pe.at[:, 0::2].set(jnp.sin(pos * div))
    pe = pe.at[:, 1::2].set(jnp.cos(pos * div))
    return pe


def forward(params, src, tgt, src_mask, tgt_mask, *, n_heads):
    """src: (S, N, 1), tgt: (T, N, 1) -> (T, N, 1)  (batch_first=False).

    src_mask (memory mask) may be None, meaning "no masking" (same result as
    an all-zeros additive mask, but skips the dead add inside the kernel).
    """
    S, B, E = src.shape
    T = tgt.shape[0]
    D = params["enc"]["in_w"].shape[1]
    assert E == 1  # univariate path (module default num_predicted_features=1)

    # batch-major, 2-D activations: row index = b * seq + s
    src2d = jnp.transpose(src, (1, 0, 2)).reshape(B * S, E)
    tgt2d = jnp.transpose(tgt, (1, 0, 2)).reshape(B * T, E)

    # sinusoidal positional encoding per batch row (constant-folded under jit)
    pe_rows = jnp.tile(positional_encoding(S, D), (B, 1))        # (B*S, D)

    # one pallas_call per stack
    memory = encoder_stack(src2d, pe_rows, params["enc"],
                           batch=B, seq=S, n_heads=n_heads)       # (B*S, D)
    out2d = decoder_stack(tgt2d, memory, tgt_mask, src_mask, params["dec"],
                          batch=B, tgt_len=T, src_len=S,
                          n_heads=n_heads)                        # (B*T, 1)
    return jnp.transpose(out2d.reshape(B, T, E), (1, 0, 2))


# ------------------------------ parameter init ------------------------------

def _init_dense(key, fan_in, fan_out):
    kw, kb = jax.random.split(key)
    w = jax.random.normal(kw, (fan_in, fan_out), jnp.float32) * 0.05
    b = jax.random.normal(kb, (1, fan_out), jnp.float32) * 0.05
    return w, b


def _init_encoder_layer(key, d, ff):
    ks = jax.random.split(key, 4)
    w_qkv, b_qkv = _init_dense(ks[0], d, 3 * d)       # packed QKV (D, 3D)
    w_o, b_o = _init_dense(ks[1], d, d)
    w1, b1 = _init_dense(ks[2], d, ff)
    w2, b2 = _init_dense(ks[3], ff, d)
    ones = jnp.ones((1, d), jnp.float32)
    zeros = jnp.zeros((1, d), jnp.float32)
    return dict(w_qkv=w_qkv, b_qkv=b_qkv, w_o=w_o, b_o=b_o,
                w1=w1, b1=b1, w2=w2, b2=b2,
                ln1_g=ones, ln1_b=zeros, ln2_g=ones, ln2_b=zeros)


def _init_decoder_layer(key, d, ff):
    ks = jax.random.split(key, 6)
    sa_w_qkv, sa_b_qkv = _init_dense(ks[0], d, 3 * d)
    sa_w_o, sa_b_o = _init_dense(ks[1], d, d)
    ca_w_in, ca_b_in = _init_dense(ks[2], d, 3 * d)
    ca_w_o, ca_b_o = _init_dense(ks[3], d, d)
    w1, b1 = _init_dense(ks[4], d, ff)
    w2, b2 = _init_dense(ks[5], ff, d)
    ones = jnp.ones((1, d), jnp.float32)
    zeros = jnp.zeros((1, d), jnp.float32)
    return dict(sa_w_qkv=sa_w_qkv, sa_b_qkv=sa_b_qkv,
                sa_w_o=sa_w_o, sa_b_o=sa_b_o,
                ca_w_q=ca_w_in[:, :d], ca_b_q=ca_b_in[:, :d],
                ca_w_kv=ca_w_in[:, d:], ca_b_kv=ca_b_in[:, d:],
                ca_w_o=ca_w_o, ca_b_o=ca_b_o,
                w1=w1, b1=b1, w2=w2, b2=b2,
                ln1_g=ones, ln1_b=zeros, ln2_g=ones, ln2_b=zeros,
                ln3_g=ones, ln3_b=zeros)


def init_params(key, d, ff, n_enc, n_dec, e):
    assert e == 1
    keys = jax.random.split(key, 5)
    enc_in_w, enc_in_b = _init_dense(keys[0], e, d)   # (1, D), (1, D)
    dec_in_w, dec_in_b = _init_dense(keys[1], e, d)
    map_w, map_b = _init_dense(keys[2], d, e)         # (D, 1), (1, 1)

    def stack(layer_dicts):
        return {k: jnp.stack([ld[k] for ld in layer_dicts])
                for k in layer_dicts[0]}

    enc_layers = [_init_encoder_layer(jax.random.fold_in(keys[3], i), d, ff)
                  for i in range(n_enc)]
    dec_layers = [_init_decoder_layer(jax.random.fold_in(keys[4], i), d, ff)
                  for i in range(n_dec)]
    enc = dict(in_w=enc_in_w, in_b=enc_in_b, **stack(enc_layers))
    dec = dict(in_w=dec_in_w, in_b=dec_in_b,
               map_w_t=map_w.T, map_b=map_b, **stack(dec_layers))
    return dict(enc=enc, dec=dec)


# ------------------------- pure-JAX reference (check) -------------------------

def _ref_forward(params, src, tgt, src_mask, tgt_mask, *, n_heads):
    S, B, E = src.shape
    T = tgt.shape[0]
    enc, dec = params["enc"], params["dec"]
    D = enc["in_w"].shape[1]
    dh = D // n_heads

    def ln(x, g, b):
        m = x.mean(-1, keepdims=True)
        v = ((x - m) ** 2).mean(-1, keepdims=True)
        return (x - m) / jnp.sqrt(v + 1e-5) * g + b

    def mha(q, k, v, w_o, b_o, mask):
        b_, sq, _ = q.shape
        sk = k.shape[1]
        qh = q.reshape(b_, sq, n_heads, dh).transpose(0, 2, 1, 3)
        kh = k.reshape(b_, sk, n_heads, dh).transpose(0, 2, 1, 3)
        vh = v.reshape(b_, sk, n_heads, dh).transpose(0, 2, 1, 3)
        s = jnp.einsum("bhqd,bhkd->bhqk", qh, kh) / math.sqrt(dh)
        if mask is not None:
            s = s + mask
        p = jax.nn.softmax(s, axis=-1)
        o = jnp.einsum("bhqk,bhkd->bhqd", p, vh)
        return o.transpose(0, 2, 1, 3).reshape(b_, sq, D) @ w_o + b_o

    x = jnp.transpose(src, (1, 0, 2)) * enc["in_w"] + enc["in_b"]
    x = x + positional_encoding(S, D)[None]
    for l in range(enc["w_qkv"].shape[0]):
        qkv = x @ enc["w_qkv"][l] + enc["b_qkv"][l]
        a = mha(qkv[..., :D], qkv[..., D:2 * D], qkv[..., 2 * D:],
                enc["w_o"][l], enc["b_o"][l], None)
        x = ln(x + a, enc["ln1_g"][l], enc["ln1_b"][l])
        h = jax.nn.relu(x @ enc["w1"][l] + enc["b1"][l])
        x = ln(x + h @ enc["w2"][l] + enc["b2"][l],
               enc["ln2_g"][l], enc["ln2_b"][l])
    mem = x
    y = jnp.transpose(tgt, (1, 0, 2)) * dec["in_w"] + dec["in_b"]
    for l in range(dec["sa_w_qkv"].shape[0]):
        qkv = y @ dec["sa_w_qkv"][l] + dec["sa_b_qkv"][l]
        a = mha(qkv[..., :D], qkv[..., D:2 * D], qkv[..., 2 * D:],
                dec["sa_w_o"][l], dec["sa_b_o"][l], tgt_mask)
        y = ln(y + a, dec["ln1_g"][l], dec["ln1_b"][l])
        q = y @ dec["ca_w_q"][l] + dec["ca_b_q"][l]
        kv = mem @ dec["ca_w_kv"][l] + dec["ca_b_kv"][l]
        a = mha(q, kv[..., :D], kv[..., D:],
                dec["ca_w_o"][l], dec["ca_b_o"][l], src_mask)
        y = ln(y + a, dec["ln2_g"][l], dec["ln2_b"][l])
        h = jax.nn.relu(y @ dec["w1"][l] + dec["b1"][l])
        y = ln(y + h @ dec["w2"][l] + dec["b2"][l],
               dec["ln3_g"][l], dec["ln3_b"][l])
    out = jnp.sum(y * dec["map_w_t"], axis=-1, keepdims=True) + dec["map_b"]
    return jnp.transpose(out, (1, 0, 2))


# ----------------------------------- main -----------------------------------

if __name__ == "__main__":
    # Small, deterministic configuration (module defaults scaled down).
    B = 2        # batch size N
    S = 8        # source sequence length
    T = 8        # target sequence length (dec_seq_len)
    D = 32       # dim_val
    H = 4        # n_heads
    FF = 64      # dim_feedforward
    E = 1        # num_predicted_features
    N_ENC = 2    # n_encoder_layers
    N_DEC = 2    # n_decoder_layers

    root = jax.random.PRNGKey(0)
    k_params, k_src, k_tgt = jax.random.split(root, 3)
    params = init_params(k_params, D, FF, N_ENC, N_DEC, E)

    src = jax.random.normal(k_src, (S, B, E), jnp.float32)
    tgt = jax.random.normal(k_tgt, (T, B, E), jnp.float32)
    # causal target mask (additive, -1e9 instead of -inf for numerical safety)
    tgt_mask = jnp.where(jnp.tril(jnp.ones((T, T), bool)),
                         0.0, -1e9).astype(jnp.float32)
    src_mask = None  # no memory mask (equivalent to an all-zeros mask)

    fwd = jax.jit(functools.partial(forward, n_heads=H))
    out = fwd(params, src, tgt, src_mask, tgt_mask)
    jax.block_until_ready(out)

    assert out.shape == (T, B, E), out.shape
    assert bool(jnp.all(jnp.isfinite(out)))

    # loose tolerance: pl.reciprocal(approx=True) + MXU rounding vs XLA
    ref = _ref_forward(params, src, tgt, src_mask, tgt_mask, n_heads=H)
    max_err = float(jnp.max(jnp.abs(out - ref)))
    assert max_err < 1e-2, f"max abs error vs reference: {max_err}"

    print("KERNEL_OK")
</pallas_src>

<mosaic_0001>
module attributes {stable_mosaic.version = 11 : i64} {
  func.func @_encoder_stack_kernel(%arg0: memref<16x1xf32, #tpu.memory_space<vmem>>, %arg1: memref<1x32xf32, #tpu.memory_space<vmem>>, %arg2: memref<1x32xf32, #tpu.memory_space<vmem>>, %arg3: memref<16x32xf32, #tpu.memory_space<vmem>>, %arg4: memref<2x32x96xf32, #tpu.memory_space<vmem>>, %arg5: memref<2x1x96xf32, #tpu.memory_space<vmem>>, %arg6: memref<2x32x32xf32, #tpu.memory_space<vmem>>, %arg7: memref<2x1x32xf32, #tpu.memory_space<vmem>>, %arg8: memref<2x1x32xf32, #tpu.memory_space<vmem>>, %arg9: memref<2x1x32xf32, #tpu.memory_space<vmem>>, %arg10: memref<2x32x64xf32, #tpu.memory_space<vmem>>, %arg11: memref<2x1x64xf32, #tpu.memory_space<vmem>>, %arg12: memref<2x64x32xf32, #tpu.memory_space<vmem>>, %arg13: memref<2x1x32xf32, #tpu.memory_space<vmem>>, %arg14: memref<2x1x32xf32, #tpu.memory_space<vmem>>, %arg15: memref<2x1x32xf32, #tpu.memory_space<vmem>>, %arg16: memref<16x32xf32, #tpu.memory_space<vmem>>) attributes {dimension_semantics = [], scalar_prefetch = 0 : i64, scratch_operands = 0 : i64, tpu.core_type = #tpu.core_type<tc>} {
    %c0 = arith.constant 0 : index
    %c0_0 = arith.constant 0 : index
    %0 = vector.load %arg0[%c0, %c0_0] : memref<16x1xf32, #tpu.memory_space<vmem>>, vector<16x1xf32>
    %c0_1 = arith.constant 0 : index
    %c0_2 = arith.constant 0 : index
    %1 = vector.load %arg1[%c0_1, %c0_2] : memref<1x32xf32, #tpu.memory_space<vmem>>, vector<1x32xf32>
    %2 = vector.broadcast %0 : vector<16x1xf32> to vector<16x32xf32>
    %3 = vector.broadcast %1 : vector<1x32xf32> to vector<16x32xf32>
    %4 = arith.mulf %2, %3 : vector<16x32xf32>
    %c0_3 = arith.constant 0 : index
    %c0_4 = arith.constant 0 : index
    %5 = vector.load %arg2[%c0_3, %c0_4] : memref<1x32xf32, #tpu.memory_space<vmem>>, vector<1x32xf32>
    %6 = vector.broadcast %5 : vector<1x32xf32> to vector<16x32xf32>
    %7 = arith.addf %4, %6 : vector<16x32xf32>
    %c0_5 = arith.constant 0 : index
    %c0_6 = arith.constant 0 : index
    %8 = vector.load %arg3[%c0_5, %c0_6] : memref<16x32xf32, #tpu.memory_space<vmem>>, vector<16x32xf32>
    %9 = arith.addf %7, %8 : vector<16x32xf32>
    %c0_7 = arith.constant 0 : index
    %c0_8 = arith.constant 0 : index
    %c0_9 = arith.constant 0 : index
    %10 = vector.load %arg4[%c0_7, %c0_8, %c0_9] : memref<2x32x96xf32, #tpu.memory_space<vmem>>, vector<1x32x96xf32>
    %11 = vector.shape_cast %10 : vector<1x32x96xf32> to vector<32x96xf32>
    %cst = arith.constant dense<0.000000e+00> : vector<16x96xf32>
    %12 = tpu.matmul %9, %11, %cst {dimension_numbers = #tpu.dot_dimension_numbers<[1], [0], [0], [1], [0, 0, 1, 1], [], []>} : vector<16x32xf32>, vector<32x96xf32>, vector<16x96xf32> -> vector<16x96xf32>
    %c0_10 = arith.constant 0 : index
    %c0_11 = arith.constant 0 : index
    %c0_12 = arith.constant 0 : index
    %13 = vector.load %arg5[%c0_10, %c0_11, %c0_12] : memref<2x1x96xf32, #tpu.memory_space<vmem>>, vector<1x1x96xf32>
    %14 = vector.shape_cast %13 : vector<1x1x96xf32> to vector<1x96xf32>
    %15 = vector.broadcast %14 : vector<1x96xf32> to vector<16x96xf32>
    %16 = arith.addf %12, %15 : vector<16x96xf32>
    %17 = vector.extract_strided_slice %16 {offsets = [0, 0], sizes = [16, 32], strides = [1, 1]} : vector<16x96xf32> to vector<16x32xf32>
    %18 = vector.extract_strided_slice %16 {offsets = [0, 32], sizes = [16, 32], strides = [1, 1]} : vector<16x96xf32> to vector<16x32xf32>
    %19 = vector.extract_strided_slice %16 {offsets = [0, 64], sizes = [16, 32], strides = [1, 1]} : vector<16x96xf32> to vector<16x32xf32>
    %c0_13 = arith.constant 0 : index
    %c0_14 = arith.constant 0 : index
    %c0_15 = arith.constant 0 : index
    %20 = vector.load %arg6[%c0_13, %c0_14, %c0_15] : memref<2x32x32xf32, #tpu.memory_space<vmem>>, vector<1x32x32xf32>
    %21 = vector.shape_cast %20 : vector<1x32x32xf32> to vector<32x32xf32>
    %c0_16 = arith.constant 0 : index
    %c0_17 = arith.constant 0 : index
    %c0_18 = arith.constant 0 : index
    %22 = vector.load %arg7[%c0_16, %c0_17, %c0_18] : memref<2x1x32xf32, #tpu.memory_space<vmem>>, vector<1x1x32xf32>
    %23 = vector.shape_cast %22 : vector<1x1x32xf32> to vector<1x32xf32>
    %24 = vector.extract_strided_slice %17 {offsets = [0, 0], sizes = [16, 8], strides = [1, 1]} : vector<16x32xf32> to vector<16x8xf32>
    %25 = vector.shape_cast %24 : vector<16x8xf32> to vector<2x8x8xf32>
    %26 = vector.extract_strided_slice %17 {offsets = [0, 8], sizes = [16, 8], strides = [1, 1]} : vector<16x32xf32> to vector<16x8xf32>
    %27 = vector.shape_cast %26 : vector<16x8xf32> to vector<2x8x8xf32>
    %28 = vector.extract_strided_slice %17 {offsets = [0, 16], sizes = [16, 8], strides = [1, 1]} : vector<16x32xf32> to vector<16x8xf32>
    %29 = vector.shape_cast %28 : vector<16x8xf32> to vector<2x8x8xf32>
    %30 = vector.extract_strided_slice %17 {offsets = [0, 24], sizes = [16, 8], strides = [1, 1]} : vector<16x32xf32> to vector<16x8xf32>
    %31 = vector.shape_cast %30 : vector<16x8xf32> to vector<2x8x8xf32>
    %32 = tpu.concatenate %25, %27, %29, %31 in 0 : vector<2x8x8xf32>, vector<2x8x8xf32>, vector<2x8x8xf32>, vector<2x8x8xf32> -> vector<8x8x8xf32>
    %33 = vector.extract_strided_slice %18 {offsets = [0, 0], sizes = [16, 8], strides = [1, 1]} : vector<16x32xf32> to vector<16x8xf32>
    %34 = vector.shape_cast %33 : vector<16x8xf32> to vector<2x8x8xf32>
    %35 = vector.extract_strided_slice %18 {offsets = [0, 8], sizes = [16, 8], strides = [1, 1]} : vector<16x32xf32> to vector<16x8xf32>
    %36 = vector.shape_cast %35 : vector<16x8xf32> to vector<2x8x8xf32>
    %37 = vector.extract_strided_slice %18 {offsets = [0, 16], sizes = [16, 8], strides = [1, 1]} : vector<16x32xf32> to vector<16x8xf32>
    %38 = vector.shape_cast %37 : vector<16x8xf32> to vector<2x8x8xf32>
    %39 = vector.extract_strided_slice %18 {offsets = [0, 24], sizes = [16, 8], strides = [1, 1]} : vector<16x32xf32> to vector<16x8xf32>
    %40 = vector.shape_cast %39 : vector<16x8xf32> to vector<2x8x8xf32>
    %41 = tpu.concatenate %34, %36, %38, %40 in 0 : vector<2x8x8xf32>, vector<2x8x8xf32>, vector<2x8x8xf32>, vector<2x8x8xf32> -> vector<8x8x8xf32>
    %42 = vector.extract_strided_slice %19 {offsets = [0, 0], sizes = [16, 8], strides = [1, 1]} : vector<16x32xf32> to vector<16x8xf32>
    %43 = vector.shape_cast %42 : vector<16x8xf32> to vector<2x8x8xf32>
    %44 = vector.extract_strided_slice %19 {offsets = [0, 8], sizes = [16, 8], strides = [1, 1]} : vector<16x32xf32> to vector<16x8xf32>
    %45 = vector.shape_cast %44 : vector<16x8xf32> to vector<2x8x8xf32>
    %46 = vector.extract_strided_slice %19 {offsets = [0, 16], sizes = [16, 8], strides = [1, 1]} : vector<16x32xf32> to vector<16x8xf32>
    %47 = vector.shape_cast %46 : vector<16x8xf32> to vector<2x8x8xf32>
    %48 = vector.extract_strided_slice %19 {offsets = [0, 24], sizes = [16, 8], strides = [1, 1]} : vector<16x32xf32> to vector<16x8xf32>
    %49 = vector.shape_cast %48 : vector<16x8xf32> to vector<2x8x8xf32>
    %50 = tpu.concatenate %43, %45, %47, %49 in 0 : vector<2x8x8xf32>, vector<2x8x8xf32>, vector<2x8x8xf32>, vector<2x8x8xf32> -> vector<8x8x8xf32>
    "tpu.trace_start"() <{level = 10 : i32, message = "bqd,bkd->bqk"}> : () -> ()
    %cst_19 = arith.constant dense<0.000000e+00> : vector<8x8x8xf32>
    %51 = tpu.matmul %32, %41, %cst_19 {dimension_numbers = #tpu.dot_dimension_numbers<[2], [2], [1], [1], [0, 0, 0, 1, 1, 1], [0], [0]>} : vector<8x8x8xf32>, vector<8x8x8xf32>, vector<8x8x8xf32> -> vector<8x8x8xf32>
    "tpu.trace_stop"() : () -> ()
    %cst_20 = arith.constant 0.353553385 : f32
    %52 = vector.broadcast %cst_20 : f32 to vector<8x8x8xf32>
    %53 = arith.mulf %51, %52 : vector<8x8x8xf32>
    %cst_21 = arith.constant dense<0xFF800000> : vector<8x8xf32>
    %54 = vector.multi_reduction <maximumf>, %53, %cst_21 [2] : vector<8x8x8xf32> to vector<8x8xf32>
    %55 = vector.shape_cast %54 : vector<8x8xf32> to vector<8x8x1xf32>
    %56 = vector.broadcast %55 : vector<8x8x1xf32> to vector<8x8x8xf32>
    %57 = arith.subf %53, %56 : vector<8x8x8xf32>
    %58 = math.exp %57 : vector<8x8x8xf32>
    %cst_22 = arith.constant dense<0.000000e+00> : vector<8x8xf32>
    %59 = vector.multi_reduction <add>, %58, %cst_22 [2] : vector<8x8x8xf32> to vector<8x8xf32>
    %60 = vector.shape_cast %59 : vector<8x8xf32> to vector<8x8x1xf32>
    %61 = tpu.reciprocal %60 {approx = true} : vector<8x8x1xf32> -> vector<8x8x1xf32>
    %62 = vector.broadcast %61 : vector<8x8x1xf32> to vector<8x8x8xf32>
    %63 = arith.mulf %58, %62 : vector<8x8x8xf32>
    "tpu.trace_start"() <{level = 10 : i32, message = "bqk,bkd->bqd"}> : () -> ()
    %cst_23 = arith.constant dense<0.000000e+00> : vector<8x8x8xf32>
    %64 = tpu.matmul %63, %50, %cst_23 {dimension_numbers = #tpu.dot_dimension_numbers<[2], [1], [1], [2], [0, 0, 0, 1, 1, 2], [0], [0]>} : vector<8x8x8xf32>, vector<8x8x8xf32>, vector<8x8x8xf32> -> vector<8x8x8xf32>
    "tpu.trace_stop"() : () -> ()
    %65 = vector.extract_strided_slice %64 {offsets = [0, 0, 0], sizes = [2, 8, 8], strides = [1, 1, 1]} : vector<8x8x8xf32> to vector<2x8x8xf32>
    %66 = vector.shape_cast %65 : vector<2x8x8xf32> to vector<16x8xf32>
    %67 = vector.extract_strided_slice %64 {offsets = [2, 0, 0], sizes = [2, 8, 8], strides = [1, 1, 1]} : vector<8x8x8xf32> to vector<2x8x8xf32>
    %68 = vector.shape_cast %67 : vector<2x8x8xf32> to vector<16x8xf32>
    %69 = vector.extract_strided_slice %64 {offsets = [4, 0, 0], sizes = [2, 8, 8], strides = [1, 1, 1]} : vector<8x8x8xf32> to vector<2x8x8xf32>
    %70 = vector.shape_cast %69 : vector<2x8x8xf32> to vector<16x8xf32>
    %71 = vector.extract_strided_slice %64 {offsets = [6, 0, 0], sizes = [2, 8, 8], strides = [1, 1, 1]} : vector<8x8x8xf32> to vector<2x8x8xf32>
    %72 = vector.shape_cast %71 : vector<2x8x8xf32> to vector<16x8xf32>
    %73 = tpu.concatenate %66, %68, %70, %72 in 1 : vector<16x8xf32>, vector<16x8xf32>, vector<16x8xf32>, vector<16x8xf32> -> vector<16x32xf32>
    %cst_24 = arith.constant dense<0.000000e+00> : vector<16x32xf32>
    %74 = tpu.matmul %73, %21, %cst_24 {dimension_numbers = #tpu.dot_dimension_numbers<[1], [0], [0], [1], [0, 0, 1, 1], [], []>} : vector<16x32xf32>, vector<32x32xf32>, vector<16x32xf32> -> vector<16x32xf32>
    %75 = vector.broadcast %23 : vector<1x32xf32> to vector<16x32xf32>
    %76 = arith.addf %74, %75 : vector<16x32xf32>
    %77 = arith.addf %9, %76 : vector<16x32xf32>
    %c0_25 = arith.constant 0 : index
    %c0_26 = arith.constant 0 : index
    %c0_27 = arith.constant 0 : index
    %78 = vector.load %arg8[%c0_25, %c0_26, %c0_27] : memref<2x1x32xf32, #tpu.memory_space<vmem>>, vector<1x1x32xf32>
    %79 = vector.shape_cast %78 : vector<1x1x32xf32> to vector<1x32xf32>
    %c0_28 = arith.constant 0 : index
    %c0_29 = arith.constant 0 : index
    %c0_30 = arith.constant 0 : index
    %80 = vector.load %arg9[%c0_28, %c0_29, %c0_30] : memref<2x1x32xf32, #tpu.memory_space<vmem>>, vector<1x1x32xf32>
    %81 = vector.shape_cast %80 : vector<1x1x32xf32> to vector<1x32xf32>
    %cst_31 = arith.constant dense<0.000000e+00> : vector<16xf32>
    %82 = vector.multi_reduction <add>, %77, %cst_31 [1] : vector<16x32xf32> to vector<16xf32>
    %83 = vector.shape_cast %82 : vector<16xf32> to vector<16x1xf32>
    %cst_32 = arith.constant 3.200000e+01 : f32
    %84 = vector.broadcast %cst_32 : f32 to vector<16x1xf32>
    %85 = arith.divf %83, %84 : vector<16x1xf32>
    %86 = vector.broadcast %85 : vector<16x1xf32> to vector<16x32xf32>
    %87 = arith.subf %77, %86 : vector<16x32xf32>
    %88 = arith.mulf %87, %87 : vector<16x32xf32>
    %cst_33 = arith.constant dense<0.000000e+00> : vector<16xf32>
    %89 = vector.multi_reduction <add>, %88, %cst_33 [1] : vector<16x32xf32> to vector<16xf32>
    %90 = vector.shape_cast %89 : vector<16xf32> to vector<16x1xf32>
    %cst_34 = arith.constant 3.200000e+01 : f32
    %91 = vector.broadcast %cst_34 : f32 to vector<16x1xf32>
    %92 = arith.divf %90, %91 : vector<16x1xf32>
    %93 = vector.broadcast %85 : vector<16x1xf32> to vector<16x32xf32>
    %94 = arith.subf %77, %93 : vector<16x32xf32>
    %cst_35 = arith.constant 9.99999974E-6 : f32
    %95 = vector.broadcast %cst_35 : f32 to vector<16x1xf32>
    %96 = arith.addf %92, %95 : vector<16x1xf32>
    %97 = math.rsqrt %96 : vector<16x1xf32>
    %98 = vector.broadcast %97 : vector<16x1xf32> to vector<16x32xf32>
    %99 = arith.mulf %94, %98 : vector<16x32xf32>
    %100 = vector.broadcast %79 : vector<1x32xf32> to vector<16x32xf32>
    %101 = arith.mulf %99, %100 : vector<16x32xf32>
    %102 = vector.broadcast %81 : vector<1x32xf32> to vector<16x32xf32>
    %103 = arith.addf %101, %102 : vector<16x32xf32>
    %c0_36 = arith.constant 0 : index
    %c0_37 = arith.constant 0 : index
    %c0_38 = arith.constant 0 : index
    %104 = vector.load %arg10[%c0_36, %c0_37, %c0_38] : memref<2x32x64xf32, #tpu.memory_space<vmem>>, vector<1x32x64xf32>
    %105 = vector.shape_cast %104 : vector<1x32x64xf32> to vector<32x64xf32>
    %cst_39 = arith.constant dense<0.000000e+00> : vector<16x64xf32>
    %106 = tpu.matmul %103, %105, %cst_39 {dimension_numbers = #tpu.dot_dimension_numbers<[1], [0], [0], [1], [0, 0, 1, 1], [], []>} : vector<16x32xf32>, vector<32x64xf32>, vector<16x64xf32> -> vector<16x64xf32>
    %c0_40 = arith.constant 0 : index
    %c0_41 = arith.constant 0 : index
    %c0_42 = arith.constant 0 : index
    %107 = vector.load %arg11[%c0_40, %c0_41, %c0_42] : memref<2x1x64xf32, #tpu.memory_space<vmem>>, vector<1x1x64xf32>
    %108 = vector.shape_cast %107 : vector<1x1x64xf32> to vector<1x64xf32>
    %109 = vector.broadcast %108 : vector<1x64xf32> to vector<16x64xf32>
    %110 = arith.addf %106, %109 : vector<16x64xf32>
    %cst_43 = arith.constant 0.000000e+00 : f32
    %111 = vector.broadcast %cst_43 : f32 to vector<16x64xf32>
    %112 = arith.maximumf %110, %111 : vector<16x64xf32>
    %c0_44 = arith.constant 0 : index
    %c0_45 = arith.constant 0 : index
    %c0_46 = arith.constant 0 : index
    %113 = vector.load %arg12[%c0_44, %c0_45, %c0_46] : memref<2x64x32xf32, #tpu.memory_space<vmem>>, vector<1x64x32xf32>
    %114 = vector.shape_cast %113 : vector<1x64x32xf32> to vector<64x32xf32>
    %cst_47 = arith.constant dense<0.000000e+00> : vector<16x32xf32>
    %115 = tpu.matmul %112, %114, %cst_47 {dimension_numbers = #tpu.dot_dimension_numbers<[1], [0], [0], [1], [0, 0, 1, 1], [], []>} : vector<16x64xf32>, vector<64x32xf32>, vector<16x32xf32> -> vector<16x32xf32>
    %c0_48 = arith.constant 0 : index
    %c0_49 = arith.constant 0 : index
    %c0_50 = arith.constant 0 : index
    %116 = vector.load %arg13[%c0_48, %c0_49, %c0_50] : memref<2x1x32xf32, #tpu.memory_space<vmem>>, vector<1x1x32xf32>
    %117 = vector.shape_cast %116 : vector<1x1x32xf32> to vector<1x32xf32>
    %118 = vector.broadcast %117 : vector<1x32xf32> to vector<16x32xf32>
    %119 = arith.addf %115, %118 : vector<16x32xf32>
    %120 = arith.addf %103, %119 : vector<16x32xf32>
    %c0_51 = arith.constant 0 : index
    %c0_52 = arith.constant 0 : index
    %c0_53 = arith.constant 0 : index
    %121 = vector.load %arg14[%c0_51, %c0_52, %c0_53] : memref<2x1x32xf32, #tpu.memory_space<vmem>>, vector<1x1x32xf32>
    %122 = vector.shape_cast %121 : vector<1x1x32xf32> to vector<1x32xf32>
    %c0_54 = arith.constant 0 : index
    %c0_55 = arith.constant 0 : index
    %c0_56 = arith.constant 0 : index
    %123 = vector.load %arg15[%c0_54, %c0_55, %c0_56] : memref<2x1x32xf32, #tpu.memory_space<vmem>>, vector<1x1x32xf32>
    %124 = vector.shape_cast %123 : vector<1x1x32xf32> to vector<1x32xf32>
    %cst_57 = arith.constant dense<0.000000e+00> : vector<16xf32>
    %125 = vector.multi_reduction <add>, %120, %cst_57 [1] : vector<16x32xf32> to vector<16xf32>
    %126 = vector.shape_cast %125 : vector<16xf32> to vector<16x1xf32>
    %cst_58 = arith.constant 3.200000e+01 : f32
    %127 = vector.broadcast %cst_58 : f32 to vector<16x1xf32>
    %128 = arith.divf %126, %127 : vector<16x1xf32>
    %129 = vector.broadcast %128 : vector<16x1xf32> to vector<16x32xf32>
    %130 = arith.subf %120, %129 : vector<16x32xf32>
    %131 = arith.mulf %130, %130 : vector<16x32xf32>
    %cst_59 = arith.constant dense<0.000000e+00> : vector<16xf32>
    %132 = vector.multi_reduction <add>, %131, %cst_59 [1] : vector<16x32xf32> to vector<16xf32>
    %133 = vector.shape_cast %132 : vector<16xf32> to vector<16x1xf32>
    %cst_60 = arith.constant 3.200000e+01 : f32
    %134 = vector.broadcast %cst_60 : f32 to vector<16x1xf32>
    %135 = arith.divf %133, %134 : vector<16x1xf32>
    %136 = vector.broadcast %128 : vector<16x1xf32> to vector<16x32xf32>
    %137 = arith.subf %120, %136 : vector<16x32xf32>
    %cst_61 = arith.constant 9.99999974E-6 : f32
    %138 = vector.broadcast %cst_61 : f32 to vector<16x1xf32>
    %139 = arith.addf %135, %138 : vector<16x1xf32>
    %140 = math.rsqrt %139 : vector<16x1xf32>
    %141 = vector.broadcast %140 : vector<16x1xf32> to vector<16x32xf32>
    %142 = arith.mulf %137, %141 : vector<16x32xf32>
    %143 = vector.broadcast %122 : vector<1x32xf32> to vector<16x32xf32>
    %144 = arith.mulf %142, %143 : vector<16x32xf32>
    %145 = vector.broadcast %124 : vector<1x32xf32> to vector<16x32xf32>
    %146 = arith.addf %144, %145 : vector<16x32xf32>
    %c1 = arith.constant 1 : index
    %c0_62 = arith.constant 0 : index
    %c0_63 = arith.constant 0 : index
    %147 = vector.load %arg4[%c1, %c0_62, %c0_63] : memref<2x32x96xf32, #tpu.memory_space<vmem>>, vector<1x32x96xf32>
    %148 = vector.shape_cast %147 : vector<1x32x96xf32> to vector<32x96xf32>
    %cst_64 = arith.constant dense<0.000000e+00> : vector<16x96xf32>
    %149 = tpu.matmul %146, %148, %cst_64 {dimension_numbers = #tpu.dot_dimension_numbers<[1], [0], [0], [1], [0, 0, 1, 1], [], []>} : vector<16x32xf32>, vector<32x96xf32>, vector<16x96xf32> -> vector<16x96xf32>
    %c1_65 = arith.constant 1 : index
    %c0_66 = arith.constant 0 : index
    %c0_67 = arith.constant 0 : index
    %150 = vector.load %arg5[%c1_65, %c0_66, %c0_67] : memref<2x1x96xf32, #tpu.memory_space<vmem>>, vector<1x1x96xf32>
    %151 = vector.shape_cast %150 : vector<1x1x96xf32> to vector<1x96xf32>
    %152 = vector.broadcast %151 : vector<1x96xf32> to vector<16x96xf32>
    %153 = arith.addf %149, %152 : vector<16x96xf32>
    %154 = vector.extract_strided_slice %153 {offsets = [0, 0], sizes = [16, 32], strides = [1, 1]} : vector<16x96xf32> to vector<16x32xf32>
    %155 = vector.extract_strided_slice %153 {offsets = [0, 32], sizes = [16, 32], strides = [1, 1]} : vector<16x96xf32> to vector<16x32xf32>
    %156 = vector.extract_strided_slice %153 {offsets = [0, 64], sizes = [16, 32], strides = [1, 1]} : vector<16x96xf32> to vector<16x32xf32>
    %c1_68 = arith.constant 1 : index
    %c0_69 = arith.constant 0 : index
    %c0_70 = arith.constant 0 : index
    %157 = vector.load %arg6[%c1_68, %c0_69, %c0_70] : memref<2x32x32xf32, #tpu.memory_space<vmem>>, vector<1x32x32xf32>
    %158 = vector.shape_cast %157 : vector<1x32x32xf32> to vector<32x32xf32>
    %c1_71 = arith.constant 1 : index
    %c0_72 = arith.constant 0 : index
    %c0_73 = arith.constant 0 : index
    %159 = vector.load %arg7[%c1_71, %c0_72, %c0_73] : memref<2x1x32xf32, #tpu.memory_space<vmem>>, vector<1x1x32xf32>
    %160 = vector.shape_cast %159 : vector<1x1x32xf32> to vector<1x32xf32>
    %161 = vector.extract_strided_slice %154 {offsets = [0, 0], sizes = [16, 8], strides = [1, 1]} : vector<16x32xf32> to vector<16x8xf32>
    %162 = vector.shape_cast %161 : vector<16x8xf32> to vector<2x8x8xf32>
    %163 = vector.extract_strided_slice %154 {offsets = [0, 8], sizes = [16, 8], strides = [1, 1]} : vector<16x32xf32> to vector<16x8xf32>
    %164 = vector.shape_cast %163 : vector<16x8xf32> to vector<2x8x8xf32>
    %165 = vector.extract_strided_slice %154 {offsets = [0, 16], sizes = [16, 8], strides = [1, 1]} : vector<16x32xf32> to vector<16x8xf32>
    %166 = vector.shape_cast %165 : vector<16x8xf32> to vector<2x8x8xf32>
    %167 = vector.extract_strided_slice %154 {offsets = [0, 24], sizes = [16, 8], strides = [1, 1]} : vector<16x32xf32> to vector<16x8xf32>
    %168 = vector.shape_cast %167 : vector<16x8xf32> to vector<2x8x8xf32>
    %169 = tpu.concatenate %162, %164, %166, %168 in 0 : vector<2x8x8xf32>, vector<2x8x8xf32>, vector<2x8x8xf32>, vector<2x8x8xf32> -> vector<8x8x8xf32>
    %170 = vector.extract_strided_slice %155 {offsets = [0, 0], sizes = [16, 8], strides = [1, 1]} : vector<16x32xf32> to vector<16x8xf32>
    %171 = vector.shape_cast %170 : vector<16x8xf32> to vector<2x8x8xf32>
    %172 = vector.extract_strided_slice %155 {offsets = [0, 8], sizes = [16, 8], strides = [1, 1]} : vector<16x32xf32> to vector<16x8xf32>
    %173 = vector.shape_cast %172 : vector<16x8xf32> to vector<2x8x8xf32>
    %174 = vector.extract_strided_slice %155 {offsets = [0, 16], sizes = [16, 8], strides = [1, 1]} : vector<16x32xf32> to vector<16x8xf32>
    %175 = vector.shape_cast %174 : vector<16x8xf32> to vector<2x8x8xf32>
    %176 = vector.extract_strided_slice %155 {offsets = [0, 24], sizes = [16, 8], strides = [1, 1]} : vector<16x32xf32> to vector<16x8xf32>
    %177 = vector.shape_cast %176 : vector<16x8xf32> to vector<2x8x8xf32>
    %178 = tpu.concatenate %171, %173, %175, %177 in 0 : vector<2x8x8xf32>, vector<2x8x8xf32>, vector<2x8x8xf32>, vector<2x8x8xf32> -> vector<8x8x8xf32>
    %179 = vector.extract_strided_slice %156 {offsets = [0, 0], sizes = [16, 8], strides = [1, 1]} : vector<16x32xf32> to vector<16x8xf32>
    %180 = vector.shape_cast %179 : vector<16x8xf32> to vector<2x8x8xf32>
    %181 = vector.extract_strided_slice %156 {offsets = [0, 8], sizes = [16, 8], strides = [1, 1]} : vector<16x32xf32> to vector<16x8xf32>
    %182 = vector.shape_cast %181 : vector<16x8xf32> to vector<2x8x8xf32>
    %183 = vector.extract_strided_slice %156 {offsets = [0, 16], sizes = [16, 8], strides = [1, 1]} : vector<16x32xf32> to vector<16x8xf32>
    %184 = vector.shape_cast %183 : vector<16x8xf32> to vector<2x8x8xf32>
    %185 = vector.extract_strided_slice %156 {offsets = [0, 24], sizes = [16, 8], strides = [1, 1]} : vector<16x32xf32> to vector<16x8xf32>
    %186 = vector.shape_cast %185 : vector<16x8xf32> to vector<2x8x8xf32>
    %187 = tpu.concatenate %180, %182, %184, %186 in 0 : vector<2x8x8xf32>, vector<2x8x8xf32>, vector<2x8x8xf32>, vector<2x8x8xf32> -> vector<8x8x8xf32>
    "tpu.trace_start"() <{level = 10 : i32, message = "bqd,bkd->bqk"}> : () -> ()
    %cst_74 = arith.constant dense<0.000000e+00> : vector<8x8x8xf32>
    %188 = tpu.matmul %169, %178, %cst_74 {dimension_numbers = #tpu.dot_dimension_numbers<[2], [2], [1], [1], [0, 0, 0, 1, 1, 1], [0], [0]>} : vector<8x8x8xf32>, vector<8x8x8xf32>, vector<8x8x8xf32> -> vector<8x8x8xf32>
    "tpu.trace_stop"() : () -> ()
    %cst_75 = arith.constant 0.353553385 : f32
    %189 = vector.broadcast %cst_75 : f32 to vector<8x8x8xf32>
    %190 = arith.mulf %188, %189 : vector<8x8x8xf32>
    %cst_76 = arith.constant dense<0xFF800000> : vector<8x8xf32>
    %191 = vector.multi_reduction <maximumf>, %190, %cst_76 [2] : vector<8x8x8xf32> to vector<8x8xf32>
    %192 = vector.shape_cast %191 : vector<8x8xf32> to vector<8x8x1xf32>
    %193 = vector.broadcast %192 : vector<8x8x1xf32> to vector<8x8x8xf32>
    %194 = arith.subf %190, %193 : vector<8x8x8xf32>
    %195 = math.exp %194 : vector<8x8x8xf32>
    %cst_77 = arith.constant dense<0.000000e+00> : vector<8x8xf32>
    %196 = vector.multi_reduction <add>, %195, %cst_77 [2] : vector<8x8x8xf32> to vector<8x8xf32>
    %197 = vector.shape_cast %196 : vector<8x8xf32> to vector<8x8x1xf32>
    %198 = tpu.reciprocal %197 {approx = true} : vector<8x8x1xf32> -> vector<8x8x1xf32>
    %199 = vector.broadcast %198 : vector<8x8x1xf32> to vector<8x8x8xf32>
    %200 = arith.mulf %195, %199 : vector<8x8x8xf32>
    "tpu.trace_start"() <{level = 10 : i32, message = "bqk,bkd->bqd"}> : () -> ()
    %cst_78 = arith.constant dense<0.000000e+00> : vector<8x8x8xf32>
    %201 = tpu.matmul %200, %187, %cst_78 {dimension_numbers = #tpu.dot_dimension_numbers<[2], [1], [1], [2], [0, 0, 0, 1, 1, 2], [0], [0]>} : vector<8x8x8xf32>, vector<8x8x8xf32>, vector<8x8x8xf32> -> vector<8x8x8xf32>
    "tpu.trace_stop"() : () -> ()
    %202 = vector.extract_strided_slice %201 {offsets = [0, 0, 0], sizes = [2, 8, 8], strides = [1, 1, 1]} : vector<8x8x8xf32> to vector<2x8x8xf32>
    %203 = vector.shape_cast %202 : vector<2x8x8xf32> to vector<16x8xf32>
    %204 = vector.extract_strided_slice %201 {offsets = [2, 0, 0], sizes = [2, 8, 8], strides = [1, 1, 1]} : vector<8x8x8xf32> to vector<2x8x8xf32>
    %205 = vector.shape_cast %204 : vector<2x8x8xf32> to vector<16x8xf32>
    %206 = vector.extract_strided_slice %201 {offsets = [4, 0, 0], sizes = [2, 8, 8], strides = [1, 1, 1]} : vector<8x8x8xf32> to vector<2x8x8xf32>
    %207 = vector.shape_cast %206 : vector<2x8x8xf32> to vector<16x8xf32>
    %208 = vector.extract_strided_slice %201 {offsets = [6, 0, 0], sizes = [2, 8, 8], strides = [1, 1, 1]} : vector<8x8x8xf32> to vector<2x8x8xf32>
    %209 = vector.shape_cast %208 : vector<2x8x8xf32> to vector<16x8xf32>
    %210 = tpu.concatenate %203, %205, %207, %209 in 1 : vector<16x8xf32>, vector<16x8xf32>, vector<16x8xf32>, vector<16x8xf32> -> vector<16x32xf32>
    %cst_79 = arith.constant dense<0.000000e+00> : vector<16x32xf32>
    %211 = tpu.matmul %210, %158, %cst_79 {dimension_numbers = #tpu.dot_dimension_numbers<[1], [0], [0], [1], [0, 0, 1, 1], [], []>} : vector<16x32xf32>, vector<32x32xf32>, vector<16x32xf32> -> vector<16x32xf32>
    %212 = vector.broadcast %160 : vector<1x32xf32> to vector<16x32xf32>
    %213 = arith.addf %211, %212 : vector<16x32xf32>
    %214 = arith.addf %146, %213 : vector<16x32xf32>
    %c1_80 = arith.constant 1 : index
    %c0_81 = arith.constant 0 : index
    %c0_82 = arith.constant 0 : index
    %215 = vector.load %arg8[%c1_80, %c0_81, %c0_82] : memref<2x1x32xf32, #tpu.memory_space<vmem>>, vector<1x1x32xf32>
    %216 = vector.shape_cast %215 : vector<1x1x32xf32> to vector<1x32xf32>
    %c1_83 = arith.constant 1 : index
    %c0_84 = arith.constant 0 : index
    %c0_85 = arith.constant 0 : index
    %217 = vector.load %arg9[%c1_83, %c0_84, %c0_85] : memref<2x1x32xf32, #tpu.memory_space<vmem>>, vector<1x1x32xf32>
    %218 = vector.shape_cast %217 : vector<1x1x32xf32> to vector<1x32xf32>
    %cst_86 = arith.constant dense<0.000000e+00> : vector<16xf32>
    %219 = vector.multi_reduction <add>, %214, %cst_86 [1] : vector<16x32xf32> to vector<16xf32>
    %220 = vector.shape_cast %219 : vector<16xf32> to vector<16x1xf32>
    %cst_87 = arith.constant 3.200000e+01 : f32
    %221 = vector.broadcast %cst_87 : f32 to vector<16x1xf32>
    %222 = arith.divf %220, %221 : vector<16x1xf32>
    %223 = vector.broadcast %222 : vector<16x1xf32> to vector<16x32xf32>
    %224 = arith.subf %214, %223 : vector<16x32xf32>
    %225 = arith.mulf %224, %224 : vector<16x32xf32>
    %cst_88 = arith.constant dense<0.000000e+00> : vector<16xf32>
    %226 = vector.multi_reduction <add>, %225, %cst_88 [1] : vector<16x32xf32> to vector<16xf32>
    %227 = vector.shape_cast %226 : vector<16xf32> to vector<16x1xf32>
    %cst_89 = arith.constant 3.200000e+01 : f32
    %228 = vector.broadcast %cst_89 : f32 to vector<16x1xf32>
    %229 = arith.divf %227, %228 : vector<16x1xf32>
    %230 = vector.broadcast %222 : vector<16x1xf32> to vector<16x32xf32>
    %231 = arith.subf %214, %230 : vector<16x32xf32>
    %cst_90 = arith.constant 9.99999974E-6 : f32
    %232 = vector.broadcast %cst_90 : f32 to vector<16x1xf32>
    %233 = arith.addf %229, %232 : vector<16x1xf32>
    %234 = math.rsqrt %233 : vector<16x1xf32>
    %235 = vector.broadcast %234 : vector<16x1xf32> to vector<16x32xf32>
    %236 = arith.mulf %231, %235 : vector<16x32xf32>
    %237 = vector.broadcast %216 : vector<1x32xf32> to vector<16x32xf32>
    %238 = arith.mulf %236, %237 : vector<16x32xf32>
    %239 = vector.broadcast %218 : vector<1x32xf32> to vector<16x32xf32>
    %240 = arith.addf %238, %239 : vector<16x32xf32>
    %c1_91 = arith.constant 1 : index
    %c0_92 = arith.constant 0 : index
    %c0_93 = arith.constant 0 : index
    %241 = vector.load %arg10[%c1_91, %c0_92, %c0_93] : memref<2x32x64xf32, #tpu.memory_space<vmem>>, vector<1x32x64xf32>
    %242 = vector.shape_cast %241 : vector<1x32x64xf32> to vector<32x64xf32>
    %cst_94 = arith.constant dense<0.000000e+00> : vector<16x64xf32>
    %243 = tpu.matmul %240, %242, %cst_94 {dimension_numbers = #tpu.dot_dimension_numbers<[1], [0], [0], [1], [0, 0, 1, 1], [], []>} : vector<16x32xf32>, vector<32x64xf32>, vector<16x64xf32> -> vector<16x64xf32>
    %c1_95 = arith.constant 1 : index
    %c0_96 = arith.constant 0 : index
    %c0_97 = arith.constant 0 : index
    %244 = vector.load %arg11[%c1_95, %c0_96, %c0_97] : memref<2x1x64xf32, #tpu.memory_space<vmem>>, vector<1x1x64xf32>
    %245 = vector.shape_cast %244 : vector<1x1x64xf32> to vector<1x64xf32>
    %246 = vector.broadcast %245 : vector<1x64xf32> to vector<16x64xf32>
    %247 = arith.addf %243, %246 : vector<16x64xf32>
    %cst_98 = arith.constant 0.000000e+00 : f32
    %248 = vector.broadcast %cst_98 : f32 to vector<16x64xf32>
    %249 = arith.maximumf %247, %248 : vector<16x64xf32>
    %c1_99 = arith.constant 1 : index
    %c0_100 = arith.constant 0 : index
    %c0_101 = arith.constant 0 : index
    %250 = vector.load %arg12[%c1_99, %c0_100, %c0_101] : memref<2x64x32xf32, #tpu.memory_space<vmem>>, vector<1x64x32xf32>
    %251 = vector.shape_cast %250 : vector<1x64x32xf32> to vector<64x32xf32>
    %cst_102 = arith.constant dense<0.000000e+00> : vector<16x32xf32>
    %252 = tpu.matmul %249, %251, %cst_102 {dimension_numbers = #tpu.dot_dimension_numbers<[1], [0], [0], [1], [0, 0, 1, 1], [], []>} : vector<16x64xf32>, vector<64x32xf32>, vector<16x32xf32> -> vector<16x32xf32>
    %c1_103 = arith.constant 1 : index
    %c0_104 = arith.constant 0 : index
    %c0_105 = arith.constant 0 : index
    %253 = vector.load %arg13[%c1_103, %c0_104, %c0_105] : memref<2x1x32xf32, #tpu.memory_space<vmem>>, vector<1x1x32xf32>
    %254 = vector.shape_cast %253 : vector<1x1x32xf32> to vector<1x32xf32>
    %255 = vector.broadcast %254 : vector<1x32xf32> to vector<16x32xf32>
    %256 = arith.addf %252, %255 : vector<16x32xf32>
    %257 = arith.addf %240, %256 : vector<16x32xf32>
    %c1_106 = arith.constant 1 : index
    %c0_107 = arith.constant 0 : index
    %c0_108 = arith.constant 0 : index
    %258 = vector.load %arg14[%c1_106, %c0_107, %c0_108] : memref<2x1x32xf32, #tpu.memory_space<vmem>>, vector<1x1x32xf32>
    %259 = vector.shape_cast %258 : vector<1x1x32xf32> to vector<1x32xf32>
    %c1_109 = arith.constant 1 : index
    %c0_110 = arith.constant 0 : index
    %c0_111 = arith.constant 0 : index
    %260 = vector.load %arg15[%c1_109, %c0_110, %c0_111] : memref<2x1x32xf32, #tpu.memory_space<vmem>>, vector<1x1x32xf32>
    %261 = vector.shape_cast %260 : vector<1x1x32xf32> to vector<1x32xf32>
    %cst_112 = arith.constant dense<0.000000e+00> : vector<16xf32>
    %262 = vector.multi_reduction <add>, %257, %cst_112 [1] : vector<16x32xf32> to vector<16xf32>
    %263 = vector.shape_cast %262 : vector<16xf32> to vector<16x1xf32>
    %cst_113 = arith.constant 3.200000e+01 : f32
    %264 = vector.broadcast %cst_113 : f32 to vector<16x1xf32>
    %265 = arith.divf %263, %264 : vector<16x1xf32>
    %266 = vector.broadcast %265 : vector<16x1xf32> to vector<16x32xf32>
    %267 = arith.subf %257, %266 : vector<16x32xf32>
    %268 = arith.mulf %267, %267 : vector<16x32xf32>
    %cst_114 = arith.constant dense<0.000000e+00> : vector<16xf32>
    %269 = vector.multi_reduction <add>, %268, %cst_114 [1] : vector<16x32xf32> to vector<16xf32>
    %270 = vector.shape_cast %269 : vector<16xf32> to vector<16x1xf32>
    %cst_115 = arith.constant 3.200000e+01 : f32
    %271 = vector.broadcast %cst_115 : f32 to vector<16x1xf32>
    %272 = arith.divf %270, %271 : vector<16x1xf32>
    %273 = vector.broadcast %265 : vector<16x1xf32> to vector<16x32xf32>
    %274 = arith.subf %257, %273 : vector<16x32xf32>
    %cst_116 = arith.constant 9.99999974E-6 : f32
    %275 = vector.broadcast %cst_116 : f32 to vector<16x1xf32>
    %276 = arith.addf %272, %275 : vector<16x1xf32>
    %277 = math.rsqrt %276 : vector<16x1xf32>
    %278 = vector.broadcast %277 : vector<16x1xf32> to vector<16x32xf32>
    %279 = arith.mulf %274, %278 : vector<16x32xf32>
    %280 = vector.broadcast %259 : vector<1x32xf32> to vector<16x32xf32>
    %281 = arith.mulf %279, %280 : vector<16x32xf32>
    %282 = vector.broadcast %261 : vector<1x32xf32> to vector<16x32xf32>
    %283 = arith.addf %281, %282 : vector<16x32xf32>
    %c0_117 = arith.constant 0 : index
    %c0_118 = arith.constant 0 : index
    %284 = vector.load %arg16[%c0_117, %c0_118] : memref<16x32xf32, #tpu.memory_space<vmem>>, vector<16x32xf32>
    tpu.vector_store %arg16[%c0_117, %c0_118], %283 {strides = array<i32>} : memref<16x32xf32, #tpu.memory_space<vmem>>, vector<16x32xf32>,
    return
  }
}

module attributes {stable_mosaic.version = 11 : i64} {
  func.func @_decoder_stack_kernel(%arg0: memref<16x1xf32, #tpu.memory_space<vmem>>, %arg1: memref<1x32xf32, #tpu.memory_space<vmem>>, %arg2: memref<1x32xf32, #tpu.memory_space<vmem>>, %arg3: memref<16x32xf32, #tpu.memory_space<vmem>>, %arg4: memref<8x8xf32, #tpu.memory_space<vmem>>, %arg5: memref<8x8xf32, #tpu.memory_space<vmem>>, %arg6: memref<2x32x96xf32, #tpu.memory_space<vmem>>, %arg7: memref<2x1x96xf32, #tpu.memory_space<vmem>>, %arg8: memref<2x32x32xf32, #tpu.memory_space<vmem>>, %arg9: memref<2x1x32xf32, #tpu.memory_space<vmem>>, %arg10: memref<2x1x32xf32, #tpu.memory_space<vmem>>, %arg11: memref<2x1x32xf32, #tpu.memory_space<vmem>>, %arg12: memref<2x32x32xf32, #tpu.memory_space<vmem>>, %arg13: memref<2x1x32xf32, #tpu.memory_space<vmem>>, %arg14: memref<2x32x64xf32, #tpu.memory_space<vmem>>, %arg15: memref<2x1x64xf32, #tpu.memory_space<vmem>>, %arg16: memref<2x32x32xf32, #tpu.memory_space<vmem>>, %arg17: memref<2x1x32xf32, #tpu.memory_space<vmem>>, %arg18: memref<2x1x32xf32, #tpu.memory_space<vmem>>, %arg19: memref<2x1x32xf32, #tpu.memory_space<vmem>>, %arg20: memref<2x32x64xf32, #tpu.memory_space<vmem>>, %arg21: memref<2x1x64xf32, #tpu.memory_space<vmem>>, %arg22: memref<2x64x32xf32, #tpu.memory_space<vmem>>, %arg23: memref<2x1x32xf32, #tpu.memory_space<vmem>>, %arg24: memref<2x1x32xf32, #tpu.memory_space<vmem>>, %arg25: memref<2x1x32xf32, #tpu.memory_space<vmem>>, %arg26: memref<1x32xf32, #tpu.memory_space<vmem>>, %arg27: memref<1x1xf32, #tpu.memory_space<vmem>>, %arg28: memref<16x1xf32, #tpu.memory_space<vmem>>) attributes {dimension_semantics = [], scalar_prefetch = 0 : i64, scratch_operands = 0 : i64, tpu.core_type = #tpu.core_type<tc>} {
    %c0 = arith.constant 0 : index
    %c0_0 = arith.constant 0 : index
    %0 = vector.load %arg0[%c0, %c0_0] : memref<16x1xf32, #tpu.memory_space<vmem>>, vector<16x1xf32>
    %c0_1 = arith.constant 0 : index
    %c0_2 = arith.constant 0 : index
    %1 = vector.load %arg1[%c0_1, %c0_2] : memref<1x32xf32, #tpu.memory_space<vmem>>, vector<1x32xf32>
    %2 = vector.broadcast %0 : vector<16x1xf32> to vector<16x32xf32>
    %3 = vector.broadcast %1 : vector<1x32xf32> to vector<16x32xf32>
    %4 = arith.mulf %2, %3 : vector<16x32xf32>
    %c0_3 = arith.constant 0 : index
    %c0_4 = arith.constant 0 : index
    %5 = vector.load %arg2[%c0_3, %c0_4] : memref<1x32xf32, #tpu.memory_space<vmem>>, vector<1x32xf32>
    %6 = vector.broadcast %5 : vector<1x32xf32> to vector<16x32xf32>
    %7 = arith.addf %4, %6 : vector<16x32xf32>
    %c0_5 = arith.constant 0 : index
    %c0_6 = arith.constant 0 : index
    %8 = vector.load %arg3[%c0_5, %c0_6] : memref<16x32xf32, #tpu.memory_space<vmem>>, vector<16x32xf32>
    %c0_7 = arith.constant 0 : index
    %c0_8 = arith.constant 0 : index
    %9 = vector.load %arg4[%c0_7, %c0_8] : memref<8x8xf32, #tpu.memory_space<vmem>>, vector<8x8xf32>
    %c0_9 = arith.constant 0 : index
    %c0_10 = arith.constant 0 : index
    %c0_11 = arith.constant 0 : index
    %10 = vector.load %arg6[%c0_9, %c0_10, %c0_11] : memref<2x32x96xf32, #tpu.memory_space<vmem>>, vector<1x32x96xf32>
    %11 = vector.shape_cast %10 : vector<1x32x96xf32> to vector<32x96xf32>
    %cst = arith.constant dense<0.000000e+00> : vector<16x96xf32>
    %12 = tpu.matmul %7, %11, %cst {dimension_numbers = #tpu.dot_dimension_numbers<[1], [0], [0], [1], [0, 0, 1, 1], [], []>} : vector<16x32xf32>, vector<32x96xf32>, vector<16x96xf32> -> vector<16x96xf32>
    %c0_12 = arith.constant 0 : index
    %c0_13 = arith.constant 0 : index
    %c0_14 = arith.constant 0 : index
    %13 = vector.load %arg7[%c0_12, %c0_13, %c0_14] : memref<2x1x96xf32, #tpu.memory_space<vmem>>, vector<1x1x96xf32>
    %14 = vector.shape_cast %13 : vector<1x1x96xf32> to vector<1x96xf32>
    %15 = vector.broadcast %14 : vector<1x96xf32> to vector<16x96xf32>
    %16 = arith.addf %12, %15 : vector<16x96xf32>
    %17 = vector.extract_strided_slice %16 {offsets = [0, 0], sizes = [16, 32], strides = [1, 1]} : vector<16x96xf32> to vector<16x32xf32>
    %18 = vector.extract_strided_slice %16 {offsets = [0, 32], sizes = [16, 32], strides = [1, 1]} : vector<16x96xf32> to vector<16x32xf32>
    %19 = vector.extract_strided_slice %16 {offsets = [0, 64], sizes = [16, 32], strides = [1, 1]} : vector<16x96xf32> to vector<16x32xf32>
    %c0_15 = arith.constant 0 : index
    %c0_16 = arith.constant 0 : index
    %c0_17 = arith.constant 0 : index
    %20 = vector.load %arg8[%c0_15, %c0_16, %c0_17] : memref<2x32x32xf32, #tpu.memory_space<vmem>>, vector<1x32x32xf32>
    %21 = vector.shape_cast %20 : vector<1x32x32xf32> to vector<32x32xf32>
    %c0_18 = arith.constant 0 : index
    %c0_19 = arith.constant 0 : index
    %c0_20 = arith.constant 0 : index
    %22 = vector.load %arg9[%c0_18, %c0_19, %c0_20] : memref<2x1x32xf32, #tpu.memory_space<vmem>>, vector<1x1x32xf32>
    %23 = vector.shape_cast %22 : vector<1x1x32xf32> to vector<1x32xf32>
    %24 = vector.extract_strided_slice %17 {offsets = [0, 0], sizes = [16, 8], strides = [1, 1]} : vector<16x32xf32> to vector<16x8xf32>
    %25 = vector.shape_cast %24 : vector<16x8xf32> to vector<2x8x8xf32>
    %26 = vector.extract_strided_slice %17 {offsets = [0, 8], sizes = [16, 8], strides = [1, 1]} : vector<16x32xf32> to vector<16x8xf32>
    %27 = vector.shape_cast %26 : vector<16x8xf32> to vector<2x8x8xf32>
    %28 = vector.extract_strided_slice %17 {offsets = [0, 16], sizes = [16, 8], strides = [1, 1]} : vector<16x32xf32> to vector<16x8xf32>
    %29 = vector.shape_cast %28 : vector<16x8xf32> to vector<2x8x8xf32>
    %30 = vector.extract_strided_slice %17 {offsets = [0, 24], sizes = [16, 8], strides = [1, 1]} : vector<16x32xf32> to vector<16x8xf32>
    %31 = vector.shape_cast %30 : vector<16x8xf32> to vector<2x8x8xf32>
    %32 = tpu.concatenate %25, %27, %29, %31 in 0 : vector<2x8x8xf32>, vector<2x8x8xf32>, vector<2x8x8xf32>, vector<2x8x8xf32> -> vector<8x8x8xf32>
    %33 = vector.extract_strided_slice %18 {offsets = [0, 0], sizes = [16, 8], strides = [1, 1]} : vector<16x32xf32> to vector<16x8xf32>
    %34 = vector.shape_cast %33 : vector<16x8xf32> to vector<2x8x8xf32>
    %35 = vector.extract_strided_slice %18 {offsets = [0, 8], sizes = [16, 8], strides = [1, 1]} : vector<16x32xf32> to vector<16x8xf32>
    %36 = vector.shape_cast %35 : vector<16x8xf32> to vector<2x8x8xf32>
    %37 = vector.extract_strided_slice %18 {offsets = [0, 16], sizes = [16, 8], strides = [1, 1]} : vector<16x32xf32> to vector<16x8xf32>
    %38 = vector.shape_cast %37 : vector<16x8xf32> to vector<2x8x8xf32>
    %39 = vector.extract_strided_slice %18 {offsets = [0, 24], sizes = [16, 8], strides = [1, 1]} : vector<16x32xf32> to vector<16x8xf32>
    %40 = vector.shape_cast %39 : vector<16x8xf32> to vector<2x8x8xf32>
    %41 = tpu.concatenate %34, %36, %38, %40 in 0 : vector<2x8x8xf32>, vector<2x8x8xf32>, vector<2x8x8xf32>, vector<2x8x8xf32> -> vector<8x8x8xf32>
    %42 = vector.extract_strided_slice %19 {offsets = [0, 0], sizes = [16, 8], strides = [1, 1]} : vector<16x32xf32> to vector<16x8xf32>
    %43 = vector.shape_cast %42 : vector<16x8xf32> to vector<2x8x8xf32>
    %44 = vector.extract_strided_slice %19 {offsets = [0, 8], sizes = [16, 8], strides = [1, 1]} : vector<16x32xf32> to vector<16x8xf32>
    %45 = vector.shape_cast %44 : vector<16x8xf32> to vector<2x8x8xf32>
    %46 = vector.extract_strided_slice %19 {offsets = [0, 16], sizes = [16, 8], strides = [1, 1]} : vector<16x32xf32> to vector<16x8xf32>
    %47 = vector.shape_cast %46 : vector<16x8xf32> to vector<2x8x8xf32>
    %48 = vector.extract_strided_slice %19 {offsets = [0, 24], sizes = [16, 8], strides = [1, 1]} : vector<16x32xf32> to vector<16x8xf32>
    %49 = vector.shape_cast %48 : vector<16x8xf32> to vector<2x8x8xf32>
    %50 = tpu.concatenate %43, %45, %47, %49 in 0 : vector<2x8x8xf32>, vector<2x8x8xf32>, vector<2x8x8xf32>, vector<2x8x8xf32> -> vector<8x8x8xf32>
    "tpu.trace_start"() <{level = 10 : i32, message = "bqd,bkd->bqk"}> : () -> ()
    %cst_21 = arith.constant dense<0.000000e+00> : vector<8x8x8xf32>
    %51 = tpu.matmul %32, %41, %cst_21 {dimension_numbers = #tpu.dot_dimension_numbers<[2], [2], [1], [1], [0, 0, 0, 1, 1, 1], [0], [0]>} : vector<8x8x8xf32>, vector<8x8x8xf32>, vector<8x8x8xf32> -> vector<8x8x8xf32>
    "tpu.trace_stop"() : () -> ()
    %cst_22 = arith.constant 0.353553385 : f32
    %52 = vector.broadcast %cst_22 : f32 to vector<8x8x8xf32>
    %53 = arith.mulf %51, %52 : vector<8x8x8xf32>
    %54 = vector.shape_cast %9 : vector<8x8xf32> to vector<1x8x8xf32>
    %55 = vector.broadcast %54 : vector<1x8x8xf32> to vector<8x8x8xf32>
    %56 = arith.addf %53, %55 : vector<8x8x8xf32>
    %cst_23 = arith.constant dense<0xFF800000> : vector<8x8xf32>
    %57 = vector.multi_reduction <maximumf>, %56, %cst_23 [2] : vector<8x8x8xf32> to vector<8x8xf32>
    %58 = vector.shape_cast %57 : vector<8x8xf32> to vector<8x8x1xf32>
    %59 = vector.broadcast %58 : vector<8x8x1xf32> to vector<8x8x8xf32>
    %60 = arith.subf %56, %59 : vector<8x8x8xf32>
    %61 = math.exp %60 : vector<8x8x8xf32>
    %cst_24 = arith.constant dense<0.000000e+00> : vector<8x8xf32>
    %62 = vector.multi_reduction <add>, %61, %cst_24 [2] : vector<8x8x8xf32> to vector<8x8xf32>
    %63 = vector.shape_cast %62 : vector<8x8xf32> to vector<8x8x1xf32>
    %64 = tpu.reciprocal %63 {approx = true} : vector<8x8x1xf32> -> vector<8x8x1xf32>
    %65 = vector.broadcast %64 : vector<8x8x1xf32> to vector<8x8x8xf32>
    %66 = arith.mulf %61, %65 : vector<8x8x8xf32>
    "tpu.trace_start"() <{level = 10 : i32, message = "bqk,bkd->bqd"}> : () -> ()
    %cst_25 = arith.constant dense<0.000000e+00> : vector<8x8x8xf32>
    %67 = tpu.matmul %66, %50, %cst_25 {dimension_numbers = #tpu.dot_dimension_numbers<[2], [1], [1], [2], [0, 0, 0, 1, 1, 2], [0], [0]>} : vector<8x8x8xf32>, vector<8x8x8xf32>, vector<8x8x8xf32> -> vector<8x8x8xf32>
    "tpu.trace_stop"() : () -> ()
    %68 = vector.extract_strided_slice %67 {offsets = [0, 0, 0], sizes = [2, 8, 8], strides = [1, 1, 1]} : vector<8x8x8xf32> to vector<2x8x8xf32>
    %69 = vector.shape_cast %68 : vector<2x8x8xf32> to vector<16x8xf32>
    %70 = vector.extract_strided_slice %67 {offsets = [2, 0, 0], sizes = [2, 8, 8], strides = [1, 1, 1]} : vector<8x8x8xf32> to vector<2x8x8xf32>
    %71 = vector.shape_cast %70 : vector<2x8x8xf32> to vector<16x8xf32>
    %72 = vector.extract_strided_slice %67 {offsets = [4, 0, 0], sizes = [2, 8, 8], strides = [1, 1, 1]} : vector<8x8x8xf32> to vector<2x8x8xf32>
    %73 = vector.shape_cast %72 : vector<2x8x8xf32> to vector<16x8xf32>
    %74 = vector.extract_strided_slice %67 {offsets = [6, 0, 0], sizes = [2, 8, 8], strides = [1, 1, 1]} : vector<8x8x8xf32> to vector<2x8x8xf32>
    %75 = vector.shape_cast %74 : vector<2x8x8xf32> to vector<16x8xf32>
    %76 = tpu.concatenate %69, %71, %73, %75 in 1 : vector<16x8xf32>, vector<16x8xf32>, vector<16x8xf32>, vector<16x8xf32> -> vector<16x32xf32>
    %cst_26 = arith.constant dense<0.000000e+00> : vector<16x32xf32>
    %77 = tpu.matmul %76, %21, %cst_26 {dimension_numbers = #tpu.dot_dimension_numbers<[1], [0], [0], [1], [0, 0, 1, 1], [], []>} : vector<16x32xf32>, vector<32x32xf32>, vector<16x32xf32> -> vector<16x32xf32>
    %78 = vector.broadcast %23 : vector<1x32xf32> to vector<16x32xf32>
    %79 = arith.addf %77, %78 : vector<16x32xf32>
    %80 = arith.addf %7, %79 : vector<16x32xf32>
    %c0_27 = arith.constant 0 : index
    %c0_28 = arith.constant 0 : index
    %c0_29 = arith.constant 0 : index
    %81 = vector.load %arg10[%c0_27, %c0_28, %c0_29] : memref<2x1x32xf32, #tpu.memory_space<vmem>>, vector<1x1x32xf32>
    %82 = vector.shape_cast %81 : vector<1x1x32xf32> to vector<1x32xf32>
    %c0_30 = arith.constant 0 : index
    %c0_31 = arith.constant 0 : index
    %c0_32 = arith.constant 0 : index
    %83 = vector.load %arg11[%c0_30, %c0_31, %c0_32] : memref<2x1x32xf32, #tpu.memory_space<vmem>>, vector<1x1x32xf32>
    %84 = vector.shape_cast %83 : vector<1x1x32xf32> to vector<1x32xf32>
    %cst_33 = arith.constant dense<0.000000e+00> : vector<16xf32>
    %85 = vector.multi_reduction <add>, %80, %cst_33 [1] : vector<16x32xf32> to vector<16xf32>
    %86 = vector.shape_cast %85 : vector<16xf32> to vector<16x1xf32>
    %cst_34 = arith.constant 3.200000e+01 : f32
    %87 = vector.broadcast %cst_34 : f32 to vector<16x1xf32>
    %88 = arith.divf %86, %87 : vector<16x1xf32>
    %89 = vector.broadcast %88 : vector<16x1xf32> to vector<16x32xf32>
    %90 = arith.subf %80, %89 : vector<16x32xf32>
    %91 = arith.mulf %90, %90 : vector<16x32xf32>
    %cst_35 = arith.constant dense<0.000000e+00> : vector<16xf32>
    %92 = vector.multi_reduction <add>, %91, %cst_35 [1] : vector<16x32xf32> to vector<16xf32>
    %93 = vector.shape_cast %92 : vector<16xf32> to vector<16x1xf32>
    %cst_36 = arith.constant 3.200000e+01 : f32
    %94 = vector.broadcast %cst_36 : f32 to vector<16x1xf32>
    %95 = arith.divf %93, %94 : vector<16x1xf32>
    %96 = vector.broadcast %88 : vector<16x1xf32> to vector<16x32xf32>
    %97 = arith.subf %80, %96 : vector<16x32xf32>
    %cst_37 = arith.constant 9.99999974E-6 : f32
    %98 = vector.broadcast %cst_37 : f32 to vector<16x1xf32>
    %99 = arith.addf %95, %98 : vector<16x1xf32>
    %100 = math.rsqrt %99 : vector<16x1xf32>
    %101 = vector.broadcast %100 : vector<16x1xf32> to vector<16x32xf32>
    %102 = arith.mulf %97, %101 : vector<16x32xf32>
    %103 = vector.broadcast %82 : vector<1x32xf32> to vector<16x32xf32>
    %104 = arith.mulf %102, %103 : vector<16x32xf32>
    %105 = vector.broadcast %84 : vector<1x32xf32> to vector<16x32xf32>
    %106 = arith.addf %104, %105 : vector<16x32xf32>
    %c0_38 = arith.constant 0 : index
    %c0_39 = arith.constant 0 : index
    %c0_40 = arith.constant 0 : index
    %107 = vector.load %arg12[%c0_38, %c0_39, %c0_40] : memref<2x32x32xf32, #tpu.memory_space<vmem>>, vector<1x32x32xf32>
    %108 = vector.shape_cast %107 : vector<1x32x32xf32> to vector<32x32xf32>
    %cst_41 = arith.constant dense<0.000000e+00> : vector<16x32xf32>
    %109 = tpu.matmul %106, %108, %cst_41 {dimension_numbers = #tpu.dot_dimension_numbers<[1], [0], [0], [1], [0, 0, 1, 1], [], []>} : vector<16x32xf32>, vector<32x32xf32>, vector<16x32xf32> -> vector<16x32xf32>
    %c0_42 = arith.constant 0 : index
    %c0_43 = arith.constant 0 : index
    %c0_44 = arith.constant 0 : index
    %110 = vector.load %arg13[%c0_42, %c0_43, %c0_44] : memref<2x1x32xf32, #tpu.memory_space<vmem>>, vector<1x1x32xf32>
    %111 = vector.shape_cast %110 : vector<1x1x32xf32> to vector<1x32xf32>
    %112 = vector.broadcast %111 : vector<1x32xf32> to vector<16x32xf32>
    %113 = arith.addf %109, %112 : vector<16x32xf32>
    %c0_45 = arith.constant 0 : index
    %c0_46 = arith.constant 0 : index
    %c0_47 = arith.constant 0 : index
    %114 = vector.load %arg14[%c0_45, %c0_46, %c0_47] : memref<2x32x64xf32, #tpu.memory_space<vmem>>, vector<1x32x64xf32>
    %115 = vector.shape_cast %114 : vector<1x32x64xf32> to vector<32x64xf32>
    %cst_48 = arith.constant dense<0.000000e+00> : vector<16x64xf32>
    %116 = tpu.matmul %8, %115, %cst_48 {dimension_numbers = #tpu.dot_dimension_numbers<[1], [0], [0], [1], [0, 0, 1, 1], [], []>} : vector<16x32xf32>, vector<32x64xf32>, vector<16x64xf32> -> vector<16x64xf32>
    %c0_49 = arith.constant 0 : index
    %c0_50 = arith.constant 0 : index
    %c0_51 = arith.constant 0 : index
    %117 = vector.load %arg15[%c0_49, %c0_50, %c0_51] : memref<2x1x64xf32, #tpu.memory_space<vmem>>, vector<1x1x64xf32>
    %118 = vector.shape_cast %117 : vector<1x1x64xf32> to vector<1x64xf32>
    %119 = vector.broadcast %118 : vector<1x64xf32> to vector<16x64xf32>
    %120 = arith.addf %116, %119 : vector<16x64xf32>
    %121 = vector.extract_strided_slice %120 {offsets = [0, 0], sizes = [16, 32], strides = [1, 1]} : vector<16x64xf32> to vector<16x32xf32>
    %122 = vector.extract_strided_slice %120 {offsets = [0, 32], sizes = [16, 32], strides = [1, 1]} : vector<16x64xf32> to vector<16x32xf32>
    %c0_52 = arith.constant 0 : index
    %c0_53 = arith.constant 0 : index
    %c0_54 = arith.constant 0 : index
    %123 = vector.load %arg16[%c0_52, %c0_53, %c0_54] : memref<2x32x32xf32, #tpu.memory_space<vmem>>, vector<1x32x32xf32>
    %124 = vector.shape_cast %123 : vector<1x32x32xf32> to vector<32x32xf32>
    %c0_55 = arith.constant 0 : index
    %c0_56 = arith.constant 0 : index
    %c0_57 = arith.constant 0 : index
    %125 = vector.load %arg17[%c0_55, %c0_56, %c0_57] : memref<2x1x32xf32, #tpu.memory_space<vmem>>, vector<1x1x32xf32>
    %126 = vector.shape_cast %125 : vector<1x1x32xf32> to vector<1x32xf32>
    %127 = vector.extract_strided_slice %113 {offsets = [0, 0], sizes = [16, 8], strides = [1, 1]} : vector<16x32xf32> to vector<16x8xf32>
    %128 = vector.shape_cast %127 : vector<16x8xf32> to vector<2x8x8xf32>
    %129 = vector.extract_strided_slice %113 {offsets = [0, 8], sizes = [16, 8], strides = [1, 1]} : vector<16x32xf32> to vector<16x8xf32>
    %130 = vector.shape_cast %129 : vector<16x8xf32> to vector<2x8x8xf32>
    %131 = vector.extract_strided_slice %113 {offsets = [0, 16], sizes = [16, 8], strides = [1, 1]} : vector<16x32xf32> to vector<16x8xf32>
    %132 = vector.shape_cast %131 : vector<16x8xf32> to vector<2x8x8xf32>
    %133 = vector.extract_strided_slice %113 {offsets = [0, 24], sizes = [16, 8], strides = [1, 1]} : vector<16x32xf32> to vector<16x8xf32>
    %134 = vector.shape_cast %133 : vector<16x8xf32> to vector<2x8x8xf32>
    %135 = tpu.concatenate %128, %130, %132, %134 in 0 : vector<2x8x8xf32>, vector<2x8x8xf32>, vector<2x8x8xf32>, vector<2x8x8xf32> -> vector<8x8x8xf32>
    %136 = vector.extract_strided_slice %121 {offsets = [0, 0], sizes = [16, 8], strides = [1, 1]} : vector<16x32xf32> to vector<16x8xf32>
    %137 = vector.shape_cast %136 : vector<16x8xf32> to vector<2x8x8xf32>
    %138 = vector.extract_strided_slice %121 {offsets = [0, 8], sizes = [16, 8], strides = [1, 1]} : vector<16x32xf32> to vector<16x8xf32>
    %139 = vector.shape_cast %138 : vector<16x8xf32> to vector<2x8x8xf32>
    %140 = vector.extract_strided_slice %121 {offsets = [0, 16], sizes = [16, 8], strides = [1, 1]} : vector<16x32xf32> to vector<16x8xf32>
    %141 = vector.shape_cast %140 : vector<16x8xf32> to vector<2x8x8xf32>
    %142 = vector.extract_strided_slice %121 {offsets = [0, 24], sizes = [16, 8], strides = [1, 1]} : vector<16x32xf32> to vector<16x8xf32>
    %143 = vector.shape_cast %142 : vector<16x8xf32> to vector<2x8x8xf32>
    %144 = tpu.concatenate %137, %139, %141, %143 in 0 : vector<2x8x8xf32>, vector<2x8x8xf32>, vector<2x8x8xf32>, vector<2x8x8xf32> -> vector<8x8x8xf32>
    %145 = vector.extract_strided_slice %122 {offsets = [0, 0], sizes = [16, 8], strides = [1, 1]} : vector<16x32xf32> to vector<16x8xf32>
    %146 = vector.shape_cast %145 : vector<16x8xf32> to vector<2x8x8xf32>
    %147 = vector.extract_strided_slice %122 {offsets = [0, 8], sizes = [16, 8], strides = [1, 1]} : vector<16x32xf32> to vector<16x8xf32>
    %148 = vector.shape_cast %147 : vector<16x8xf32> to vector<2x8x8xf32>
    %149 = vector.extract_strided_slice %122 {offsets = [0, 16], sizes = [16, 8], strides = [1, 1]} : vector<16x32xf32> to vector<16x8xf32>
    %150 = vector.shape_cast %149 : vector<16x8xf32> to vector<2x8x8xf32>
    %151 = vector.extract_strided_slice %122 {offsets = [0, 24], sizes = [16, 8], strides = [1, 1]} : vector<16x32xf32> to vector<16x8xf32>
    %152 = vector.shape_cast %151 : vector<16x8xf32> to vector<2x8x8xf32>
    %153 = tpu.concatenate %146, %148, %150, %152 in 0 : vector<2x8x8xf32>, vector<2x8x8xf32>, vector<2x8x8xf32>, vector<2x8x8xf32> -> vector<8x8x8xf32>
    "tpu.trace_start"() <{level = 10 : i32, message = "bqd,bkd->bqk"}> : () -> ()
    %cst_58 = arith.constant dense<0.000000e+00> : vector<8x8x8xf32>
    %154 = tpu.matmul %135, %144, %cst_58 {dimension_numbers = #tpu.dot_dimension_numbers<[2], [2], [1], [1], [0, 0, 0, 1, 1, 1], [0], [0]>} : vector<8x8x8xf32>, vector<8x8x8xf32>, vector<8x8x8xf32> -> vector<8x8x8xf32>
    "tpu.trace_stop"() : () -> ()
    %cst_59 = arith.constant 0.353553385 : f32
    %155 = vector.broadcast %cst_59 : f32 to vector<8x8x8xf32>
    %156 = arith.mulf %154, %155 : vector<8x8x8xf32>
    %cst_60 = arith.constant dense<0xFF800000> : vector<8x8xf32>
    %157 = vector.multi_reduction <maximumf>, %156, %cst_60 [2] : vector<8x8x8xf32> to vector<8x8xf32>
    %158 = vector.shape_cast %157 : vector<8x8xf32> to vector<8x8x1xf32>
    %159 = vector.broadcast %158 : vector<8x8x1xf32> to vector<8x8x8xf32>
    %160 = arith.subf %156, %159 : vector<8x8x8xf32>
    %161 = math.exp %160 : vector<8x8x8xf32>
    %cst_61 = arith.constant dense<0.000000e+00> : vector<8x8xf32>
    %162 = vector.multi_reduction <add>, %161, %cst_61 [2] : vector<8x8x8xf32> to vector<8x8xf32>
    %163 = vector.shape_cast %162 : vector<8x8xf32> to vector<8x8x1xf32>
    %164 = tpu.reciprocal %163 {approx = true} : vector<8x8x1xf32> -> vector<8x8x1xf32>
    %165 = vector.broadcast %164 : vector<8x8x1xf32> to vector<8x8x8xf32>
    %166 = arith.mulf %161, %165 : vector<8x8x8xf32>
    "tpu.trace_start"() <{level = 10 : i32, message = "bqk,bkd->bqd"}> : () -> ()
    %cst_62 = arith.constant dense<0.000000e+00> : vector<8x8x8xf32>
    %167 = tpu.matmul %166, %153, %cst_62 {dimension_numbers = #tpu.dot_dimension_numbers<[2], [1], [1], [2], [0, 0, 0, 1, 1, 2], [0], [0]>} : vector<8x8x8xf32>, vector<8x8x8xf32>, vector<8x8x8xf32> -> vector<8x8x8xf32>
    "tpu.trace_stop"() : () -> ()
    %168 = vector.extract_strided_slice %167 {offsets = [0, 0, 0], sizes = [2, 8, 8], strides = [1, 1, 1]} : vector<8x8x8xf32> to vector<2x8x8xf32>
    %169 = vector.shape_cast %168 : vector<2x8x8xf32> to vector<16x8xf32>
    %170 = vector.extract_strided_slice %167 {offsets = [2, 0, 0], sizes = [2, 8, 8], strides = [1, 1, 1]} : vector<8x8x8xf32> to vector<2x8x8xf32>
    %171 = vector.shape_cast %170 : vector<2x8x8xf32> to vector<16x8xf32>
    %172 = vector.extract_strided_slice %167 {offsets = [4, 0, 0], sizes = [2, 8, 8], strides = [1, 1, 1]} : vector<8x8x8xf32> to vector<2x8x8xf32>
    %173 = vector.shape_cast %172 : vector<2x8x8xf32> to vector<16x8xf32>
    %174 = vector.extract_strided_slice %167 {offsets = [6, 0, 0], sizes = [2, 8, 8], strides = [1, 1, 1]} : vector<8x8x8xf32> to vector<2x8x8xf32>
    %175 = vector.shape_cast %174 : vector<2x8x8xf32> to vector<16x8xf32>
    %176 = tpu.concatenate %169, %171, %173, %175 in 1 : vector<16x8xf32>, vector<16x8xf32>, vector<16x8xf32>, vector<16x8xf32> -> vector<16x32xf32>
    %cst_63 = arith.constant dense<0.000000e+00> : vector<16x32xf32>
    %177 = tpu.matmul %176, %124, %cst_63 {dimension_numbers = #tpu.dot_dimension_numbers<[1], [0], [0], [1], [0, 0, 1, 1], [], []>} : vector<16x32xf32>, vector<32x32xf32>, vector<16x32xf32> -> vector<16x32xf32>
    %178 = vector.broadcast %126 : vector<1x32xf32> to vector<16x32xf32>
    %179 = arith.addf %177, %178 : vector<16x32xf32>
    %180 = arith.addf %106, %179 : vector<16x32xf32>
    %c0_64 = arith.constant 0 : index
    %c0_65 = arith.constant 0 : index
    %c0_66 = arith.constant 0 : index
    %181 = vector.load %arg18[%c0_64, %c0_65, %c0_66] : memref<2x1x32xf32, #tpu.memory_space<vmem>>, vector<1x1x32xf32>
    %182 = vector.shape_cast %181 : vector<1x1x32xf32> to vector<1x32xf32>
    %c0_67 = arith.constant 0 : index
    %c0_68 = arith.constant 0 : index
    %c0_69 = arith.constant 0 : index
    %183 = vector.load %arg19[%c0_67, %c0_68, %c0_69] : memref<2x1x32xf32, #tpu.memory_space<vmem>>, vector<1x1x32xf32>
    %184 = vector.shape_cast %183 : vector<1x1x32xf32> to vector<1x32xf32>
    %cst_70 = arith.constant dense<0.000000e+00> : vector<16xf32>
    %185 = vector.multi_reduction <add>, %180, %cst_70 [1] : vector<16x32xf32> to vector<16xf32>
    %186 = vector.shape_cast %185 : vector<16xf32> to vector<16x1xf32>
    %cst_71 = arith.constant 3.200000e+01 : f32
    %187 = vector.broadcast %cst_71 : f32 to vector<16x1xf32>
    %188 = arith.divf %186, %187 : vector<16x1xf32>
    %189 = vector.broadcast %188 : vector<16x1xf32> to vector<16x32xf32>
    %190 = arith.subf %180, %189 : vector<16x32xf32>
    %191 = arith.mulf %190, %190 : vector<16x32xf32>
    %cst_72 = arith.constant dense<0.000000e+00> : vector<16xf32>
    %192 = vector.multi_reduction <add>, %191, %cst_72 [1] : vector<16x32xf32> to vector<16xf32>
    %193 = vector.shape_cast %192 : vector<16xf32> to vector<16x1xf32>
    %cst_73 = arith.constant 3.200000e+01 : f32
    %194 = vector.broadcast %cst_73 : f32 to vector<16x1xf32>
    %195 = arith.divf %193, %194 : vector<16x1xf32>
    %196 = vector.broadcast %188 : vector<16x1xf32> to vector<16x32xf32>
    %197 = arith.subf %180, %196 : vector<16x32xf32>
    %cst_74 = arith.constant 9.99999974E-6 : f32
    %198 = vector.broadcast %cst_74 : f32 to vector<16x1xf32>
    %199 = arith.addf %195, %198 : vector<16x1xf32>
    %200 = math.rsqrt %199 : vector<16x1xf32>
    %201 = vector.broadcast %200 : vector<16x1xf32> to vector<16x32xf32>
    %202 = arith.mulf %197, %201 : vector<16x32xf32>
    %203 = vector.broadcast %182 : vector<1x32xf32> to vector<16x32xf32>
    %204 = arith.mulf %202, %203 : vector<16x32xf32>
    %205 = vector.broadcast %184 : vector<1x32xf32> to vector<16x32xf32>
    %206 = arith.addf %204, %205 : vector<16x32xf32>
    %c0_75 = arith.constant 0 : index
    %c0_76 = arith.constant 0 : index
    %c0_77 = arith.constant 0 : index
    %207 = vector.load %arg20[%c0_75, %c0_76, %c0_77] : memref<2x32x64xf32, #tpu.memory_space<vmem>>, vector<1x32x64xf32>
    %208 = vector.shape_cast %207 : vector<1x32x64xf32> to vector<32x64xf32>
    %cst_78 = arith.constant dense<0.000000e+00> : vector<16x64xf32>
    %209 = tpu.matmul %206, %208, %cst_78 {dimension_numbers = #tpu.dot_dimension_numbers<[1], [0], [0], [1], [0, 0, 1, 1], [], []>} : vector<16x32xf32>, vector<32x64xf32>, vector<16x64xf32> -> vector<16x64xf32>
    %c0_79 = arith.constant 0 : index
    %c0_80 = arith.constant 0 : index
    %c0_81 = arith.constant 0 : index
    %210 = vector.load %arg21[%c0_79, %c0_80, %c0_81] : memref<2x1x64xf32, #tpu.memory_space<vmem>>, vector<1x1x64xf32>
    %211 = vector.shape_cast %210 : vector<1x1x64xf32> to vector<1x64xf32>
    %212 = vector.broadcast %211 : vector<1x64xf32> to vector<16x64xf32>
    %213 = arith.addf %209, %212 : vector<16x64xf32>
    %cst_82 = arith.constant 0.000000e+00 : f32
    %214 = vector.broadcast %cst_82 : f32 to vector<16x64xf32>
    %215 = arith.maximumf %213, %214 : vector<16x64xf32>
    %c0_83 = arith.constant 0 : index
    %c0_84 = arith.constant 0 : index
    %c0_85 = arith.constant 0 : index
    %216 = vector.load %arg22[%c0_83, %c0_84, %c0_85] : memref<2x64x32xf32, #tpu.memory_space<vmem>>, vector<1x64x32xf32>
    %217 = vector.shape_cast %216 : vector<1x64x32xf32> to vector<64x32xf32>
    %cst_86 = arith.constant dense<0.000000e+00> : vector<16x32xf32>
    %218 = tpu.matmul %215, %217, %cst_86 {dimension_numbers = #tpu.dot_dimension_numbers<[1], [0], [0], [1], [0, 0, 1, 1], [], []>} : vector<16x64xf32>, vector<64x32xf32>, vector<16x32xf32> -> vector<16x32xf32>
    %c0_87 = arith.constant 0 : index
    %c0_88 = arith.constant 0 : index
    %c0_89 = arith.constant 0 : index
    %219 = vector.load %arg23[%c0_87, %c0_88, %c0_89] : memref<2x1x32xf32, #tpu.memory_space<vmem>>, vector<1x1x32xf32>
    %220 = vector.shape_cast %219 : vector<1x1x32xf32> to vector<1x32xf32>
    %221 = vector.broadcast %220 : vector<1x32xf32> to vector<16x32xf32>
    %222 = arith.addf %218, %221 : vector<16x32xf32>
    %223 = arith.addf %206, %222 : vector<16x32xf32>
    %c0_90 = arith.constant 0 : index
    %c0_91 = arith.constant 0 : index
    %c0_92 = arith.constant 0 : index
    %224 = vector.load %arg24[%c0_90, %c0_91, %c0_92] : memref<2x1x32xf32, #tpu.memory_space<vmem>>, vector<1x1x32xf32>
    %225 = vector.shape_cast %224 : vector<1x1x32xf32> to vector<1x32xf32>
    %c0_93 = arith.constant 0 : index
    %c0_94 = arith.constant 0 : index
    %c0_95 = arith.constant 0 : index
    %226 = vector.load %arg25[%c0_93, %c0_94, %c0_95] : memref<2x1x32xf32, #tpu.memory_space<vmem>>, vector<1x1x32xf32>
    %227 = vector.shape_cast %226 : vector<1x1x32xf32> to vector<1x32xf32>
    %cst_96 = arith.constant dense<0.000000e+00> : vector<16xf32>
    %228 = vector.multi_reduction <add>, %223, %cst_96 [1] : vector<16x32xf32> to vector<16xf32>
    %229 = vector.shape_cast %228 : vector<16xf32> to vector<16x1xf32>
    %cst_97 = arith.constant 3.200000e+01 : f32
    %230 = vector.broadcast %cst_97 : f32 to vector<16x1xf32>
    %231 = arith.divf %229, %230 : vector<16x1xf32>
    %232 = vector.broadcast %231 : vector<16x1xf32> to vector<16x32xf32>
    %233 = arith.subf %223, %232 : vector<16x32xf32>
    %234 = arith.mulf %233, %233 : vector<16x32xf32>
    %cst_98 = arith.constant dense<0.000000e+00> : vector<16xf32>
    %235 = vector.multi_reduction <add>, %234, %cst_98 [1] : vector<16x32xf32> to vector<16xf32>
    %236 = vector.shape_cast %235 : vector<16xf32> to vector<16x1xf32>
    %cst_99 = arith.constant 3.200000e+01 : f32
    %237 = vector.broadcast %cst_99 : f32 to vector<16x1xf32>
    %238 = arith.divf %236, %237 : vector<16x1xf32>
    %239 = vector.broadcast %231 : vector<16x1xf32> to vector<16x32xf32>
    %240 = arith.subf %223, %239 : vector<16x32xf32>
    %cst_100 = arith.constant 9.99999974E-6 : f32
    %241 = vector.broadcast %cst_100 : f32 to vector<16x1xf32>
    %242 = arith.addf %238, %241 : vector<16x1xf32>
    %243 = math.rsqrt %242 : vector<16x1xf32>
    %244 = vector.broadcast %243 : vector<16x1xf32> to vector<16x32xf32>
    %245 = arith.mulf %240, %244 : vector<16x32xf32>
    %246 = vector.broadcast %225 : vector<1x32xf32> to vector<16x32xf32>
    %247 = arith.mulf %245, %246 : vector<16x32xf32>
    %248 = vector.broadcast %227 : vector<1x32xf32> to vector<16x32xf32>
    %249 = arith.addf %247, %248 : vector<16x32xf32>
    %c1 = arith.constant 1 : index
    %c0_101 = arith.constant 0 : index
    %c0_102 = arith.constant 0 : index
    %250 = vector.load %arg6[%c1, %c0_101, %c0_102] : memref<2x32x96xf32, #tpu.memory_space<vmem>>, vector<1x32x96xf32>
    %251 = vector.shape_cast %250 : vector<1x32x96xf32> to vector<32x96xf32>
    %cst_103 = arith.constant dense<0.000000e+00> : vector<16x96xf32>
    %252 = tpu.matmul %249, %251, %cst_103 {dimension_numbers = #tpu.dot_dimension_numbers<[1], [0], [0], [1], [0, 0, 1, 1], [], []>} : vector<16x32xf32>, vector<32x96xf32>, vector<16x96xf32> -> vector<16x96xf32>
    %c1_104 = arith.constant 1 : index
    %c0_105 = arith.constant 0 : index
    %c0_106 = arith.constant 0 : index
    %253 = vector.load %arg7[%c1_104, %c0_105, %c0_106] : memref<2x1x96xf32, #tpu.memory_space<vmem>>, vector<1x1x96xf32>
    %254 = vector.shape_cast %253 : vector<1x1x96xf32> to vector<1x96xf32>
    %255 = vector.broadcast %254 : vector<1x96xf32> to vector<16x96xf32>
    %256 = arith.addf %252, %255 : vector<16x96xf32>
    %257 = vector.extract_strided_slice %256 {offsets = [0, 0], sizes = [16, 32], strides = [1, 1]} : vector<16x96xf32> to vector<16x32xf32>
    %258 = vector.extract_strided_slice %256 {offsets = [0, 32], sizes = [16, 32], strides = [1, 1]} : vector<16x96xf32> to vector<16x32xf32>
    %259 = vector.extract_strided_slice %256 {offsets = [0, 64], sizes = [16, 32], strides = [1, 1]} : vector<16x96xf32> to vector<16x32xf32>
    %c1_107 = arith.constant 1 : index
    %c0_108 = arith.constant 0 : index
    %c0_109 = arith.constant 0 : index
    %260 = vector.load %arg8[%c1_107, %c0_108, %c0_109] : memref<2x32x32xf32, #tpu.memory_space<vmem>>, vector<1x32x32xf32>
    %261 = vector.shape_cast %260 : vector<1x32x32xf32> to vector<32x32xf32>
    %c1_110 = arith.constant 1 : index
    %c0_111 = arith.constant 0 : index
    %c0_112 = arith.constant 0 : index
    %262 = vector.load %arg9[%c1_110, %c0_111, %c0_112] : memref<2x1x32xf32, #tpu.memory_space<vmem>>, vector<1x1x32xf32>
    %263 = vector.shape_cast %262 : vector<1x1x32xf32> to vector<1x32xf32>
    %264 = vector.extract_strided_slice %257 {offsets = [0, 0], sizes = [16, 8], strides = [1, 1]} : vector<16x32xf32> to vector<16x8xf32>
    %265 = vector.shape_cast %264 : vector<16x8xf32> to vector<2x8x8xf32>
    %266 = vector.extract_strided_slice %257 {offsets = [0, 8], sizes = [16, 8], strides = [1, 1]} : vector<16x32xf32> to vector<16x8xf32>
    %267 = vector.shape_cast %266 : vector<16x8xf32> to vector<2x8x8xf32>
    %268 = vector.extract_strided_slice %257 {offsets = [0, 16], sizes = [16, 8], strides = [1, 1]} : vector<16x32xf32> to vector<16x8xf32>
    %269 = vector.shape_cast %268 : vector<16x8xf32> to vector<2x8x8xf32>
    %270 = vector.extract_strided_slice %257 {offsets = [0, 24], sizes = [16, 8], strides = [1, 1]} : vector<16x32xf32> to vector<16x8xf32>
    %271 = vector.shape_cast %270 : vector<16x8xf32> to vector<2x8x8xf32>
    %272 = tpu.concatenate %265, %267, %269, %271 in 0 : vector<2x8x8xf32>, vector<2x8x8xf32>, vector<2x8x8xf32>, vector<2x8x8xf32> -> vector<8x8x8xf32>
    %273 = vector.extract_strided_slice %258 {offsets = [0, 0], sizes = [16, 8], strides = [1, 1]} : vector<16x32xf32> to vector<16x8xf32>
    %274 = vector.shape_cast %273 : vector<16x8xf32> to vector<2x8x8xf32>
    %275 = vector.extract_strided_slice %258 {offsets = [0, 8], sizes = [16, 8], strides = [1, 1]} : vector<16x32xf32> to vector<16x8xf32>
    %276 = vector.shape_cast %275 : vector<16x8xf32> to vector<2x8x8xf32>
    %277 = vector.extract_strided_slice %258 {offsets = [0, 16], sizes = [16, 8], strides = [1, 1]} : vector<16x32xf32> to vector<16x8xf32>
    %278 = vector.shape_cast %277 : vector<16x8xf32> to vector<2x8x8xf32>
    %279 = vector.extract_strided_slice %258 {offsets = [0, 24], sizes = [16, 8], strides = [1, 1]} : vector<16x32xf32> to vector<16x8xf32>
    %280 = vector.shape_cast %279 : vector<16x8xf32> to vector<2x8x8xf32>
    %281 = tpu.concatenate %274, %276, %278, %280 in 0 : vector<2x8x8xf32>, vector<2x8x8xf32>, vector<2x8x8xf32>, vector<2x8x8xf32> -> vector<8x8x8xf32>
    %282 = vector.extract_strided_slice %259 {offsets = [0, 0], sizes = [16, 8], strides = [1, 1]} : vector<16x32xf32> to vector<16x8xf32>
    %283 = vector.shape_cast %282 : vector<16x8xf32> to vector<2x8x8xf32>
    %284 = vector.extract_strided_slice %259 {offsets = [0, 8], sizes = [16, 8], strides = [1, 1]} : vector<16x32xf32> to vector<16x8xf32>
    %285 = vector.shape_cast %284 : vector<16x8xf32> to vector<2x8x8xf32>
    %286 = vector.extract_strided_slice %259 {offsets = [0, 16], sizes = [16, 8], strides = [1, 1]} : vector<16x32xf32> to vector<16x8xf32>
    %287 = vector.shape_cast %286 : vector<16x8xf32> to vector<2x8x8xf32>
    %288 = vector.extract_strided_slice %259 {offsets = [0, 24], sizes = [16, 8], strides = [1, 1]} : vector<16x32xf32> to vector<16x8xf32>
    %289 = vector.shape_cast %288 : vector<16x8xf32> to vector<2x8x8xf32>
    %290 = tpu.concatenate %283, %285, %287, %289 in 0 : vector<2x8x8xf32>, vector<2x8x8xf32>, vector<2x8x8xf32>, vector<2x8x8xf32> -> vector<8x8x8xf32>
    "tpu.trace_start"() <{level = 10 : i32, message = "bqd,bkd->bqk"}> : () -> ()
    %cst_113 = arith.constant dense<0.000000e+00> : vector<8x8x8xf32>
    %291 = tpu.matmul %272, %281, %cst_113 {dimension_numbers = #tpu.dot_dimension_numbers<[2], [2], [1], [1], [0, 0, 0, 1, 1, 1], [0], [0]>} : vector<8x8x8xf32>, vector<8x8x8xf32>, vector<8x8x8xf32> -> vector<8x8x8xf32>
    "tpu.trace_stop"() : () -> ()
    %cst_114 = arith.constant 0.353553385 : f32
    %292 = vector.broadcast %cst_114 : f32 to vector<8x8x8xf32>
    %293 = arith.mulf %291, %292 : vector<8x8x8xf32>
    %294 = vector.shape_cast %9 : vector<8x8xf32> to vector<1x8x8xf32>
    %295 = vector.broadcast %294 : vector<1x8x8xf32> to vector<8x8x8xf32>
    %296 = arith.addf %293, %295 : vector<8x8x8xf32>
    %cst_115 = arith.constant dense<0xFF800000> : vector<8x8xf32>
    %297 = vector.multi_reduction <maximumf>, %296, %cst_115 [2] : vector<8x8x8xf32> to vector<8x8xf32>
    %298 = vector.shape_cast %297 : vector<8x8xf32> to vector<8x8x1xf32>
    %299 = vector.broadcast %298 : vector<8x8x1xf32> to vector<8x8x8xf32>
    %300 = arith.subf %296, %299 : vector<8x8x8xf32>
    %301 = math.exp %300 : vector<8x8x8xf32>
    %cst_116 = arith.constant dense<0.000000e+00> : vector<8x8xf32>
    %302 = vector.multi_reduction <add>, %301, %cst_116 [2] : vector<8x8x8xf32> to vector<8x8xf32>
    %303 = vector.shape_cast %302 : vector<8x8xf32> to vector<8x8x1xf32>
    %304 = tpu.reciprocal %303 {approx = true} : vector<8x8x1xf32> -> vector<8x8x1xf32>
    %305 = vector.broadcast %304 : vector<8x8x1xf32> to vector<8x8x8xf32>
    %306 = arith.mulf %301, %305 : vector<8x8x8xf32>
    "tpu.trace_start"() <{level = 10 : i32, message = "bqk,bkd->bqd"}> : () -> ()
    %cst_117 = arith.constant dense<0.000000e+00> : vector<8x8x8xf32>
    %307 = tpu.matmul %306, %290, %cst_117 {dimension_numbers = #tpu.dot_dimension_numbers<[2], [1], [1], [2], [0, 0, 0, 1, 1, 2], [0], [0]>} : vector<8x8x8xf32>, vector<8x8x8xf32>, vector<8x8x8xf32> -> vector<8x8x8xf32>
    "tpu.trace_stop"() : () -> ()
    %308 = vector.extract_strided_slice %307 {offsets = [0, 0, 0], sizes = [2, 8, 8], strides = [1, 1, 1]} : vector<8x8x8xf32> to vector<2x8x8xf32>
    %309 = vector.shape_cast %308 : vector<2x8x8xf32> to vector<16x8xf32>
    %310 = vector.extract_strided_slice %307 {offsets = [2, 0, 0], sizes = [2, 8, 8], strides = [1, 1, 1]} : vector<8x8x8xf32> to vector<2x8x8xf32>
    %311 = vector.shape_cast %310 : vector<2x8x8xf32> to vector<16x8xf32>
    %312 = vector.extract_strided_slice %307 {offsets = [4, 0, 0], sizes = [2, 8, 8], strides = [1, 1, 1]} : vector<8x8x8xf32> to vector<2x8x8xf32>
    %313 = vector.shape_cast %312 : vector<2x8x8xf32> to vector<16x8xf32>
    %314 = vector.extract_strided_slice %307 {offsets = [6, 0, 0], sizes = [2, 8, 8], strides = [1, 1, 1]} : vector<8x8x8xf32> to vector<2x8x8xf32>
    %315 = vector.shape_cast %314 : vector<2x8x8xf32> to vector<16x8xf32>
    %316 = tpu.concatenate %309, %311, %313, %315 in 1 : vector<16x8xf32>, vector<16x8xf32>, vector<16x8xf32>, vector<16x8xf32> -> vector<16x32xf32>
    %cst_118 = arith.constant dense<0.000000e+00> : vector<16x32xf32>
    %317 = tpu.matmul %316, %261, %cst_118 {dimension_numbers = #tpu.dot_dimension_numbers<[1], [0], [0], [1], [0, 0, 1, 1], [], []>} : vector<16x32xf32>, vector<32x32xf32>, vector<16x32xf32> -> vector<16x32xf32>
    %318 = vector.broadcast %263 : vector<1x32xf32> to vector<16x32xf32>
    %319 = arith.addf %317, %318 : vector<16x32xf32>
    %320 = arith.addf %249, %319 : vector<16x32xf32>
    %c1_119 = arith.constant 1 : index
    %c0_120 = arith.constant 0 : index
    %c0_121 = arith.constant 0 : index
    %321 = vector.load %arg10[%c1_119, %c0_120, %c0_121] : memref<2x1x32xf32, #tpu.memory_space<vmem>>, vector<1x1x32xf32>
    %322 = vector.shape_cast %321 : vector<1x1x32xf32> to vector<1x32xf32>
    %c1_122 = arith.constant 1 : index
    %c0_123 = arith.constant 0 : index
    %c0_124 = arith.constant 0 : index
    %323 = vector.load %arg11[%c1_122, %c0_123, %c0_124] : memref<2x1x32xf32, #tpu.memory_space<vmem>>, vector<1x1x32xf32>
    %324 = vector.shape_cast %323 : vector<1x1x32xf32> to vector<1x32xf32>
    %cst_125 = arith.constant dense<0.000000e+00> : vector<16xf32>
    %325 = vector.multi_reduction <add>, %320, %cst_125 [1] : vector<16x32xf32> to vector<16xf32>
    %326 = vector.shape_cast %325 : vector<16xf32> to vector<16x1xf32>
    %cst_126 = arith.constant 3.200000e+01 : f32
    %327 = vector.broadcast %cst_126 : f32 to vector<16x1xf32>
    %328 = arith.divf %326, %327 : vector<16x1xf32>
    %329 = vector.broadcast %328 : vector<16x1xf32> to vector<16x32xf32>
    %330 = arith.subf %320, %329 : vector<16x32xf32>
    %331 = arith.mulf %330, %330 : vector<16x32xf32>
    %cst_127 = arith.constant dense<0.000000e+00> : vector<16xf32>
    %332 = vector.multi_reduction <add>, %331, %cst_127 [1] : vector<16x32xf32> to vector<16xf32>
    %333 = vector.shape_cast %332 : vector<16xf32> to vector<16x1xf32>
    %cst_128 = arith.constant 3.200000e+01 : f32
    %334 = vector.broadcast %cst_128 : f32 to vector<16x1xf32>
    %335 = arith.divf %333, %334 : vector<16x1xf32>
    %336 = vector.broadcast %328 : vector<16x1xf32> to vector<16x32xf32>
    %337 = arith.subf %320, %336 : vector<16x32xf32>
    %cst_129 = arith.constant 9.99999974E-6 : f32
    %338 = vector.broadcast %cst_129 : f32 to vector<16x1xf32>
    %339 = arith.addf %335, %338 : vector<16x1xf32>
    %340 = math.rsqrt %339 : vector<16x1xf32>
    %341 = vector.broadcast %340 : vector<16x1xf32> to vector<16x32xf32>
    %342 = arith.mulf %337, %341 : vector<16x32xf32>
    %343 = vector.broadcast %322 : vector<1x32xf32> to vector<16x32xf32>
    %344 = arith.mulf %342, %343 : vector<16x32xf32>
    %345 = vector.broadcast %324 : vector<1x32xf32> to vector<16x32xf32>
    %346 = arith.addf %344, %345 : vector<16x32xf32>
    %c1_130 = arith.constant 1 : index
    %c0_131 = arith.constant 0 : index
    %c0_132 = arith.constant 0 : index
    %347 = vector.load %arg12[%c1_130, %c0_131, %c0_132] : memref<2x32x32xf32, #tpu.memory_space<vmem>>, vector<1x32x32xf32>
    %348 = vector.shape_cast %347 : vector<1x32x32xf32> to vector<32x32xf32>
    %cst_133 = arith.constant dense<0.000000e+00> : vector<16x32xf32>
    %349 = tpu.matmul %346, %348, %cst_133 {dimension_numbers = #tpu.dot_dimension_numbers<[1], [0], [0], [1], [0, 0, 1, 1], [], []>} : vector<16x32xf32>, vector<32x32xf32>, vector<16x32xf32> -> vector<16x32xf32>
    %c1_134 = arith.constant 1 : index
    %c0_135 = arith.constant 0 : index
    %c0_136 = arith.constant 0 : index
    %350 = vector.load %arg13[%c1_134, %c0_135, %c0_136] : memref<2x1x32xf32, #tpu.memory_space<vmem>>, vector<1x1x32xf32>
    %351 = vector.shape_cast %350 : vector<1x1x32xf32> to vector<1x32xf32>
    %352 = vector.broadcast %351 : vector<1x32xf32> to vector<16x32xf32>
    %353 = arith.addf %349, %352 : vector<16x32xf32>
    %c1_137 = arith.constant 1 : index
    %c0_138 = arith.constant 0 : index
    %c0_139 = arith.constant 0 : index
    %354 = vector.load %arg14[%c1_137, %c0_138, %c0_139] : memref<2x32x64xf32, #tpu.memory_space<vmem>>, vector<1x32x64xf32>
    %355 = vector.shape_cast %354 : vector<1x32x64xf32> to vector<32x64xf32>
    %cst_140 = arith.constant dense<0.000000e+00> : vector<16x64xf32>
    %356 = tpu.matmul %8, %355, %cst_140 {dimension_numbers = #tpu.dot_dimension_numbers<[1], [0], [0], [1], [0, 0, 1, 1], [], []>} : vector<16x32xf32>, vector<32x64xf32>, vector<16x64xf32> -> vector<16x64xf32>
    %c1_141 = arith.constant 1 : index
    %c0_142 = arith.constant 0 : index
    %c0_143 = arith.constant 0 : index
    %357 = vector.load %arg15[%c1_141, %c0_142, %c0_143] : memref<2x1x64xf32, #tpu.memory_space<vmem>>, vector<1x1x64xf32>
    %358 = vector.shape_cast %357 : vector<1x1x64xf32> to vector<1x64xf32>
    %359 = vector.broadcast %358 : vector<1x64xf32> to vector<16x64xf32>
    %360 = arith.addf %356, %359 : vector<16x64xf32>
    %361 = vector.extract_strided_slice %360 {offsets = [0, 0], sizes = [16, 32], strides = [1, 1]} : vector<16x64xf32> to vector<16x32xf32>
    %362 = vector.extract_strided_slice %360 {offsets = [0, 32], sizes = [16, 32], strides = [1, 1]} : vector<16x64xf32> to vector<16x32xf32>
    %c1_144 = arith.constant 1 : index
    %c0_145 = arith.constant 0 : index
    %c0_146 = arith.constant 0 : index
    %363 = vector.load %arg16[%c1_144, %c0_145, %c0_146] : memref<2x32x32xf32, #tpu.memory_space<vmem>>, vector<1x32x32xf32>
    %364 = vector.shape_cast %363 : vector<1x32x32xf32> to vector<32x32xf32>
    %c1_147 = arith.constant 1 : index
    %c0_148 = arith.constant 0 : index
    %c0_149 = arith.constant 0 : index
    %365 = vector.load %arg17[%c1_147, %c0_148, %c0_149] : memref<2x1x32xf32, #tpu.memory_space<vmem>>, vector<1x1x32xf32>
    %366 = vector.shape_cast %365 : vector<1x1x32xf32> to vector<1x32xf32>
    %367 = vector.extract_strided_slice %353 {offsets = [0, 0], sizes = [16, 8], strides = [1, 1]} : vector<16x32xf32> to vector<16x8xf32>
    %368 = vector.shape_cast %367 : vector<16x8xf32> to vector<2x8x8xf32>
    %369 = vector.extract_strided_slice %353 {offsets = [0, 8], sizes = [16, 8], strides = [1, 1]} : vector<16x32xf32> to vector<16x8xf32>
    %370 = vector.shape_cast %369 : vector<16x8xf32> to vector<2x8x8xf32>
    %371 = vector.extract_strided_slice %353 {offsets = [0, 16], sizes = [16, 8], strides = [1, 1]} : vector<16x32xf32> to vector<16x8xf32>
    %372 = vector.shape_cast %371 : vector<16x8xf32> to vector<2x8x8xf32>
    %373 = vector.extract_strided_slice %353 {offsets = [0, 24], sizes = [16, 8], strides = [1, 1]} : vector<16x32xf32> to vector<16x8xf32>
    %374 = vector.shape_cast %373 : vector<16x8xf32> to vector<2x8x8xf32>
    %375 = tpu.concatenate %368, %370, %372, %374 in 0 : vector<2x8x8xf32>, vector<2x8x8xf32>, vector<2x8x8xf32>, vector<2x8x8xf32> -> vector<8x8x8xf32>
    %376 = vector.extract_strided_slice %361 {offsets = [0, 0], sizes = [16, 8], strides = [1, 1]} : vector<16x32xf32> to vector<16x8xf32>
    %377 = vector.shape_cast %376 : vector<16x8xf32> to vector<2x8x8xf32>
    %378 = vector.extract_strided_slice %361 {offsets = [0, 8], sizes = [16, 8], strides = [1, 1]} : vector<16x32xf32> to vector<16x8xf32>
    %379 = vector.shape_cast %378 : vector<16x8xf32> to vector<2x8x8xf32>
    %380 = vector.extract_strided_slice %361 {offsets = [0, 16], sizes = [16, 8], strides = [1, 1]} : vector<16x32xf32> to vector<16x8xf32>
    %381 = vector.shape_cast %380 : vector<16x8xf32> to vector<2x8x8xf32>
    %382 = vector.extract_strided_slice %361 {offsets = [0, 24], sizes = [16, 8], strides = [1, 1]} : vector<16x32xf32> to vector<16x8xf32>
    %383 = vector.shape_cast %382 : vector<16x8xf32> to vector<2x8x8xf32>
    %384 = tpu.concatenate %377, %379, %381, %383 in 0 : vector<2x8x8xf32>, vector<2x8x8xf32>, vector<2x8x8xf32>, vector<2x8x8xf32> -> vector<8x8x8xf32>
    %385 = vector.extract_strided_slice %362 {offsets = [0, 0], sizes = [16, 8], strides = [1, 1]} : vector<16x32xf32> to vector<16x8xf32>
    %386 = vector.shape_cast %385 : vector<16x8xf32> to vector<2x8x8xf32>
    %387 = vector.extract_strided_slice %362 {offsets = [0, 8], sizes = [16, 8], strides = [1, 1]} : vector<16x32xf32> to vector<16x8xf32>
    %388 = vector.shape_cast %387 : vector<16x8xf32> to vector<2x8x8xf32>
    %389 = vector.extract_strided_slice %362 {offsets = [0, 16], sizes = [16, 8], strides = [1, 1]} : vector<16x32xf32> to vector<16x8xf32>
    %390 = vector.shape_cast %389 : vector<16x8xf32> to vector<2x8x8xf32>
    %391 = vector.extract_strided_slice %362 {offsets = [0, 24], sizes = [16, 8], strides = [1, 1]} : vector<16x32xf32> to vector<16x8xf32>
    %392 = vector.shape_cast %391 : vector<16x8xf32> to vector<2x8x8xf32>
    %393 = tpu.concatenate %386, %388, %390, %392 in 0 : vector<2x8x8xf32>, vector<2x8x8xf32>, vector<2x8x8xf32>, vector<2x8x8xf32> -> vector<8x8x8xf32>
    "tpu.trace_start"() <{level = 10 : i32, message = "bqd,bkd->bqk"}> : () -> ()
    %cst_150 = arith.constant dense<0.000000e+00> : vector<8x8x8xf32>
    %394 = tpu.matmul %375, %384, %cst_150 {dimension_numbers = #tpu.dot_dimension_numbers<[2], [2], [1], [1], [0, 0, 0, 1, 1, 1], [0], [0]>} : vector<8x8x8xf32>, vector<8x8x8xf32>, vector<8x8x8xf32> -> vector<8x8x8xf32>
    "tpu.trace_stop"() : () -> ()
    %cst_151 = arith.constant 0.353553385 : f32
    %395 = vector.broadcast %cst_151 : f32 to vector<8x8x8xf32>
    %396 = arith.mulf %394, %395 : vector<8x8x8xf32>
    %cst_152 = arith.constant dense<0xFF800000> : vector<8x8xf32>
    %397 = vector.multi_reduction <maximumf>, %396, %cst_152 [2] : vector<8x8x8xf32> to vector<8x8xf32>
    %398 = vector.shape_cast %397 : vector<8x8xf32> to vector<8x8x1xf32>
    %399 = vector.broadcast %398 : vector<8x8x1xf32> to vector<8x8x8xf32>
    %400 = arith.subf %396, %399 : vector<8x8x8xf32>
    %401 = math.exp %400 : vector<8x8x8xf32>
    %cst_153 = arith.constant dense<0.000000e+00> : vector<8x8xf32>
    %402 = vector.multi_reduction <add>, %401, %cst_153 [2] : vector<8x8x8xf32> to vector<8x8xf32>
    %403 = vector.shape_cast %402 : vector<8x8xf32> to vector<8x8x1xf32>
    %404 = tpu.reciprocal %403 {approx = true} : vector<8x8x1xf32> -> vector<8x8x1xf32>
    %405 = vector.broadcast %404 : vector<8x8x1xf32> to vector<8x8x8xf32>
    %406 = arith.mulf %401, %405 : vector<8x8x8xf32>
    "tpu.trace_start"() <{level = 10 : i32, message = "bqk,bkd->bqd"}> : () -> ()
    %cst_154 = arith.constant dense<0.000000e+00> : vector<8x8x8xf32>
    %407 = tpu.matmul %406, %393, %cst_154 {dimension_numbers = #tpu.dot_dimension_numbers<[2], [1], [1], [2], [0, 0, 0, 1, 1, 2], [0], [0]>} : vector<8x8x8xf32>, vector<8x8x8xf32>, vector<8x8x8xf32> -> vector<8x8x8xf32>
    "tpu.trace_stop"() : () -> ()
    %408 = vector.extract_strided_slice %407 {offsets = [0, 0, 0], sizes = [2, 8, 8], strides = [1, 1, 1]} : vector<8x8x8xf32> to vector<2x8x8xf32>
    %409 = vector.shape_cast %408 : vector<2x8x8xf32> to vector<16x8xf32>
    %410 = vector.extract_strided_slice %407 {offsets = [2, 0, 0], sizes = [2, 8, 8], strides = [1, 1, 1]} : vector<8x8x8xf32> to vector<2x8x8xf32>
    %411 = vector.shape_cast %410 : vector<2x8x8xf32> to vector<16x8xf32>
    %412 = vector.extract_strided_slice %407 {offsets = [4, 0, 0], sizes = [2, 8, 8], strides = [1, 1, 1]} : vector<8x8x8xf32> to vector<2x8x8xf32>
    %413 = vector.shape_cast %412 : vector<2x8x8xf32> to vector<16x8xf32>
    %414 = vector.extract_strided_slice %407 {offsets = [6, 0, 0], sizes = [2, 8, 8], strides = [1, 1, 1]} : vector<8x8x8xf32> to vector<2x8x8xf32>
    %415 = vector.shape_cast %414 : vector<2x8x8xf32> to vector<16x8xf32>
    %416 = tpu.concatenate %409, %411, %413, %415 in 1 : vector<16x8xf32>, vector<16x8xf32>, vector<16x8xf32>, vector<16x8xf32> -> vector<16x32xf32>
    %cst_155 = arith.constant dense<0.000000e+00> : vector<16x32xf32>
    %417 = tpu.matmul %416, %364, %cst_155 {dimension_numbers = #tpu.dot_dimension_numbers<[1], [0], [0], [1], [0, 0, 1, 1], [], []>} : vector<16x32xf32>, vector<32x32xf32>, vector<16x32xf32> -> vector<16x32xf32>
    %418 = vector.broadcast %366 : vector<1x32xf32> to vector<16x32xf32>
    %419 = arith.addf %417, %418 : vector<16x32xf32>
    %420 = arith.addf %346, %419 : vector<16x32xf32>
    %c1_156 = arith.constant 1 : index
    %c0_157 = arith.constant 0 : index
    %c0_158 = arith.constant 0 : index
    %421 = vector.load %arg18[%c1_156, %c0_157, %c0_158] : memref<2x1x32xf32, #tpu.memory_space<vmem>>, vector<1x1x32xf32>
    %422 = vector.shape_cast %421 : vector<1x1x32xf32> to vector<1x32xf32>
    %c1_159 = arith.constant 1 : index
    %c0_160 = arith.constant 0 : index
    %c0_161 = arith.constant 0 : index
    %423 = vector.load %arg19[%c1_159, %c0_160, %c0_161] : memref<2x1x32xf32, #tpu.memory_space<vmem>>, vector<1x1x32xf32>
    %424 = vector.shape_cast %423 : vector<1x1x32xf32> to vector<1x32xf32>
    %cst_162 = arith.constant dense<0.000000e+00> : vector<16xf32>
    %425 = vector.multi_reduction <add>, %420, %cst_162 [1] : vector<16x32xf32> to vector<16xf32>
    %426 = vector.shape_cast %425 : vector<16xf32> to vector<16x1xf32>
    %cst_163 = arith.constant 3.200000e+01 : f32
    %427 = vector.broadcast %cst_163 : f32 to vector<16x1xf32>
    %428 = arith.divf %426, %427 : vector<16x1xf32>
    %429 = vector.broadcast %428 : vector<16x1xf32> to vector<16x32xf32>
    %430 = arith.subf %420, %429 : vector<16x32xf32>
    %431 = arith.mulf %430, %430 : vector<16x32xf32>
    %cst_164 = arith.constant dense<0.000000e+00> : vector<16xf32>
    %432 = vector.multi_reduction <add>, %431, %cst_164 [1] : vector<16x32xf32> to vector<16xf32>
    %433 = vector.shape_cast %432 : vector<16xf32> to vector<16x1xf32>
    %cst_165 = arith.constant 3.200000e+01 : f32
    %434 = vector.broadcast %cst_165 : f32 to vector<16x1xf32>
    %435 = arith.divf %433, %434 : vector<16x1xf32>
    %436 = vector.broadcast %428 : vector<16x1xf32> to vector<16x32xf32>
    %437 = arith.subf %420, %436 : vector<16x32xf32>
    %cst_166 = arith.constant 9.99999974E-6 : f32
    %438 = vector.broadcast %cst_166 : f32 to vector<16x1xf32>
    %439 = arith.addf %435, %438 : vector<16x1xf32>
    %440 = math.rsqrt %439 : vector<16x1xf32>
    %441 = vector.broadcast %440 : vector<16x1xf32> to vector<16x32xf32>
    %442 = arith.mulf %437, %441 : vector<16x32xf32>
    %443 = vector.broadcast %422 : vector<1x32xf32> to vector<16x32xf32>
    %444 = arith.mulf %442, %443 : vector<16x32xf32>
    %445 = vector.broadcast %424 : vector<1x32xf32> to vector<16x32xf32>
    %446 = arith.addf %444, %445 : vector<16x32xf32>
    %c1_167 = arith.constant 1 : index
    %c0_168 = arith.constant 0 : index
    %c0_169 = arith.constant 0 : index
    %447 = vector.load %arg20[%c1_167, %c0_168, %c0_169] : memref<2x32x64xf32, #tpu.memory_space<vmem>>, vector<1x32x64xf32>
    %448 = vector.shape_cast %447 : vector<1x32x64xf32> to vector<32x64xf32>
    %cst_170 = arith.constant dense<0.000000e+00> : vector<16x64xf32>
    %449 = tpu.matmul %446, %448, %cst_170 {dimension_numbers = #tpu.dot_dimension_numbers<[1], [0], [0], [1], [0, 0, 1, 1], [], []>} : vector<16x32xf32>, vector<32x64xf32>, vector<16x64xf32> -> vector<16x64xf32>
    %c1_171 = arith.constant 1 : index
    %c0_172 = arith.constant 0 : index
    %c0_173 = arith.constant 0 : index
    %450 = vector.load %arg21[%c1_171, %c0_172, %c0_173] : memref<2x1x64xf32, #tpu.memory_space<vmem>>, vector<1x1x64xf32>
    %451 = vector.shape_cast %450 : vector<1x1x64xf32> to vector<1x64xf32>
    %452 = vector.broadcast %451 : vector<1x64xf32> to vector<16x64xf32>
    %453 = arith.addf %449, %452 : vector<16x64xf32>
    %cst_174 = arith.constant 0.000000e+00 : f32
    %454 = vector.broadcast %cst_174 : f32 to vector<16x64xf32>
    %455 = arith.maximumf %453, %454 : vector<16x64xf32>
    %c1_175 = arith.constant 1 : index
    %c0_176 = arith.constant 0 : index
    %c0_177 = arith.constant 0 : index
    %456 = vector.load %arg22[%c1_175, %c0_176, %c0_177] : memref<2x64x32xf32, #tpu.memory_space<vmem>>, vector<1x64x32xf32>
    %457 = vector.shape_cast %456 : vector<1x64x32xf32> to vector<64x32xf32>
    %cst_178 = arith.constant dense<0.000000e+00> : vector<16x32xf32>
    %458 = tpu.matmul %455, %457, %cst_178 {dimension_numbers = #tpu.dot_dimension_numbers<[1], [0], [0], [1], [0, 0, 1, 1], [], []>} : vector<16x64xf32>, vector<64x32xf32>, vector<16x32xf32> -> vector<16x32xf32>
    %c1_179 = arith.constant 1 : index
    %c0_180 = arith.constant 0 : index
    %c0_181 = arith.constant 0 : index
    %459 = vector.load %arg23[%c1_179, %c0_180, %c0_181] : memref<2x1x32xf32, #tpu.memory_space<vmem>>, vector<1x1x32xf32>
    %460 = vector.shape_cast %459 : vector<1x1x32xf32> to vector<1x32xf32>
    %461 = vector.broadcast %460 : vector<1x32xf32> to vector<16x32xf32>
    %462 = arith.addf %458, %461 : vector<16x32xf32>
    %463 = arith.addf %446, %462 : vector<16x32xf32>
    %c1_182 = arith.constant 1 : index
    %c0_183 = arith.constant 0 : index
    %c0_184 = arith.constant 0 : index
    %464 = vector.load %arg24[%c1_182, %c0_183, %c0_184] : memref<2x1x32xf32, #tpu.memory_space<vmem>>, vector<1x1x32xf32>
    %465 = vector.shape_cast %464 : vector<1x1x32xf32> to vector<1x32xf32>
    %c1_185 = arith.constant 1 : index
    %c0_186 = arith.constant 0 : index
    %c0_187 = arith.constant 0 : index
    %466 = vector.load %arg25[%c1_185, %c0_186, %c0_187] : memref<2x1x32xf32, #tpu.memory_space<vmem>>, vector<1x1x32xf32>
    %467 = vector.shape_cast %466 : vector<1x1x32xf32> to vector<1x32xf32>
    %cst_188 = arith.constant dense<0.000000e+00> : vector<16xf32>
    %468 = vector.multi_reduction <add>, %463, %cst_188 [1] : vector<16x32xf32> to vector<16xf32>
    %469 = vector.shape_cast %468 : vector<16xf32> to vector<16x1xf32>
    %cst_189 = arith.constant 3.200000e+01 : f32
    %470 = vector.broadcast %cst_189 : f32 to vector<16x1xf32>
    %471 = arith.divf %469, %470 : vector<16x1xf32>
    %472 = vector.broadcast %471 : vector<16x1xf32> to vector<16x32xf32>
    %473 = arith.subf %463, %472 : vector<16x32xf32>
    %474 = arith.mulf %473, %473 : vector<16x32xf32>
    %cst_190 = arith.constant dense<0.000000e+00> : vector<16xf32>
    %475 = vector.multi_reduction <add>, %474, %cst_190 [1] : vector<16x32xf32> to vector<16xf32>
    %476 = vector.shape_cast %475 : vector<16xf32> to vector<16x1xf32>
    %cst_191 = arith.constant 3.200000e+01 : f32
    %477 = vector.broadcast %cst_191 : f32 to vector<16x1xf32>
    %478 = arith.divf %476, %477 : vector<16x1xf32>
    %479 = vector.broadcast %471 : vector<16x1xf32> to vector<16x32xf32>
    %480 = arith.subf %463, %479 : vector<16x32xf32>
    %cst_192 = arith.constant 9.99999974E-6 : f32
    %481 = vector.broadcast %cst_192 : f32 to vector<16x1xf32>
    %482 = arith.addf %478, %481 : vector<16x1xf32>
    %483 = math.rsqrt %482 : vector<16x1xf32>
    %484 = vector.broadcast %483 : vector<16x1xf32> to vector<16x32xf32>
    %485 = arith.mulf %480, %484 : vector<16x32xf32>
    %486 = vector.broadcast %465 : vector<1x32xf32> to vector<16x32xf32>
    %487 = arith.mulf %485, %486 : vector<16x32xf32>
    %488 = vector.broadcast %467 : vector<1x32xf32> to vector<16x32xf32>
    %489 = arith.addf %487, %488 : vector<16x32xf32>
    %c0_193 = arith.constant 0 : index
    %c0_194 = arith.constant 0 : index
    %490 = vector.load %arg26[%c0_193, %c0_194] : memref<1x32xf32, #tpu.memory_space<vmem>>, vector<1x32xf32>
    %491 = vector.broadcast %490 : vector<1x32xf32> to vector<16x32xf32>
    %492 = arith.mulf %489, %491 : vector<16x32xf32>
    %cst_195 = arith.constant dense<0.000000e+00> : vector<16xf32>
    %493 = vector.multi_reduction <add>, %492, %cst_195 [1] : vector<16x32xf32> to vector<16xf32>
    %494 = vector.shape_cast %493 : vector<16xf32> to vector<16x1xf32>
    %c0_196 = arith.constant 0 : index
    %c0_197 = arith.constant 0 : index
    %495 = vector.load %arg27[%c0_196, %c0_197] : memref<1x1xf32, #tpu.memory_space<vmem>>, vector<1x1xf32>
    %496 = vector.broadcast %495 : vector<1x1xf32> to vector<16x1xf32>
    %497 = arith.addf %494, %496 : vector<16x1xf32>
    %c0_198 = arith.constant 0 : index
    %c0_199 = arith.constant 0 : index
    %498 = vector.load %arg28[%c0_198, %c0_199] : memref<16x1xf32, #tpu.memory_space<vmem>>, vector<16x1xf32>
    tpu.vector_store %arg28[%c0_198, %c0_199], %497 {strides = array<i32>} : memref<16x1xf32, #tpu.memory_space<vmem>>, vector<16x1xf32>,
    return
  }
}

</mosaic_0001>

<llo_original>
// kernel: forward.2
$region0: #{forward.2}
  #allocation0 [shape = 'u32[]', space=smem, size = 0x4, offset = 0x4, fixed_abs, tag = 'smem constant byte address 0x4 - core index']
  #allocation1 [shape = 'u32[144,128]{1,0:T(1,128)}', space=vmem, size = 0x12000, scoped, tag = 'internal scratch']
  %s0 = inlined_call_operand.vmem [shape: f32[16,1], index: 0, kind: input, shape index: {}]
  %s1 = inlined_call_operand.vmem [shape: f32[1,32], index: 1, kind: input, shape index: {}]
  %s2 = inlined_call_operand.vmem [shape: f32[1,32], index: 2, kind: input, shape index: {}]
  %s3 = inlined_call_operand.vmem [shape: f32[16,32], index: 3, kind: input, shape index: {}]
  %s4 = inlined_call_operand.vmem [shape: f32[2,32,96], index: 4, kind: input, shape index: {}]
  %s5 = inlined_call_operand.vmem [shape: f32[2,1,96], index: 5, kind: input, shape index: {}]
  %s6 = inlined_call_operand.vmem [shape: f32[2,32,32], index: 6, kind: input, shape index: {}]
  %s7 = inlined_call_operand.vmem [shape: f32[2,1,32], index: 7, kind: input, shape index: {}]
  %s8 = inlined_call_operand.vmem [shape: f32[2,1,32], index: 8, kind: input, shape index: {}]
  %s9 = inlined_call_operand.vmem [shape: f32[2,1,32], index: 9, kind: input, shape index: {}]
  %s10 = inlined_call_operand.vmem [shape: f32[2,32,64], index: 10, kind: input, shape index: {}]
  %s11 = inlined_call_operand.vmem [shape: f32[2,1,64], index: 11, kind: input, shape index: {}]
  %s12 = inlined_call_operand.vmem [shape: f32[2,64,32], index: 12, kind: input, shape index: {}]
  %s13 = inlined_call_operand.vmem [shape: f32[2,1,32], index: 13, kind: input, shape index: {}]
  %s14 = inlined_call_operand.vmem [shape: f32[2,1,32], index: 14, kind: input, shape index: {}]
  %s15 = inlined_call_operand.vmem [shape: f32[2,1,32], index: 15, kind: input, shape index: {}]
  %s16 = inlined_call_operand.vmem [shape: f32[16,32], index: 16, kind: output, shape index: {}]
  %s17 = sld [smem:[#allocation0]]
  $region74: #{forward.2} parent=0
    _
  %s19 = ssub.s32 1, %s17
  %s20 = scalar_select 0, %s19, %s17
  // Predicated region
  $region2: #{forward.2} parent=0 // pred_check
    _
  $region3: #{forward.2} parent=0 // pred_check_branch
    %22 = sbr.rel (0) target = $region5
  $region4: #{forward.2} parent=0 // pred_region
    _
  $region5: #{forward.2} parent=0 // pred_fallthru
    _
  // Predicated region
  $region6: #{forward.2} parent=0 // pred_check
    _
  $region7: #{forward.2} parent=0 // pred_check_branch
    %24 = sbr.rel (0) target = $region9
  $region8: #{forward.2} parent=0 // pred_region
    _
  $region9: #{forward.2} parent=0 // pred_fallthru
    _
  // Predicated region
  $region10: #{forward.2} parent=0 // pred_check
    _
  $region11: #{forward.2} parent=0 // pred_check_branch
    %26 = sbr.rel (0) target = $region13
  $region12: #{forward.2} parent=0 // pred_region
    _
  $region13: #{forward.2} parent=0 // pred_fallthru
    _
  // Predicated region
  $region14: #{forward.2} parent=0 // pred_check
    _
  $region15: #{forward.2} parent=0 // pred_check_branch
    %28 = sbr.rel (0) target = $region17
  $region16: #{forward.2} parent=0 // pred_region
    _
  $region17: #{forward.2} parent=0 // pred_fallthru
    _
  // Predicated region
  $region18: #{forward.2} parent=0 // pred_check
    _
  $region19: #{forward.2} parent=0 // pred_check_branch
    %30 = sbr.rel (0) target = $region21
  $region20: #{forward.2} parent=0 // pred_region
    _
  $region21: #{forward.2} parent=0 // pred_fallthru
    _
  // Predicated region
  $region22: #{forward.2} parent=0 // pred_check
    _
  $region23: #{forward.2} parent=0 // pred_check_branch
    %32 = sbr.rel (0) target = $region25
  $region24: #{forward.2} parent=0 // pred_region
    _
  $region25: #{forward.2} parent=0 // pred_fallthru
    _
  // Predicated region
  $region26: #{forward.2} parent=0 // pred_check
    _
  $region27: #{forward.2} parent=0 // pred_check_branch
    %34 = sbr.rel (0) target = $region29
  $region28: #{forward.2} parent=0 // pred_region
    _
  $region29: #{forward.2} parent=0 // pred_fallthru
    _
  // Predicated region
  $region30: #{forward.2} parent=0 // pred_check
    _
  $region31: #{forward.2} parent=0 // pred_check_branch
    %36 = sbr.rel (0) target = $region33
  $region32: #{forward.2} parent=0 // pred_region
    _
  $region33: #{forward.2} parent=0 // pred_fallthru
    _
  // Predicated region
  $region34: #{forward.2} parent=0 // pred_check
    _
  $region35: #{forward.2} parent=0 // pred_check_branch
    %38 = sbr.rel (0) target = $region37
  $region36: #{forward.2} parent=0 // pred_region
    _
  $region37: #{forward.2} parent=0 // pred_fallthru
    _
  // Predicated region
  $region38: #{forward.2} parent=0 // pred_check
    _
  $region39: #{forward.2} parent=0 // pred_check_branch
    %40 = sbr.rel (0) target = $region41
  $region40: #{forward.2} parent=0 // pred_region
    _
  $region41: #{forward.2} parent=0 // pred_fallthru
    _
  // Predicated region
  $region42: #{forward.2} parent=0 // pred_check
    _
  $region43: #{forward.2} parent=0 // pred_check_branch
    %42 = sbr.rel (0) target = $region45
  $region44: #{forward.2} parent=0 // pred_region
    _
  $region45: #{forward.2} parent=0 // pred_fallthru
    _
  // Predicated region
  $region46: #{forward.2} parent=0 // pred_check
    _
  $region47: #{forward.2} parent=0 // pred_check_branch
    %44 = sbr.rel (0) target = $region49
  $region48: #{forward.2} parent=0 // pred_region
    _
  $region49: #{forward.2} parent=0 // pred_fallthru
    _
  // Predicated region
  $region50: #{forward.2} parent=0 // pred_check
    _
  $region51: #{forward.2} parent=0 // pred_check_branch
    %46 = sbr.rel (0) target = $region53
  $region52: #{forward.2} parent=0 // pred_region
    _
  $region53: #{forward.2} parent=0 // pred_fallthru
    _
  // Predicated region
  $region54: #{forward.2} parent=0 // pred_check
    _
  $region55: #{forward.2} parent=0 // pred_check_branch
    %48 = sbr.rel (0) target = $region57
  $region56: #{forward.2} parent=0 // pred_region
    _
  $region57: #{forward.2} parent=0 // pred_fallthru
    _
  // Predicated region
  $region58: #{forward.2} parent=0 // pred_check
    _
  $region59: #{forward.2} parent=0 // pred_check_branch
    %50 = sbr.rel (0) target = $region61
  $region60: #{forward.2} parent=0 // pred_region
    _
  $region61: #{forward.2} parent=0 // pred_fallthru
    _
  // Predicated region
  $region62: #{forward.2} parent=0 // pred_check
    _
  $region63: #{forward.2} parent=0 // pred_check_branch
    %52 = sbr.rel (0) target = $region65
  $region64: #{forward.2} parent=0 // pred_region
    _
  $region65: #{forward.2} parent=0 // pred_fallthru
    _
  %v53 = vld [vmem:[%s0] sm:$0xff]
  %v54 = vld [vmem:[%s0 + $0x8] sm:$0xff]
  %v55 = vld [vmem:[%s1] sm:$0x1]
  %57 = vset.pattern.permute.xlu0 0
  %58 = vperm.xlu0 %57, %v53
  %v59 = vpop.permute.xlu0 %58
  %62 = vset.pattern.permute.xlu0 0
  %63 = vperm.xlu0 %62, %v54
  %v64 = vpop.permute.xlu0 %63
  %v67 = vlaneseq
  %v68 = vshrl.u32 %v67, 7
  %v69 = vsub.s32 0, %v68
  %v70 = vrot.slane %v55, %v69
  %v72 = vmul.f32 %v59, %v70
  %v73 = vmul.f32 %v64, %v70
  %v74 = vld [vmem:[%s2] sm:$0x1]
  %v76 = vlaneseq
  %v77 = vshrl.u32 %v76, 7
  %v78 = vsub.s32 0, %v77
  %v79 = vrot.slane %v74, %v78
  %v81 = vadd.f32 %v72, %v79
  %v82 = vadd.f32 %v73, %v79
  %v83 = vld [vmem:[%s3] sm:$0xff]
  %v84 = vld [vmem:[%s3 + $0x8] sm:$0xff]
  %v85 = vadd.f32 %v81, %v83
  %v86 = vadd.f32 %v82, %v84
  %v87 = vld [vmem:[%s4] sm:$0xff]
  %v88 = vld [vmem:[%s4 + $0x8] sm:$0xff]
  %v89 = vld [vmem:[%s4 + $0x10] sm:$0xff]
  %v90 = vld [vmem:[%s4 + $0x18] sm:$0xff]
  %v91 = vld [vmem:[%s5] sm:$0x1]
  %v93 = vlaneseq
  %v94 = vshrl.u32 %v93, 7
  %v95 = vsub.s32 0, %v94
  %v96 = vrot.slane %v91, %v95
  %vm98 = vcmask 261120
  %v100 = vsel %vm98, %v85, 0
  %v103 = vsel %vm98, %v86, 0
  %105 = vmatprep.subr.mxu0 0.0
  %106 = vmatpush1.msra.mxu0 %v87
  %107 = vmatprep.subr.mxu0 0.0
  %108 = vmatpush1.msra.mxu0 %v88
  %109 = vmatprep.subr.mxu0 0.0
  %110 = vmatpush1.msra.mxu0 %v89
  %111 = vmatprep.subr.mxu0 0.0
  %112 = vmatpush1.msra.mxu0 %v90
  %113 = vmatprep.subr.mxu0 0.0
  %114 = vmatpush1.msra.mxu0 0.0
  %115 = vmatprep.subr.mxu0 0.0
  %116 = vmatpush1.msra.mxu0 0.0
  %117 = vmatprep.subr.mxu0 0.0
  %118 = vmatpush1.msra.mxu0 0.0
  %119 = vmatprep.subr.mxu0 0.0
  %120 = vmatpush1.msra.mxu0 0.0
  %121 = vmatprep.subr.mxu0 0.0
  %122 = vmatpush1.msra.mxu0 0.0
  %123 = vmatprep.subr.mxu0 0.0
  %124 = vmatpush1.msra.mxu0 0.0
  %125 = vmatprep.subr.mxu0 0.0
  %126 = vmatpush1.msra.mxu0 0.0
  %127 = vmatprep.subr.mxu0 0.0
  %128 = vmatpush1.msra.mxu0 0.0
  %129 = vmatprep.subr.mxu0 0.0
  %130 = vmatpush1.msra.mxu0 0.0
  %131 = vmatprep.subr.mxu0 0.0
  %132 = vmatpush1.msra.mxu0 0.0
  %133 = vmatprep.subr.mxu0 0.0
  %134 = vmatpush1.msra.mxu0 0.0
  %135 = vmatprep.subr.mxu0 0.0
  %136 = vmatpush1.msra.mxu0 0.0
  %137 = vmatprep.subr.mxu0 0.0
  %138 = vmatpush1.msra.mxu0 0.0
  %139 = vmatprep.subr.mxu0 0.0
  %140 = vmatpush1.msra.mxu0 0.0
  %141 = vmatprep.subr.mxu0 0.0
  %142 = vmatpush1.msra.mxu0 0.0
  %143 = vmatprep.subr.mxu0 0.0
  %144 = vmatpush1.msra.mxu0 0.0
  %145 = vmatprep.subr.mxu0 0.0
  %146 = vmatpush1.msra.mxu0 0.0
  %147 = vmatprep.subr.mxu0 0.0
  %148 = vmatpush1.msra.mxu0 0.0
  %149 = vmatprep.subr.mxu0 0.0
  %150 = vmatpush1.msra.mxu0 0.0
  %151 = vmatprep.subr.mxu0 0.0
  %152 = vmatpush1.msra.mxu0 0.0
  %153 = vmatprep.subr.mxu0 0.0
  %154 = vmatpush1.msra.mxu0 0.0
  %155 = vmatprep.subr.mxu0 0.0
  %156 = vmatpush1.msra.mxu0 0.0
  %157 = vmatprep.subr.mxu0 0.0
  %158 = vmatpush1.msra.mxu0 0.0
  %159 = vmatprep.subr.mxu0 0.0
  %160 = vmatpush1.msra.mxu0 0.0
  %161 = vmatprep.subr.mxu0 0.0
  %162 = vmatpush1.msra.mxu0 0.0
  %163 = vmatprep.subr.mxu0 0.0
  %164 = vmatpush1.msra.mxu0 0.0
  %165 = vmatprep.subr.mxu0 0.0
  %166 = vmatpush1.msra.mxu0 0.0
  %167 = vmatprep.subr.mxu0 0.0
  %168 = vmatpush1.msra.mxu0 0.0
  %169 = vmatprep.mubr.f32.mxu0 0.0
  %170 = vmatmul.mubr.f32.gmra.mrb[0].mxu0 %v100
  %v171 = vpop.f32.mrb[0].mxu0
  %v172 = vadd.f32 %v96, %v171
  %v173 = vpop.f32.mrb[0].mxu0
  %174 = vmatprep.mubr.f32.mxu0 0.0
  %175 = vmatmul.mubr.f32.gmra.mrb[0].mxu0 %v103
  %v176 = vpop.f32.mrb[0].mxu0
  %v177 = vadd.f32 %v96, %v176
  %v178 = vpop.f32.mrb[0].mxu0
  %179 = vdwg.mxu0
  %v180 = vld [vmem:[%s6] sm:$0xff]
  %v181 = vld [vmem:[%s6 + $0x8] sm:$0xff]
  %v182 = vld [vmem:[%s6 + $0x10] sm:$0xff]
  %v183 = vld [vmem:[%s6 + $0x18] sm:$0xff]
  %v184 = vld [vmem:[%s7] sm:$0x1]
  %187 = vrot.lane.b32.xlu0 %v172, 120
  %v188 = vpop.permute.xlu0 %187
  %189 = vrot.lane.b32.xlu0 %v177, 120
  %v190 = vpop.permute.xlu0 %189
  %191 = vrot.lane.b32.xlu0 %v172, 112
  %v192 = vpop.permute.xlu0 %191
  %193 = vrot.lane.b32.xlu0 %v177, 112
  %v194 = vpop.permute.xlu0 %193
  %195 = vrot.lane.b32.xlu0 %v172, 104
  %v196 = vpop.permute.xlu0 %195
  %197 = vrot.lane.b32.xlu0 %v177, 104
  %v198 = vpop.permute.xlu0 %197
  %199 = vrot.lane.b32.xlu0 %v172, 96
  %v200 = vpop.permute.xlu0 %199
  %vm201 = vcmask 64512
  %v202 = vsel %vm201, %v172, 0
  %v204 = vsel %vm201, %v200, 0
  %206 = vmatprep.subr.mxu0 0.0
  %207 = vmatpush1.xpose.msra.mxu0 %v204
  %208 = vmatprep.subr.mxu0 0.0
  %209 = vmatpush1.xpose.msra.mxu0 0.0
  %210 = vmatprep.subr.mxu0 0.0
  %211 = vmatpush1.xpose.msra.mxu0 0.0
  %212 = vmatprep.subr.mxu0 0.0
  %213 = vmatpush1.xpose.msra.mxu0 0.0
  %214 = vmatprep.subr.mxu0 0.0
  %215 = vmatpush1.xpose.msra.mxu0 0.0
  %216 = vmatprep.subr.mxu0 0.0
  %217 = vmatpush1.xpose.msra.mxu0 0.0
  %218 = vmatprep.subr.mxu0 0.0
  %219 = vmatpush1.xpose.msra.mxu0 0.0
  %220 = vmatprep.subr.mxu0 0.0
  %221 = vmatpush1.xpose.msra.mxu0 0.0
  %222 = vmatprep.subr.mxu0 0.0
  %223 = vmatpush1.xpose.msra.mxu0 0.0
  %224 = vmatprep.subr.mxu0 0.0
  %225 = vmatpush1.xpose.msra.mxu0 0.0
  %226 = vmatprep.subr.mxu0 0.0
  %227 = vmatpush1.xpose.msra.mxu0 0.0
  %228 = vmatprep.subr.mxu0 0.0
  %229 = vmatpush1.xpose.msra.mxu0 0.0
  %230 = vmatprep.subr.mxu0 0.0
  %231 = vmatpush1.xpose.msra.mxu0 0.0
  %232 = vmatprep.subr.mxu0 0.0
  %233 = vmatpush1.xpose.msra.mxu0 0.0
  %234 = vmatprep.subr.mxu0 0.0
  %235 = vmatpush1.xpose.msra.mxu0 0.0
  %236 = vmatprep.subr.mxu0 0.0
  %237 = vmatpush1.xpose.msra.mxu0 0.0
  %238 = vmatprep.subr.mxu0 0.0
  %239 = vmatpush1.xpose.msra.mxu0 0.0
  %240 = vmatprep.subr.mxu0 0.0
  %241 = vmatpush1.xpose.msra.mxu0 0.0
  %242 = vmatprep.subr.mxu0 0.0
  %243 = vmatpush1.xpose.msra.mxu0 0.0
  %244 = vmatprep.subr.mxu0 0.0
  %245 = vmatpush1.xpose.msra.mxu0 0.0
  %246 = vmatprep.subr.mxu0 0.0
  %247 = vmatpush1.xpose.msra.mxu0 0.0
  %248 = vmatprep.subr.mxu0 0.0
  %249 = vmatpush1.xpose.msra.mxu0 0.0
  %250 = vmatprep.subr.mxu0 0.0
  %251 = vmatpush1.xpose.msra.mxu0 0.0
  %252 = vmatprep.subr.mxu0 0.0
  %253 = vmatpush1.xpose.msra.mxu0 0.0
  %254 = vmatprep.subr.mxu0 0.0
  %255 = vmatpush1.xpose.msra.mxu0 0.0
  %256 = vmatprep.subr.mxu0 0.0
  %257 = vmatpush1.xpose.msra.mxu0 0.0
  %258 = vmatprep.subr.mxu0 0.0
  %259 = vmatpush1.xpose.msra.mxu0 0.0
  %260 = vmatprep.subr.mxu0 0.0
  %261 = vmatpush1.xpose.msra.mxu0 0.0
  %262 = vmatprep.subr.mxu0 0.0
  %263 = vmatpush1.xpose.msra.mxu0 0.0
  %264 = vmatprep.subr.mxu0 0.0
  %265 = vmatpush1.xpose.msra.mxu0 0.0
  %266 = vmatprep.subr.mxu0 0.0
  %267 = vmatpush1.xpose.msra.mxu0 0.0
  %268 = vmatprep.subr.mxu0 0.0
  %269 = vmatpush1.xpose.msra.mxu0 0.0
  %270 = vmatprep.mubr.f32.mxu0 0.0
  %271 = vmatmul.mubr.f32.gmra.mrb[0].mxu0 %v202
  %v272 = vpop.f32.mrb[0].mxu0
  %v273 = vadd.f32 0.0, %v272
  %v274 = vpop.f32.mrb[0].mxu0
  %275 = vdwg.mxu0
  %276 = vrot.lane.b32.xlu0 %v177, 96
  %v277 = vpop.permute.xlu0 %276
  %v278 = vsel %vm201, %v177, 0
  %v280 = vsel %vm201, %v277, 0
  %282 = vmatprep.subr.mxu0 0.0
  %283 = vmatpush1.xpose.msra.mxu0 %v280
  %284 = vmatprep.subr.mxu0 0.0
  %285 = vmatpush1.xpose.msra.mxu0 0.0
  %286 = vmatprep.subr.mxu0 0.0
  %287 = vmatpush1.xpose.msra.mxu0 0.0
  %288 = vmatprep.subr.mxu0 0.0
  %289 = vmatpush1.xpose.msra.mxu0 0.0
  %290 = vmatprep.subr.mxu0 0.0
  %291 = vmatpush1.xpose.msra.mxu0 0.0
  %292 = vmatprep.subr.mxu0 0.0
  %293 = vmatpush1.xpose.msra.mxu0 0.0
  %294 = vmatprep.subr.mxu0 0.0
  %295 = vmatpush1.xpose.msra.mxu0 0.0
  %296 = vmatprep.subr.mxu0 0.0
  %297 = vmatpush1.xpose.msra.mxu0 0.0
  %298 = vmatprep.subr.mxu0 0.0
  %299 = vmatpush1.xpose.msra.mxu0 0.0
  %300 = vmatprep.subr.mxu0 0.0
  %301 = vmatpush1.xpose.msra.mxu0 0.0
  %302 = vmatprep.subr.mxu0 0.0
  %303 = vmatpush1.xpose.msra.mxu0 0.0
  %304 = vmatprep.subr.mxu0 0.0
  %305 = vmatpush1.xpose.msra.mxu0 0.0
  %306 = vmatprep.subr.mxu0 0.0
  %307 = vmatpush1.xpose.msra.mxu0 0.0
  %308 = vmatprep.subr.mxu0 0.0
  %309 = vmatpush1.xpose.msra.mxu0 0.0
  %310 = vmatprep.subr.mxu0 0.0
  %311 = vmatpush1.xpose.msra.mxu0 0.0
  %312 = vmatprep.subr.mxu0 0.0
  %313 = vmatpush1.xpose.msra.mxu0 0.0
  %314 = vmatprep.subr.mxu0 0.0
  %315 = vmatpush1.xpose.msra.mxu0 0.0
  %316 = vmatprep.subr.mxu0 0.0
  %317 = vmatpush1.xpose.msra.mxu0 0.0
  %318 = vmatprep.subr.mxu0 0.0
  %319 = vmatpush1.xpose.msra.mxu0 0.0
  %320 = vmatprep.subr.mxu0 0.0
  %321 = vmatpush1.xpose.msra.mxu0 0.0
  %322 = vmatprep.subr.mxu0 0.0
  %323 = vmatpush1.xpose.msra.mxu0 0.0
  %324 = vmatprep.subr.mxu0 0.0
  %325 = vmatpush1.xpose.msra.mxu0 0.0
  %326 = vmatprep.subr.mxu0 0.0
  %327 = vmatpush1.xpose.msra.mxu0 0.0
  %328 = vmatprep.subr.mxu0 0.0
  %329 = vmatpush1.xpose.msra.mxu0 0.0
  %330 = vmatprep.subr.mxu0 0.0
  %331 = vmatpush1.xpose.msra.mxu0 0.0
  %332 = vmatprep.subr.mxu0 0.0
  %333 = vmatpush1.xpose.msra.mxu0 0.0
  %334 = vmatprep.subr.mxu0 0.0
  %335 = vmatpush1.xpose.msra.mxu0 0.0
  %336 = vmatprep.subr.mxu0 0.0
  %337 = vmatpush1.xpose.msra.mxu0 0.0
  %338 = vmatprep.subr.mxu0 0.0
  %339 = vmatpush1.xpose.msra.mxu0 0.0
  %340 = vmatprep.subr.mxu0 0.0
  %341 = vmatpush1.xpose.msra.mxu0 0.0
  %342 = vmatprep.subr.mxu0 0.0
  %343 = vmatpush1.xpose.msra.mxu0 0.0
  %344 = vmatprep.subr.mxu0 0.0
  %345 = vmatpush1.xpose.msra.mxu0 0.0
  %346 = vmatprep.mubr.f32.mxu0 0.0
  %347 = vmatmul.mubr.f32.gmra.mrb[0].mxu0 %v278
  %v348 = vpop.f32.mrb[0].mxu0
  %v349 = vadd.f32 0.0, %v348
  %v350 = vpop.f32.mrb[0].mxu0
  %351 = vdwg.mxu0
  %352 = vrot.lane.b32.xlu0 %v188, 96
  %v353 = vpop.permute.xlu0 %352
  %v354 = vsel %vm201, %v188, 0
  %v356 = vsel %vm201, %v353, 0
  %358 = vmatprep.subr.mxu0 0.0
  %359 = vmatpush1.xpose.msra.mxu0 %v356
  %360 = vmatprep.subr.mxu0 0.0
  %361 = vmatpush1.xpose.msra.mxu0 0.0
  %362 = vmatprep.subr.mxu0 0.0
  %363 = vmatpush1.xpose.msra.mxu0 0.0
  %364 = vmatprep.subr.mxu0 0.0
  %365 = vmatpush1.xpose.msra.mxu0 0.0
  %366 = vmatprep.subr.mxu0 0.0
  %367 = vmatpush1.xpose.msra.mxu0 0.0
  %368 = vmatprep.subr.mxu0 0.0
  %369 = vmatpush1.xpose.msra.mxu0 0.0
  %370 = vmatprep.subr.mxu0 0.0
  %371 = vmatpush1.xpose.msra.mxu0 0.0
  %372 = vmatprep.subr.mxu0 0.0
  %373 = vmatpush1.xpose.msra.mxu0 0.0
  %374 = vmatprep.subr.mxu0 0.0
  %375 = vmatpush1.xpose.msra.mxu0 0.0
  %376 = vmatprep.subr.mxu0 0.0
  %377 = vmatpush1.xpose.msra.mxu0 0.0
  %378 = vmatprep.subr.mxu0 0.0
  %379 = vmatpush1.xpose.msra.mxu0 0.0
  %380 = vmatprep.subr.mxu0 0.0
  %381 = vmatpush1.xpose.msra.mxu0 0.0
  %382 = vmatprep.subr.mxu0 0.0
  %383 = vmatpush1.xpose.msra.mxu0 0.0
  %384 = vmatprep.subr.mxu0 0.0
  %385 = vmatpush1.xpose.msra.mxu0 0.0
  %386 = vmatprep.subr.mxu0 0.0
  %387 = vmatpush1.xpose.msra.mxu0 0.0
  %388 = vmatprep.subr.mxu0 0.0
  %389 = vmatpush1.xpose.msra.mxu0 0.0
  %390 = vmatprep.subr.mxu0 0.0
  %391 = vmatpush1.xpose.msra.mxu0 0.0
  %392 = vmatprep.subr.mxu0 0.0
  %393 = vmatpush1.xpose.msra.mxu0 0.0
  %394 = vmatprep.subr.mxu0 0.0
  %395 = vmatpush1.xpose.msra.mxu0 0.0
  %396 = vmatprep.subr.mxu0 0.0
  %397 = vmatpush1.xpose.msra.mxu0 0.0
  %398 = vmatprep.subr.mxu0 0.0
  %399 = vmatpush1.xpose.msra.mxu0 0.0
  %400 = vmatprep.subr.mxu0 0.0
  %401 = vmatpush1.xpose.msra.mxu0 0.0
  %402 = vmatprep.subr.mxu0 0.0
  %403 = vmatpush1.xpose.msra.mxu0 0.0
  %404 = vmatprep.subr.mxu0 0.0
  %405 = vmatpush1.xpose.msra.mxu0 0.0
  %406 = vmatprep.subr.mxu0 0.0
  %407 = vmatpush1.xpose.msra.mxu0 0.0
  %408 = vmatprep.subr.mxu0 0.0
  %409 = vmatpush1.xpose.msra.mxu0 0.0
  %410 = vmatprep.subr.mxu0 0.0
  %411 = vmatpush1.xpose.msra.mxu0 0.0
  %412 = vmatprep.subr.mxu0 0.0
  %413 = vmatpush1.xpose.msra.mxu0 0.0
  %414 = vmatprep.subr.mxu0 0.0
  %415 = vmatpush1.xpose.msra.mxu0 0.0
  %416 = vmatprep.subr.mxu0 0.0
  %417 = vmatpush1.xpose.msra.mxu0 0.0
  %418 = vmatprep.subr.mxu0 0.0
  %419 = vmatpush1.xpose.msra.mxu0 0.0
  %420 = vmatprep.subr.mxu0 0.0
  %421 = vmatpush1.xpose.msra.mxu0 0.0
  %422 = vmatprep.mubr.f32.mxu0 0.0
  %423 = vmatmul.mubr.f32.gmra.mrb[0].mxu0 %v354
  %v424 = vpop.f32.mrb[0].mxu0
  %v425 = vadd.f32 0.0, %v424
  %v426 = vpop.f32.mrb[0].mxu0
  %427 = vdwg.mxu0
  %428 = vrot.lane.b32.xlu0 %v190, 96
  %v429 = vpop.permute.xlu0 %428
  %v430 = vsel %vm201, %v190, 0
  %v432 = vsel %vm201, %v429, 0
  %434 = vmatprep.subr.mxu0 0.0
  %435 = vmatpush1.xpose.msra.mxu0 %v432
  %436 = vmatprep.subr.mxu0 0.0
  %437 = vmatpush1.xpose.msra.mxu0 0.0
  %438 = vmatprep.subr.mxu0 0.0
  %439 = vmatpush1.xpose.msra.mxu0 0.0
  %440 = vmatprep.subr.mxu0 0.0
  %441 = vmatpush1.xpose.msra.mxu0 0.0
  %442 = vmatprep.subr.mxu0 0.0
  %443 = vmatpush1.xpose.msra.mxu0 0.0
  %444 = vmatprep.subr.mxu0 0.0
  %445 = vmatpush1.xpose.msra.mxu0 0.0
  %446 = vmatprep.subr.mxu0 0.0
  %447 = vmatpush1.xpose.msra.mxu0 0.0
  %448 = vmatprep.subr.mxu0 0.0
  %449 = vmatpush1.xpose.msra.mxu0 0.0
  %450 = vmatprep.subr.mxu0 0.0
  %451 = vmatpush1.xpose.msra.mxu0 0.0
  %452 = vmatprep.subr.mxu0 0.0
  %453 = vmatpush1.xpose.msra.mxu0 0.0
  %454 = vmatprep.subr.mxu0 0.0
  %455 = vmatpush1.xpose.msra.mxu0 0.0
  %456 = vmatprep.subr.mxu0 0.0
  %457 = vmatpush1.xpose.msra.mxu0 0.0
  %458 = vmatprep.subr.mxu0 0.0
  %459 = vmatpush1.xpose.msra.mxu0 0.0
  %460 = vmatprep.subr.mxu0 0.0
  %461 = vmatpush1.xpose.msra.mxu0 0.0
  %462 = vmatprep.subr.mxu0 0.0
  %463 = vmatpush1.xpose.msra.mxu0 0.0
  %464 = vmatprep.subr.mxu0 0.0
  %465 = vmatpush1.xpose.msra.mxu0 0.0
  %466 = vmatprep.subr.mxu0 0.0
  %467 = vmatpush1.xpose.msra.mxu0 0.0
  %468 = vmatprep.subr.mxu0 0.0
  %469 = vmatpush1.xpose.msra.mxu0 0.0
  %470 = vmatprep.subr.mxu0 0.0
  %471 = vmatpush1.xpose.msra.mxu0 0.0
  %472 = vmatprep.subr.mxu0 0.0
  %473 = vmatpush1.xpose.msra.mxu0 0.0
  %474 = vmatprep.subr.mxu0 0.0
  %475 = vmatpush1.xpose.msra.mxu0 0.0
  %476 = vmatprep.subr.mxu0 0.0
  %477 = vmatpush1.xpose.msra.mxu0 0.0
  %478 = vmatprep.subr.mxu0 0.0
  %479 = vmatpush1.xpose.msra.mxu0 0.0
  %480 = vmatprep.subr.mxu0 0.0
  %481 = vmatpush1.xpose.msra.mxu0 0.0
  %482 = vmatprep.subr.mxu0 0.0
  %483 = vmatpush1.xpose.msra.mxu0 0.0
  %484 = vmatprep.subr.mxu0 0.0
  %485 = vmatpush1.xpose.msra.mxu0 0.0
  %486 = vmatprep.subr.mxu0 0.0
  %487 = vmatpush1.xpose.msra.mxu0 0.0
  %488 = vmatprep.subr.mxu0 0.0
  %489 = vmatpush1.xpose.msra.mxu0 0.0
  %490 = vmatprep.subr.mxu0 0.0
  %491 = vmatpush1.xpose.msra.mxu0 0.0
  %492 = vmatprep.subr.mxu0 0.0
  %493 = vmatpush1.xpose.msra.mxu0 0.0
  %494 = vmatprep.subr.mxu0 0.0
  %495 = vmatpush1.xpose.msra.mxu0 0.0
  %496 = vmatprep.subr.mxu0 0.0
  %497 = vmatpush1.xpose.msra.mxu0 0.0
  %498 = vmatprep.mubr.f32.mxu0 0.0
  %499 = vmatmul.mubr.f32.gmra.mrb[0].mxu0 %v430
  %v500 = vpop.f32.mrb[0].mxu0
  %v501 = vadd.f32 0.0, %v500
  %v502 = vpop.f32.mrb[0].mxu0
  %503 = vdwg.mxu0
  %504 = vrot.lane.b32.xlu0 %v192, 96
  %v505 = vpop.permute.xlu0 %504
  %v506 = vsel %vm201, %v192, 0
  %v508 = vsel %vm201, %v505, 0
  %510 = vmatprep.subr.mxu0 0.0
  %511 = vmatpush1.xpose.msra.mxu0 %v508
  %512 = vmatprep.subr.mxu0 0.0
  %513 = vmatpush1.xpose.msra.mxu0 0.0
  %514 = vmatprep.subr.mxu0 0.0
  %515 = vmatpush1.xpose.msra.mxu0 0.0
  %516 = vmatprep.subr.mxu0 0.0
  %517 = vmatpush1.xpose.msra.mxu0 0.0
  %518 = vmatprep.subr.mxu0 0.0
  %519 = vmatpush1.xpose.msra.mxu0 0.0
  %520 = vmatprep.subr.mxu0 0.0
  %521 = vmatpush1.xpose.msra.mxu0 0.0
  %522 = vmatprep.subr.mxu0 0.0
  %523 = vmatpush1.xpose.msra.mxu0 0.0
  %524 = vmatprep.subr.mxu0 0.0
  %525 = vmatpush1.xpose.msra.mxu0 0.0
  %526 = vmatprep.subr.mxu0 0.0
  %527 = vmatpush1.xpose.msra.mxu0 0.0
  %528 = vmatprep.subr.mxu0 0.0
  %529 = vmatpush1.xpose.msra.mxu0 0.0
  %530 = vmatprep.subr.mxu0 0.0
  %531 = vmatpush1.xpose.msra.mxu0 0.0
  %532 = vmatprep.subr.mxu0 0.0
  %533 = vmatpush1.xpose.msra.mxu0 0.0
  %534 = vmatprep.subr.mxu0 0.0
  %535 = vmatpush1.xpose.msra.mxu0 0.0
  %536 = vmatprep.subr.mxu0 0.0
  %537 = vmatpush1.xpose.msra.mxu0 0.0
  %538 = vmatprep.subr.mxu0 0.0
  %539 = vmatpush1.xpose.msra.mxu0 0.0
  %540 = vmatprep.subr.mxu0 0.0
  %541 = vmatpush1.xpose.msra.mxu0 0.0
  %542 = vmatprep.subr.mxu0 0.0
  %543 = vmatpush1.xpose.msra.mxu0 0.0
  %544 = vmatprep.subr.mxu0 0.0
  %545 = vmatpush1.xpose.msra.mxu0 0.0
  %546 = vmatprep.subr.mxu0 0.0
  %547 = vmatpush1.xpose.msra.mxu0 0.0
  %548 = vmatprep.subr.mxu0 0.0
  %549 = vmatpush1.xpose.msra.mxu0 0.0
  %550 = vmatprep.subr.mxu0 0.0
  %551 = vmatpush1.xpose.msra.mxu0 0.0
  %552 = vmatprep.subr.mxu0 0.0
  %553 = vmatpush1.xpose.msra.mxu0 0.0
  %554 = vmatprep.subr.mxu0 0.0
  %555 = vmatpush1.xpose.msra.mxu0 0.0
  %556 = vmatprep.subr.mxu0 0.0
  %557 = vmatpush1.xpose.msra.mxu0 0.0
  %558 = vmatprep.subr.mxu0 0.0
  %559 = vmatpush1.xpose.msra.mxu0 0.0
  %560 = vmatprep.subr.mxu0 0.0
  %561 = vmatpush1.xpose.msra.mxu0 0.0
  %562 = vmatprep.subr.mxu0 0.0
  %563 = vmatpush1.xpose.msra.mxu0 0.0
  %564 = vmatprep.subr.mxu0 0.0
  %565 = vmatpush1.xpose.msra.mxu0 0.0
  %566 = vmatprep.subr.mxu0 0.0
  %567 = vmatpush1.xpose.msra.mxu0 0.0
  %568 = vmatprep.subr.mxu0 0.0
  %569 = vmatpush1.xpose.msra.mxu0 0.0
  %570 = vmatprep.subr.mxu0 0.0
  %571 = vmatpush1.xpose.msra.mxu0 0.0
  %572 = vmatprep.subr.mxu0 0.0
  %573 = vmatpush1.xpose.msra.mxu0 0.0
  %574 = vmatprep.mubr.f32.mxu0 0.0
  %575 = vmatmul.mubr.f32.gmra.mrb[0].mxu0 %v506
  %v576 = vpop.f32.mrb[0].mxu0
  %v577 = vadd.f32 0.0, %v576
  %v578 = vpop.f32.mrb[0].mxu0
  %579 = vdwg.mxu0
  %580 = vrot.lane.b32.xlu0 %v194, 96
  %v581 = vpop.permute.xlu0 %580
  %v582 = vsel %vm201, %v194, 0
  %v584 = vsel %vm201, %v581, 0
  %586 = vmatprep.subr.mxu0 0.0
  %587 = vmatpush1.xpose.msra.mxu0 %v584
  %588 = vmatprep.subr.mxu0 0.0
  %589 = vmatpush1.xpose.msra.mxu0 0.0
  %590 = vmatprep.subr.mxu0 0.0
  %591 = vmatpush1.xpose.msra.mxu0 0.0
  %592 = vmatprep.subr.mxu0 0.0
  %593 = vmatpush1.xpose.msra.mxu0 0.0
  %594 = vmatprep.subr.mxu0 0.0
  %595 = vmatpush1.xpose.msra.mxu0 0.0
  %596 = vmatprep.subr.mxu0 0.0
  %597 = vmatpush1.xpose.msra.mxu0 0.0
  %598 = vmatprep.subr.mxu0 0.0
  %599 = vmatpush1.xpose.msra.mxu0 0.0
  %600 = vmatprep.subr.mxu0 0.0
  %601 = vmatpush1.xpose.msra.mxu0 0.0
  %602 = vmatprep.subr.mxu0 0.0
  %603 = vmatpush1.xpose.msra.mxu0 0.0
  %604 = vmatprep.subr.mxu0 0.0
  %605 = vmatpush1.xpose.msra.mxu0 0.0
  %606 = vmatprep.subr.mxu0 0.0
  %607 = vmatpush1.xpose.msra.mxu0 0.0
  %608 = vmatprep.subr.mxu0 0.0
  %609 = vmatpush1.xpose.msra.mxu0 0.0
  %610 = vmatprep.subr.mxu0 0.0
  %611 = vmatpush1.xpose.msra.mxu0 0.0
  %612 = vmatprep.subr.mxu0 0.0
  %613 = vmatpush1.xpose.msra.mxu0 0.0
  %614 = vmatprep.subr.mxu0 0.0
  %615 = vmatpush1.xpose.msra.mxu0 0.0
  %616 = vmatprep.subr.mxu0 0.0
  %617 = vmatpush1.xpose.msra.mxu0 0.0
  %618 = vmatprep.subr.mxu0 0.0
  %619 = vmatpush1.xpose.msra.mxu0 0.0
  %620 = vmatprep.subr.mxu0 0.0
  %621 = vmatpush1.xpose.msra.mxu0 0.0
  %622 = vmatprep.subr.mxu0 0.0
  %623 = vmatpush1.xpose.msra.mxu0 0.0
  %624 = vmatprep.subr.mxu0 0.0
  %625 = vmatpush1.xpose.msra.mxu0 0.0
  %626 = vmatprep.subr.mxu0 0.0
  %627 = vmatpush1.xpose.msra.mxu0 0.0
  %628 = vmatprep.subr.mxu0 0.0
  %629 = vmatpush1.xpose.msra.mxu0 0.0
  %630 = vmatprep.subr.mxu0 0.0
  %631 = vmatpush1.xpose.msra.mxu0 0.0
  %632 = vmatprep.subr.mxu0 0.0
  %633 = vmatpush1.xpose.msra.mxu0 0.0
  %634 = vmatprep.subr.mxu0 0.0
  %635 = vmatpush1.xpose.msra.mxu0 0.0
  %636 = vmatprep.subr.mxu0 0.0
  %637 = vmatpush1.xpose.msra.mxu0 0.0
  %638 = vmatprep.subr.mxu0 0.0
  %639 = vmatpush1.xpose.msra.mxu0 0.0
  %640 = vmatprep.subr.mxu0 0.0
  %641 = vmatpush1.xpose.msra.mxu0 0.0
  %642 = vmatprep.subr.mxu0 0.0
  %643 = vmatpush1.xpose.msra.mxu0 0.0
  %644 = vmatprep.subr.mxu0 0.0
  %645 = vmatpush1.xpose.msra.mxu0 0.0
  %646 = vmatprep.subr.mxu0 0.0
  %647 = vmatpush1.xpose.msra.mxu0 0.0
  %648 = vmatprep.subr.mxu0 0.0
  %649 = vmatpush1.xpose.msra.mxu0 0.0
  %650 = vmatprep.mubr.f32.mxu0 0.0
  %651 = vmatmul.mubr.f32.gmra.mrb[0].mxu0 %v582
  %v652 = vpop.f32.mrb[0].mxu0
  %v653 = vadd.f32 0.0, %v652
  %v654 = vpop.f32.mrb[0].mxu0
  %655 = vdwg.mxu0
  %656 = vrot.lane.b32.xlu0 %v196, 96
  %v657 = vpop.permute.xlu0 %656
  %v658 = vsel %vm201, %v196, 0
  %v660 = vsel %vm201, %v657, 0
  %662 = vmatprep.subr.mxu0 0.0
  %663 = vmatpush1.xpose.msra.mxu0 %v660
  %664 = vmatprep.subr.mxu0 0.0
  %665 = vmatpush1.xpose.msra.mxu0 0.0
  %666 = vmatprep.subr.mxu0 0.0
  %667 = vmatpush1.xpose.msra.mxu0 0.0
  %668 = vmatprep.subr.mxu0 0.0
  %669 = vmatpush1.xpose.msra.mxu0 0.0
  %670 = vmatprep.subr.mxu0 0.0
  %671 = vmatpush1.xpose.msra.mxu0 0.0
  %672 = vmatprep.subr.mxu0 0.0
  %673 = vmatpush1.xpose.msra.mxu0 0.0
  %674 = vmatprep.subr.mxu0 0.0
  %675 = vmatpush1.xpose.msra.mxu0 0.0
  %676 = vmatprep.subr.mxu0 0.0
  %677 = vmatpush1.xpose.msra.mxu0 0.0
  %678 = vmatprep.subr.mxu0 0.0
  %679 = vmatpush1.xpose.msra.mxu0 0.0
  %680 = vmatprep.subr.mxu0 0.0
  %681 = vmatpush1.xpose.msra.mxu0 0.0
  %682 = vmatprep.subr.mxu0 0.0
  %683 = vmatpush1.xpose.msra.mxu0 0.0
  %684 = vmatprep.subr.mxu0 0.0
  %685 = vmatpush1.xpose.msra.mxu0 0.0
  %686 = vmatprep.subr.mxu0 0.0
  %687 = vmatpush1.xpose.msra.mxu0 0.0
  %688 = vmatprep.subr.mxu0 0.0
  %689 = vmatpush1.xpose.msra.mxu0 0.0
  %690 = vmatprep.subr.mxu0 0.0
  %691 = vmatpush1.xpose.msra.mxu0 0.0
  %692 = vmatprep.subr.mxu0 0.0
  %693 = vmatpush1.xpose.msra.mxu0 0.0
  %694 = vmatprep.subr.mxu0 0.0
  %695 = vmatpush1.xpose.msra.mxu0 0.0
  %696 = vmatprep.subr.mxu0 0.0
  %697 = vmatpush1.xpose.msra.mxu0 0.0
  %698 = vmatprep.subr.mxu0 0.0
  %699 = vmatpush1.xpose.msra.mxu0 0.0
  %700 = vmatprep.subr.mxu0 0.0
  %701 = vmatpush1.xpose.msra.mxu0 0.0
  %702 = vmatprep.subr.mxu0 0.0
  %703 = vmatpush1.xpose.msra.mxu0 0.0
  %704 = vmatprep.subr.mxu0 0.0
  %705 = vmatpush1.xpose.msra.mxu0 0.0
  %706 = vmatprep.subr.mxu0 0.0
  %707 = vmatpush1.xpose.msra.mxu0 0.0
  %708 = vmatprep.subr.mxu0 0.0
  %709 = vmatpush1.xpose.msra.mxu0 0.0
  %710 = vmatprep.subr.mxu0 0.0
  %711 = vmatpush1.xpose.msra.mxu0 0.0
  %712 = vmatprep.subr.mxu0 0.0
  %713 = vmatpush1.xpose.msra.mxu0 0.0
  %714 = vmatprep.subr.mxu0 0.0
  %715 = vmatpush1.xpose.msra.mxu0 0.0
  %716 = vmatprep.subr.mxu0 0.0
  %717 = vmatpush1.xpose.msra.mxu0 0.0
  %718 = vmatprep.subr.mxu0 0.0
  %719 = vmatpush1.xpose.msra.mxu0 0.0
  %720 = vmatprep.subr.mxu0 0.0
  %721 = vmatpush1.xpose.msra.mxu0 0.0
  %722 = vmatprep.subr.mxu0 0.0
  %723 = vmatpush1.xpose.msra.mxu0 0.0
  %724 = vmatprep.subr.mxu0 0.0
  %725 = vmatpush1.xpose.msra.mxu0 0.0
  %726 = vmatprep.mubr.f32.mxu0 0.0
  %727 = vmatmul.mubr.f32.gmra.mrb[0].mxu0 %v658
  %v728 = vpop.f32.mrb[0].mxu0
  %v729 = vadd.f32 0.0, %v728
  %v730 = vpop.f32.mrb[0].mxu0
  %731 = vdwg.mxu0
  %732 = vrot.lane.b32.xlu0 %v198, 96
  %v733 = vpop.permute.xlu0 %732
  %v734 = vsel %vm201, %v198, 0
  %v736 = vsel %vm201, %v733, 0
  %738 = vmatprep.subr.mxu0 0.0
  %739 = vmatpush1.xpose.msra.mxu0 %v736
  %740 = vmatprep.subr.mxu0 0.0
  %741 = vmatpush1.xpose.msra.mxu0 0.0
  %742 = vmatprep.subr.mxu0 0.0
  %743 = vmatpush1.xpose.msra.mxu0 0.0
  %744 = vmatprep.subr.mxu0 0.0
  %745 = vmatpush1.xpose.msra.mxu0 0.0
  %746 = vmatprep.subr.mxu0 0.0
  %747 = vmatpush1.xpose.msra.mxu0 0.0
  %748 = vmatprep.subr.mxu0 0.0
  %749 = vmatpush1.xpose.msra.mxu0 0.0
  %750 = vmatprep.subr.mxu0 0.0
  %751 = vmatpush1.xpose.msra.mxu0 0.0
  %752 = vmatprep.subr.mxu0 0.0
  %753 = vmatpush1.xpose.msra.mxu0 0.0
  %754 = vmatprep.subr.mxu0 0.0
  %755 = vmatpush1.xpose.msra.mxu0 0.0
  %756 = vmatprep.subr.mxu0 0.0
  %757 = vmatpush1.xpose.msra.mxu0 0.0
  %758 = vmatprep.subr.mxu0 0.0
  %759 = vmatpush1.xpose.msra.mxu0 0.0
  %760 = vmatprep.subr.mxu0 0.0
  %761 = vmatpush1.xpose.msra.mxu0 0.0
  %762 = vmatprep.subr.mxu0 0.0
  %763 = vmatpush1.xpose.msra.mxu0 0.0
  %764 = vmatprep.subr.mxu0 0.0
  %765 = vmatpush1.xpose.msra.mxu0 0.0
  %766 = vmatprep.subr.mxu0 0.0
  %767 = vmatpush1.xpose.msra.mxu0 0.0
  %768 = vmatprep.subr.mxu0 0.0
  %769 = vmatpush1.xpose.msra.mxu0 0.0
  %770 = vmatprep.subr.mxu0 0.0
  %771 = vmatpush1.xpose.msra.mxu0 0.0
  %772 = vmatprep.subr.mxu0 0.0
  %773 = vmatpush1.xpose.msra.mxu0 0.0
  %774 = vmatprep.subr.mxu0 0.0
  %775 = vmatpush1.xpose.msra.mxu0 0.0
  %776 = vmatprep.subr.mxu0 0.0
  %777 = vmatpush1.xpose.msra.mxu0 0.0
  %778 = vmatprep.subr.mxu0 0.0
  %779 = vmatpush1.xpose.msra.mxu0 0.0
  %780 = vmatprep.subr.mxu0 0.0
  %781 = vmatpush1.xpose.msra.mxu0 0.0
  %782 = vmatprep.subr.mxu0 0.0
  %783 = vmatpush1.xpose.msra.mxu0 0.0
  %784 = vmatprep.subr.mxu0 0.0
  %785 = vmatpush1.xpose.msra.mxu0 0.0
  %786 = vmatprep.subr.mxu0 0.0
  %787 = vmatpush1.xpose.msra.mxu0 0.0
  %788 = vmatprep.subr.mxu0 0.0
  %789 = vmatpush1.xpose.msra.mxu0 0.0
  %790 = vmatprep.subr.mxu0 0.0
  %791 = vmatpush1.xpose.msra.mxu0 0.0
  %792 = vmatprep.subr.mxu0 0.0
  %793 = vmatpush1.xpose.msra.mxu0 0.0
  %794 = vmatprep.subr.mxu0 0.0
  %795 = vmatpush1.xpose.msra.mxu0 0.0
  %796 = vmatprep.subr.mxu0 0.0
  %797 = vmatpush1.xpose.msra.mxu0 0.0
  %798 = vmatprep.subr.mxu0 0.0
  %799 = vmatpush1.xpose.msra.mxu0 0.0
  %800 = vmatprep.subr.mxu0 0.0
  %801 = vmatpush1.xpose.msra.mxu0 0.0
  %802 = vmatprep.mubr.f32.mxu0 0.0
  %803 = vmatmul.mubr.f32.gmra.mrb[0].mxu0 %v734
  %v804 = vpop.f32.mrb[0].mxu0
  %v805 = vadd.f32 0.0, %v804
  %v806 = vpop.f32.mrb[0].mxu0
  %807 = vdwg.mxu0
  %v808 = vmul.f32 %v273, 0.35355338
  %v809 = vmul.f32 %v349, 0.35355338
  %v810 = vmul.f32 %v425, 0.35355338
  %v811 = vmul.f32 %v501, 0.35355338
  %v812 = vmul.f32 %v577, 0.35355338
  %v813 = vmul.f32 %v653, 0.35355338
  %v814 = vmul.f32 %v729, 0.35355338
  %v815 = vmul.f32 %v805, 0.35355338
  %v816 = vsel %vm201, %v808, -inf
  %817 = vmax.xlane.f32.xlu0 %v816
  %v818 = vpop.xlane.xlu0 %817
  %v819 = vsel %vm201, %v809, -inf
  %820 = vmax.xlane.f32.xlu0 %v819
  %v821 = vpop.xlane.xlu0 %820
  %v822 = vsel %vm201, %v810, -inf
  %823 = vmax.xlane.f32.xlu0 %v822
  %v824 = vpop.xlane.xlu0 %823
  %v825 = vsel %vm201, %v811, -inf
  %826 = vmax.xlane.f32.xlu0 %v825
  %v827 = vpop.xlane.xlu0 %826
  %v828 = vsel %vm201, %v812, -inf
  %829 = vmax.xlane.f32.xlu0 %v828
  %v830 = vpop.xlane.xlu0 %829
  %v831 = vsel %vm201, %v813, -inf
  %832 = vmax.xlane.f32.xlu0 %v831
  %v833 = vpop.xlane.xlu0 %832
  %v834 = vsel %vm201, %v814, -inf
  %835 = vmax.xlane.f32.xlu0 %v834
  %v836 = vpop.xlane.xlu0 %835
  %v837 = vsel %vm201, %v815, -inf
  %838 = vmax.xlane.f32.xlu0 %v837
  %v839 = vpop.xlane.xlu0 %838
  %v840 = vsub.f32 %v808, %v818
  %v841 = vsub.f32 %v809, %v821
  %v842 = vsub.f32 %v810, %v824
  %v843 = vsub.f32 %v811, %v827
  %v844 = vsub.f32 %v812, %v830
  %v845 = vsub.f32 %v813, %v833
  %v846 = vsub.f32 %v814, %v836
  %v847 = vsub.f32 %v815, %v839
  %v848 = vmul.f32 %v840, 1.442695
  %v849 = vpow.pop %v848
  %v850 = vmul.f32 %v841, 1.442695
  %v851 = vpow.pop %v850
  %v852 = vmul.f32 %v842, 1.442695
  %v853 = vpow.pop %v852
  %v854 = vmul.f32 %v843, 1.442695
  %v855 = vpow.pop %v854
  %v856 = vmul.f32 %v844, 1.442695
  %v857 = vpow.pop %v856
  %v858 = vmul.f32 %v845, 1.442695
  %v859 = vpow.pop %v858
  %v860 = vmul.f32 %v846, 1.442695
  %v861 = vpow.pop %v860
  %v862 = vmul.f32 %v847, 1.442695
  %v863 = vpow.pop %v862
  %v864 = vsel %vm201, %v849, 0.0
  %865 = vadd.xlane.f32.xlu0 %v864
  %v866 = vpop.xlane.xlu0 %865
  %v867 = vsel %vm201, %v851, 0.0
  %868 = vadd.xlane.f32.xlu0 %v867
  %v869 = vpop.xlane.xlu0 %868
  %v870 = vsel %vm201, %v853, 0.0
  %871 = vadd.xlane.f32.xlu0 %v870
  %v872 = vpop.xlane.xlu0 %871
  %v873 = vsel %vm201, %v855, 0.0
  %874 = vadd.xlane.f32.xlu0 %v873
  %v875 = vpop.xlane.xlu0 %874
  %v876 = vsel %vm201, %v857, 0.0
  %877 = vadd.xlane.f32.xlu0 %v876
  %v878 = vpop.xlane.xlu0 %877
  %v879 = vsel %vm201, %v859, 0.0
  %880 = vadd.xlane.f32.xlu0 %v879
  %v881 = vpop.xlane.xlu0 %880
  %v882 = vsel %vm201, %v861, 0.0
  %883 = vadd.xlane.f32.xlu0 %v882
  %v884 = vpop.xlane.xlu0 %883
  %v885 = vsel %vm201, %v863, 0.0
  %886 = vadd.xlane.f32.xlu0 %v885
  %v887 = vpop.xlane.xlu0 %886
  %v888 = vrcp.pop %v866
  %v889 = vrcp.pop %v869
  %v890 = vrcp.pop %v872
  %v891 = vrcp.pop %v875
  %v892 = vrcp.pop %v878
  %v893 = vrcp.pop %v881
  %v894 = vrcp.pop %v884
  %v895 = vrcp.pop %v887
  %v896 = vmul.f32 %v849, %v888
  %v897 = vmul.f32 %v851, %v889
  %v898 = vmul.f32 %v853, %v890
  %v899 = vmul.f32 %v855, %v891
  %v900 = vmul.f32 %v857, %v892
  %v901 = vmul.f32 %v859, %v893
  %v902 = vmul.f32 %v861, %v894
  %v903 = vmul.f32 %v863, %v895
  %904 = vrot.lane.b32.xlu0 %v172, 64
  %v905 = vpop.permute.xlu0 %904
  %v908 = vsel %vm201, %v896, 0
  %910 = vmatprep.subr.mxu0 0.0
  %911 = vmatpush1.msra.mxu0 %v905
  %912 = vmatprep.subr.mxu0 0.0
  %913 = vmatpush1.msra.mxu0 0.0
  %914 = vmatprep.subr.mxu0 0.0
  %915 = vmatpush1.msra.mxu0 0.0
  %916 = vmatprep.subr.mxu0 0.0
  %917 = vmatpush1.msra.mxu0 0.0
  %918 = vmatprep.subr.mxu0 0.0
  %919 = vmatpush1.msra.mxu0 0.0
  %920 = vmatprep.subr.mxu0 0.0
  %921 = vmatpush1.msra.mxu0 0.0
  %922 = vmatprep.subr.mxu0 0.0
  %923 = vmatpush1.msra.mxu0 0.0
  %924 = vmatprep.subr.mxu0 0.0
  %925 = vmatpush1.msra.mxu0 0.0
  %926 = vmatprep.subr.mxu0 0.0
  %927 = vmatpush1.msra.mxu0 0.0
  %928 = vmatprep.subr.mxu0 0.0
  %929 = vmatpush1.msra.mxu0 0.0
  %930 = vmatprep.subr.mxu0 0.0
  %931 = vmatpush1.msra.mxu0 0.0
  %932 = vmatprep.subr.mxu0 0.0
  %933 = vmatpush1.msra.mxu0 0.0
  %934 = vmatprep.subr.mxu0 0.0
  %935 = vmatpush1.msra.mxu0 0.0
  %936 = vmatprep.subr.mxu0 0.0
  %937 = vmatpush1.msra.mxu0 0.0
  %938 = vmatprep.subr.mxu0 0.0
  %939 = vmatpush1.msra.mxu0 0.0
  %940 = vmatprep.subr.mxu0 0.0
  %941 = vmatpush1.msra.mxu0 0.0
  %942 = vmatprep.subr.mxu0 0.0
  %943 = vmatpush1.msra.mxu0 0.0
  %944 = vmatprep.subr.mxu0 0.0
  %945 = vmatpush1.msra.mxu0 0.0
  %946 = vmatprep.subr.mxu0 0.0
  %947 = vmatpush1.msra.mxu0 0.0
  %948 = vmatprep.subr.mxu0 0.0
  %949 = vmatpush1.msra.mxu0 0.0
  %950 = vmatprep.subr.mxu0 0.0
  %951 = vmatpush1.msra.mxu0 0.0
  %952 = vmatprep.subr.mxu0 0.0
  %953 = vmatpush1.msra.mxu0 0.0
  %954 = vmatprep.subr.mxu0 0.0
  %955 = vmatpush1.msra.mxu0 0.0
  %956 = vmatprep.subr.mxu0 0.0
  %957 = vmatpush1.msra.mxu0 0.0
  %958 = vmatprep.subr.mxu0 0.0
  %959 = vmatpush1.msra.mxu0 0.0
  %960 = vmatprep.subr.mxu0 0.0
  %961 = vmatpush1.msra.mxu0 0.0
  %962 = vmatprep.subr.mxu0 0.0
  %963 = vmatpush1.msra.mxu0 0.0
  %964 = vmatprep.subr.mxu0 0.0
  %965 = vmatpush1.msra.mxu0 0.0
  %966 = vmatprep.subr.mxu0 0.0
  %967 = vmatpush1.msra.mxu0 0.0
  %968 = vmatprep.subr.mxu0 0.0
  %969 = vmatpush1.msra.mxu0 0.0
  %970 = vmatprep.subr.mxu0 0.0
  %971 = vmatpush1.msra.mxu0 0.0
  %972 = vmatprep.subr.mxu0 0.0
  %973 = vmatpush1.msra.mxu0 0.0
  %974 = vmatprep.mubr.f32.mxu0 0.0
  %975 = vmatmul.mubr.f32.gmra.mrb[0].mxu0 %v908
  %v976 = vpop.f32.mrb[0].mxu0
  %v977 = vadd.f32 0.0, %v976
  %v978 = vpop.f32.mrb[0].mxu0
  %979 = vdwg.mxu0
  %980 = vrot.lane.b32.xlu0 %v177, 64
  %v981 = vpop.permute.xlu0 %980
  %v984 = vsel %vm201, %v897, 0
  %986 = vmatprep.subr.mxu0 0.0
  %987 = vmatpush1.msra.mxu0 %v981
  %988 = vmatprep.subr.mxu0 0.0
  %989 = vmatpush1.msra.mxu0 0.0
  %990 = vmatprep.subr.mxu0 0.0
  %991 = vmatpush1.msra.mxu0 0.0
  %992 = vmatprep.subr.mxu0 0.0
  %993 = vmatpush1.msra.mxu0 0.0
  %994 = vmatprep.subr.mxu0 0.0
  %995 = vmatpush1.msra.mxu0 0.0
  %996 = vmatprep.subr.mxu0 0.0
  %997 = vmatpush1.msra.mxu0 0.0
  %998 = vmatprep.subr.mxu0 0.0
  %999 = vmatpush1.msra.mxu0 0.0
  %1000 = vmatprep.subr.mxu0 0.0
  %1001 = vmatpush1.msra.mxu0 0.0
  %1002 = vmatprep.subr.mxu0 0.0
  %1003 = vmatpush1.msra.mxu0 0.0
  %1004 = vmatprep.subr.mxu0 0.0
  %1005 = vmatpush1.msra.mxu0 0.0
  %1006 = vmatprep.subr.mxu0 0.0
  %1007 = vmatpush1.msra.mxu0 0.0
  %1008 = vmatprep.subr.mxu0 0.0
  %1009 = vmatpush1.msra.mxu0 0.0
  %1010 = vmatprep.subr.mxu0 0.0
  %1011 = vmatpush1.msra.mxu0 0.0
  %1012 = vmatprep.subr.mxu0 0.0
  %1013 = vmatpush1.msra.mxu0 0.0
  %1014 = vmatprep.subr.mxu0 0.0
  %1015 = vmatpush1.msra.mxu0 0.0
  %1016 = vmatprep.subr.mxu0 0.0
  %1017 = vmatpush1.msra.mxu0 0.0
  %1018 = vmatprep.subr.mxu0 0.0
  %1019 = vmatpush1.msra.mxu0 0.0
  %1020 = vmatprep.subr.mxu0 0.0
  %1021 = vmatpush1.msra.mxu0 0.0
  %1022 = vmatprep.subr.mxu0 0.0
  %1023 = vmatpush1.msra.mxu0 0.0
  %1024 = vmatprep.subr.mxu0 0.0
  %1025 = vmatpush1.msra.mxu0 0.0
  %1026 = vmatprep.subr.mxu0 0.0
  %1027 = vmatpush1.msra.mxu0 0.0
  %1028 = vmatprep.subr.mxu0 0.0
  %1029 = vmatpush1.msra.mxu0 0.0
  %1030 = vmatprep.subr.mxu0 0.0
  %1031 = vmatpush1.msra.mxu0 0.0
  %1032 = vmatprep.subr.mxu0 0.0
  %1033 = vmatpush1.msra.mxu0 0.0
  %1034 = vmatprep.subr.mxu0 0.0
  %1035 = vmatpush1.msra.mxu0 0.0
  %1036 = vmatprep.subr.mxu0 0.0
  %1037 = vmatpush1.msra.mxu0 0.0
  %1038 = vmatprep.subr.mxu0 0.0
  %1039 = vmatpush1.msra.mxu0 0.0
  %1040 = vmatprep.subr.mxu0 0.0
  %1041 = vmatpush1.msra.mxu0 0.0
  %1042 = vmatprep.subr.mxu0 0.0
  %1043 = vmatpush1.msra.mxu0 0.0
  %1044 = vmatprep.subr.mxu0 0.0
  %1045 = vmatpush1.msra.mxu0 0.0
  %1046 = vmatprep.subr.mxu0 0.0
  %1047 = vmatpush1.msra.mxu0 0.0
  %1048 = vmatprep.subr.mxu0 0.0
  %1049 = vmatpush1.msra.mxu0 0.0
  %1050 = vmatprep.mubr.f32.mxu0 0.0
  %1051 = vmatmul.mubr.f32.gmra.mrb[0].mxu0 %v984
  %v1052 = vpop.f32.mrb[0].mxu0
  %v1053 = vadd.f32 0.0, %v1052
  %v1054 = vpop.f32.mrb[0].mxu0
  %1055 = vdwg.mxu0
  %1056 = vrot.lane.b32.xlu0 %v188, 64
  %v1057 = vpop.permute.xlu0 %1056
  %v1060 = vsel %vm201, %v898, 0
  %1062 = vmatprep.subr.mxu0 0.0
  %1063 = vmatpush1.msra.mxu0 %v1057
  %1064 = vmatprep.subr.mxu0 0.0
  %1065 = vmatpush1.msra.mxu0 0.0
  %1066 = vmatprep.subr.mxu0 0.0
  %1067 = vmatpush1.msra.mxu0 0.0
  %1068 = vmatprep.subr.mxu0 0.0
  %1069 = vmatpush1.msra.mxu0 0.0
  %1070 = vmatprep.subr.mxu0 0.0
  %1071 = vmatpush1.msra.mxu0 0.0
  %1072 = vmatprep.subr.mxu0 0.0
  %1073 = vmatpush1.msra.mxu0 0.0
  %1074 = vmatprep.subr.mxu0 0.0
  %1075 = vmatpush1.msra.mxu0 0.0
  %1076 = vmatprep.subr.mxu0 0.0
  %1077 = vmatpush1.msra.mxu0 0.0
  %1078 = vmatprep.subr.mxu0 0.0
  %1079 = vmatpush1.msra.mxu0 0.0
  %1080 = vmatprep.subr.mxu0 0.0
  %1081 = vmatpush1.msra.mxu0 0.0
  %1082 = vmatprep.subr.mxu0 0.0
  %1083 = vmatpush1.msra.mxu0 0.0
  %1084 = vmatprep.subr.mxu0 0.0
  %1085 = vmatpush1.msra.mxu0 0.0
  %1086 = vmatprep.subr.mxu0 0.0
  %1087 = vmatpush1.msra.mxu0 0.0
  %1088 = vmatprep.subr.mxu0 0.0
  %1089 = vmatpush1.msra.mxu0 0.0
  %1090 = vmatprep.subr.mxu0 0.0
  %1091 = vmatpush1.msra.mxu0 0.0
  %1092 = vmatprep.subr.mxu0 0.0
  %1093 = vmatpush1.msra.mxu0 0.0
  %1094 = vmatprep.subr.mxu0 0.0
  %1095 = vmatpush1.msra.mxu0 0.0
  %1096 = vmatprep.subr.mxu0 0.0
  %1097 = vmatpush1.msra.mxu0 0.0
  %1098 = vmatprep.subr.mxu0 0.0
  %1099 = vmatpush1.msra.mxu0 0.0
  %1100 = vmatprep.subr.mxu0 0.0
  %1101 = vmatpush1.msra.mxu0 0.0
  %1102 = vmatprep.subr.mxu0 0.0
  %1103 = vmatpush1.msra.mxu0 0.0
  %1104 = vmatprep.subr.mxu0 0.0
  %1105 = vmatpush1.msra.mxu0 0.0
  %1106 = vmatprep.subr.mxu0 0.0
  %1107 = vmatpush1.msra.mxu0 0.0
  %1108 = vmatprep.subr.mxu0 0.0
  %1109 = vmatpush1.msra.mxu0 0.0
  %1110 = vmatprep.subr.mxu0 0.0
  %1111 = vmatpush1.msra.mxu0 0.0
  %1112 = vmatprep.subr.mxu0 0.0
  %1113 = vmatpush1.msra.mxu0 0.0
  %1114 = vmatprep.subr.mxu0 0.0
  %1115 = vmatpush1.msra.mxu0 0.0
  %1116 = vmatprep.subr.mxu0 0.0
  %1117 = vmatpush1.msra.mxu0 0.0
  %1118 = vmatprep.subr.mxu0 0.0
  %1119 = vmatpush1.msra.mxu0 0.0
  %1120 = vmatprep.subr.mxu0 0.0
  %1121 = vmatpush1.msra.mxu0 0.0
  %1122 = vmatprep.subr.mxu0 0.0
  %1123 = vmatpush1.msra.mxu0 0.0
  %1124 = vmatprep.subr.mxu0 0.0
  %1125 = vmatpush1.msra.mxu0 0.0
  %1126 = vmatprep.mubr.f32.mxu0 0.0
  %1127 = vmatmul.mubr.f32.gmra.mrb[0].mxu0 %v1060
  %v1128 = vpop.f32.mrb[0].mxu0
  %v1129 = vadd.f32 0.0, %v1128
  %v1130 = vpop.f32.mrb[0].mxu0
  %1131 = vdwg.mxu0
  %1132 = vrot.lane.b32.xlu0 %v190, 64
  %v1133 = vpop.permute.xlu0 %1132
  %v1136 = vsel %vm201, %v899, 0
  %1138 = vmatprep.subr.mxu0 0.0
  %1139 = vmatpush1.msra.mxu0 %v1133
  %1140 = vmatprep.subr.mxu0 0.0
  %1141 = vmatpush1.msra.mxu0 0.0
  %1142 = vmatprep.subr.mxu0 0.0
  %1143 = vmatpush1.msra.mxu0 0.0
  %1144 = vmatprep.subr.mxu0 0.0
  %1145 = vmatpush1.msra.mxu0 0.0
  %1146 = vmatprep.subr.mxu0 0.0
  %1147 = vmatpush1.msra.mxu0 0.0
  %1148 = vmatprep.subr.mxu0 0.0
  %1149 = vmatpush1.msra.mxu0 0.0
  %1150 = vmatprep.subr.mxu0 0.0
  %1151 = vmatpush1.msra.mxu0 0.0
  %1152 = vmatprep.subr.mxu0 0.0
  %1153 = vmatpush1.msra.mxu0 0.0
  %1154 = vmatprep.subr.mxu0 0.0
  %1155 = vmatpush1.msra.mxu0 0.0
  %1156 = vmatprep.subr.mxu0 0.0
  %1157 = vmatpush1.msra.mxu0 0.0
  %1158 = vmatprep.subr.mxu0 0.0
  %1159 = vmatpush1.msra.mxu0 0.0
  %1160 = vmatprep.subr.mxu0 0.0
  %1161 = vmatpush1.msra.mxu0 0.0
  %1162 = vmatprep.subr.mxu0 0.0
  %1163 = vmatpush1.msra.mxu0 0.0
  %1164 = vmatprep.subr.mxu0 0.0
  %1165 = vmatpush1.msra.mxu0 0.0
  %1166 = vmatprep.subr.mxu0 0.0
  %1167 = vmatpush1.msra.mxu0 0.0
  %1168 = vmatprep.subr.mxu0 0.0
  %1169 = vmatpush1.msra.mxu0 0.0
  %1170 = vmatprep.subr.mxu0 0.0
  %1171 = vmatpush1.msra.mxu0 0.0
  %1172 = vmatprep.subr.mxu0 0.0
  %1173 = vmatpush1.msra.mxu0 0.0
  %1174 = vmatprep.subr.mxu0 0.0
  %1175 = vmatpush1.msra.mxu0 0.0
  %1176 = vmatprep.subr.mxu0 0.0
  %1177 = vmatpush1.msra.mxu0 0.0
  %1178 = vmatprep.subr.mxu0 0.0
  %1179 = vmatpush1.msra.mxu0 0.0
  %1180 = vmatprep.subr.mxu0 0.0
  %1181 = vmatpush1.msra.mxu0 0.0
  %1182 = vmatprep.subr.mxu0 0.0
  %1183 = vmatpush1.msra.mxu0 0.0
  %1184 = vmatprep.subr.mxu0 0.0
  %1185 = vmatpush1.msra.mxu0 0.0
  %1186 = vmatprep.subr.mxu0 0.0
  %1187 = vmatpush1.msra.mxu0 0.0
  %1188 = vmatprep.subr.mxu0 0.0
  %1189 = vmatpush1.msra.mxu0 0.0
  %1190 = vmatprep.subr.mxu0 0.0
  %1191 = vmatpush1.msra.mxu0 0.0
  %1192 = vmatprep.subr.mxu0 0.0
  %1193 = vmatpush1.msra.mxu0 0.0
  %1194 = vmatprep.subr.mxu0 0.0
  %1195 = vmatpush1.msra.mxu0 0.0
  %1196 = vmatprep.subr.mxu0 0.0
  %1197 = vmatpush1.msra.mxu0 0.0
  %1198 = vmatprep.subr.mxu0 0.0
  %1199 = vmatpush1.msra.mxu0 0.0
  %1200 = vmatprep.subr.mxu0 0.0
  %1201 = vmatpush1.msra.mxu0 0.0
  %1202 = vmatprep.mubr.f32.mxu0 0.0
  %1203 = vmatmul.mubr.f32.gmra.mrb[0].mxu0 %v1136
  %v1204 = vpop.f32.mrb[0].mxu0
  %v1205 = vadd.f32 0.0, %v1204
  %v1206 = vpop.f32.mrb[0].mxu0
  %1207 = vdwg.mxu0
  %1208 = vrot.lane.b32.xlu0 %v192, 64
  %v1209 = vpop.permute.xlu0 %1208
  %v1212 = vsel %vm201, %v900, 0
  %1214 = vmatprep.subr.mxu0 0.0
  %1215 = vmatpush1.msra.mxu0 %v1209
  %1216 = vmatprep.subr.mxu0 0.0
  %1217 = vmatpush1.msra.mxu0 0.0
  %1218 = vmatprep.subr.mxu0 0.0
  %1219 = vmatpush1.msra.mxu0 0.0
  %1220 = vmatprep.subr.mxu0 0.0
  %1221 = vmatpush1.msra.mxu0 0.0
  %1222 = vmatprep.subr.mxu0 0.0
  %1223 = vmatpush1.msra.mxu0 0.0
  %1224 = vmatprep.subr.mxu0 0.0
  %1225 = vmatpush1.msra.mxu0 0.0
  %1226 = vmatprep.subr.mxu0 0.0
  %1227 = vmatpush1.msra.mxu0 0.0
  %1228 = vmatprep.subr.mxu0 0.0
  %1229 = vmatpush1.msra.mxu0 0.0
  %1230 = vmatprep.subr.mxu0 0.0
  %1231 = vmatpush1.msra.mxu0 0.0
  %1232 = vmatprep.subr.mxu0 0.0
  %1233 = vmatpush1.msra.mxu0 0.0
  %1234 = vmatprep.subr.mxu0 0.0
  %1235 = vmatpush1.msra.mxu0 0.0
  %1236 = vmatprep.subr.mxu0 0.0
  %1237 = vmatpush1.msra.mxu0 0.0
  %1238 = vmatprep.subr.mxu0 0.0
  %1239 = vmatpush1.msra.mxu0 0.0
  %1240 = vmatprep.subr.mxu0 0.0
  %1241 = vmatpush1.msra.mxu0 0.0
  %1242 = vmatprep.subr.mxu0 0.0
  %1243 = vmatpush1.msra.mxu0 0.0
  %1244 = vmatprep.subr.mxu0 0.0
  %1245 = vmatpush1.msra.mxu0 0.0
  %1246 = vmatprep.subr.mxu0 0.0
  %1247 = vmatpush1.msra.mxu0 0.0
  %1248 = vmatprep.subr.mxu0 0.0
  %1249 = vmatpush1.msra.mxu0 0.0
  %1250 = vmatprep.subr.mxu0 0.0
  %1251 = vmatpush1.msra.mxu0 0.0
  %1252 = vmatprep.subr.mxu0 0.0
  %1253 = vmatpush1.msra.mxu0 0.0
  %1254 = vmatprep.subr.mxu0 0.0
  %1255 = vmatpush1.msra.mxu0 0.0
  %1256 = vmatprep.subr.mxu0 0.0
  %1257 = vmatpush1.msra.mxu0 0.0
  %1258 = vmatprep.subr.mxu0 0.0
  %1259 = vmatpush1.msra.mxu0 0.0
  %1260 = vmatprep.subr.mxu0 0.0
  %1261 = vmatpush1.msra.mxu0 0.0
  %1262 = vmatprep.subr.mxu0 0.0
  %1263 = vmatpush1.msra.mxu0 0.0
  %1264 = vmatprep.subr.mxu0 0.0
  %1265 = vmatpush1.msra.mxu0 0.0
  %1266 = vmatprep.subr.mxu0 0.0
  %1267 = vmatpush1.msra.mxu0 0.0
  %1268 = vmatprep.subr.mxu0 0.0
  %1269 = vmatpush1.msra.mxu0 0.0
  %1270 = vmatprep.subr.mxu0 0.0
  %1271 = vmatpush1.msra.mxu0 0.0
  %1272 = vmatprep.subr.mxu0 0.0
  %1273 = vmatpush1.msra.mxu0 0.0
  %1274 = vmatprep.subr.mxu0 0.0
  %1275 = vmatpush1.msra.mxu0 0.0
  %1276 = vmatprep.subr.mxu0 0.0
  %1277 = vmatpush1.msra.mxu0 0.0
  %1278 = vmatprep.mubr.f32.mxu0 0.0
  %1279 = vmatmul.mubr.f32.gmra.mrb[0].mxu0 %v1212
  %v1280 = vpop.f32.mrb[0].mxu0
  %v1281 = vadd.f32 0.0, %v1280
  %v1282 = vpop.f32.mrb[0].mxu0
  %1283 = vdwg.mxu0
  %1284 = vrot.lane.b32.xlu0 %v194, 64
  %v1285 = vpop.permute.xlu0 %1284
  %v1288 = vsel %vm201, %v901, 0
  %1290 = vmatprep.subr.mxu0 0.0
  %1291 = vmatpush1.msra.mxu0 %v1285
  %1292 = vmatprep.subr.mxu0 0.0
  %1293 = vmatpush1.msra.mxu0 0.0
  %1294 = vmatprep.subr.mxu0 0.0
  %1295 = vmatpush1.msra.mxu0 0.0
  %1296 = vmatprep.subr.mxu0 0.0
  %1297 = vmatpush1.msra.mxu0 0.0
  %1298 = vmatprep.subr.mxu0 0.0
  %1299 = vmatpush1.msra.mxu0 0.0
  %1300 = vmatprep.subr.mxu0 0.0
  %1301 = vmatpush1.msra.mxu0 0.0
  %1302 = vmatprep.subr.mxu0 0.0
  %1303 = vmatpush1.msra.mxu0 0.0
  %1304 = vmatprep.subr.mxu0 0.0
  %1305 = vmatpush1.msra.mxu0 0.0
  %1306 = vmatprep.subr.mxu0 0.0
  %1307 = vmatpush1.msra.mxu0 0.0
  %1308 = vmatprep.subr.mxu0 0.0
  %1309 = vmatpush1.msra.mxu0 0.0
  %1310 = vmatprep.subr.mxu0 0.0
  %1311 = vmatpush1.msra.mxu0 0.0
  %1312 = vmatprep.subr.mxu0 0.0
  %1313 = vmatpush1.msra.mxu0 0.0
  %1314 = vmatprep.subr.mxu0 0.0
  %1315 = vmatpush1.msra.mxu0 0.0
  %1316 = vmatprep.subr.mxu0 0.0
  %1317 = vmatpush1.msra.mxu0 0.0
  %1318 = vmatprep.subr.mxu0 0.0
  %1319 = vmatpush1.msra.mxu0 0.0
  %1320 = vmatprep.subr.mxu0 0.0
  %1321 = vmatpush1.msra.mxu0 0.0
  %1322 = vmatprep.subr.mxu0 0.0
  %1323 = vmatpush1.msra.mxu0 0.0
  %1324 = vmatprep.subr.mxu0 0.0
  %1325 = vmatpush1.msra.mxu0 0.0
  %1326 = vmatprep.subr.mxu0 0.0
  %1327 = vmatpush1.msra.mxu0 0.0
  %1328 = vmatprep.subr.mxu0 0.0
  %1329 = vmatpush1.msra.mxu0 0.0
  %1330 = vmatprep.subr.mxu0 0.0
  %1331 = vmatpush1.msra.mxu0 0.0
  %1332 = vmatprep.subr.mxu0 0.0
  %1333 = vmatpush1.msra.mxu0 0.0
  %1334 = vmatprep.subr.mxu0 0.0
  %1335 = vmatpush1.msra.mxu0 0.0
  %1336 = vmatprep.subr.mxu0 0.0
  %1337 = vmatpush1.msra.mxu0 0.0
  %1338 = vmatprep.subr.mxu0 0.0
  %1339 = vmatpush1.msra.mxu0 0.0
  %1340 = vmatprep.subr.mxu0 0.0
  %1341 = vmatpush1.msra.mxu0 0.0
  %1342 = vmatprep.subr.mxu0 0.0
  %1343 = vmatpush1.msra.mxu0 0.0
  %1344 = vmatprep.subr.mxu0 0.0
  %1345 = vmatpush1.msra.mxu0 0.0
  %1346 = vmatprep.subr.mxu0 0.0
  %1347 = vmatpush1.msra.mxu0 0.0
  %1348 = vmatprep.subr.mxu0 0.0
  %1349 = vmatpush1.msra.mxu0 0.0
  %1350 = vmatprep.subr.mxu0 0.0
  %1351 = vmatpush1.msra.mxu0 0.0
  %1352 = vmatprep.subr.mxu0 0.0
  %1353 = vmatpush1.msra.mxu0 0.0
  %1354 = vmatprep.mubr.f32.mxu0 0.0
  %1355 = vmatmul.mubr.f32.gmra.mrb[0].mxu0 %v1288
  %v1356 = vpop.f32.mrb[0].mxu0
  %v1357 = vadd.f32 0.0, %v1356
  %v1358 = vpop.f32.mrb[0].mxu0
  %1359 = vdwg.mxu0
  %1360 = vrot.lane.b32.xlu0 %v196, 64
  %v1361 = vpop.permute.xlu0 %1360
  %v1364 = vsel %vm201, %v902, 0
  %1366 = vmatprep.subr.mxu0 0.0
  %1367 = vmatpush1.msra.mxu0 %v1361
  %1368 = vmatprep.subr.mxu0 0.0
  %1369 = vmatpush1.msra.mxu0 0.0
  %1370 = vmatprep.subr.mxu0 0.0
  %1371 = vmatpush1.msra.mxu0 0.0
  %1372 = vmatprep.subr.mxu0 0.0
  %1373 = vmatpush1.msra.mxu0 0.0
  %1374 = vmatprep.subr.mxu0 0.0
  %1375 = vmatpush1.msra.mxu0 0.0
  %1376 = vmatprep.subr.mxu0 0.0
  %1377 = vmatpush1.msra.mxu0 0.0
  %1378 = vmatprep.subr.mxu0 0.0
  %1379 = vmatpush1.msra.mxu0 0.0
  %1380 = vmatprep.subr.mxu0 0.0
  %1381 = vmatpush1.msra.mxu0 0.0
  %1382 = vmatprep.subr.mxu0 0.0
  %1383 = vmatpush1.msra.mxu0 0.0
  %1384 = vmatprep.subr.mxu0 0.0
  %1385 = vmatpush1.msra.mxu0 0.0
  %1386 = vmatprep.subr.mxu0 0.0
  %1387 = vmatpush1.msra.mxu0 0.0
  %1388 = vmatprep.subr.mxu0 0.0
  %1389 = vmatpush1.msra.mxu0 0.0
  %1390 = vmatprep.subr.mxu0 0.0
  %1391 = vmatpush1.msra.mxu0 0.0
  %1392 = vmatprep.subr.mxu0 0.0
  %1393 = vmatpush1.msra.mxu0 0.0
  %1394 = vmatprep.subr.mxu0 0.0
  %1395 = vmatpush1.msra.mxu0 0.0
  %1396 = vmatprep.subr.mxu0 0.0
  %1397 = vmatpush1.msra.mxu0 0.0
  %1398 = vmatprep.subr.mxu0 0.0
  %1399 = vmatpush1.msra.mxu0 0.0
  %1400 = vmatprep.subr.mxu0 0.0
  %1401 = vmatpush1.msra.mxu0 0.0
  %1402 = vmatprep.subr.mxu0 0.0
  %1403 = vmatpush1.msra.mxu0 0.0
  %1404 = vmatprep.subr.mxu0 0.0
  %1405 = vmatpush1.msra.mxu0 0.0
  %1406 = vmatprep.subr.mxu0 0.0
  %1407 = vmatpush1.msra.mxu0 0.0
  %1408 = vmatprep.subr.mxu0 0.0
  %1409 = vmatpush1.msra.mxu0 0.0
  %1410 = vmatprep.subr.mxu0 0.0
  %1411 = vmatpush1.msra.mxu0 0.0
  %1412 = vmatprep.subr.mxu0 0.0
  %1413 = vmatpush1.msra.mxu0 0.0
  %1414 = vmatprep.subr.mxu0 0.0
  %1415 = vmatpush1.msra.mxu0 0.0
  %1416 = vmatprep.subr.mxu0 0.0
  %1417 = vmatpush1.msra.mxu0 0.0
  %1418 = vmatprep.subr.mxu0 0.0
  %1419 = vmatpush1.msra.mxu0 0.0
  %1420 = vmatprep.subr.mxu0 0.0
  %1421 = vmatpush1.msra.mxu0 0.0
  %1422 = vmatprep.subr.mxu0 0.0
  %1423 = vmatpush1.msra.mxu0 0.0
  %1424 = vmatprep.subr.mxu0 0.0
  %1425 = vmatpush1.msra.mxu0 0.0
  %1426 = vmatprep.subr.mxu0 0.0
  %1427 = vmatpush1.msra.mxu0 0.0
  %1428 = vmatprep.subr.mxu0 0.0
  %1429 = vmatpush1.msra.mxu0 0.0
  %1430 = vmatprep.mubr.f32.mxu0 0.0
  %1431 = vmatmul.mubr.f32.gmra.mrb[0].mxu0 %v1364
  %v1432 = vpop.f32.mrb[0].mxu0
  %v1433 = vadd.f32 0.0, %v1432
  %v1434 = vpop.f32.mrb[0].mxu0
  %1435 = vdwg.mxu0
  %1436 = vrot.lane.b32.xlu0 %v198, 64
  %v1437 = vpop.permute.xlu0 %1436
  %v1440 = vsel %vm201, %v903, 0
  %1442 = vmatprep.subr.mxu0 0.0
  %1443 = vmatpush1.msra.mxu0 %v1437
  %1444 = vmatprep.subr.mxu0 0.0
  %1445 = vmatpush1.msra.mxu0 0.0
  %1446 = vmatprep.subr.mxu0 0.0
  %1447 = vmatpush1.msra.mxu0 0.0
  %1448 = vmatprep.subr.mxu0 0.0
  %1449 = vmatpush1.msra.mxu0 0.0
  %1450 = vmatprep.subr.mxu0 0.0
  %1451 = vmatpush1.msra.mxu0 0.0
  %1452 = vmatprep.subr.mxu0 0.0
  %1453 = vmatpush1.msra.mxu0 0.0
  %1454 = vmatprep.subr.mxu0 0.0
  %1455 = vmatpush1.msra.mxu0 0.0
  %1456 = vmatprep.subr.mxu0 0.0
  %1457 = vmatpush1.msra.mxu0 0.0
  %1458 = vmatprep.subr.mxu0 0.0
  %1459 = vmatpush1.msra.mxu0 0.0
  %1460 = vmatprep.subr.mxu0 0.0
  %1461 = vmatpush1.msra.mxu0 0.0
  %1462 = vmatprep.subr.mxu0 0.0
  %1463 = vmatpush1.msra.mxu0 0.0
  %1464 = vmatprep.subr.mxu0 0.0
  %1465 = vmatpush1.msra.mxu0 0.0
  %1466 = vmatprep.subr.mxu0 0.0
  %1467 = vmatpush1.msra.mxu0 0.0
  %1468 = vmatprep.subr.mxu0 0.0
  %1469 = vmatpush1.msra.mxu0 0.0
  %1470 = vmatprep.subr.mxu0 0.0
  %1471 = vmatpush1.msra.mxu0 0.0
  %1472 = vmatprep.subr.mxu0 0.0
  %1473 = vmatpush1.msra.mxu0 0.0
  %1474 = vmatprep.subr.mxu0 0.0
  %1475 = vmatpush1.msra.mxu0 0.0
  %1476 = vmatprep.subr.mxu0 0.0
  %1477 = vmatpush1.msra.mxu0 0.0
  %1478 = vmatprep.subr.mxu0 0.0
  %1479 = vmatpush1.msra.mxu0 0.0
  %1480 = vmatprep.subr.mxu0 0.0
  %1481 = vmatpush1.msra.mxu0 0.0
  %1482 = vmatprep.subr.mxu0 0.0
  %1483 = vmatpush1.msra.mxu0 0.0
  %1484 = vmatprep.subr.mxu0 0.0
  %1485 = vmatpush1.msra.mxu0 0.0
  %1486 = vmatprep.subr.mxu0 0.0
  %1487 = vmatpush1.msra.mxu0 0.0
  %1488 = vmatprep.subr.mxu0 0.0
  %1489 = vmatpush1.msra.mxu0 0.0
  %1490 = vmatprep.subr.mxu0 0.0
  %1491 = vmatpush1.msra.mxu0 0.0
  %1492 = vmatprep.subr.mxu0 0.0
  %1493 = vmatpush1.msra.mxu0 0.0
  %1494 = vmatprep.subr.mxu0 0.0
  %1495 = vmatpush1.msra.mxu0 0.0
  %1496 = vmatprep.subr.mxu0 0.0
  %1497 = vmatpush1.msra.mxu0 0.0
  %1498 = vmatprep.subr.mxu0 0.0
  %1499 = vmatpush1.msra.mxu0 0.0
  %1500 = vmatprep.subr.mxu0 0.0
  %1501 = vmatpush1.msra.mxu0 0.0
  %1502 = vmatprep.subr.mxu0 0.0
  %1503 = vmatpush1.msra.mxu0 0.0
  %1504 = vmatprep.subr.mxu0 0.0
  %1505 = vmatpush1.msra.mxu0 0.0
  %1506 = vmatprep.mubr.f32.mxu0 0.0
  %1507 = vmatmul.mubr.f32.gmra.mrb[0].mxu0 %v1440
  %v1508 = vpop.f32.mrb[0].mxu0
  %v1509 = vadd.f32 0.0, %v1508
  %v1510 = vpop.f32.mrb[0].mxu0
  %1511 = vdwg.mxu0
  %1514 = vrot.lane.b32.xlu0 %v1129, 8
  %v1515 = vpop.permute.xlu0 %1514
  %1516 = vrot.lane.b32.xlu0 %v1205, 8
  %v1517 = vpop.permute.xlu0 %1516
  %1522 = vrot.lane.b32.xlu0 %v1281, 16
  %v1523 = vpop.permute.xlu0 %1522
  %1524 = vrot.lane.b32.xlu0 %v1357, 16
  %v1525 = vpop.permute.xlu0 %1524
  %1530 = vrot.lane.b32.xlu0 %v1433, 24
  %v1531 = vpop.permute.xlu0 %1530
  %1532 = vrot.lane.b32.xlu0 %v1509, 24
  %v1533 = vpop.permute.xlu0 %1532
  %v1536 = vsel %vm201, %v977, %v1515
  %v1537 = vsel %vm201, %v1053, %v1517
  %vm1538 = vcmask 130048
  %v1539 = vsel %vm1538, %v1536, %v1523
  %v1540 = vsel %vm1538, %v1537, %v1525
  %vm1541 = vcmask 195584
  %v1542 = vsel %vm1541, %v1539, %v1531
  %v1543 = vsel %vm1541, %v1540, %v1533
  %v1545 = vlaneseq
  %v1546 = vshrl.u32 %v1545, 7
  %v1547 = vsub.s32 0, %v1546
  %v1548 = vrot.slane %v184, %v1547
  %v1551 = vsel %vm98, %v1542, 0
  %v1554 = vsel %vm98, %v1543, 0
  %1556 = vmatprep.subr.mxu0 0.0
  %1557 = vmatpush1.msra.mxu0 %v180
  %1558 = vmatprep.subr.mxu0 0.0
  %1559 = vmatpush1.msra.mxu0 %v181
  %1560 = vmatprep.subr.mxu0 0.0
  %1561 = vmatpush1.msra.mxu0 %v182
  %1562 = vmatprep.subr.mxu0 0.0
  %1563 = vmatpush1.msra.mxu0 %v183
  %1564 = vmatprep.subr.mxu0 0.0
  %1565 = vmatpush1.msra.mxu0 0.0
  %1566 = vmatprep.subr.mxu0 0.0
  %1567 = vmatpush1.msra.mxu0 0.0
  %1568 = vmatprep.subr.mxu0 0.0
  %1569 = vmatpush1.msra.mxu0 0.0
  %1570 = vmatprep.subr.mxu0 0.0
  %1571 = vmatpush1.msra.mxu0 0.0
  %1572 = vmatprep.subr.mxu0 0.0
  %1573 = vmatpush1.msra.mxu0 0.0
  %1574 = vmatprep.subr.mxu0 0.0
  %1575 = vmatpush1.msra.mxu0 0.0
  %1576 = vmatprep.subr.mxu0 0.0
  %1577 = vmatpush1.msra.mxu0 0.0
  %1578 = vmatprep.subr.mxu0 0.0
  %1579 = vmatpush1.msra.mxu0 0.0
  %1580 = vmatprep.subr.mxu0 0.0
  %1581 = vmatpush1.msra.mxu0 0.0
  %1582 = vmatprep.subr.mxu0 0.0
  %1583 = vmatpush1.msra.mxu0 0.0
  %1584 = vmatprep.subr.mxu0 0.0
  %1585 = vmatpush1.msra.mxu0 0.0
  %1586 = vmatprep.subr.mxu0 0.0
  %1587 = vmatpush1.msra.mxu0 0.0
  %1588 = vmatprep.subr.mxu0 0.0
  %1589 = vmatpush1.msra.mxu0 0.0
  %1590 = vmatprep.subr.mxu0 0.0
  %1591 = vmatpush1.msra.mxu0 0.0
  %1592 = vmatprep.subr.mxu0 0.0
  %1593 = vmatpush1.msra.mxu0 0.0
  %1594 = vmatprep.subr.mxu0 0.0
  %1595 = vmatpush1.msra.mxu0 0.0
  %1596 = vmatprep.subr.mxu0 0.0
  %1597 = vmatpush1.msra.mxu0 0.0
  %1598 = vmatprep.subr.mxu0 0.0
  %1599 = vmatpush1.msra.mxu0 0.0
  %1600 = vmatprep.subr.mxu0 0.0
  %1601 = vmatpush1.msra.mxu0 0.0
  %1602 = vmatprep.subr.mxu0 0.0
  %1603 = vmatpush1.msra.mxu0 0.0
  %1604 = vmatprep.subr.mxu0 0.0
  %1605 = vmatpush1.msra.mxu0 0.0
  %1606 = vmatprep.subr.mxu0 0.0
  %1607 = vmatpush1.msra.mxu0 0.0
  %1608 = vmatprep.subr.mxu0 0.0
  %1609 = vmatpush1.msra.mxu0 0.0
  %1610 = vmatprep.subr.mxu0 0.0
  %1611 = vmatpush1.msra.mxu0 0.0
  %1612 = vmatprep.subr.mxu0 0.0
  %1613 = vmatpush1.msra.mxu0 0.0
  %1614 = vmatprep.subr.mxu0 0.0
  %1615 = vmatpush1.msra.mxu0 0.0
  %1616 = vmatprep.subr.mxu0 0.0
  %1617 = vmatpush1.msra.mxu0 0.0
  %1618 = vmatprep.subr.mxu0 0.0
  %1619 = vmatpush1.msra.mxu0 0.0
  %1620 = vmatprep.mubr.f32.mxu0 0.0
  %1621 = vmatmul.mubr.f32.gmra.mrb[0].mxu0 %v1551
  %v1622 = vpop.f32.mrb[0].mxu0
  %v1623 = vadd.f32 %v1548, %v1622
  %v1624 = vpop.f32.mrb[0].mxu0
  %1625 = vmatprep.mubr.f32.mxu0 0.0
  %1626 = vmatmul.mubr.f32.gmra.mrb[0].mxu0 %v1554
  %v1627 = vpop.f32.mrb[0].mxu0
  %v1628 = vadd.f32 %v1548, %v1627
  %v1629 = vpop.f32.mrb[0].mxu0
  %1630 = vdwg.mxu0
  %v1631 = vadd.f32 %v85, %v1623
  %v1632 = vadd.f32 %v86, %v1628
  %v1633 = vld [vmem:[%s8] sm:$0x1]
  %v1634 = vld [vmem:[%s9] sm:$0x1]
  %v1635 = vsel %vm98, %v1631, 0.0
  %1636 = vadd.xlane.f32.xlu0 %v1635
  %v1637 = vpop.xlane.xlu0 %1636
  %v1638 = vsel %vm98, %v1632, 0.0
  %1639 = vadd.xlane.f32.xlu0 %v1638
  %v1640 = vpop.xlane.xlu0 %1639
  %v1641 = vrcp.pop 32.0
  %v1642 = vmul.f32 %v1637, %v1641
  %v1643 = vmul.f32 %v1640, %v1641
  %v1644 = vsub.f32 %v1631, %v1642
  %v1645 = vsub.f32 %v1632, %v1643
  %v1646 = vmul.f32 %v1644, %v1644
  %v1647 = vmul.f32 %v1645, %v1645
  %v1648 = vsel %vm98, %v1646, 0.0
  %1649 = vadd.xlane.f32.xlu0 %v1648
  %v1650 = vpop.xlane.xlu0 %1649
  %v1651 = vsel %vm98, %v1647, 0.0
  %1652 = vadd.xlane.f32.xlu0 %v1651
  %v1653 = vpop.xlane.xlu0 %1652
  %v1654 = vmul.f32 %v1650, %v1641
  %v1655 = vmul.f32 %v1653, %v1641
  %v1656 = vadd.f32 %v1654, 1e-05
  %v1657 = vadd.f32 %v1655, 1e-05
  %v1658 = vrsqrt.pop %v1656
  %v1659 = vrsqrt.pop %v1657
  %v1660 = vmul.f32 %v1644, %v1658
  %v1661 = vmul.f32 %v1645, %v1659
  %v1663 = vlaneseq
  %v1664 = vshrl.u32 %v1663, 7
  %v1665 = vsub.s32 0, %v1664
  %v1666 = vrot.slane %v1633, %v1665
  %v1668 = vmul.f32 %v1660, %v1666
  %v1669 = vmul.f32 %v1661, %v1666
  %v1671 = vlaneseq
  %v1672 = vshrl.u32 %v1671, 7
  %v1673 = vsub.s32 0, %v1672
  %v1674 = vrot.slane %v1634, %v1673
  %v1676 = vadd.f32 %v1668, %v1674
  %v1677 = vadd.f32 %v1669, %v1674
  %v1678 = vld [vmem:[%s10] sm:$0xff]
  %v1679 = vld [vmem:[%s10 + $0x8] sm:$0xff]
  %v1680 = vld [vmem:[%s10 + $0x10] sm:$0xff]
  %v1681 = vld [vmem:[%s10 + $0x18] sm:$0xff]
  %v1682 = vld [vmem:[%s11] sm:$0x1]
  %v1684 = vlaneseq
  %v1685 = vshrl.u32 %v1684, 7
  %v1686 = vsub.s32 0, %v1685
  %v1687 = vrot.slane %v1682, %v1686
  %v1690 = vsel %vm98, %v1676, 0
  %v1693 = vsel %vm98, %v1677, 0
  %1695 = vmatprep.subr.mxu0 0.0
  %1696 = vmatpush1.msra.mxu0 %v1678
  %1697 = vmatprep.subr.mxu0 0.0
  %1698 = vmatpush1.msra.mxu0 %v1679
  %1699 = vmatprep.subr.mxu0 0.0
  %1700 = vmatpush1.msra.mxu0 %v1680
  %1701 = vmatprep.subr.mxu0 0.0
  %1702 = vmatpush1.msra.mxu0 %v1681
  %1703 = vmatprep.subr.mxu0 0.0
  %1704 = vmatpush1.msra.mxu0 0.0
  %1705 = vmatprep.subr.mxu0 0.0
  %1706 = vmatpush1.msra.mxu0 0.0
  %1707 = vmatprep.subr.mxu0 0.0
  %1708 = vmatpush1.msra.mxu0 0.0
  %1709 = vmatprep.subr.mxu0 0.0
  %1710 = vmatpush1.msra.mxu0 0.0
  %1711 = vmatprep.subr.mxu0 0.0
  %1712 = vmatpush1.msra.mxu0 0.0
  %1713 = vmatprep.subr.mxu0 0.0
  %1714 = vmatpush1.msra.mxu0 0.0
  %1715 = vmatprep.subr.mxu0 0.0
  %1716 = vmatpush1.msra.mxu0 0.0
  %1717 = vmatprep.subr.mxu0 0.0
  %1718 = vmatpush1.msra.mxu0 0.0
  %1719 = vmatprep.subr.mxu0 0.0
  %1720 = vmatpush1.msra.mxu0 0.0
  %1721 = vmatprep.subr.mxu0 0.0
  %1722 = vmatpush1.msra.mxu0 0.0
  %1723 = vmatprep.subr.mxu0 0.0
  %1724 = vmatpush1.msra.mxu0 0.0
  %1725 = vmatprep.subr.mxu0 0.0
  %1726 = vmatpush1.msra.mxu0 0.0
  %1727 = vmatprep.subr.mxu0 0.0
  %1728 = vmatpush1.msra.mxu0 0.0
  %1729 = vmatprep.subr.mxu0 0.0
  %1730 = vmatpush1.msra.mxu0 0.0
  %1731 = vmatprep.subr.mxu0 0.0
  %1732 = vmatpush1.msra.mxu0 0.0
  %1733 = vmatprep.subr.mxu0 0.0
  %1734 = vmatpush1.msra.mxu0 0.0
  %1735 = vmatprep.subr.mxu0 0.0
  %1736 = vmatpush1.msra.mxu0 0.0
  %1737 = vmatprep.subr.mxu0 0.0
  %1738 = vmatpush1.msra.mxu0 0.0
  %1739 = vmatprep.subr.mxu0 0.0
  %1740 = vmatpush1.msra.mxu0 0.0
  %1741 = vmatprep.subr.mxu0 0.0
  %1742 = vmatpush1.msra.mxu0 0.0
  %1743 = vmatprep.subr.mxu0 0.0
  %1744 = vmatpush1.msra.mxu0 0.0
  %1745 = vmatprep.subr.mxu0 0.0
  %1746 = vmatpush1.msra.mxu0 0.0
  %1747 = vmatprep.subr.mxu0 0.0
  %1748 = vmatpush1.msra.mxu0 0.0
  %1749 = vmatprep.subr.mxu0 0.0
  %1750 = vmatpush1.msra.mxu0 0.0
  %1751 = vmatprep.subr.mxu0 0.0
  %1752 = vmatpush1.msra.mxu0 0.0
  %1753 = vmatprep.subr.mxu0 0.0
  %1754 = vmatpush1.msra.mxu0 0.0
  %1755 = vmatprep.subr.mxu0 0.0
  %1756 = vmatpush1.msra.mxu0 0.0
  %1757 = vmatprep.subr.mxu0 0.0
  %1758 = vmatpush1.msra.mxu0 0.0
  %1759 = vmatprep.mubr.f32.mxu0 0.0
  %1760 = vmatmul.mubr.f32.gmra.mrb[0].mxu0 %v1690
  %v1761 = vpop.f32.mrb[0].mxu0
  %v1762 = vadd.f32 %v1687, %v1761
  %v1763 = vpop.f32.mrb[0].mxu0
  %1764 = vmatprep.mubr.f32.mxu0 0.0
  %1765 = vmatmul.mubr.f32.gmra.mrb[0].mxu0 %v1693
  %v1766 = vpop.f32.mrb[0].mxu0
  %v1767 = vadd.f32 %v1687, %v1766
  %v1768 = vpop.f32.mrb[0].mxu0
  %1769 = vdwg.mxu0
  %v1770 = vmax.f32 %v1762, 0.0
  %v1771 = vmax.f32 %v1767, 0.0
  %v1772 = vld [vmem:[%s12] sm:$0xff]
  %v1773 = vld [vmem:[%s12 + $0x8] sm:$0xff]
  %v1774 = vld [vmem:[%s12 + $0x10] sm:$0xff]
  %v1775 = vld [vmem:[%s12 + $0x18] sm:$0xff]
  %v1776 = vld [vmem:[%s12 + $0x20] sm:$0xff]
  %v1777 = vld [vmem:[%s12 + $0x28] sm:$0xff]
  %v1778 = vld [vmem:[%s12 + $0x30] sm:$0xff]
  %v1779 = vld [vmem:[%s12 + $0x38] sm:$0xff]
  %v1780 = vld [vmem:[%s13] sm:$0x1]
  %v1782 = vlaneseq
  %v1783 = vshrl.u32 %v1782, 7
  %v1784 = vsub.s32 0, %v1783
  %v1785 = vrot.slane %v1780, %v1784
  %vm1787 = vcmask 523264
  %v1789 = vsel %vm1787, %v1770, 0
  %v1792 = vsel %vm1787, %v1771, 0
  %1794 = vmatprep.subr.mxu0 0.0
  %1795 = vmatpush1.msra.mxu0 %v1772
  %1796 = vmatprep.subr.mxu0 0.0
  %1797 = vmatpush1.msra.mxu0 %v1773
  %1798 = vmatprep.subr.mxu0 0.0
  %1799 = vmatpush1.msra.mxu0 %v1774
  %1800 = vmatprep.subr.mxu0 0.0
  %1801 = vmatpush1.msra.mxu0 %v1775
  %1802 = vmatprep.subr.mxu0 0.0
  %1803 = vmatpush1.msra.mxu0 %v1776
  %1804 = vmatprep.subr.mxu0 0.0
  %1805 = vmatpush1.msra.mxu0 %v1777
  %1806 = vmatprep.subr.mxu0 0.0
  %1807 = vmatpush1.msra.mxu0 %v1778
  %1808 = vmatprep.subr.mxu0 0.0
  %1809 = vmatpush1.msra.mxu0 %v1779
  %1810 = vmatprep.subr.mxu0 0.0
  %1811 = vmatpush1.msra.mxu0 0.0
  %1812 = vmatprep.subr.mxu0 0.0
  %1813 = vmatpush1.msra.mxu0 0.0
  %1814 = vmatprep.subr.mxu0 0.0
  %1815 = vmatpush1.msra.mxu0 0.0
  %1816 = vmatprep.subr.mxu0 0.0
  %1817 = vmatpush1.msra.mxu0 0.0
  %1818 = vmatprep.subr.mxu0 0.0
  %1819 = vmatpush1.msra.mxu0 0.0
  %1820 = vmatprep.subr.mxu0 0.0
  %1821 = vmatpush1.msra.mxu0 0.0
  %1822 = vmatprep.subr.mxu0 0.0
  %1823 = vmatpush1.msra.mxu0 0.0
  %1824 = vmatprep.subr.mxu0 0.0
  %1825 = vmatpush1.msra.mxu0 0.0
  %1826 = vmatprep.subr.mxu0 0.0
  %1827 = vmatpush1.msra.mxu0 0.0
  %1828 = vmatprep.subr.mxu0 0.0
  %1829 = vmatpush1.msra.mxu0 0.0
  %1830 = vmatprep.subr.mxu0 0.0
  %1831 = vmatpush1.msra.mxu0 0.0
  %1832 = vmatprep.subr.mxu0 0.0
  %1833 = vmatpush1.msra.mxu0 0.0
  %1834 = vmatprep.subr.mxu0 0.0
  %1835 = vmatpush1.msra.mxu0 0.0
  %1836 = vmatprep.subr.mxu0 0.0
  %1837 = vmatpush1.msra.mxu0 0.0
  %1838 = vmatprep.subr.mxu0 0.0
  %1839 = vmatpush1.msra.mxu0 0.0
  %1840 = vmatprep.subr.mxu0 0.0
  %1841 = vmatpush1.msra.mxu0 0.0
  %1842 = vmatprep.subr.mxu0 0.0
  %1843 = vmatpush1.msra.mxu0 0.0
  %1844 = vmatprep.subr.mxu0 0.0
  %1845 = vmatpush1.msra.mxu0 0.0
  %1846 = vmatprep.subr.mxu0 0.0
  %1847 = vmatpush1.msra.mxu0 0.0
  %1848 = vmatprep.subr.mxu0 0.0
  %1849 = vmatpush1.msra.mxu0 0.0
  %1850 = vmatprep.subr.mxu0 0.0
  %1851 = vmatpush1.msra.mxu0 0.0
  %1852 = vmatprep.subr.mxu0 0.0
  %1853 = vmatpush1.msra.mxu0 0.0
  %1854 = vmatprep.subr.mxu0 0.0
  %1855 = vmatpush1.msra.mxu0 0.0
  %1856 = vmatprep.subr.mxu0 0.0
  %1857 = vmatpush1.msra.mxu0 0.0
  %1858 = vmatprep.mubr.f32.mxu0 0.0
  %1859 = vmatmul.mubr.f32.gmra.mrb[0].mxu0 %v1789
  %v1860 = vpop.f32.mrb[0].mxu0
  %v1861 = vadd.f32 %v1785, %v1860
  %v1862 = vpop.f32.mrb[0].mxu0
  %1863 = vmatprep.mubr.f32.mxu0 0.0
  %1864 = vmatmul.mubr.f32.gmra.mrb[0].mxu0 %v1792
  %v1865 = vpop.f32.mrb[0].mxu0
  %v1866 = vadd.f32 %v1785, %v1865
  %v1867 = vpop.f32.mrb[0].mxu0
  %1868 = vdwg.mxu0
  %v1869 = vadd.f32 %v1676, %v1861
  %v1870 = vadd.f32 %v1677, %v1866
  %v1871 = vld [vmem:[%s14] sm:$0x1]
  %v1872 = vld [vmem:[%s15] sm:$0x1]
  %v1873 = vsel %vm98, %v1869, 0.0
  %1874 = vadd.xlane.f32.xlu0 %v1873
  %v1875 = vpop.xlane.xlu0 %1874
  %v1876 = vsel %vm98, %v1870, 0.0
  %1877 = vadd.xlane.f32.xlu0 %v1876
  %v1878 = vpop.xlane.xlu0 %1877
  %v1879 = vmul.f32 %v1875, %v1641
  %v1880 = vmul.f32 %v1878, %v1641
  %v1881 = vsub.f32 %v1869, %v1879
  %v1882 = vsub.f32 %v1870, %v1880
  %v1883 = vmul.f32 %v1881, %v1881
  %v1884 = vmul.f32 %v1882, %v1882
  %v1885 = vsel %vm98, %v1883, 0.0
  %1886 = vadd.xlane.f32.xlu0 %v1885
  %v1887 = vpop.xlane.xlu0 %1886
  %v1888 = vsel %vm98, %v1884, 0.0
  %1889 = vadd.xlane.f32.xlu0 %v1888
  %v1890 = vpop.xlane.xlu0 %1889
  %v1891 = vmul.f32 %v1887, %v1641
  %v1892 = vmul.f32 %v1890, %v1641
  %v1893 = vadd.f32 %v1891, 1e-05
  %v1894 = vadd.f32 %v1892, 1e-05
  %v1895 = vrsqrt.pop %v1893
  %v1896 = vrsqrt.pop %v1894
  %v1897 = vmul.f32 %v1881, %v1895
  %v1898 = vmul.f32 %v1882, %v1896
  %v1900 = vlaneseq
  %v1901 = vshrl.u32 %v1900, 7
  %v1902 = vsub.s32 0, %v1901
  %v1903 = vrot.slane %v1871, %v1902
  %v1905 = vmul.f32 %v1897, %v1903
  %v1906 = vmul.f32 %v1898, %v1903
  %v1908 = vlaneseq
  %v1909 = vshrl.u32 %v1908, 7
  %v1910 = vsub.s32 0, %v1909
  %v1911 = vrot.slane %v1872, %v1910
  %v1913 = vadd.f32 %v1905, %v1911
  %v1914 = vadd.f32 %v1906, %v1911
  %s1915 = scalar_lea.vmem %s4, 32
  %v1916 = vld [vmem:[%s1915] sm:$0xff]
  %v1917 = vld [vmem:[%s1915 + $0x8] sm:$0xff]
  %v1918 = vld [vmem:[%s1915 + $0x10] sm:$0xff]
  %v1919 = vld [vmem:[%s1915 + $0x18] sm:$0xff]
  %s1920 = scalar_lea.vmem %s5, 1
  %v1921 = vld [vmem:[%s1920] sm:$0x1]
  %v1923 = vlaneseq
  %v1924 = vshrl.u32 %v1923, 7
  %v1925 = vsub.s32 0, %v1924
  %v1926 = vrot.slane %v1921, %v1925
  %v1929 = vsel %vm98, %v1913, 0
  %v1932 = vsel %vm98, %v1914, 0
  %1934 = vmatprep.subr.mxu0 0.0
  %1935 = vmatpush1.msra.mxu0 %v1916
  %1936 = vmatprep.subr.mxu0 0.0
  %1937 = vmatpush1.msra.mxu0 %v1917
  %1938 = vmatprep.subr.mxu0 0.0
  %1939 = vmatpush1.msra.mxu0 %v1918
  %1940 = vmatprep.subr.mxu0 0.0
  %1941 = vmatpush1.msra.mxu0 %v1919
  %1942 = vmatprep.subr.mxu0 0.0
  %1943 = vmatpush1.msra.mxu0 0.0
  %1944 = vmatprep.subr.mxu0 0.0
  %1945 = vmatpush1.msra.mxu0 0.0
  %1946 = vmatprep.subr.mxu0 0.0
  %1947 = vmatpush1.msra.mxu0 0.0
  %1948 = vmatprep.subr.mxu0 0.0
  %1949 = vmatpush1.msra.mxu0 0.0
  %1950 = vmatprep.subr.mxu0 0.0
  %1951 = vmatpush1.msra.mxu0 0.0
  %1952 = vmatprep.subr.mxu0 0.0
  %1953 = vmatpush1.msra.mxu0 0.0
  %1954 = vmatprep.subr.mxu0 0.0
  %1955 = vmatpush1.msra.mxu0 0.0
  %1956 = vmatprep.subr.mxu0 0.0
  %1957 = vmatpush1.msra.mxu0 0.0
  %1958 = vmatprep.subr.mxu0 0.0
  %1959 = vmatpush1.msra.mxu0 0.0
  %1960 = vmatprep.subr.mxu0 0.0
  %1961 = vmatpush1.msra.mxu0 0.0
  %1962 = vmatprep.subr.mxu0 0.0
  %1963 = vmatpush1.msra.mxu0 0.0
  %1964 = vmatprep.subr.mxu0 0.0
  %1965 = vmatpush1.msra.mxu0 0.0
  %1966 = vmatprep.subr.mxu0 0.0
  %1967 = vmatpush1.msra.mxu0 0.0
  %1968 = vmatprep.subr.mxu0 0.0
  %1969 = vmatpush1.msra.mxu0 0.0
  %1970 = vmatprep.subr.mxu0 0.0
  %1971 = vmatpush1.msra.mxu0 0.0
  %1972 = vmatprep.subr.mxu0 0.0
  %1973 = vmatpush1.msra.mxu0 0.0
  %1974 = vmatprep.subr.mxu0 0.0
  %1975 = vmatpush1.msra.mxu0 0.0
  %1976 = vmatprep.subr.mxu0 0.0
  %1977 = vmatpush1.msra.mxu0 0.0
  %1978 = vmatprep.subr.mxu0 0.0
  %1979 = vmatpush1.msra.mxu0 0.0
  %1980 = vmatprep.subr.mxu0 0.0
  %1981 = vmatpush1.msra.mxu0 0.0
  %1982 = vmatprep.subr.mxu0 0.0
  %1983 = vmatpush1.msra.mxu0 0.0
  %1984 = vmatprep.subr.mxu0 0.0
  %1985 = vmatpush1.msra.mxu0 0.0
  %1986 = vmatprep.subr.mxu0 0.0
  %1987 = vmatpush1.msra.mxu0 0.0
  %1988 = vmatprep.subr.mxu0 0.0
  %1989 = vmatpush1.msra.mxu0 0.0
  %1990 = vmatprep.subr.mxu0 0.0
  %1991 = vmatpush1.msra.mxu0 0.0
  %1992 = vmatprep.subr.mxu0 0.0
  %1993 = vmatpush1.msra.mxu0 0.0
  %1994 = vmatprep.subr.mxu0 0.0
  %1995 = vmatpush1.msra.mxu0 0.0
  %1996 = vmatprep.subr.mxu0 0.0
  %1997 = vmatpush1.msra.mxu0 0.0
  %1998 = vmatprep.mubr.f32.mxu0 0.0
  %1999 = vmatmul.mubr.f32.gmra.mrb[0].mxu0 %v1929
  %v2000 = vpop.f32.mrb[0].mxu0
  %v2001 = vadd.f32 %v1926, %v2000
  %v2002 = vpop.f32.mrb[0].mxu0
  %2003 = vmatprep.mubr.f32.mxu0 0.0
  %2004 = vmatmul.mubr.f32.gmra.mrb[0].mxu0 %v1932
  %v2005 = vpop.f32.mrb[0].mxu0
  %v2006 = vadd.f32 %v1926, %v2005
  %v2007 = vpop.f32.mrb[0].mxu0
  %2008 = vdwg.mxu0
  %s2009 = scalar_lea.vmem %s6, 32
  %v2010 = vld [vmem:[%s2009] sm:$0xff]
  %v2011 = vld [vmem:[%s2009 + $0x8] sm:$0xff]
  %v2012 = vld [vmem:[%s2009 + $0x10] sm:$0xff]
  %v2013 = vld [vmem:[%s2009 + $0x18] sm:$0xff]
  %s2014 = scalar_lea.vmem %s7, 1
  %v2015 = vld [vmem:[%s2014] sm:$0x1]
  %2018 = vrot.lane.b32.xlu0 %v2001, 120
  %v2019 = vpop.permute.xlu0 %2018
  %2020 = vrot.lane.b32.xlu0 %v2006, 120
  %v2021 = vpop.permute.xlu0 %2020
  %2022 = vrot.lane.b32.xlu0 %v2001, 112
  %v2023 = vpop.permute.xlu0 %2022
  %2024 = vrot.lane.b32.xlu0 %v2006, 112
  %v2025 = vpop.permute.xlu0 %2024
  %2026 = vrot.lane.b32.xlu0 %v2001, 104
  %v2027 = vpop.permute.xlu0 %2026
  %2028 = vrot.lane.b32.xlu0 %v2006, 104
  %v2029 = vpop.permute.xlu0 %2028
  %2030 = vrot.lane.b32.xlu0 %v2001, 96
  %v2031 = vpop.permute.xlu0 %2030
  %v2032 = vsel %vm201, %v2001, 0
  %v2034 = vsel %vm201, %v2031, 0
  %2036 = vmatprep.subr.mxu0 0.0
  %2037 = vmatpush1.xpose.msra.mxu0 %v2034
  %2038 = vmatprep.subr.mxu0 0.0
  %2039 = vmatpush1.xpose.msra.mxu0 0.0
  %2040 = vmatprep.subr.mxu0 0.0
  %2041 = vmatpush1.xpose.msra.mxu0 0.0
  %2042 = vmatprep.subr.mxu0 0.0
  %2043 = vmatpush1.xpose.msra.mxu0 0.0
  %2044 = vmatprep.subr.mxu0 0.0
  %2045 = vmatpush1.xpose.msra.mxu0 0.0
  %2046 = vmatprep.subr.mxu0 0.0
  %2047 = vmatpush1.xpose.msra.mxu0 0.0
  %2048 = vmatprep.subr.mxu0 0.0
  %2049 = vmatpush1.xpose.msra.mxu0 0.0
  %2050 = vmatprep.subr.mxu0 0.0
  %2051 = vmatpush1.xpose.msra.mxu0 0.0
  %2052 = vmatprep.subr.mxu0 0.0
  %2053 = vmatpush1.xpose.msra.mxu0 0.0
  %2054 = vmatprep.subr.mxu0 0.0
  %2055 = vmatpush1.xpose.msra.mxu0 0.0
  %2056 = vmatprep.subr.mxu0 0.0
  %2057 = vmatpush1.xpose.msra.mxu0 0.0
  %2058 = vmatprep.subr.mxu0 0.0
  %2059 = vmatpush1.xpose.msra.mxu0 0.0
  %2060 = vmatprep.subr.mxu0 0.0
  %2061 = vmatpush1.xpose.msra.mxu0 0.0
  %2062 = vmatprep.subr.mxu0 0.0
  %2063 = vmatpush1.xpose.msra.mxu0 0.0
  %2064 = vmatprep.subr.mxu0 0.0
  %2065 = vmatpush1.xpose.msra.mxu0 0.0
  %2066 = vmatprep.subr.mxu0 0.0
  %2067 = vmatpush1.xpose.msra.mxu0 0.0
  %2068 = vmatprep.subr.mxu0 0.0
  %2069 = vmatpush1.xpose.msra.mxu0 0.0
  %2070 = vmatprep.subr.mxu0 0.0
  %2071 = vmatpush1.xpose.msra.mxu0 0.0
  %2072 = vmatprep.subr.mxu0 0.0
  %2073 = vmatpush1.xpose.msra.mxu0 0.0
  %2074 = vmatprep.subr.mxu0 0.0
  %2075 = vmatpush1.xpose.msra.mxu0 0.0
  %2076 = vmatprep.subr.mxu0 0.0
  %2077 = vmatpush1.xpose.msra.mxu0 0.0
  %2078 = vmatprep.subr.mxu0 0.0
  %2079 = vmatpush1.xpose.msra.mxu0 0.0
  %2080 = vmatprep.subr.mxu0 0.0
  %2081 = vmatpush1.xpose.msra.mxu0 0.0
  %2082 = vmatprep.subr.mxu0 0.0
  %2083 = vmatpush1.xpose.msra.mxu0 0.0
  %2084 = vmatprep.subr.mxu0 0.0
  %2085 = vmatpush1.xpose.msra.mxu0 0.0
  %2086 = vmatprep.subr.mxu0 0.0
  %2087 = vmatpush1.xpose.msra.mxu0 0.0
  %2088 = vmatprep.subr.mxu0 0.0
  %2089 = vmatpush1.xpose.msra.mxu0 0.0
  %2090 = vmatprep.subr.mxu0 0.0
  %2091 = vmatpush1.xpose.msra.mxu0 0.0
  %2092 = vmatprep.subr.mxu0 0.0
  %2093 = vmatpush1.xpose.msra.mxu0 0.0
  %2094 = vmatprep.subr.mxu0 0.0
  %2095 = vmatpush1.xpose.msra.mxu0 0.0
  %2096 = vmatprep.subr.mxu0 0.0
  %2097 = vmatpush1.xpose.msra.mxu0 0.0
  %2098 = vmatprep.subr.mxu0 0.0
  %2099 = vmatpush1.xpose.msra.mxu0 0.0
  %2100 = vmatprep.mubr.f32.mxu0 0.0
  %2101 = vmatmul.mubr.f32.gmra.mrb[0].mxu0 %v2032
  %v2102 = vpop.f32.mrb[0].mxu0
  %v2103 = vadd.f32 0.0, %v2102
  %v2104 = vpop.f32.mrb[0].mxu0
  %2105 = vdwg.mxu0
  %2106 = vrot.lane.b32.xlu0 %v2006, 96
  %v2107 = vpop.permute.xlu0 %2106
  %v2108 = vsel %vm201, %v2006, 0
  %v2110 = vsel %vm201, %v2107, 0
  %2112 = vmatprep.subr.mxu0 0.0
  %2113 = vmatpush1.xpose.msra.mxu0 %v2110
  %2114 = vmatprep.subr.mxu0 0.0
  %2115 = vmatpush1.xpose.msra.mxu0 0.0
  %2116 = vmatprep.subr.mxu0 0.0
  %2117 = vmatpush1.xpose.msra.mxu0 0.0
  %2118 = vmatprep.subr.mxu0 0.0
  %2119 = vmatpush1.xpose.msra.mxu0 0.0
  %2120 = vmatprep.subr.mxu0 0.0
  %2121 = vmatpush1.xpose.msra.mxu0 0.0
  %2122 = vmatprep.subr.mxu0 0.0
  %2123 = vmatpush1.xpose.msra.mxu0 0.0
  %2124 = vmatprep.subr.mxu0 0.0
  %2125 = vmatpush1.xpose.msra.mxu0 0.0
  %2126 = vmatprep.subr.mxu0 0.0
  %2127 = vmatpush1.xpose.msra.mxu0 0.0
  %2128 = vmatprep.subr.mxu0 0.0
  %2129 = vmatpush1.xpose.msra.mxu0 0.0
  %2130 = vmatprep.subr.mxu0 0.0
  %2131 = vmatpush1.xpose.msra.mxu0 0.0
  %2132 = vmatprep.subr.mxu0 0.0
  %2133 = vmatpush1.xpose.msra.mxu0 0.0
  %2134 = vmatprep.subr.mxu0 0.0
  %2135 = vmatpush1.xpose.msra.mxu0 0.0
  %2136 = vmatprep.subr.mxu0 0.0
  %2137 = vmatpush1.xpose.msra.mxu0 0.0
  %2138 = vmatprep.subr.mxu0 0.0
  %2139 = vmatpush1.xpose.msra.mxu0 0.0
  %2140 = vmatprep.subr.mxu0 0.0
  %2141 = vmatpush1.xpose.msra.mxu0 0.0
  %2142 = vmatprep.subr.mxu0 0.0
  %2143 = vmatpush1.xpose.msra.mxu0 0.0
  %2144 = vmatprep.subr.mxu0 0.0
  %2145 = vmatpush1.xpose.msra.mxu0 0.0
  %2146 = vmatprep.subr.mxu0 0.0
  %2147 = vmatpush1.xpose.msra.mxu0 0.0
  %2148 = vmatprep.subr.mxu0 0.0
  %2149 = vmatpush1.xpose.msra.mxu0 0.0
  %2150 = vmatprep.subr.mxu0 0.0
  %2151 = vmatpush1.xpose.msra.mxu0 0.0
  %2152 = vmatprep.subr.mxu0 0.0
  %2153 = vmatpush1.xpose.msra.mxu0 0.0
  %2154 = vmatprep.subr.mxu0 0.0
  %2155 = vmatpush1.xpose.msra.mxu0 0.0
  %2156 = vmatprep.subr.mxu0 0.0
  %2157 = vmatpush1.xpose.msra.mxu0 0.0
  %2158 = vmatprep.subr.mxu0 0.0
  %2159 = vmatpush1.xpose.msra.mxu0 0.0
  %2160 = vmatprep.subr.mxu0 0.0
  %2161 = vmatpush1.xpose.msra.mxu0 0.0
  %2162 = vmatprep.subr.mxu0 0.0
  %2163 = vmatpush1.xpose.msra.mxu0 0.0
  %2164 = vmatprep.subr.mxu0 0.0
  %2165 = vmatpush1.xpose.msra.mxu0 0.0
  %2166 = vmatprep.subr.mxu0 0.0
  %2167 = vmatpush1.xpose.msra.mxu0 0.0
  %2168 = vmatprep.subr.mxu0 0.0
  %2169 = vmatpush1.xpose.msra.mxu0 0.0
  %2170 = vmatprep.subr.mxu0 0.0
  %2171 = vmatpush1.xpose.msra.mxu0 0.0
  %2172 = vmatprep.subr.mxu0 0.0
  %2173 = vmatpush1.xpose.msra.mxu0 0.0
  %2174 = vmatprep.subr.mxu0 0.0
  %2175 = vmatpush1.xpose.msra.mxu0 0.0
  %2176 = vmatprep.mubr.f32.mxu0 0.0
  %2177 = vmatmul.mubr.f32.gmra.mrb[0].mxu0 %v2108
  %v2178 = vpop.f32.mrb[0].mxu0
  %v2179 = vadd.f32 0.0, %v2178
  %v2180 = vpop.f32.mrb[0].mxu0
  %2181 = vdwg.mxu0
  %2182 = vrot.lane.b32.xlu0 %v2019, 96
  %v2183 = vpop.permute.xlu0 %2182
  %v2184 = vsel %vm201, %v2019, 0
  %v2186 = vsel %vm201, %v2183, 0
  %2188 = vmatprep.subr.mxu0 0.0
  %2189 = vmatpush1.xpose.msra.mxu0 %v2186
  %2190 = vmatprep.subr.mxu0 0.0
  %2191 = vmatpush1.xpose.msra.mxu0 0.0
  %2192 = vmatprep.subr.mxu0 0.0
  %2193 = vmatpush1.xpose.msra.mxu0 0.0
  %2194 = vmatprep.subr.mxu0 0.0
  %2195 = vmatpush1.xpose.msra.mxu0 0.0
  %2196 = vmatprep.subr.mxu0 0.0
  %2197 = vmatpush1.xpose.msra.mxu0 0.0
  %2198 = vmatprep.subr.mxu0 0.0
  %2199 = vmatpush1.xpose.msra.mxu0 0.0
  %2200 = vmatprep.subr.mxu0 0.0
  %2201 = vmatpush1.xpose.msra.mxu0 0.0
  %2202 = vmatprep.subr.mxu0 0.0
  %2203 = vmatpush1.xpose.msra.mxu0 0.0
  %2204 = vmatprep.subr.mxu0 0.0
  %2205 = vmatpush1.xpose.msra.mxu0 0.0
  %2206 = vmatprep.subr.mxu0 0.0
  %2207 = vmatpush1.xpose.msra.mxu0 0.0
  %2208 = vmatprep.subr.mxu0 0.0
  %2209 = vmatpush1.xpose.msra.mxu0 0.0
  %2210 = vmatprep.subr.mxu0 0.0
  %2211 = vmatpush1.xpose.msra.mxu0 0.0
  %2212 = vmatprep.subr.mxu0 0.0
  %2213 = vmatpush1.xpose.msra.mxu0 0.0
  %2214 = vmatprep.subr.mxu0 0.0
  %2215 = vmatpush1.xpose.msra.mxu0 0.0
  %2216 = vmatprep.subr.mxu0 0.0
  %2217 = vmatpush1.xpose.msra.mxu0 0.0
  %2218 = vmatprep.subr.mxu0 0.0
  %2219 = vmatpush1.xpose.msra.mxu0 0.0
  %2220 = vmatprep.subr.mxu0 0.0
  %2221 = vmatpush1.xpose.msra.mxu0 0.0
  %2222 = vmatprep.subr.mxu0 0.0
  %2223 = vmatpush1.xpose.msra.mxu0 0.0
  %2224 = vmatprep.subr.mxu0 0.0
  %2225 = vmatpush1.xpose.msra.mxu0 0.0
  %2226 = vmatprep.subr.mxu0 0.0
  %2227 = vmatpush1.xpose.msra.mxu0 0.0
  %2228 = vmatprep.subr.mxu0 0.0
  %2229 = vmatpush1.xpose.msra.mxu0 0.0
  %2230 = vmatprep.subr.mxu0 0.0
  %2231 = vmatpush1.xpose.msra.mxu0 0.0
  %2232 = vmatprep.subr.mxu0 0.0
  %2233 = vmatpush1.xpose.msra.mxu0 0.0
  %2234 = vmatprep.subr.mxu0 0.0
  %2235 = vmatpush1.xpose.msra.mxu0 0.0
  %2236 = vmatprep.subr.mxu0 0.0
  %2237 = vmatpush1.xpose.msra.mxu0 0.0
  %2238 = vmatprep.subr.mxu0 0.0
  %2239 = vmatpush1.xpose.msra.mxu0 0.0
  %2240 = vmatprep.subr.mxu0 0.0
  %2241 = vmatpush1.xpose.msra.mxu0 0.0
  %2242 = vmatprep.subr.mxu0 0.0
  %2243 = vmatpush1.xpose.msra.mxu0 0.0
  %2244 = vmatprep.subr.mxu0 0.0
  %2245 = vmatpush1.xpose.msra.mxu0 0.0
  %2246 = vmatprep.subr.mxu0 0.0
  %2247 = vmatpush1.xpose.msra.mxu0 0.0
  %2248 = vmatprep.subr.mxu0 0.0
  %2249 = vmatpush1.xpose.msra.mxu0 0.0
  %2250 = vmatprep.subr.mxu0 0.0
  %2251 = vmatpush1.xpose.msra.mxu0 0.0
  %2252 = vmatprep.mubr.f32.mxu0 0.0
  %2253 = vmatmul.mubr.f32.gmra.mrb[0].mxu0 %v2184
  %v2254 = vpop.f32.mrb[0].mxu0
  %v2255 = vadd.f32 0.0, %v2254
  %v2256 = vpop.f32.mrb[0].mxu0
  %2257 = vdwg.mxu0
  %2258 = vrot.lane.b32.xlu0 %v2021, 96
  %v2259 = vpop.permute.xlu0 %2258
  %v2260 = vsel %vm201, %v2021, 0
  %v2262 = vsel %vm201, %v2259, 0
  %2264 = vmatprep.subr.mxu0 0.0
  %2265 = vmatpush1.xpose.msra.mxu0 %v2262
  %2266 = vmatprep.subr.mxu0 0.0
  %2267 = vmatpush1.xpose.msra.mxu0 0.0
  %2268 = vmatprep.subr.mxu0 0.0
  %2269 = vmatpush1.xpose.msra.mxu0 0.0
  %2270 = vmatprep.subr.mxu0 0.0
  %2271 = vmatpush1.xpose.msra.mxu0 0.0
  %2272 = vmatprep.subr.mxu0 0.0
  %2273 = vmatpush1.xpose.msra.mxu0 0.0
  %2274 = vmatprep.subr.mxu0 0.0
  %2275 = vmatpush1.xpose.msra.mxu0 0.0
  %2276 = vmatprep.subr.mxu0 0.0
  %2277 = vmatpush1.xpose.msra.mxu0 0.0
  %2278 = vmatprep.subr.mxu0 0.0
  %2279 = vmatpush1.xpose.msra.mxu0 0.0
  %2280 = vmatprep.subr.mxu0 0.0
  %2281 = vmatpush1.xpose.msra.mxu0 0.0
  %2282 = vmatprep.subr.mxu0 0.0
  %2283 = vmatpush1.xpose.msra.mxu0 0.0
  %2284 = vmatprep.subr.mxu0 0.0
  %2285 = vmatpush1.xpose.msra.mxu0 0.0
  %2286 = vmatprep.subr.mxu0 0.0
  %2287 = vmatpush1.xpose.msra.mxu0 0.0
  %2288 = vmatprep.subr.mxu0 0.0
  %2289 = vmatpush1.xpose.msra.mxu0 0.0
  %2290 = vmatprep.subr.mxu0 0.0
  %2291 = vmatpush1.xpose.msra.mxu0 0.0
  %2292 = vmatprep.subr.mxu0 0.0
  %2293 = vmatpush1.xpose.msra.mxu0 0.0
  %2294 = vmatprep.subr.mxu0 0.0
  %2295 = vmatpush1.xpose.msra.mxu0 0.0
  %2296 = vmatprep.subr.mxu0 0.0
  %2297 = vmatpush1.xpose.msra.mxu0 0.0
  %2298 = vmatprep.subr.mxu0 0.0
  %2299 = vmatpush1.xpose.msra.mxu0 0.0
  %2300 = vmatprep.subr.mxu0 0.0
  %2301 = vmatpush1.xpose.msra.mxu0 0.0
  %2302 = vmatprep.subr.mxu0 0.0
  %2303 = vmatpush1.xpose.msra.mxu0 0.0
  %2304 = vmatprep.subr.mxu0 0.0
  %2305 = vmatpush1.xpose.msra.mxu0 0.0
  %2306 = vmatprep.subr.mxu0 0.0
  %2307 = vmatpush1.xpose.msra.mxu0 0.0
  %2308 = vmatprep.subr.mxu0 0.0
  %2309 = vmatpush1.xpose.msra.mxu0 0.0
  %2310 = vmatprep.subr.mxu0 0.0
  %2311 = vmatpush1.xpose.msra.mxu0 0.0
  %2312 = vmatprep.subr.mxu0 0.0
  %2313 = vmatpush1.xpose.msra.mxu0 0.0
  %2314 = vmatprep.subr.mxu0 0.0
  %2315 = vmatpush1.xpose.msra.mxu0 0.0
  %2316 = vmatprep.subr.mxu0 0.0
  %2317 = vmatpush1.xpose.msra.mxu0 0.0
  %2318 = vmatprep.subr.mxu0 0.0
  %2319 = vmatpush1.xpose.msra.mxu0 0.0
  %2320 = vmatprep.subr.mxu0 0.0
  %2321 = vmatpush1.xpose.msra.mxu0 0.0
  %2322 = vmatprep.subr.mxu0 0.0
  %2323 = vmatpush1.xpose.msra.mxu0 0.0
  %2324 = vmatprep.subr.mxu0 0.0
  %2325 = vmatpush1.xpose.msra.mxu0 0.0
  %2326 = vmatprep.subr.mxu0 0.0
  %2327 = vmatpush1.xpose.msra.mxu0 0.0
  %2328 = vmatprep.mubr.f32.mxu0 0.0
  %2329 = vmatmul.mubr.f32.gmra.mrb[0].mxu0 %v2260
  %v2330 = vpop.f32.mrb[0].mxu0
  %v2331 = vadd.f32 0.0, %v2330
  %v2332 = vpop.f32.mrb[0].mxu0
  %2333 = vdwg.mxu0
  %2334 = vrot.lane.b32.xlu0 %v2023, 96
  %v2335 = vpop.permute.xlu0 %2334
  %v2336 = vsel %vm201, %v2023, 0
  %v2338 = vsel %vm201, %v2335, 0
  %2340 = vmatprep.subr.mxu0 0.0
  %2341 = vmatpush1.xpose.msra.mxu0 %v2338
  %2342 = vmatprep.subr.mxu0 0.0
  %2343 = vmatpush1.xpose.msra.mxu0 0.0
  %2344 = vmatprep.subr.mxu0 0.0
  %2345 = vmatpush1.xpose.msra.mxu0 0.0
  %2346 = vmatprep.subr.mxu0 0.0
  %2347 = vmatpush1.xpose.msra.mxu0 0.0
  %2348 = vmatprep.subr.mxu0 0.0
  %2349 = vmatpush1.xpose.msra.mxu0 0.0
  %2350 = vmatprep.subr.mxu0 0.0
  %2351 = vmatpush1.xpose.msra.mxu0 0.0
  %2352 = vmatprep.subr.mxu0 0.0
  %2353 = vmatpush1.xpose.msra.mxu0 0.0
  %2354 = vmatprep.subr.mxu0 0.0
  %2355 = vmatpush1.xpose.msra.mxu0 0.0
  %2356 = vmatprep.subr.mxu0 0.0
  %2357 = vmatpush1.xpose.msra.mxu0 0.0
  %2358 = vmatprep.subr.mxu0 0.0
  %2359 = vmatpush1.xpose.msra.mxu0 0.0
  %2360 = vmatprep.subr.mxu0 0.0
  %2361 = vmatpush1.xpose.msra.mxu0 0.0
  %2362 = vmatprep.subr.mxu0 0.0
  %2363 = vmatpush1.xpose.msra.mxu0 0.0
  %2364 = vmatprep.subr.mxu0 0.0
  %2365 = vmatpush1.xpose.msra.mxu0 0.0
  %2366 = vmatprep.subr.mxu0 0.0
  %2367 = vmatpush1.xpose.msra.mxu0 0.0
  %2368 = vmatprep.subr.mxu0 0.0
  %2369 = vmatpush1.xpose.msra.mxu0 0.0
  %2370 = vmatprep.subr.mxu0 0.0
  %2371 = vmatpush1.xpose.msra.mxu0 0.0
  %2372 = vmatprep.subr.mxu0 0.0
  %2373 = vmatpush1.xpose.msra.mxu0 0.0
  %2374 = vmatprep.subr.mxu0 0.0
  %2375 = vmatpush1.xpose.msra.mxu0 0.0
  %2376 = vmatprep.subr.mxu0 0.0
  %2377 = vmatpush1.xpose.msra.mxu0 0.0
  %2378 = vmatprep.subr.mxu0 0.0
  %2379 = vmatpush1.xpose.msra.mxu0 0.0
  %2380 = vmatprep.subr.mxu0 0.0
  %2381 = vmatpush1.xpose.msra.mxu0 0.0
  %2382 = vmatprep.subr.mxu0 0.0
  %2383 = vmatpush1.xpose.msra.mxu0 0.0
  %2384 = vmatprep.subr.mxu0 0.0
  %2385 = vmatpush1.xpose.msra.mxu0 0.0
  %2386 = vmatprep.subr.mxu0 0.0
  %2387 = vmatpush1.xpose.msra.mxu0 0.0
  %2388 = vmatprep.subr.mxu0 0.0
  %2389 = vmatpush1.xpose.msra.mxu0 0.0
  %2390 = vmatprep.subr.mxu0 0.0
  %2391 = vmatpush1.xpose.msra.mxu0 0.0
  %2392 = vmatprep.subr.mxu0 0.0
  %2393 = vmatpush1.xpose.msra.mxu0 0.0
  %2394 = vmatprep.subr.mxu0 0.0
  %2395 = vmatpush1.xpose.msra.mxu0 0.0
  %2396 = vmatprep.subr.mxu0 0.0
  %2397 = vmatpush1.xpose.msra.mxu0 0.0
  %2398 = vmatprep.subr.mxu0 0.0
  %2399 = vmatpush1.xpose.msra.mxu0 0.0
  %2400 = vmatprep.subr.mxu0 0.0
  %2401 = vmatpush1.xpose.msra.mxu0 0.0
  %2402 = vmatprep.subr.mxu0 0.0
  %2403 = vmatpush1.xpose.msra.mxu0 0.0
  %2404 = vmatprep.mubr.f32.mxu0 0.0
  %2405 = vmatmul.mubr.f32.gmra.mrb[0].mxu0 %v2336
  %v2406 = vpop.f32.mrb[0].mxu0
  %v2407 = vadd.f32 0.0, %v2406
  %v2408 = vpop.f32.mrb[0].mxu0
  %2409 = vdwg.mxu0
  %2410 = vrot.lane.b32.xlu0 %v2025, 96
  %v2411 = vpop.permute.xlu0 %2410
  %v2412 = vsel %vm201, %v2025, 0
  %v2414 = vsel %vm201, %v2411, 0
  %2416 = vmatprep.subr.mxu0 0.0
  %2417 = vmatpush1.xpose.msra.mxu0 %v2414
  %2418 = vmatprep.subr.mxu0 0.0
  %2419 = vmatpush1.xpose.msra.mxu0 0.0
  %2420 = vmatprep.subr.mxu0 0.0
  %2421 = vmatpush1.xpose.msra.mxu0 0.0
  %2422 = vmatprep.subr.mxu0 0.0
  %2423 = vmatpush1.xpose.msra.mxu0 0.0
  %2424 = vmatprep.subr.mxu0 0.0
  %2425 = vmatpush1.xpose.msra.mxu0 0.0
  %2426 = vmatprep.subr.mxu0 0.0
  %2427 = vmatpush1.xpose.msra.mxu0 0.0
  %2428 = vmatprep.subr.mxu0 0.0
  %2429 = vmatpush1.xpose.msra.mxu0 0.0
  %2430 = vmatprep.subr.mxu0 0.0
  %2431 = vmatpush1.xpose.msra.mxu0 0.0
  %2432 = vmatprep.subr.mxu0 0.0
  %2433 = vmatpush1.xpose.msra.mxu0 0.0
  %2434 = vmatprep.subr.mxu0 0.0
  %2435 = vmatpush1.xpose.msra.mxu0 0.0
  %2436 = vmatprep.subr.mxu0 0.0
  %2437 = vmatpush1.xpose.msra.mxu0 0.0
  %2438 = vmatprep.subr.mxu0 0.0
  %2439 = vmatpush1.xpose.msra.mxu0 0.0
  %2440 = vmatprep.subr.mxu0 0.0
  %2441 = vmatpush1.xpose.msra.mxu0 0.0
  %2442 = vmatprep.subr.mxu0 0.0
  %2443 = vmatpush1.xpose.msra.mxu0 0.0
  %2444 = vmatprep.subr.mxu0 0.0
  %2445 = vmatpush1.xpose.msra.mxu0 0.0
  %2446 = vmatprep.subr.mxu0 0.0
  %2447 = vmatpush1.xpose.msra.mxu0 0.0
  %2448 = vmatprep.subr.mxu0 0.0
  %2449 = vmatpush1.xpose.msra.mxu0 0.0
  %2450 = vmatprep.subr.mxu0 0.0
  %2451 = vmatpush1.xpose.msra.mxu0 0.0
  %2452 = vmatprep.subr.mxu0 0.0
  %2453 = vmatpush1.xpose.msra.mxu0 0.0
  %2454 = vmatprep.subr.mxu0 0.0
  %2455 = vmatpush1.xpose.msra.mxu0 0.0
  %2456 = vmatprep.subr.mxu0 0.0
  %2457 = vmatpush1.xpose.msra.mxu0 0.0
  %2458 = vmatprep.subr.mxu0 0.0
  %2459 = vmatpush1.xpose.msra.mxu0 0.0
  %2460 = vmatprep.subr.mxu0 0.0
  %2461 = vmatpush1.xpose.msra.mxu0 0.0
  %2462 = vmatprep.subr.mxu0 0.0
  %2463 = vmatpush1.xpose.msra.mxu0 0.0
  %2464 = vmatprep.subr.mxu0 0.0
  %2465 = vmatpush1.xpose.msra.mxu0 0.0
  %2466 = vmatprep.subr.mxu0 0.0
  %2467 = vmatpush1.xpose.msra.mxu0 0.0
  %2468 = vmatprep.subr.mxu0 0.0
  %2469 = vmatpush1.xpose.msra.mxu0 0.0
  %2470 = vmatprep.subr.mxu0 0.0
  %2471 = vmatpush1.xpose.msra.mxu0 0.0
  %2472 = vmatprep.subr.mxu0 0.0
  %2473 = vmatpush1.xpose.msra.mxu0 0.0
  %2474 = vmatprep.subr.mxu0 0.0
  %2475 = vmatpush1.xpose.msra.mxu0 0.0
  %2476 = vmatprep.subr.mxu0 0.0
  %2477 = vmatpush1.xpose.msra.mxu0 0.0
  %2478 = vmatprep.subr.mxu0 0.0
  %2479 = vmatpush1.xpose.msra.mxu0 0.0
  %2480 = vmatprep.mubr.f32.mxu0 0.0
  %2481 = vmatmul.mubr.f32.gmra.mrb[0].mxu0 %v2412
  %v2482 = vpop.f32.mrb[0].mxu0
  %v2483 = vadd.f32 0.0, %v2482
  %v2484 = vpop.f32.mrb[0].mxu0
  %2485 = vdwg.mxu0
  %2486 = vrot.lane.b32.xlu0 %v2027, 96
  %v2487 = vpop.permute.xlu0 %2486
  %v2488 = vsel %vm201, %v2027, 0
  %v2490 = vsel %vm201, %v2487, 0
  %2492 = vmatprep.subr.mxu0 0.0
  %2493 = vmatpush1.xpose.msra.mxu0 %v2490
  %2494 = vmatprep.subr.mxu0 0.0
  %2495 = vmatpush1.xpose.msra.mxu0 0.0
  %2496 = vmatprep.subr.mxu0 0.0
  %2497 = vmatpush1.xpose.msra.mxu0 0.0
  %2498 = vmatprep.subr.mxu0 0.0
  %2499 = vmatpush1.xpose.msra.mxu0 0.0
  %2500 = vmatprep.subr.mxu0 0.0
  %2501 = vmatpush1.xpose.msra.mxu0 0.0
  %2502 = vmatprep.subr.mxu0 0.0
  %2503 = vmatpush1.xpose.msra.mxu0 0.0
  %2504 = vmatprep.subr.mxu0 0.0
  %2505 = vmatpush1.xpose.msra.mxu0 0.0
  %2506 = vmatprep.subr.mxu0 0.0
  %2507 = vmatpush1.xpose.msra.mxu0 0.0
  %2508 = vmatprep.subr.mxu0 0.0
  %2509 = vmatpush1.xpose.msra.mxu0 0.0
  %2510 = vmatprep.subr.mxu0 0.0
  %2511 = vmatpush1.xpose.msra.mxu0 0.0
  %2512 = vmatprep.subr.mxu0 0.0
  %2513 = vmatpush1.xpose.msra.mxu0 0.0
  %2514 = vmatprep.subr.mxu0 0.0
  %2515 = vmatpush1.xpose.msra.mxu0 0.0
  %2516 = vmatprep.subr.mxu0 0.0
  %2517 = vmatpush1.xpose.msra.mxu0 0.0
  %2518 = vmatprep.subr.mxu0 0.0
  %2519 = vmatpush1.xpose.msra.mxu0 0.0
  %2520 = vmatprep.subr.mxu0 0.0
  %2521 = vmatpush1.xpose.msra.mxu0 0.0
  %2522 = vmatprep.subr.mxu0 0.0
  %2523 = vmatpush1.xpose.msra.mxu0 0.0
  %2524 = vmatprep.subr.mxu0 0.0
  %2525 = vmatpush1.xpose.msra.mxu0 0.0
  %2526 = vmatprep.subr.mxu0 0.0
  %2527 = vmatpush1.xpose.msra.mxu0 0.0
  %2528 = vmatprep.subr.mxu0 0.0
  %2529 = vmatpush1.xpose.msra.mxu0 0.0
  %2530 = vmatprep.subr.mxu0 0.0
  %2531 = vmatpush1.xpose.msra.mxu0 0.0
  %2532 = vmatprep.subr.mxu0 0.0
  %2533 = vmatpush1.xpose.msra.mxu0 0.0
  %2534 = vmatprep.subr.mxu0 0.0
  %2535 = vmatpush1.xpose.msra.mxu0 0.0
  %2536 = vmatprep.subr.mxu0 0.0
  %2537 = vmatpush1.xpose.msra.mxu0 0.0
  %2538 = vmatprep.subr.mxu0 0.0
  %2539 = vmatpush1.xpose.msra.mxu0 0.0
  %2540 = vmatprep.subr.mxu0 0.0
  %2541 = vmatpush1.xpose.msra.mxu0 0.0
  %2542 = vmatprep.subr.mxu0 0.0
  %2543 = vmatpush1.xpose.msra.mxu0 0.0
  %2544 = vmatprep.subr.mxu0 0.0
  %2545 = vmatpush1.xpose.msra.mxu0 0.0
  %2546 = vmatprep.subr.mxu0 0.0
  %2547 = vmatpush1.xpose.msra.mxu0 0.0
  %2548 = vmatprep.subr.mxu0 0.0
  %2549 = vmatpush1.xpose.msra.mxu0 0.0
  %2550 = vmatprep.subr.mxu0 0.0
  %2551 = vmatpush1.xpose.msra.mxu0 0.0
  %2552 = vmatprep.subr.mxu0 0.0
  %2553 = vmatpush1.xpose.msra.mxu0 0.0
  %2554 = vmatprep.subr.mxu0 0.0
  %2555 = vmatpush1.xpose.msra.mxu0 0.0
  %2556 = vmatprep.mubr.f32.mxu0 0.0
  %2557 = vmatmul.mubr.f32.gmra.mrb[0].mxu0 %v2488
  %v2558 = vpop.f32.mrb[0].mxu0
  %v2559 = vadd.f32 0.0, %v2558
  %v2560 = vpop.f32.mrb[0].mxu0
  %2561 = vdwg.mxu0
  %2562 = vrot.lane.b32.xlu0 %v2029, 96
  %v2563 = vpop.permute.xlu0 %2562
  %v2564 = vsel %vm201, %v2029, 0
  %v2566 = vsel %vm201, %v2563, 0
  %2568 = vmatprep.subr.mxu0 0.0
  %2569 = vmatpush1.xpose.msra.mxu0 %v2566
  %2570 = vmatprep.subr.mxu0 0.0
  %2571 = vmatpush1.xpose.msra.mxu0 0.0
  %2572 = vmatprep.subr.mxu0 0.0
  %2573 = vmatpush1.xpose.msra.mxu0 0.0
  %2574 = vmatprep.subr.mxu0 0.0
  %2575 = vmatpush1.xpose.msra.mxu0 0.0
  %2576 = vmatprep.subr.mxu0 0.0
  %2577 = vmatpush1.xpose.msra.mxu0 0.0
  %2578 = vmatprep.subr.mxu0 0.0
  %2579 = vmatpush1.xpose.msra.mxu0 0.0
  %2580 = vmatprep.subr.mxu0 0.0
  %2581 = vmatpush1.xpose.msra.mxu0 0.0
  %2582 = vmatprep.subr.mxu0 0.0
  %2583 = vmatpush1.xpose.msra.mxu0 0.0
  %2584 = vmatprep.subr.mxu0 0.0
  %2585 = vmatpush1.xpose.msra.mxu0 0.0
  %2586 = vmatprep.subr.mxu0 0.0
  %2587 = vmatpush1.xpose.msra.mxu0 0.0
  %2588 = vmatprep.subr.mxu0 0.0
  %2589 = vmatpush1.xpose.msra.mxu0 0.0
  %2590 = vmatprep.subr.mxu0 0.0
  %2591 = vmatpush1.xpose.msra.mxu0 0.0
  %2592 = vmatprep.subr.mxu0 0.0
  %2593 = vmatpush1.xpose.msra.mxu0 0.0
  %2594 = vmatprep.subr.mxu0 0.0
  %2595 = vmatpush1.xpose.msra.mxu0 0.0
  %2596 = vmatprep.subr.mxu0 0.0
  %2597 = vmatpush1.xpose.msra.mxu0 0.0
  %2598 = vmatprep.subr.mxu0 0.0
  %2599 = vmatpush1.xpose.msra.mxu0 0.0
  %2600 = vmatprep.subr.mxu0 0.0
  %2601 = vmatpush1.xpose.msra.mxu0 0.0
  %2602 = vmatprep.subr.mxu0 0.0
  %2603 = vmatpush1.xpose.msra.mxu0 0.0
  %2604 = vmatprep.subr.mxu0 0.0
  %2605 = vmatpush1.xpose.msra.mxu0 0.0
  %2606 = vmatprep.subr.mxu0 0.0
  %2607 = vmatpush1.xpose.msra.mxu0 0.0
  %2608 = vmatprep.subr.mxu0 0.0
  %2609 = vmatpush1.xpose.msra.mxu0 0.0
  %2610 = vmatprep.subr.mxu0 0.0
  %2611 = vmatpush1.xpose.msra.mxu0 0.0
  %2612 = vmatprep.subr.mxu0 0.0
  %2613 = vmatpush1.xpose.msra.mxu0 0.0
  %2614 = vmatprep.subr.mxu0 0.0
  %2615 = vmatpush1.xpose.msra.mxu0 0.0
  %2616 = vmatprep.subr.mxu0 0.0
  %2617 = vmatpush1.xpose.msra.mxu0 0.0
  %2618 = vmatprep.subr.mxu0 0.0
  %2619 = vmatpush1.xpose.msra.mxu0 0.0
  %2620 = vmatprep.subr.mxu0 0.0
  %2621 = vmatpush1.xpose.msra.mxu0 0.0
  %2622 = vmatprep.subr.mxu0 0.0
  %2623 = vmatpush1.xpose.msra.mxu0 0.0
  %2624 = vmatprep.subr.mxu0 0.0
  %2625 = vmatpush1.xpose.msra.mxu0 0.0
  %2626 = vmatprep.subr.mxu0 0.0
  %2627 = vmatpush1.xpose.msra.mxu0 0.0
  %2628 = vmatprep.subr.mxu0 0.0
  %2629 = vmatpush1.xpose.msra.mxu0 0.0
  %2630 = vmatprep.subr.mxu0 0.0
  %2631 = vmatpush1.xpose.msra.mxu0 0.0
  %2632 = vmatprep.mubr.f32.mxu0 0.0
  %2633 = vmatmul.mubr.f32.gmra.mrb[0].mxu0 %v2564
  %v2634 = vpop.f32.mrb[0].mxu0
  %v2635 = vadd.f32 0.0, %v2634
  %v2636 = vpop.f32.mrb[0].mxu0
  %2637 = vdwg.mxu0
  %v2638 = vmul.f32 %v2103, 0.35355338
  %v2639 = vmul.f32 %v2179, 0.35355338
  %v2640 = vmul.f32 %v2255, 0.35355338
  %v2641 = vmul.f32 %v2331, 0.35355338
  %v2642 = vmul.f32 %v2407, 0.35355338
  %v2643 = vmul.f32 %v2483, 0.35355338
  %v2644 = vmul.f32 %v2559, 0.35355338
  %v2645 = vmul.f32 %v2635, 0.35355338
  %v2646 = vsel %vm201, %v2638, -inf
  %2647 = vmax.xlane.f32.xlu0 %v2646
  %v2648 = vpop.xlane.xlu0 %2647
  %v2649 = vsel %vm201, %v2639, -inf
  %2650 = vmax.xlane.f32.xlu0 %v2649
  %v2651 = vpop.xlane.xlu0 %2650
  %v2652 = vsel %vm201, %v2640, -inf
  %2653 = vmax.xlane.f32.xlu0 %v2652
  %v2654 = vpop.xlane.xlu0 %2653
  %v2655 = vsel %vm201, %v2641, -inf
  %2656 = vmax.xlane.f32.xlu0 %v2655
  %v2657 = vpop.xlane.xlu0 %2656
  %v2658 = vsel %vm201, %v2642, -inf
  %2659 = vmax.xlane.f32.xlu0 %v2658
  %v2660 = vpop.xlane.xlu0 %2659
  %v2661 = vsel %vm201, %v2643, -inf
  %2662 = vmax.xlane.f32.xlu0 %v2661
  %v2663 = vpop.xlane.xlu0 %2662
  %v2664 = vsel %vm201, %v2644, -inf
  %2665 = vmax.xlane.f32.xlu0 %v2664
  %v2666 = vpop.xlane.xlu0 %2665
  %v2667 = vsel %vm201, %v2645, -inf
  %2668 = vmax.xlane.f32.xlu0 %v2667
  %v2669 = vpop.xlane.xlu0 %2668
  %v2670 = vsub.f32 %v2638, %v2648
  %v2671 = vsub.f32 %v2639, %v2651
  %v2672 = vsub.f32 %v2640, %v2654
  %v2673 = vsub.f32 %v2641, %v2657
  %v2674 = vsub.f32 %v2642, %v2660
  %v2675 = vsub.f32 %v2643, %v2663
  %v2676 = vsub.f32 %v2644, %v2666
  %v2677 = vsub.f32 %v2645, %v2669
  %v2678 = vmul.f32 %v2670, 1.442695
  %v2679 = vpow.pop %v2678
  %v2680 = vmul.f32 %v2671, 1.442695
  %v2681 = vpow.pop %v2680
  %v2682 = vmul.f32 %v2672, 1.442695
  %v2683 = vpow.pop %v2682
  %v2684 = vmul.f32 %v2673, 1.442695
  %v2685 = vpow.pop %v2684
  %v2686 = vmul.f32 %v2674, 1.442695
  %v2687 = vpow.pop %v2686
  %v2688 = vmul.f32 %v2675, 1.442695
  %v2689 = vpow.pop %v2688
  %v2690 = vmul.f32 %v2676, 1.442695
  %v2691 = vpow.pop %v2690
  %v2692 = vmul.f32 %v2677, 1.442695
  %v2693 = vpow.pop %v2692
  %v2694 = vsel %vm201, %v2679, 0.0
  %2695 = vadd.xlane.f32.xlu0 %v2694
  %v2696 = vpop.xlane.xlu0 %2695
  %v2697 = vsel %vm201, %v2681, 0.0
  %2698 = vadd.xlane.f32.xlu0 %v2697
  %v2699 = vpop.xlane.xlu0 %2698
  %v2700 = vsel %vm201, %v2683, 0.0
  %2701 = vadd.xlane.f32.xlu0 %v2700
  %v2702 = vpop.xlane.xlu0 %2701
  %v2703 = vsel %vm201, %v2685, 0.0
  %2704 = vadd.xlane.f32.xlu0 %v2703
  %v2705 = vpop.xlane.xlu0 %2704
  %v2706 = vsel %vm201, %v2687, 0.0
  %2707 = vadd.xlane.f32.xlu0 %v2706
  %v2708 = vpop.xlane.xlu0 %2707
  %v2709 = vsel %vm201, %v2689, 0.0
  %2710 = vadd.xlane.f32.xlu0 %v2709
  %v2711 = vpop.xlane.xlu0 %2710
  %v2712 = vsel %vm201, %v2691, 0.0
  %2713 = vadd.xlane.f32.xlu0 %v2712
  %v2714 = vpop.xlane.xlu0 %2713
  %v2715 = vsel %vm201, %v2693, 0.0
  %2716 = vadd.xlane.f32.xlu0 %v2715
  %v2717 = vpop.xlane.xlu0 %2716
  %v2718 = vrcp.pop %v2696
  %v2719 = vrcp.pop %v2699
  %v2720 = vrcp.pop %v2702
  %v2721 = vrcp.pop %v2705
  %v2722 = vrcp.pop %v2708
  %v2723 = vrcp.pop %v2711
  %v2724 = vrcp.pop %v2714
  %v2725 = vrcp.pop %v2717
  %v2726 = vmul.f32 %v2679, %v2718
  %v2727 = vmul.f32 %v2681, %v2719
  %v2728 = vmul.f32 %v2683, %v2720
  %v2729 = vmul.f32 %v2685, %v2721
  %v2730 = vmul.f32 %v2687, %v2722
  %v2731 = vmul.f32 %v2689, %v2723
  %v2732 = vmul.f32 %v2691, %v2724
  %v2733 = vmul.f32 %v2693, %v2725
  %2734 = vrot.lane.b32.xlu0 %v2001, 64
  %v2735 = vpop.permute.xlu0 %2734
  %v2738 = vsel %vm201, %v2726, 0
  %2740 = vmatprep.subr.mxu0 0.0
  %2741 = vmatpush1.msra.mxu0 %v2735
  %2742 = vmatprep.subr.mxu0 0.0
  %2743 = vmatpush1.msra.mxu0 0.0
  %2744 = vmatprep.subr.mxu0 0.0
  %2745 = vmatpush1.msra.mxu0 0.0
  %2746 = vmatprep.subr.mxu0 0.0
  %2747 = vmatpush1.msra.mxu0 0.0
  %2748 = vmatprep.subr.mxu0 0.0
  %2749 = vmatpush1.msra.mxu0 0.0
  %2750 = vmatprep.subr.mxu0 0.0
  %2751 = vmatpush1.msra.mxu0 0.0
  %2752 = vmatprep.subr.mxu0 0.0
  %2753 = vmatpush1.msra.mxu0 0.0
  %2754 = vmatprep.subr.mxu0 0.0
  %2755 = vmatpush1.msra.mxu0 0.0
  %2756 = vmatprep.subr.mxu0 0.0
  %2757 = vmatpush1.msra.mxu0 0.0
  %2758 = vmatprep.subr.mxu0 0.0
  %2759 = vmatpush1.msra.mxu0 0.0
  %2760 = vmatprep.subr.mxu0 0.0
  %2761 = vmatpush1.msra.mxu0 0.0
  %2762 = vmatprep.subr.mxu0 0.0
  %2763 = vmatpush1.msra.mxu0 0.0
  %2764 = vmatprep.subr.mxu0 0.0
  %2765 = vmatpush1.msra.mxu0 0.0
  %2766 = vmatprep.subr.mxu0 0.0
  %2767 = vmatpush1.msra.mxu0 0.0
  %2768 = vmatprep.subr.mxu0 0.0
  %2769 = vmatpush1.msra.mxu0 0.0
  %2770 = vmatprep.subr.mxu0 0.0
  %2771 = vmatpush1.msra.mxu0 0.0
  %2772 = vmatprep.subr.mxu0 0.0
  %2773 = vmatpush1.msra.mxu0 0.0
  %2774 = vmatprep.subr.mxu0 0.0
  %2775 = vmatpush1.msra.mxu0 0.0
  %2776 = vmatprep.subr.mxu0 0.0
  %2777 = vmatpush1.msra.mxu0 0.0
  %2778 = vmatprep.subr.mxu0 0.0
  %2779 = vmatpush1.msra.mxu0 0.0
  %2780 = vmatprep.subr.mxu0 0.0
  %2781 = vmatpush1.msra.mxu0 0.0
  %2782 = vmatprep.subr.mxu0 0.0
  %2783 = vmatpush1.msra.mxu0 0.0
  %2784 = vmatprep.subr.mxu0 0.0
  %2785 = vmatpush1.msra.mxu0 0.0
  %2786 = vmatprep.subr.mxu0 0.0
  %2787 = vmatpush1.msra.mxu0 0.0
  %2788 = vmatprep.subr.mxu0 0.0
  %2789 = vmatpush1.msra.mxu0 0.0
  %2790 = vmatprep.subr.mxu0 0.0
  %2791 = vmatpush1.msra.mxu0 0.0
  %2792 = vmatprep.subr.mxu0 0.0
  %2793 = vmatpush1.msra.mxu0 0.0
  %2794 = vmatprep.subr.mxu0 0.0
  %2795 = vmatpush1.msra.mxu0 0.0
  %2796 = vmatprep.subr.mxu0 0.0
  %2797 = vmatpush1.msra.mxu0 0.0
  %2798 = vmatprep.subr.mxu0 0.0
  %2799 = vmatpush1.msra.mxu0 0.0
  %2800 = vmatprep.subr.mxu0 0.0
  %2801 = vmatpush1.msra.mxu0 0.0
  %2802 = vmatprep.subr.mxu0 0.0
  %2803 = vmatpush1.msra.mxu0 0.0
  %2804 = vmatprep.mubr.f32.mxu0 0.0
  %2805 = vmatmul.mubr.f32.gmra.mrb[0].mxu0 %v2738
  %v2806 = vpop.f32.mrb[0].mxu0
  %v2807 = vadd.f32 0.0, %v2806
  %v2808 = vpop.f32.mrb[0].mxu0
  %2809 = vdwg.mxu0
  %2810 = vrot.lane.b32.xlu0 %v2006, 64
  %v2811 = vpop.permute.xlu0 %2810
  %v2814 = vsel %vm201, %v2727, 0
  %2816 = vmatprep.subr.mxu0 0.0
  %2817 = vmatpush1.msra.mxu0 %v2811
  %2818 = vmatprep.subr.mxu0 0.0
  %2819 = vmatpush1.msra.mxu0 0.0
  %2820 = vmatprep.subr.mxu0 0.0
  %2821 = vmatpush1.msra.mxu0 0.0
  %2822 = vmatprep.subr.mxu0 0.0
  %2823 = vmatpush1.msra.mxu0 0.0
  %2824 = vmatprep.subr.mxu0 0.0
  %2825 = vmatpush1.msra.mxu0 0.0
  %2826 = vmatprep.subr.mxu0 0.0
  %2827 = vmatpush1.msra.mxu0 0.0
  %2828 = vmatprep.subr.mxu0 0.0
  %2829 = vmatpush1.msra.mxu0 0.0
  %2830 = vmatprep.subr.mxu0 0.0
  %2831 = vmatpush1.msra.mxu0 0.0
  %2832 = vmatprep.subr.mxu0 0.0
  %2833 = vmatpush1.msra.mxu0 0.0
  %2834 = vmatprep.subr.mxu0 0.0
  %2835 = vmatpush1.msra.mxu0 0.0
  %2836 = vmatprep.subr.mxu0 0.0
  %2837 = vmatpush1.msra.mxu0 0.0
  %2838 = vmatprep.subr.mxu0 0.0
  %2839 = vmatpush1.msra.mxu0 0.0
  %2840 = vmatprep.subr.mxu0 0.0
  %2841 = vmatpush1.msra.mxu0 0.0
  %2842 = vmatprep.subr.mxu0 0.0
  %2843 = vmatpush1.msra.mxu0 0.0
  %2844 = vmatprep.subr.mxu0 0.0
  %2845 = vmatpush1.msra.mxu0 0.0
  %2846 = vmatprep.subr.mxu0 0.0
  %2847 = vmatpush1.msra.mxu0 0.0
  %2848 = vmatprep.subr.mxu0 0.0
  %2849 = vmatpush1.msra.mxu0 0.0
  %2850 = vmatprep.subr.mxu0 0.0
  %2851 = vmatpush1.msra.mxu0 0.0
  %2852 = vmatprep.subr.mxu0 0.0
  %2853 = vmatpush1.msra.mxu0 0.0
  %2854 = vmatprep.subr.mxu0 0.0
  %2855 = vmatpush1.msra.mxu0 0.0
  %2856 = vmatprep.subr.mxu0 0.0
  %2857 = vmatpush1.msra.mxu0 0.0
  %2858 = vmatprep.subr.mxu0 0.0
  %2859 = vmatpush1.msra.mxu0 0.0
  %2860 = vmatprep.subr.mxu0 0.0
  %2861 = vmatpush1.msra.mxu0 0.0
  %2862 = vmatprep.subr.mxu0 0.0
  %2863 = vmatpush1.msra.mxu0 0.0
  %2864 = vmatprep.subr.mxu0 0.0
  %2865 = vmatpush1.msra.mxu0 0.0
  %2866 = vmatprep.subr.mxu0 0.0
  %2867 = vmatpush1.msra.mxu0 0.0
  %2868 = vmatprep.subr.mxu0 0.0
  %2869 = vmatpush1.msra.mxu0 0.0
  %2870 = vmatprep.subr.mxu0 0.0
  %2871 = vmatpush1.msra.mxu0 0.0
  %2872 = vmatprep.subr.mxu0 0.0
  %2873 = vmatpush1.msra.mxu0 0.0
  %2874 = vmatprep.subr.mxu0 0.0
  %2875 = vmatpush1.msra.mxu0 0.0
  %2876 = vmatprep.subr.mxu0 0.0
  %2877 = vmatpush1.msra.mxu0 0.0
  %2878 = vmatprep.subr.mxu0 0.0
  %2879 = vmatpush1.msra.mxu0 0.0
  %2880 = vmatprep.mubr.f32.mxu0 0.0
  %2881 = vmatmul.mubr.f32.gmra.mrb[0].mxu0 %v2814
  %v2882 = vpop.f32.mrb[0].mxu0
  %v2883 = vadd.f32 0.0, %v2882
  %v2884 = vpop.f32.mrb[0].mxu0
  %2885 = vdwg.mxu0
  %2886 = vrot.lane.b32.xlu0 %v2019, 64
  %v2887 = vpop.permute.xlu0 %2886
  %v2890 = vsel %vm201, %v2728, 0
  %2892 = vmatprep.subr.mxu0 0.0
  %2893 = vmatpush1.msra.mxu0 %v2887
  %2894 = vmatprep.subr.mxu0 0.0
  %2895 = vmatpush1.msra.mxu0 0.0
  %2896 = vmatprep.subr.mxu0 0.0
  %2897 = vmatpush1.msra.mxu0 0.0
  %2898 = vmatprep.subr.mxu0 0.0
  %2899 = vmatpush1.msra.mxu0 0.0
  %2900 = vmatprep.subr.mxu0 0.0
  %2901 = vmatpush1.msra.mxu0 0.0
  %2902 = vmatprep.subr.mxu0 0.0
  %2903 = vmatpush1.msra.mxu0 0.0
  %2904 = vmatprep.subr.mxu0 0.0
  %2905 = vmatpush1.msra.mxu0 0.0
  %2906 = vmatprep.subr.mxu0 0.0
  %2907 = vmatpush1.msra.mxu0 0.0
  %2908 = vmatprep.subr.mxu0 0.0
  %2909 = vmatpush1.msra.mxu0 0.0
  %2910 = vmatprep.subr.mxu0 0.0
  %2911 = vmatpush1.msra.mxu0 0.0
  %2912 = vmatprep.subr.mxu0 0.0
  %2913 = vmatpush1.msra.mxu0 0.0
  %2914 = vmatprep.subr.mxu0 0.0
  %2915 = vmatpush1.msra.mxu0 0.0
  %2916 = vmatprep.subr.mxu0 0.0
  %2917 = vmatpush1.msra.mxu0 0.0
  %2918 = vmatprep.subr.mxu0 0.0
  %2919 = vmatpush1.msra.mxu0 0.0
  %2920 = vmatprep.subr.mxu0 0.0
  %2921 = vmatpush1.msra.mxu0 0.0
  %2922 = vmatprep.subr.mxu0 0.0
  %2923 = vmatpush1.msra.mxu0 0.0
  %2924 = vmatprep.subr.mxu0 0.0
  %2925 = vmatpush1.msra.mxu0 0.0
  %2926 = vmatprep.subr.mxu0 0.0
  %2927 = vmatpush1.msra.mxu0 0.0
  %2928 = vmatprep.subr.mxu0 0.0
  %2929 = vmatpush1.msra.mxu0 0.0
  %2930 = vmatprep.subr.mxu0 0.0
  %2931 = vmatpush1.msra.mxu0 0.0
  %2932 = vmatprep.subr.mxu0 0.0
  %2933 = vmatpush1.msra.mxu0 0.0
  %2934 = vmatprep.subr.mxu0 0.0
  %2935 = vmatpush1.msra.mxu0 0.0
  %2936 = vmatprep.subr.mxu0 0.0
  %2937 = vmatpush1.msra.mxu0 0.0
  %2938 = vmatprep.subr.mxu0 0.0
  %2939 = vmatpush1.msra.mxu0 0.0
  %2940 = vmatprep.subr.mxu0 0.0
  %2941 = vmatpush1.msra.mxu0 0.0
  %2942 = vmatprep.subr.mxu0 0.0
  %2943 = vmatpush1.msra.mxu0 0.0
  %2944 = vmatprep.subr.mxu0 0.0
  %2945 = vmatpush1.msra.mxu0 0.0
  %2946 = vmatprep.subr.mxu0 0.0
  %2947 = vmatpush1.msra.mxu0 0.0
  %2948 = vmatprep.subr.mxu0 0.0
  %2949 = vmatpush1.msra.mxu0 0.0
  %2950 = vmatprep.subr.mxu0 0.0
  %2951 = vmatpush1.msra.mxu0 0.0
  %2952 = vmatprep.subr.mxu0 0.0
  %2953 = vmatpush1.msra.mxu0 0.0
  %2954 = vmatprep.subr.mxu0 0.0
  %2955 = vmatpush1.msra.mxu0 0.0
  %2956 = vmatprep.mubr.f32.mxu0 0.0
  %2957 = vmatmul.mubr.f32.gmra.mrb[0].mxu0 %v2890
  %v2958 = vpop.f32.mrb[0].mxu0
  %v2959 = vadd.f32 0.0, %v2958
  %v2960 = vpop.f32.mrb[0].mxu0
  %2961 = vdwg.mxu0
  %2962 = vrot.lane.b32.xlu0 %v2021, 64
  %v2963 = vpop.permute.xlu0 %2962
  %v2966 = vsel %vm201, %v2729, 0
  %2968 = vmatprep.subr.mxu0 0.0
  %2969 = vmatpush1.msra.mxu0 %v2963
  %2970 = vmatprep.subr.mxu0 0.0
  %2971 = vmatpush1.msra.mxu0 0.0
  %2972 = vmatprep.subr.mxu0 0.0
  %2973 = vmatpush1.msra.mxu0 0.0
  %2974 = vmatprep.subr.mxu0 0.0
  %2975 = vmatpush1.msra.mxu0 0.0
  %2976 = vmatprep.subr.mxu0 0.0
  %2977 = vmatpush1.msra.mxu0 0.0
  %2978 = vmatprep.subr.mxu0 0.0
  %2979 = vmatpush1.msra.mxu0 0.0
  %2980 = vmatprep.subr.mxu0 0.0
  %2981 = vmatpush1.msra.mxu0 0.0
  %2982 = vmatprep.subr.mxu0 0.0
  %2983 = vmatpush1.msra.mxu0 0.0
  %2984 = vmatprep.subr.mxu0 0.0
  %2985 = vmatpush1.msra.mxu0 0.0
  %2986 = vmatprep.subr.mxu0 0.0
  %2987 = vmatpush1.msra.mxu0 0.0
  %2988 = vmatprep.subr.mxu0 0.0
  %2989 = vmatpush1.msra.mxu0 0.0
  %2990 = vmatprep.subr.mxu0 0.0
  %2991 = vmatpush1.msra.mxu0 0.0
  %2992 = vmatprep.subr.mxu0 0.0
  %2993 = vmatpush1.msra.mxu0 0.0
  %2994 = vmatprep.subr.mxu0 0.0
  %2995 = vmatpush1.msra.mxu0 0.0
  %2996 = vmatprep.subr.mxu0 0.0
  %2997 = vmatpush1.msra.mxu0 0.0
  %2998 = vmatprep.subr.mxu0 0.0
  %2999 = vmatpush1.msra.mxu0 0.0
  %3000 = vmatprep.subr.mxu0 0.0
  %3001 = vmatpush1.msra.mxu0 0.0
  %3002 = vmatprep.subr.mxu0 0.0
  %3003 = vmatpush1.msra.mxu0 0.0
  %3004 = vmatprep.subr.mxu0 0.0
  %3005 = vmatpush1.msra.mxu0 0.0
  %3006 = vmatprep.subr.mxu0 0.0
  %3007 = vmatpush1.msra.mxu0 0.0
  %3008 = vmatprep.subr.mxu0 0.0
  %3009 = vmatpush1.msra.mxu0 0.0
  %3010 = vmatprep.subr.mxu0 0.0
  %3011 = vmatpush1.msra.mxu0 0.0
  %3012 = vmatprep.subr.mxu0 0.0
  %3013 = vmatpush1.msra.mxu0 0.0
  %3014 = vmatprep.subr.mxu0 0.0
  %3015 = vmatpush1.msra.mxu0 0.0
  %3016 = vmatprep.subr.mxu0 0.0
  %3017 = vmatpush1.msra.mxu0 0.0
  %3018 = vmatprep.subr.mxu0 0.0
  %3019 = vmatpush1.msra.mxu0 0.0
  %3020 = vmatprep.subr.mxu0 0.0
  %3021 = vmatpush1.msra.mxu0 0.0
  %3022 = vmatprep.subr.mxu0 0.0
  %3023 = vmatpush1.msra.mxu0 0.0
  %3024 = vmatprep.subr.mxu0 0.0
  %3025 = vmatpush1.msra.mxu0 0.0
  %3026 = vmatprep.subr.mxu0 0.0
  %3027 = vmatpush1.msra.mxu0 0.0
  %3028 = vmatprep.subr.mxu0 0.0
  %3029 = vmatpush1.msra.mxu0 0.0
  %3030 = vmatprep.subr.mxu0 0.0
  %3031 = vmatpush1.msra.mxu0 0.0
  %3032 = vmatprep.mubr.f32.mxu0 0.0
  %3033 = vmatmul.mubr.f32.gmra.mrb[0].mxu0 %v2966
  %v3034 = vpop.f32.mrb[0].mxu0
  %v3035 = vadd.f32 0.0, %v3034
  %v3036 = vpop.f32.mrb[0].mxu0
  %3037 = vdwg.mxu0
  %3038 = vrot.lane.b32.xlu0 %v2023, 64
  %v3039 = vpop.permute.xlu0 %3038
  %v3042 = vsel %vm201, %v2730, 0
  %3044 = vmatprep.subr.mxu0 0.0
  %3045 = vmatpush1.msra.mxu0 %v3039
  %3046 = vmatprep.subr.mxu0 0.0
  %3047 = vmatpush1.msra.mxu0 0.0
  %3048 = vmatprep.subr.mxu0 0.0
  %3049 = vmatpush1.msra.mxu0 0.0
  %3050 = vmatprep.subr.mxu0 0.0
  %3051 = vmatpush1.msra.mxu0 0.0
  %3052 = vmatprep.subr.mxu0 0.0
  %3053 = vmatpush1.msra.mxu0 0.0
  %3054 = vmatprep.subr.mxu0 0.0
  %3055 = vmatpush1.msra.mxu0 0.0
  %3056 = vmatprep.subr.mxu0 0.0
  %3057 = vmatpush1.msra.mxu0 0.0
  %3058 = vmatprep.subr.mxu0 0.0
  %3059 = vmatpush1.msra.mxu0 0.0
  %3060 = vmatprep.subr.mxu0 0.0
  %3061 = vmatpush1.msra.mxu0 0.0
  %3062 = vmatprep.subr.mxu0 0.0
  %3063 = vmatpush1.msra.mxu0 0.0
  %3064 = vmatprep.subr.mxu0 0.0
  %3065 = vmatpush1.msra.mxu0 0.0
  %3066 = vmatprep.subr.mxu0 0.0
  %3067 = vmatpush1.msra.mxu0 0.0
  %3068 = vmatprep.subr.mxu0 0.0
  %3069 = vmatpush1.msra.mxu0 0.0
  %3070 = vmatprep.subr.mxu0 0.0
  %3071 = vmatpush1.msra.mxu0 0.0
  %3072 = vmatprep.subr.mxu0 0.0
  %3073 = vmatpush1.msra.mxu0 0.0
  %3074 = vmatprep.subr.mxu0 0.0
  %3075 = vmatpush1.msra.mxu0 0.0
  %3076 = vmatprep.subr.mxu0 0.0
  %3077 = vmatpush1.msra.mxu0 0.0
  %3078 = vmatprep.subr.mxu0 0.0
  %3079 = vmatpush1.msra.mxu0 0.0
  %3080 = vmatprep.subr.mxu0 0.0
  %3081 = vmatpush1.msra.mxu0 0.0
  %3082 = vmatprep.subr.mxu0 0.0
  %3083 = vmatpush1.msra.mxu0 0.0
  %3084 = vmatprep.subr.mxu0 0.0
  %3085 = vmatpush1.msra.mxu0 0.0
  %3086 = vmatprep.subr.mxu0 0.0
  %3087 = vmatpush1.msra.mxu0 0.0
  %3088 = vmatprep.subr.mxu0 0.0
  %3089 = vmatpush1.msra.mxu0 0.0
  %3090 = vmatprep.subr.mxu0 0.0
  %3091 = vmatpush1.msra.mxu0 0.0
  %3092 = vmatprep.subr.mxu0 0.0
  %3093 = vmatpush1.msra.mxu0 0.0
  %3094 = vmatprep.subr.mxu0 0.0
  %3095 = vmatpush1.msra.mxu0 0.0
  %3096 = vmatprep.subr.mxu0 0.0
  %3097 = vmatpush1.msra.mxu0 0.0
  %3098 = vmatprep.subr.mxu0 0.0
  %3099 = vmatpush1.msra.mxu0 0.0
  %3100 = vmatprep.subr.mxu0 0.0
  %3101 = vmatpush1.msra.mxu0 0.0
  %3102 = vmatprep.subr.mxu0 0.0
  %3103 = vmatpush1.msra.mxu0 0.0
  %3104 = vmatprep.subr.mxu0 0.0
  %3105 = vmatpush1.msra.mxu0 0.0
  %3106 = vmatprep.subr.mxu0 0.0
  %3107 = vmatpush1.msra.mxu0 0.0
  %3108 = vmatprep.mubr.f32.mxu0 0.0
  %3109 = vmatmul.mubr.f32.gmra.mrb[0].mxu0 %v3042
  %v3110 = vpop.f32.mrb[0].mxu0
  %v3111 = vadd.f32 0.0, %v3110
  %v3112 = vpop.f32.mrb[0].mxu0
  %3113 = vdwg.mxu0
  %3114 = vrot.lane.b32.xlu0 %v2025, 64
  %v3115 = vpop.permute.xlu0 %3114
  %v3118 = vsel %vm201, %v2731, 0
  %3120 = vmatprep.subr.mxu0 0.0
  %3121 = vmatpush1.msra.mxu0 %v3115
  %3122 = vmatprep.subr.mxu0 0.0
  %3123 = vmatpush1.msra.mxu0 0.0
  %3124 = vmatprep.subr.mxu0 0.0
  %3125 = vmatpush1.msra.mxu0 0.0
  %3126 = vmatprep.subr.mxu0 0.0
  %3127 = vmatpush1.msra.mxu0 0.0
  %3128 = vmatprep.subr.mxu0 0.0
  %3129 = vmatpush1.msra.mxu0 0.0
  %3130 = vmatprep.subr.mxu0 0.0
  %3131 = vmatpush1.msra.mxu0 0.0
  %3132 = vmatprep.subr.mxu0 0.0
  %3133 = vmatpush1.msra.mxu0 0.0
  %3134 = vmatprep.subr.mxu0 0.0
  %3135 = vmatpush1.msra.mxu0 0.0
  %3136 = vmatprep.subr.mxu0 0.0
  %3137 = vmatpush1.msra.mxu0 0.0
  %3138 = vmatprep.subr.mxu0 0.0
  %3139 = vmatpush1.msra.mxu0 0.0
  %3140 = vmatprep.subr.mxu0 0.0
  %3141 = vmatpush1.msra.mxu0 0.0
  %3142 = vmatprep.subr.mxu0 0.0
  %3143 = vmatpush1.msra.mxu0 0.0
  %3144 = vmatprep.subr.mxu0 0.0
  %3145 = vmatpush1.msra.mxu0 0.0
  %3146 = vmatprep.subr.mxu0 0.0
  %3147 = vmatpush1.msra.mxu0 0.0
  %3148 = vmatprep.subr.mxu0 0.0
  %3149 = vmatpush1.msra.mxu0 0.0
  %3150 = vmatprep.subr.mxu0 0.0
  %3151 = vmatpush1.msra.mxu0 0.0
  %3152 = vmatprep.subr.mxu0 0.0
  %3153 = vmatpush1.msra.mxu0 0.0
  %3154 = vmatprep.subr.mxu0 0.0
  %3155 = vmatpush1.msra.mxu0 0.0
  %3156 = vmatprep.subr.mxu0 0.0
  %3157 = vmatpush1.msra.mxu0 0.0
  %3158 = vmatprep.subr.mxu0 0.0
  %3159 = vmatpush1.msra.mxu0 0.0
  %3160 = vmatprep.subr.mxu0 0.0
  %3161 = vmatpush1.msra.mxu0 0.0
  %3162 = vmatprep.subr.mxu0 0.0
  %3163 = vmatpush1.msra.mxu0 0.0
  %3164 = vmatprep.subr.mxu0 0.0
  %3165 = vmatpush1.msra.mxu0 0.0
  %3166 = vmatprep.subr.mxu0 0.0
  %3167 = vmatpush1.msra.mxu0 0.0
  %3168 = vmatprep.subr.mxu0 0.0
  %3169 = vmatpush1.msra.mxu0 0.0
  %3170 = vmatprep.subr.mxu0 0.0
  %3171 = vmatpush1.msra.mxu0 0.0
  %3172 = vmatprep.subr.mxu0 0.0
  %3173 = vmatpush1.msra.mxu0 0.0
  %3174 = vmatprep.subr.mxu0 0.0
  %3175 = vmatpush1.msra.mxu0 0.0
  %3176 = vmatprep.subr.mxu0 0.0
  %3177 = vmatpush1.msra.mxu0 0.0
  %3178 = vmatprep.subr.mxu0 0.0
  %3179 = vmatpush1.msra.mxu0 0.0
  %3180 = vmatprep.subr.mxu0 0.0
  %3181 = vmatpush1.msra.mxu0 0.0
  %3182 = vmatprep.subr.mxu0 0.0
  %3183 = vmatpush1.msra.mxu0 0.0
  %3184 = vmatprep.mubr.f32.mxu0 0.0
  %3185 = vmatmul.mubr.f32.gmra.mrb[0].mxu0 %v3118
  %v3186 = vpop.f32.mrb[0].mxu0
  %v3187 = vadd.f32 0.0, %v3186
  %v3188 = vpop.f32.mrb[0].mxu0
  %3189 = vdwg.mxu0
  %3190 = vrot.lane.b32.xlu0 %v2027, 64
  %v3191 = vpop.permute.xlu0 %3190
  %v3194 = vsel %vm201, %v2732, 0
  %3196 = vmatprep.subr.mxu0 0.0
  %3197 = vmatpush1.msra.mxu0 %v3191
  %3198 = vmatprep.subr.mxu0 0.0
  %3199 = vmatpush1.msra.mxu0 0.0
  %3200 = vmatprep.subr.mxu0 0.0
  %3201 = vmatpush1.msra.mxu0 0.0
  %3202 = vmatprep.subr.mxu0 0.0
  %3203 = vmatpush1.msra.mxu0 0.0
  %3204 = vmatprep.subr.mxu0 0.0
  %3205 = vmatpush1.msra.mxu0 0.0
  %3206 = vmatprep.subr.mxu0 0.0
  %3207 = vmatpush1.msra.mxu0 0.0
  %3208 = vmatprep.subr.mxu0 0.0
  %3209 = vmatpush1.msra.mxu0 0.0
  %3210 = vmatprep.subr.mxu0 0.0
  %3211 = vmatpush1.msra.mxu0 0.0
  %3212 = vmatprep.subr.mxu0 0.0
  %3213 = vmatpush1.msra.mxu0 0.0
  %3214 = vmatprep.subr.mxu0 0.0
  %3215 = vmatpush1.msra.mxu0 0.0
  %3216 = vmatprep.subr.mxu0 0.0
  %3217 = vmatpush1.msra.mxu0 0.0
  %3218 = vmatprep.subr.mxu0 0.0
  %3219 = vmatpush1.msra.mxu0 0.0
  %3220 = vmatprep.subr.mxu0 0.0
  %3221 = vmatpush1.msra.mxu0 0.0
  %3222 = vmatprep.subr.mxu0 0.0
  %3223 = vmatpush1.msra.mxu0 0.0
  %3224 = vmatprep.subr.mxu0 0.0
  %3225 = vmatpush1.msra.mxu0 0.0
  %3226 = vmatprep.subr.mxu0 0.0
  %3227 = vmatpush1.msra.mxu0 0.0
  %3228 = vmatprep.subr.mxu0 0.0
  %3229 = vmatpush1.msra.mxu0 0.0
  %3230 = vmatprep.subr.mxu0 0.0
  %3231 = vmatpush1.msra.mxu0 0.0
  %3232 = vmatprep.subr.mxu0 0.0
  %3233 = vmatpush1.msra.mxu0 0.0
  %3234 = vmatprep.subr.mxu0 0.0
  %3235 = vmatpush1.msra.mxu0 0.0
  %3236 = vmatprep.subr.mxu0 0.0
  %3237 = vmatpush1.msra.mxu0 0.0
  %3238 = vmatprep.subr.mxu0 0.0
  %3239 = vmatpush1.msra.mxu0 0.0
  %3240 = vmatprep.subr.mxu0 0.0
  %3241 = vmatpush1.msra.mxu0 0.0
  %3242 = vmatprep.subr.mxu0 0.0
  %3243 = vmatpush1.msra.mxu0 0.0
  %3244 = vmatprep.subr.mxu0 0.0
  %3245 = vmatpush1.msra.mxu0 0.0
  %3246 = vmatprep.subr.mxu0 0.0
  %3247 = vmatpush1.msra.mxu0 0.0
  %3248 = vmatprep.subr.mxu0 0.0
  %3249 = vmatpush1.msra.mxu0 0.0
  %3250 = vmatprep.subr.mxu0 0.0
  %3251 = vmatpush1.msra.mxu0 0.0
  %3252 = vmatprep.subr.mxu0 0.0
  %3253 = vmatpush1.msra.mxu0 0.0
  %3254 = vmatprep.subr.mxu0 0.0
  %3255 = vmatpush1.msra.mxu0 0.0
  %3256 = vmatprep.subr.mxu0 0.0
  %3257 = vmatpush1.msra.mxu0 0.0
  %3258 = vmatprep.subr.mxu0 0.0
  %3259 = vmatpush1.msra.mxu0 0.0
  %3260 = vmatprep.mubr.f32.mxu0 0.0
  %3261 = vmatmul.mubr.f32.gmra.mrb[0].mxu0 %v3194
  %v3262 = vpop.f32.mrb[0].mxu0
  %v3263 = vadd.f32 0.0, %v3262
  %v3264 = vpop.f32.mrb[0].mxu0
  %3265 = vdwg.mxu0
  %3266 = vrot.lane.b32.xlu0 %v2029, 64
  %v3267 = vpop.permute.xlu0 %3266
  %v3270 = vsel %vm201, %v2733, 0
  %3272 = vmatprep.subr.mxu0 0.0
  %3273 = vmatpush1.msra.mxu0 %v3267
  %3274 = vmatprep.subr.mxu0 0.0
  %3275 = vmatpush1.msra.mxu0 0.0
  %3276 = vmatprep.subr.mxu0 0.0
  %3277 = vmatpush1.msra.mxu0 0.0
  %3278 = vmatprep.subr.mxu0 0.0
  %3279 = vmatpush1.msra.mxu0 0.0
  %3280 = vmatprep.subr.mxu0 0.0
  %3281 = vmatpush1.msra.mxu0 0.0
  %3282 = vmatprep.subr.mxu0 0.0
  %3283 = vmatpush1.msra.mxu0 0.0
  %3284 = vmatprep.subr.mxu0 0.0
  %3285 = vmatpush1.msra.mxu0 0.0
  %3286 = vmatprep.subr.mxu0 0.0
  %3287 = vmatpush1.msra.mxu0 0.0
  %3288 = vmatprep.subr.mxu0 0.0
  %3289 = vmatpush1.msra.mxu0 0.0
  %3290 = vmatprep.subr.mxu0 0.0
  %3291 = vmatpush1.msra.mxu0 0.0
  %3292 = vmatprep.subr.mxu0 0.0
  %3293 = vmatpush1.msra.mxu0 0.0
  %3294 = vmatprep.subr.mxu0 0.0
  %3295 = vmatpush1.msra.mxu0 0.0
  %3296 = vmatprep.subr.mxu0 0.0
  %3297 = vmatpush1.msra.mxu0 0.0
  %3298 = vmatprep.subr.mxu0 0.0
  %3299 = vmatpush1.msra.mxu0 0.0
  %3300 = vmatprep.subr.mxu0 0.0
  %3301 = vmatpush1.msra.mxu0 0.0
  %3302 = vmatprep.subr.mxu0 0.0
  %3303 = vmatpush1.msra.mxu0 0.0
  %3304 = vmatprep.subr.mxu0 0.0
  %3305 = vmatpush1.msra.mxu0 0.0
  %3306 = vmatprep.subr.mxu0 0.0
  %3307 = vmatpush1.msra.mxu0 0.0
  %3308 = vmatprep.subr.mxu0 0.0
  %3309 = vmatpush1.msra.mxu0 0.0
  %3310 = vmatprep.subr.mxu0 0.0
  %3311 = vmatpush1.msra.mxu0 0.0
  %3312 = vmatprep.subr.mxu0 0.0
  %3313 = vmatpush1.msra.mxu0 0.0
  %3314 = vmatprep.subr.mxu0 0.0
  %3315 = vmatpush1.msra.mxu0 0.0
  %3316 = vmatprep.subr.mxu0 0.0
  %3317 = vmatpush1.msra.mxu0 0.0
  %3318 = vmatprep.subr.mxu0 0.0
  %3319 = vmatpush1.msra.mxu0 0.0
  %3320 = vmatprep.subr.mxu0 0.0
  %3321 = vmatpush1.msra.mxu0 0.0
  %3322 = vmatprep.subr.mxu0 0.0
  %3323 = vmatpush1.msra.mxu0 0.0
  %3324 = vmatprep.subr.mxu0 0.0
  %3325 = vmatpush1.msra.mxu0 0.0
  %3326 = vmatprep.subr.mxu0 0.0
  %3327 = vmatpush1.msra.mxu0 0.0
  %3328 = vmatprep.subr.mxu0 0.0
  %3329 = vmatpush1.msra.mxu0 0.0
  %3330 = vmatprep.subr.mxu0 0.0
  %3331 = vmatpush1.msra.mxu0 0.0
  %3332 = vmatprep.subr.mxu0 0.0
  %3333 = vmatpush1.msra.mxu0 0.0
  %3334 = vmatprep.subr.mxu0 0.0
  %3335 = vmatpush1.msra.mxu0 0.0
  %3336 = vmatprep.mubr.f32.mxu0 0.0
  %3337 = vmatmul.mubr.f32.gmra.mrb[0].mxu0 %v3270
  %v3338 = vpop.f32.mrb[0].mxu0
  %v3339 = vadd.f32 0.0, %v3338
  %v3340 = vpop.f32.mrb[0].mxu0
  %3341 = vdwg.mxu0
  %3344 = vrot.lane.b32.xlu0 %v2959, 8
  %v3345 = vpop.permute.xlu0 %3344
  %3346 = vrot.lane.b32.xlu0 %v3035, 8
  %v3347 = vpop.permute.xlu0 %3346
  %3352 = vrot.lane.b32.xlu0 %v3111, 16
  %v3353 = vpop.permute.xlu0 %3352
  %3354 = vrot.lane.b32.xlu0 %v3187, 16
  %v3355 = vpop.permute.xlu0 %3354
  %3360 = vrot.lane.b32.xlu0 %v3263, 24
  %v3361 = vpop.permute.xlu0 %3360
  %3362 = vrot.lane.b32.xlu0 %v3339, 24
  %v3363 = vpop.permute.xlu0 %3362
  %v3366 = vsel %vm201, %v2807, %v3345
  %v3367 = vsel %vm201, %v2883, %v3347
  %v3368 = vsel %vm1538, %v3366, %v3353
  %v3369 = vsel %vm1538, %v3367, %v3355
  %v3370 = vsel %vm1541, %v3368, %v3361
  %v3371 = vsel %vm1541, %v3369, %v3363
  %v3373 = vlaneseq
  %v3374 = vshrl.u32 %v3373, 7
  %v3375 = vsub.s32 0, %v3374
  %v3376 = vrot.slane %v2015, %v3375
  %v3379 = vsel %vm98, %v3370, 0
  %v3382 = vsel %vm98, %v3371, 0
  %3384 = vmatprep.subr.mxu0 0.0
  %3385 = vmatpush1.msra.mxu0 %v2010
  %3386 = vmatprep.subr.mxu0 0.0
  %3387 = vmatpush1.msra.mxu0 %v2011
  %3388 = vmatprep.subr.mxu0 0.0
  %3389 = vmatpush1.msra.mxu0 %v2012
  %3390 = vmatprep.subr.mxu0 0.0
  %3391 = vmatpush1.msra.mxu0 %v2013
  %3392 = vmatprep.subr.mxu0 0.0
  %3393 = vmatpush1.msra.mxu0 0.0
  %3394 = vmatprep.subr.mxu0 0.0
  %3395 = vmatpush1.msra.mxu0 0.0
  %3396 = vmatprep.subr.mxu0 0.0
  %3397 = vmatpush1.msra.mxu0 0.0
  %3398 = vmatprep.subr.mxu0 0.0
  %3399 = vmatpush1.msra.mxu0 0.0
  %3400 = vmatprep.subr.mxu0 0.0
  %3401 = vmatpush1.msra.mxu0 0.0
  %3402 = vmatprep.subr.mxu0 0.0
  %3403 = vmatpush1.msra.mxu0 0.0
  %3404 = vmatprep.subr.mxu0 0.0
  %3405 = vmatpush1.msra.mxu0 0.0
  %3406 = vmatprep.subr.mxu0 0.0
  %3407 = vmatpush1.msra.mxu0 0.0
  %3408 = vmatprep.subr.mxu0 0.0
  %3409 = vmatpush1.msra.mxu0 0.0
  %3410 = vmatprep.subr.mxu0 0.0
  %3411 = vmatpush1.msra.mxu0 0.0
  %3412 = vmatprep.subr.mxu0 0.0
  %3413 = vmatpush1.msra.mxu0 0.0
  %3414 = vmatprep.subr.mxu0 0.0
  %3415 = vmatpush1.msra.mxu0 0.0
  %3416 = vmatprep.subr.mxu0 0.0
  %3417 = vmatpush1.msra.mxu0 0.0
  %3418 = vmatprep.subr.mxu0 0.0
  %3419 = vmatpush1.msra.mxu0 0.0
  %3420 = vmatprep.subr.mxu0 0.0
  %3421 = vmatpush1.msra.mxu0 0.0
  %3422 = vmatprep.subr.mxu0 0.0
  %3423 = vmatpush1.msra.mxu0 0.0
  %3424 = vmatprep.subr.mxu0 0.0
  %3425 = vmatpush1.msra.mxu0 0.0
  %3426 = vmatprep.subr.mxu0 0.0
  %3427 = vmatpush1.msra.mxu0 0.0
  %3428 = vmatprep.subr.mxu0 0.0
  %3429 = vmatpush1.msra.mxu0 0.0
  %3430 = vmatprep.subr.mxu0 0.0
  %3431 = vmatpush1.msra.mxu0 0.0
  %3432 = vmatprep.subr.mxu0 0.0
  %3433 = vmatpush1.msra.mxu0 0.0
  %3434 = vmatprep.subr.mxu0 0.0
  %3435 = vmatpush1.msra.mxu0 0.0
  %3436 = vmatprep.subr.mxu0 0.0
  %3437 = vmatpush1.msra.mxu0 0.0
  %3438 = vmatprep.subr.mxu0 0.0
  %3439 = vmatpush1.msra.mxu0 0.0
  %3440 = vmatprep.subr.mxu0 0.0
  %3441 = vmatpush1.msra.mxu0 0.0
  %3442 = vmatprep.subr.mxu0 0.0
  %3443 = vmatpush1.msra.mxu0 0.0
  %3444 = vmatprep.subr.mxu0 0.0
  %3445 = vmatpush1.msra.mxu0 0.0
  %3446 = vmatprep.subr.mxu0 0.0
  %3447 = vmatpush1.msra.mxu0 0.0
  %3448 = vmatprep.mubr.f32.mxu0 0.0
  %3449 = vmatmul.mubr.f32.gmra.mrb[0].mxu0 %v3379
  %v3450 = vpop.f32.mrb[0].mxu0
  %v3451 = vadd.f32 %v3376, %v3450
  %v3452 = vpop.f32.mrb[0].mxu0
  %3453 = vmatprep.mubr.f32.mxu0 0.0
  %3454 = vmatmul.mubr.f32.gmra.mrb[0].mxu0 %v3382
  %v3455 = vpop.f32.mrb[0].mxu0
  %v3456 = vadd.f32 %v3376, %v3455
  %v3457 = vpop.f32.mrb[0].mxu0
  %3458 = vdwg.mxu0
  %v3459 = vadd.f32 %v1913, %v3451
  %v3460 = vadd.f32 %v1914, %v3456
  %s3461 = scalar_lea.vmem %s8, 1
  %v3462 = vld [vmem:[%s3461] sm:$0x1]
  %s3463 = scalar_lea.vmem %s9, 1
  %v3464 = vld [vmem:[%s3463] sm:$0x1]
  %v3465 = vsel %vm98, %v3459, 0.0
  %3466 = vadd.xlane.f32.xlu0 %v3465
  %v3467 = vpop.xlane.xlu0 %3466
  %v3468 = vsel %vm98, %v3460, 0.0
  %3469 = vadd.xlane.f32.xlu0 %v3468
  %v3470 = vpop.xlane.xlu0 %3469
  %v3471 = vmul.f32 %v3467, %v1641
  %v3472 = vmul.f32 %v3470, %v1641
  %v3473 = vsub.f32 %v3459, %v3471
  %v3474 = vsub.f32 %v3460, %v3472
  %v3475 = vmul.f32 %v3473, %v3473
  %v3476 = vmul.f32 %v3474, %v3474
  %v3477 = vsel %vm98, %v3475, 0.0
  %3478 = vadd.xlane.f32.xlu0 %v3477
  %v3479 = vpop.xlane.xlu0 %3478
  %v3480 = vsel %vm98, %v3476, 0.0
  %3481 = vadd.xlane.f32.xlu0 %v3480
  %v3482 = vpop.xlane.xlu0 %3481
  %v3483 = vmul.f32 %v3479, %v1641
  %v3484 = vmul.f32 %v3482, %v1641
  %v3485 = vadd.f32 %v3483, 1e-05
  %v3486 = vadd.f32 %v3484, 1e-05
  %v3487 = vrsqrt.pop %v3485
  %v3488 = vrsqrt.pop %v3486
  %v3489 = vmul.f32 %v3473, %v3487
  %v3490 = vmul.f32 %v3474, %v3488
  %v3492 = vlaneseq
  %v3493 = vshrl.u32 %v3492, 7
  %v3494 = vsub.s32 0, %v3493
  %v3495 = vrot.slane %v3462, %v3494
  %v3497 = vmul.f32 %v3489, %v3495
  %v3498 = vmul.f32 %v3490, %v3495
  %v3500 = vlaneseq
  %v3501 = vshrl.u32 %v3500, 7
  %v3502 = vsub.s32 0, %v3501
  %v3503 = vrot.slane %v3464, %v3502
  %v3505 = vadd.f32 %v3497, %v3503
  %v3506 = vadd.f32 %v3498, %v3503
  %s3507 = scalar_lea.vmem %s10, 32
  %v3508 = vld [vmem:[%s3507] sm:$0xff]
  %v3509 = vld [vmem:[%s3507 + $0x8] sm:$0xff]
  %v3510 = vld [vmem:[%s3507 + $0x10] sm:$0xff]
  %v3511 = vld [vmem:[%s3507 + $0x18] sm:$0xff]
  %s3512 = scalar_lea.vmem %s11, 1
  %v3513 = vld [vmem:[%s3512] sm:$0x1]
  %v3515 = vlaneseq
  %v3516 = vshrl.u32 %v3515, 7
  %v3517 = vsub.s32 0, %v3516
  %v3518 = vrot.slane %v3513, %v3517
  %v3521 = vsel %vm98, %v3505, 0
  %v3524 = vsel %vm98, %v3506, 0
  %3526 = vmatprep.subr.mxu0 0.0
  %3527 = vmatpush1.msra.mxu0 %v3508
  %3528 = vmatprep.subr.mxu0 0.0
  %3529 = vmatpush1.msra.mxu0 %v3509
  %3530 = vmatprep.subr.mxu0 0.0
  %3531 = vmatpush1.msra.mxu0 %v3510
  %3532 = vmatprep.subr.mxu0 0.0
  %3533 = vmatpush1.msra.mxu0 %v3511
  %3534 = vmatprep.subr.mxu0 0.0
  %3535 = vmatpush1.msra.mxu0 0.0
  %3536 = vmatprep.subr.mxu0 0.0
  %3537 = vmatpush1.msra.mxu0 0.0
  %3538 = vmatprep.subr.mxu0 0.0
  %3539 = vmatpush1.msra.mxu0 0.0
  %3540 = vmatprep.subr.mxu0 0.0
  %3541 = vmatpush1.msra.mxu0 0.0
  %3542 = vmatprep.subr.mxu0 0.0
  %3543 = vmatpush1.msra.mxu0 0.0
  %3544 = vmatprep.subr.mxu0 0.0
  %3545 = vmatpush1.msra.mxu0 0.0
  %3546 = vmatprep.subr.mxu0 0.0
  %3547 = vmatpush1.msra.mxu0 0.0
  %3548 = vmatprep.subr.mxu0 0.0
  %3549 = vmatpush1.msra.mxu0 0.0
  %3550 = vmatprep.subr.mxu0 0.0
  %3551 = vmatpush1.msra.mxu0 0.0
  %3552 = vmatprep.subr.mxu0 0.0
  %3553 = vmatpush1.msra.mxu0 0.0
  %3554 = vmatprep.subr.mxu0 0.0
  %3555 = vmatpush1.msra.mxu0 0.0
  %3556 = vmatprep.subr.mxu0 0.0
  %3557 = vmatpush1.msra.mxu0 0.0
  %3558 = vmatprep.subr.mxu0 0.0
  %3559 = vmatpush1.msra.mxu0 0.0
  %3560 = vmatprep.subr.mxu0 0.0
  %3561 = vmatpush1.msra.mxu0 0.0
  %3562 = vmatprep.subr.mxu0 0.0
  %3563 = vmatpush1.msra.mxu0 0.0
  %3564 = vmatprep.subr.mxu0 0.0
  %3565 = vmatpush1.msra.mxu0 0.0
  %3566 = vmatprep.subr.mxu0 0.0
  %3567 = vmatpush1.msra.mxu0 0.0
  %3568 = vmatprep.subr.mxu0 0.0
  %3569 = vmatpush1.msra.mxu0 0.0
  %3570 = vmatprep.subr.mxu0 0.0
  %3571 = vmatpush1.msra.mxu0 0.0
  %3572 = vmatprep.subr.mxu0 0.0
  %3573 = vmatpush1.msra.mxu0 0.0
  %3574 = vmatprep.subr.mxu0 0.0
  %3575 = vmatpush1.msra.mxu0 0.0
  %3576 = vmatprep.subr.mxu0 0.0
  %3577 = vmatpush1.msra.mxu0 0.0
  %3578 = vmatprep.subr.mxu0 0.0
  %3579 = vmatpush1.msra.mxu0 0.0
  %3580 = vmatprep.subr.mxu0 0.0
  %3581 = vmatpush1.msra.mxu0 0.0
  %3582 = vmatprep.subr.mxu0 0.0
  %3583 = vmatpush1.msra.mxu0 0.0
  %3584 = vmatprep.subr.mxu0 0.0
  %3585 = vmatpush1.msra.mxu0 0.0
  %3586 = vmatprep.subr.mxu0 0.0
  %3587 = vmatpush1.msra.mxu0 0.0
  %3588 = vmatprep.subr.mxu0 0.0
  %3589 = vmatpush1.msra.mxu0 0.0
  %3590 = vmatprep.mubr.f32.mxu0 0.0
  %3591 = vmatmul.mubr.f32.gmra.mrb[0].mxu0 %v3521
  %v3592 = vpop.f32.mrb[0].mxu0
  %v3593 = vadd.f32 %v3518, %v3592
  %v3594 = vpop.f32.mrb[0].mxu0
  %3595 = vmatprep.mubr.f32.mxu0 0.0
  %3596 = vmatmul.mubr.f32.gmra.mrb[0].mxu0 %v3524
  %v3597 = vpop.f32.mrb[0].mxu0
  %v3598 = vadd.f32 %v3518, %v3597
  %v3599 = vpop.f32.mrb[0].mxu0
  %3600 = vdwg.mxu0
  %v3601 = vmax.f32 %v3593, 0.0
  %v3602 = vmax.f32 %v3598, 0.0
  %s3603 = scalar_lea.vmem %s12, 64
  %v3604 = vld [vmem:[%s3603] sm:$0xff]
  %v3605 = vld [vmem:[%s3603 + $0x8] sm:$0xff]
  %v3606 = vld [vmem:[%s3603 + $0x10] sm:$0xff]
  %v3607 = vld [vmem:[%s3603 + $0x18] sm:$0xff]
  %v3608 = vld [vmem:[%s3603 + $0x20] sm:$0xff]
  %v3609 = vld [vmem:[%s3603 + $0x28] sm:$0xff]
  %v3610 = vld [vmem:[%s3603 + $0x30] sm:$0xff]
  %v3611 = vld [vmem:[%s3603 + $0x38] sm:$0xff]
  %s3612 = scalar_lea.vmem %s13, 1
  %v3613 = vld [vmem:[%s3612] sm:$0x1]
  %v3615 = vlaneseq
  %v3616 = vshrl.u32 %v3615, 7
  %v3617 = vsub.s32 0, %v3616
  %v3618 = vrot.slane %v3613, %v3617
  %v3621 = vsel %vm1787, %v3601, 0
  %v3624 = vsel %vm1787, %v3602, 0
  %3626 = vmatprep.subr.mxu0 0.0
  %3627 = vmatpush1.msra.mxu0 %v3604
  %3628 = vmatprep.subr.mxu0 0.0
  %3629 = vmatpush1.msra.mxu0 %v3605
  %3630 = vmatprep.subr.mxu0 0.0
  %3631 = vmatpush1.msra.mxu0 %v3606
  %3632 = vmatprep.subr.mxu0 0.0
  %3633 = vmatpush1.msra.mxu0 %v3607
  %3634 = vmatprep.subr.mxu0 0.0
  %3635 = vmatpush1.msra.mxu0 %v3608
  %3636 = vmatprep.subr.mxu0 0.0
  %3637 = vmatpush1.msra.mxu0 %v3609
  %3638 = vmatprep.subr.mxu0 0.0
  %3639 = vmatpush1.msra.mxu0 %v3610
  %3640 = vmatprep.subr.mxu0 0.0
  %3641 = vmatpush1.msra.mxu0 %v3611
  %3642 = vmatprep.subr.mxu0 0.0
  %3643 = vmatpush1.msra.mxu0 0.0
  %3644 = vmatprep.subr.mxu0 0.0
  %3645 = vmatpush1.msra.mxu0 0.0
  %3646 = vmatprep.subr.mxu0 0.0
  %3647 = vmatpush1.msra.mxu0 0.0
  %3648 = vmatprep.subr.mxu0 0.0
  %3649 = vmatpush1.msra.mxu0 0.0
  %3650 = vmatprep.subr.mxu0 0.0
  %3651 = vmatpush1.msra.mxu0 0.0
  %3652 = vmatprep.subr.mxu0 0.0
  %3653 = vmatpush1.msra.mxu0 0.0
  %3654 = vmatprep.subr.mxu0 0.0
  %3655 = vmatpush1.msra.mxu0 0.0
  %3656 = vmatprep.subr.mxu0 0.0
  %3657 = vmatpush1.msra.mxu0 0.0
  %3658 = vmatprep.subr.mxu0 0.0
  %3659 = vmatpush1.msra.mxu0 0.0
  %3660 = vmatprep.subr.mxu0 0.0
  %3661 = vmatpush1.msra.mxu0 0.0
  %3662 = vmatprep.subr.mxu0 0.0
  %3663 = vmatpush1.msra.mxu0 0.0
  %3664 = vmatprep.subr.mxu0 0.0
  %3665 = vmatpush1.msra.mxu0 0.0
  %3666 = vmatprep.subr.mxu0 0.0
  %3667 = vmatpush1.msra.mxu0 0.0
  %3668 = vmatprep.subr.mxu0 0.0
  %3669 = vmatpush1.msra.mxu0 0.0
  %3670 = vmatprep.subr.mxu0 0.0
  %3671 = vmatpush1.msra.mxu0 0.0
  %3672 = vmatprep.subr.mxu0 0.0
  %3673 = vmatpush1.msra.mxu0 0.0
  %3674 = vmatprep.subr.mxu0 0.0
  %3675 = vmatpush1.msra.mxu0 0.0
  %3676 = vmatprep.subr.mxu0 0.0
  %3677 = vmatpush1.msra.mxu0 0.0
  %3678 = vmatprep.subr.mxu0 0.0
  %3679 = vmatpush1.msra.mxu0 0.0
  %3680 = vmatprep.subr.mxu0 0.0
  %3681 = vmatpush1.msra.mxu0 0.0
  %3682 = vmatprep.subr.mxu0 0.0
  %3683 = vmatpush1.msra.mxu0 0.0
  %3684 = vmatprep.subr.mxu0 0.0
  %3685 = vmatpush1.msra.mxu0 0.0
  %3686 = vmatprep.subr.mxu0 0.0
  %3687 = vmatpush1.msra.mxu0 0.0
  %3688 = vmatprep.subr.mxu0 0.0
  %3689 = vmatpush1.msra.mxu0 0.0
  %3690 = vmatprep.mubr.f32.mxu0 0.0
  %3691 = vmatmul.mubr.f32.gmra.mrb[0].mxu0 %v3621
  %v3692 = vpop.f32.mrb[0].mxu0
  %v3693 = vadd.f32 %v3618, %v3692
  %v3694 = vpop.f32.mrb[0].mxu0
  %3695 = vmatprep.mubr.f32.mxu0 0.0
  %3696 = vmatmul.mubr.f32.gmra.mrb[0].mxu0 %v3624
  %v3697 = vpop.f32.mrb[0].mxu0
  %v3698 = vadd.f32 %v3618, %v3697
  %v3699 = vpop.f32.mrb[0].mxu0
  %3700 = vdwg.mxu0
  %v3701 = vadd.f32 %v3505, %v3693
  %v3702 = vadd.f32 %v3506, %v3698
  %s3703 = scalar_lea.vmem %s14, 1
  %v3704 = vld [vmem:[%s3703] sm:$0x1]
  %s3705 = scalar_lea.vmem %s15, 1
  %v3706 = vld [vmem:[%s3705] sm:$0x1]
  %v3707 = vsel %vm98, %v3701, 0.0
  %3708 = vadd.xlane.f32.xlu0 %v3707
  %v3709 = vpop.xlane.xlu0 %3708
  %v3710 = vsel %vm98, %v3702, 0.0
  %3711 = vadd.xlane.f32.xlu0 %v3710
  %v3712 = vpop.xlane.xlu0 %3711
  %v3713 = vmul.f32 %v3709, %v1641
  %v3714 = vmul.f32 %v3712, %v1641
  %v3715 = vsub.f32 %v3701, %v3713
  %v3716 = vsub.f32 %v3702, %v3714
  %v3717 = vmul.f32 %v3715, %v3715
  %v3718 = vmul.f32 %v3716, %v3716
  %v3719 = vsel %vm98, %v3717, 0.0
  %3720 = vadd.xlane.f32.xlu0 %v3719
  %v3721 = vpop.xlane.xlu0 %3720
  %v3722 = vsel %vm98, %v3718, 0.0
  %3723 = vadd.xlane.f32.xlu0 %v3722
  %v3724 = vpop.xlane.xlu0 %3723
  %v3725 = vmul.f32 %v3721, %v1641
  %v3726 = vmul.f32 %v3724, %v1641
  %v3727 = vadd.f32 %v3725, 1e-05
  %v3728 = vadd.f32 %v3726, 1e-05
  %v3729 = vrsqrt.pop %v3727
  %v3730 = vrsqrt.pop %v3728
  %v3731 = vmul.f32 %v3715, %v3729
  %v3732 = vmul.f32 %v3716, %v3730
  %v3734 = vlaneseq
  %v3735 = vshrl.u32 %v3734, 7
  %v3736 = vsub.s32 0, %v3735
  %v3737 = vrot.slane %v3704, %v3736
  %v3739 = vmul.f32 %v3731, %v3737
  %v3740 = vmul.f32 %v3732, %v3737
  %v3742 = vlaneseq
  %v3743 = vshrl.u32 %v3742, 7
  %v3744 = vsub.s32 0, %v3743
  %v3745 = vrot.slane %v3706, %v3744
  %v3747 = vadd.f32 %v3739, %v3745
  %v3748 = vadd.f32 %v3740, %v3745
  %3749 = vst.msk [vmem:[%s16] sm:$0xff] %vm98, %v3747
  %3750 = vst.msk [vmem:[%s16 + $0x8] sm:$0xff] %vm98, %v3748
  // Predicated region
  $region66: #{forward.2} parent=0 // pred_check
    _
  $region67: #{forward.2} parent=0 // pred_check_branch
    %3752 = sbr.rel (0) target = $region69
  $region68: #{forward.2} parent=0 // pred_region
    _
  $region69: #{forward.2} parent=0 // pred_fallthru
    _
  // Predicated region
  $region70: #{forward.2} parent=0 // pred_check
    _
  $region71: #{forward.2} parent=0 // pred_check_branch
    %3754 = sbr.rel (0) target = $region73
  $region72: #{forward.2} parent=0 // pred_region
    _
  $region73: #{forward.2} parent=0 // pred_fallthru
    _

// kernel: forward.3
$region0: #{forward.3}
  #allocation0 [shape = 'u32[]', space=smem, size = 0x4, offset = 0x4, fixed_abs, tag = 'smem constant byte address 0x4 - core index']
  #allocation1 [shape = 'u32[144,128]{1,0:T(1,128)}', space=vmem, size = 0x12000, scoped, tag = 'internal scratch']
  #allocation2 [shape = 'f32[1,1]{1,0:T(1,128)S(1)}', space=vmem, size = 0x200, scoped, tag = 'scoped memory for forward.3']
  %s0 = inlined_call_operand.vmem [shape: f32[16,1], index: 0, kind: input, shape index: {}]
  %s1 = inlined_call_operand.vmem [shape: f32[1,32], index: 1, kind: input, shape index: {}]
  %s2 = inlined_call_operand.vmem [shape: f32[1,32], index: 2, kind: input, shape index: {}]
  %s3 = inlined_call_operand.vmem [shape: f32[16,32], index: 3, kind: input, shape index: {}]
  %s4 = inlined_call_operand.vmem [shape: f32[8,8], index: 4, kind: input, shape index: {}]
  %s5 = inlined_call_operand.vmem [shape: f32[8,8], index: 5, kind: input, shape index: {}]
  %s6 = inlined_call_operand.vmem [shape: f32[2,32,96], index: 6, kind: input, shape index: {}]
  %s7 = inlined_call_operand.vmem [shape: f32[2,1,96], index: 7, kind: input, shape index: {}]
  %s8 = inlined_call_operand.vmem [shape: f32[2,32,32], index: 8, kind: input, shape index: {}]
  %s9 = inlined_call_operand.vmem [shape: f32[2,1,32], index: 9, kind: input, shape index: {}]
  %s10 = inlined_call_operand.vmem [shape: f32[2,1,32], index: 10, kind: input, shape index: {}]
  %s11 = inlined_call_operand.vmem [shape: f32[2,1,32], index: 11, kind: input, shape index: {}]
  %s12 = inlined_call_operand.vmem [shape: f32[2,32,32], index: 12, kind: input, shape index: {}]
  %s13 = inlined_call_operand.vmem [shape: f32[2,1,32], index: 13, kind: input, shape index: {}]
  %s14 = inlined_call_operand.vmem [shape: f32[2,32,64], index: 14, kind: input, shape index: {}]
  %s15 = inlined_call_operand.vmem [shape: f32[2,1,64], index: 15, kind: input, shape index: {}]
  %s16 = inlined_call_operand.vmem [shape: f32[2,32,32], index: 16, kind: input, shape index: {}]
  %s17 = inlined_call_operand.vmem [shape: f32[2,1,32], index: 17, kind: input, shape index: {}]
  %s18 = inlined_call_operand.vmem [shape: f32[2,1,32], index: 18, kind: input, shape index: {}]
  %s19 = inlined_call_operand.vmem [shape: f32[2,1,32], index: 19, kind: input, shape index: {}]
  %s20 = inlined_call_operand.vmem [shape: f32[2,32,64], index: 20, kind: input, shape index: {}]
  %s21 = inlined_call_operand.vmem [shape: f32[2,1,64], index: 21, kind: input, shape index: {}]
  %s22 = inlined_call_operand.vmem [shape: f32[2,64,32], index: 22, kind: input, shape index: {}]
  %s23 = inlined_call_operand.vmem [shape: f32[2,1,32], index: 23, kind: input, shape index: {}]
  %s24 = inlined_call_operand.vmem [shape: f32[2,1,32], index: 24, kind: input, shape index: {}]
  %s25 = inlined_call_operand.vmem [shape: f32[2,1,32], index: 25, kind: input, shape index: {}]
  %s26 = inlined_call_operand.vmem [shape: f32[1,32], index: 26, kind: input, shape index: {}]
  %s27 = inlined_call_operand.<no memory space> [shape: f32[1,1], index: 27, kind: input, shape index: {}]
  %s28 = inlined_call_operand.vmem [shape: f32[16,1], index: 28, kind: output, shape index: {}]
  %s29 = sld [smem:[#allocation0]]
  $region122: #{forward.3} parent=0
    _
  %s31 = ssub.s32 1, %s29
  %s32 = scalar_select 0, %s31, %s29
  %v33 = vstv %s27
  %34 = vst [vmem:[#allocation2] sm:$0x1] %v33
  // Predicated region
  $region2: #{forward.3} parent=0 // pred_check
    _
  $region3: #{forward.3} parent=0 // pred_check_branch
    %36 = sbr.rel (0) target = $region5
  $region4: #{forward.3} parent=0 // pred_region
    _
  $region5: #{forward.3} parent=0 // pred_fallthru
    _
  // Predicated region
  $region6: #{forward.3} parent=0 // pred_check
    _
  $region7: #{forward.3} parent=0 // pred_check_branch
    %38 = sbr.rel (0) target = $region9
  $region8: #{forward.3} parent=0 // pred_region
    _
  $region9: #{forward.3} parent=0 // pred_fallthru
    _
  // Predicated region
  $region10: #{forward.3} parent=0 // pred_check
    _
  $region11: #{forward.3} parent=0 // pred_check_branch
    %40 = sbr.rel (0) target = $region13
  $region12: #{forward.3} parent=0 // pred_region
    _
  $region13: #{forward.3} parent=0 // pred_fallthru
    _
  // Predicated region
  $region14: #{forward.3} parent=0 // pred_check
    _
  $region15: #{forward.3} parent=0 // pred_check_branch
    %42 = sbr.rel (0) target = $region17
  $region16: #{forward.3} parent=0 // pred_region
    _
  $region17: #{forward.3} parent=0 // pred_fallthru
    _
  // Predicated region
  $region18: #{forward.3} parent=0 // pred_check
    _
  $region19: #{forward.3} parent=0 // pred_check_branch
    %44 = sbr.rel (0) target = $region21
  $region20: #{forward.3} parent=0 // pred_region
    _
  $region21: #{forward.3} parent=0 // pred_fallthru
    _
  // Predicated region
  $region22: #{forward.3} parent=0 // pred_check
    _
  $region23: #{forward.3} parent=0 // pred_check_branch
    %46 = sbr.rel (0) target = $region25
  $region24: #{forward.3} parent=0 // pred_region
    _
  $region25: #{forward.3} parent=0 // pred_fallthru
    _
  // Predicated region
  $region26: #{forward.3} parent=0 // pred_check
    _
  $region27: #{forward.3} parent=0 // pred_check_branch
    %48 = sbr.rel (0) target = $region29
  $region28: #{forward.3} parent=0 // pred_region
    _
  $region29: #{forward.3} parent=0 // pred_fallthru
    _
  // Predicated region
  $region30: #{forward.3} parent=0 // pred_check
    _
  $region31: #{forward.3} parent=0 // pred_check_branch
    %50 = sbr.rel (0) target = $region33
  $region32: #{forward.3} parent=0 // pred_region
    _
  $region33: #{forward.3} parent=0 // pred_fallthru
    _
  // Predicated region
  $region34: #{forward.3} parent=0 // pred_check
    _
  $region35: #{forward.3} parent=0 // pred_check_branch
    %52 = sbr.rel (0) target = $region37
  $region36: #{forward.3} parent=0 // pred_region
    _
  $region37: #{forward.3} parent=0 // pred_fallthru
    _
  // Predicated region
  $region38: #{forward.3} parent=0 // pred_check
    _
  $region39: #{forward.3} parent=0 // pred_check_branch
    %54 = sbr.rel (0) target = $region41
  $region40: #{forward.3} parent=0 // pred_region
    _
  $region41: #{forward.3} parent=0 // pred_fallthru
    _
  // Predicated region
  $region42: #{forward.3} parent=0 // pred_check
    _
  $region43: #{forward.3} parent=0 // pred_check_branch
    %56 = sbr.rel (0) target = $region45
  $region44: #{forward.3} parent=0 // pred_region
    _
  $region45: #{forward.3} parent=0 // pred_fallthru
    _
  // Predicated region
  $region46: #{forward.3} parent=0 // pred_check
    _
  $region47: #{forward.3} parent=0 // pred_check_branch
    %58 = sbr.rel (0) target = $region49
  $region48: #{forward.3} parent=0 // pred_region
    _
  $region49: #{forward.3} parent=0 // pred_fallthru
    _
  // Predicated region
  $region50: #{forward.3} parent=0 // pred_check
    _
  $region51: #{forward.3} parent=0 // pred_check_branch
    %60 = sbr.rel (0) target = $region53
  $region52: #{forward.3} parent=0 // pred_region
    _
  $region53: #{forward.3} parent=0 // pred_fallthru
    _
  // Predicated region
  $region54: #{forward.3} parent=0 // pred_check
    _
  $region55: #{forward.3} parent=0 // pred_check_branch
    %62 = sbr.rel (0) target = $region57
  $region56: #{forward.3} parent=0 // pred_region
    _
  $region57: #{forward.3} parent=0 // pred_fallthru
    _
  // Predicated region
  $region58: #{forward.3} parent=0 // pred_check
    _
  $region59: #{forward.3} parent=0 // pred_check_branch
    %64 = sbr.rel (0) target = $region61
  $region60: #{forward.3} parent=0 // pred_region
    _
  $region61: #{forward.3} parent=0 // pred_fallthru
    _
  // Predicated region
  $region62: #{forward.3} parent=0 // pred_check
    _
  $region63: #{forward.3} parent=0 // pred_check_branch
    %66 = sbr.rel (0) target = $region65
  $region64: #{forward.3} parent=0 // pred_region
    _
  $region65: #{forward.3} parent=0 // pred_fallthru
    _
  // Predicated region
  $region66: #{forward.3} parent=0 // pred_check
    _
  $region67: #{forward.3} parent=0 // pred_check_branch
    %68 = sbr.rel (0) target = $region69
  $region68: #{forward.3} parent=0 // pred_region
    _
  $region69: #{forward.3} parent=0 // pred_fallthru
    _
  // Predicated region
  $region70: #{forward.3} parent=0 // pred_check
    _
  $region71: #{forward.3} parent=0 // pred_check_branch
    %70 = sbr.rel (0) target = $region73
  $region72: #{forward.3} parent=0 // pred_region
    _
  $region73: #{forward.3} parent=0 // pred_fallthru
    _
  // Predicated region
  $region74: #{forward.3} parent=0 // pred_check
    _
  $region75: #{forward.3} parent=0 // pred_check_branch
    %72 = sbr.rel (0) target = $region77
  $region76: #{forward.3} parent=0 // pred_region
    _
  $region77: #{forward.3} parent=0 // pred_fallthru
    _
  // Predicated region
  $region78: #{forward.3} parent=0 // pred_check
    _
  $region79: #{forward.3} parent=0 // pred_check_branch
    %74 = sbr.rel (0) target = $region81
  $region80: #{forward.3} parent=0 // pred_region
    _
  $region81: #{forward.3} parent=0 // pred_fallthru
    _
  // Predicated region
  $region82: #{forward.3} parent=0 // pred_check
    _
  $region83: #{forward.3} parent=0 // pred_check_branch
    %76 = sbr.rel (0) target = $region85
  $region84: #{forward.3} parent=0 // pred_region
    _
  $region85: #{forward.3} parent=0 // pred_fallthru
    _
  // Predicated region
  $region86: #{forward.3} parent=0 // pred_check
    _
  $region87: #{forward.3} parent=0 // pred_check_branch
    %78 = sbr.rel (0) target = $region89
  $region88: #{forward.3} parent=0 // pred_region
    _
  $region89: #{forward.3} parent=0 // pred_fallthru
    _
  // Predicated region
  $region90: #{forward.3} parent=0 // pred_check
    _
  $region91: #{forward.3} parent=0 // pred_check_branch
    %80 = sbr.rel (0) target = $region93
  $region92: #{forward.3} parent=0 // pred_region
    _
  $region93: #{forward.3} parent=0 // pred_fallthru
    _
  // Predicated region
  $region94: #{forward.3} parent=0 // pred_check
    _
  $region95: #{forward.3} parent=0 // pred_check_branch
    %82 = sbr.rel (0) target = $region97
  $region96: #{forward.3} parent=0 // pred_region
    _
  $region97: #{forward.3} parent=0 // pred_fallthru
    _
  // Predicated region
  $region98: #{forward.3} parent=0 // pred_check
    _
  $region99: #{forward.3} parent=0 // pred_check_branch
    %84 = sbr.rel (0) target = $region101
  $region100: #{forward.3} parent=0 // pred_region
    _
  $region101: #{forward.3} parent=0 // pred_fallthru
    _
  // Predicated region
  $region102: #{forward.3} parent=0 // pred_check
    _
  $region103: #{forward.3} parent=0 // pred_check_branch
    %86 = sbr.rel (0) target = $region105
  $region104: #{forward.3} parent=0 // pred_region
    _
  $region105: #{forward.3} parent=0 // pred_fallthru
    _
  // Predicated region
  $region106: #{forward.3} parent=0 // pred_check
    _
  $region107: #{forward.3} parent=0 // pred_check_branch
    %88 = sbr.rel (0) target = $region109
  $region108: #{forward.3} parent=0 // pred_region
    _
  $region109: #{forward.3} parent=0 // pred_fallthru
    _
  // Predicated region
  $region110: #{forward.3} parent=0 // pred_check
    _
  $region111: #{forward.3} parent=0 // pred_check_branch
    %90 = sbr.rel (0) target = $region113
  $region112: #{forward.3} parent=0 // pred_region
    _
  $region113: #{forward.3} parent=0 // pred_fallthru
    _
  %v91 = vld [vmem:[%s0] sm:$0xff]
  %v92 = vld [vmem:[%s0 + $0x8] sm:$0xff]
  %v93 = vld [vmem:[%s1] sm:$0x1]
  %95 = vset.pattern.permute.xlu0 0
  %96 = vperm.xlu0 %95, %v91
  %v97 = vpop.permute.xlu0 %96
  %100 = vset.pattern.permute.xlu0 0
  %101 = vperm.xlu0 %100, %v92
  %v102 = vpop.permute.xlu0 %101
  %v105 = vlaneseq
  %v106 = vshrl.u32 %v105, 7
  %v107 = vsub.s32 0, %v106
  %v108 = vrot.slane %v93, %v107
  %v110 = vmul.f32 %v97, %v108
  %v111 = vmul.f32 %v102, %v108
  %v112 = vld [vmem:[%s2] sm:$0x1]
  %v114 = vlaneseq
  %v115 = vshrl.u32 %v114, 7
  %v116 = vsub.s32 0, %v115
  %v117 = vrot.slane %v112, %v116
  %v119 = vadd.f32 %v110, %v117
  %v120 = vadd.f32 %v111, %v117
  %v121 = vld [vmem:[%s3] sm:$0xff]
  %v122 = vld [vmem:[%s3 + $0x8] sm:$0xff]
  %v123 = vld [vmem:[%s4] sm:$0xff]
  %v124 = vld [vmem:[%s6] sm:$0xff]
  %v125 = vld [vmem:[%s6 + $0x8] sm:$0xff]
  %v126 = vld [vmem:[%s6 + $0x10] sm:$0xff]
  %v127 = vld [vmem:[%s6 + $0x18] sm:$0xff]
  %v128 = vld [vmem:[%s7] sm:$0x1]
  %v130 = vlaneseq
  %v131 = vshrl.u32 %v130, 7
  %v132 = vsub.s32 0, %v131
  %v133 = vrot.slane %v128, %v132
  %vm135 = vcmask 261120
  %v137 = vsel %vm135, %v119, 0
  %v140 = vsel %vm135, %v120, 0
  %142 = vmatprep.subr.mxu0 0.0
  %143 = vmatpush1.msra.mxu0 %v124
  %144 = vmatprep.subr.mxu0 0.0
  %145 = vmatpush1.msra.mxu0 %v125
  %146 = vmatprep.subr.mxu0 0.0
  %147 = vmatpush1.msra.mxu0 %v126
  %148 = vmatprep.subr.mxu0 0.0
  %149 = vmatpush1.msra.mxu0 %v127
  %150 = vmatprep.subr.mxu0 0.0
  %151 = vmatpush1.msra.mxu0 0.0
  %152 = vmatprep.subr.mxu0 0.0
  %153 = vmatpush1.msra.mxu0 0.0
  %154 = vmatprep.subr.mxu0 0.0
  %155 = vmatpush1.msra.mxu0 0.0
  %156 = vmatprep.subr.mxu0 0.0
  %157 = vmatpush1.msra.mxu0 0.0
  %158 = vmatprep.subr.mxu0 0.0
  %159 = vmatpush1.msra.mxu0 0.0
  %160 = vmatprep.subr.mxu0 0.0
  %161 = vmatpush1.msra.mxu0 0.0
  %162 = vmatprep.subr.mxu0 0.0
  %163 = vmatpush1.msra.mxu0 0.0
  %164 = vmatprep.subr.mxu0 0.0
  %165 = vmatpush1.msra.mxu0 0.0
  %166 = vmatprep.subr.mxu0 0.0
  %167 = vmatpush1.msra.mxu0 0.0
  %168 = vmatprep.subr.mxu0 0.0
  %169 = vmatpush1.msra.mxu0 0.0
  %170 = vmatprep.subr.mxu0 0.0
  %171 = vmatpush1.msra.mxu0 0.0
  %172 = vmatprep.subr.mxu0 0.0
  %173 = vmatpush1.msra.mxu0 0.0
  %174 = vmatprep.subr.mxu0 0.0
  %175 = vmatpush1.msra.mxu0 0.0
  %176 = vmatprep.subr.mxu0 0.0
  %177 = vmatpush1.msra.mxu0 0.0
  %178 = vmatprep.subr.mxu0 0.0
  %179 = vmatpush1.msra.mxu0 0.0
  %180 = vmatprep.subr.mxu0 0.0
  %181 = vmatpush1.msra.mxu0 0.0
  %182 = vmatprep.subr.mxu0 0.0
  %183 = vmatpush1.msra.mxu0 0.0
  %184 = vmatprep.subr.mxu0 0.0
  %185 = vmatpush1.msra.mxu0 0.0
  %186 = vmatprep.subr.mxu0 0.0
  %187 = vmatpush1.msra.mxu0 0.0
  %188 = vmatprep.subr.mxu0 0.0
  %189 = vmatpush1.msra.mxu0 0.0
  %190 = vmatprep.subr.mxu0 0.0
  %191 = vmatpush1.msra.mxu0 0.0
  %192 = vmatprep.subr.mxu0 0.0
  %193 = vmatpush1.msra.mxu0 0.0
  %194 = vmatprep.subr.mxu0 0.0
  %195 = vmatpush1.msra.mxu0 0.0
  %196 = vmatprep.subr.mxu0 0.0
  %197 = vmatpush1.msra.mxu0 0.0
  %198 = vmatprep.subr.mxu0 0.0
  %199 = vmatpush1.msra.mxu0 0.0
  %200 = vmatprep.subr.mxu0 0.0
  %201 = vmatpush1.msra.mxu0 0.0
  %202 = vmatprep.subr.mxu0 0.0
  %203 = vmatpush1.msra.mxu0 0.0
  %204 = vmatprep.subr.mxu0 0.0
  %205 = vmatpush1.msra.mxu0 0.0
  %206 = vmatprep.mubr.f32.mxu0 0.0
  %207 = vmatmul.mubr.f32.gmra.mrb[0].mxu0 %v137
  %v208 = vpop.f32.mrb[0].mxu0
  %v209 = vadd.f32 %v133, %v208
  %v210 = vpop.f32.mrb[0].mxu0
  %211 = vmatprep.mubr.f32.mxu0 0.0
  %212 = vmatmul.mubr.f32.gmra.mrb[0].mxu0 %v140
  %v213 = vpop.f32.mrb[0].mxu0
  %v214 = vadd.f32 %v133, %v213
  %v215 = vpop.f32.mrb[0].mxu0
  %216 = vdwg.mxu0
  %v217 = vld [vmem:[%s8] sm:$0xff]
  %v218 = vld [vmem:[%s8 + $0x8] sm:$0xff]
  %v219 = vld [vmem:[%s8 + $0x10] sm:$0xff]
  %v220 = vld [vmem:[%s8 + $0x18] sm:$0xff]
  %v221 = vld [vmem:[%s9] sm:$0x1]
  %224 = vrot.lane.b32.xlu0 %v209, 120
  %v225 = vpop.permute.xlu0 %224
  %226 = vrot.lane.b32.xlu0 %v214, 120
  %v227 = vpop.permute.xlu0 %226
  %228 = vrot.lane.b32.xlu0 %v209, 112
  %v229 = vpop.permute.xlu0 %228
  %230 = vrot.lane.b32.xlu0 %v214, 112
  %v231 = vpop.permute.xlu0 %230
  %232 = vrot.lane.b32.xlu0 %v209, 104
  %v233 = vpop.permute.xlu0 %232
  %234 = vrot.lane.b32.xlu0 %v214, 104
  %v235 = vpop.permute.xlu0 %234
  %236 = vrot.lane.b32.xlu0 %v209, 96
  %v237 = vpop.permute.xlu0 %236
  %vm238 = vcmask 64512
  %v239 = vsel %vm238, %v209, 0
  %v241 = vsel %vm238, %v237, 0
  %243 = vmatprep.subr.mxu0 0.0
  %244 = vmatpush1.xpose.msra.mxu0 %v241
  %245 = vmatprep.subr.mxu0 0.0
  %246 = vmatpush1.xpose.msra.mxu0 0.0
  %247 = vmatprep.subr.mxu0 0.0
  %248 = vmatpush1.xpose.msra.mxu0 0.0
  %249 = vmatprep.subr.mxu0 0.0
  %250 = vmatpush1.xpose.msra.mxu0 0.0
  %251 = vmatprep.subr.mxu0 0.0
  %252 = vmatpush1.xpose.msra.mxu0 0.0
  %253 = vmatprep.subr.mxu0 0.0
  %254 = vmatpush1.xpose.msra.mxu0 0.0
  %255 = vmatprep.subr.mxu0 0.0
  %256 = vmatpush1.xpose.msra.mxu0 0.0
  %257 = vmatprep.subr.mxu0 0.0
  %258 = vmatpush1.xpose.msra.mxu0 0.0
  %259 = vmatprep.subr.mxu0 0.0
  %260 = vmatpush1.xpose.msra.mxu0 0.0
  %261 = vmatprep.subr.mxu0 0.0
  %262 = vmatpush1.xpose.msra.mxu0 0.0
  %263 = vmatprep.subr.mxu0 0.0
  %264 = vmatpush1.xpose.msra.mxu0 0.0
  %265 = vmatprep.subr.mxu0 0.0
  %266 = vmatpush1.xpose.msra.mxu0 0.0
  %267 = vmatprep.subr.mxu0 0.0
  %268 = vmatpush1.xpose.msra.mxu0 0.0
  %269 = vmatprep.subr.mxu0 0.0
  %270 = vmatpush1.xpose.msra.mxu0 0.0
  %271 = vmatprep.subr.mxu0 0.0
  %272 = vmatpush1.xpose.msra.mxu0 0.0
  %273 = vmatprep.subr.mxu0 0.0
  %274 = vmatpush1.xpose.msra.mxu0 0.0
  %275 = vmatprep.subr.mxu0 0.0
  %276 = vmatpush1.xpose.msra.mxu0 0.0
  %277 = vmatprep.subr.mxu0 0.0
  %278 = vmatpush1.xpose.msra.mxu0 0.0
  %279 = vmatprep.subr.mxu0 0.0
  %280 = vmatpush1.xpose.msra.mxu0 0.0
  %281 = vmatprep.subr.mxu0 0.0
  %282 = vmatpush1.xpose.msra.mxu0 0.0
  %283 = vmatprep.subr.mxu0 0.0
  %284 = vmatpush1.xpose.msra.mxu0 0.0
  %285 = vmatprep.subr.mxu0 0.0
  %286 = vmatpush1.xpose.msra.mxu0 0.0
  %287 = vmatprep.subr.mxu0 0.0
  %288 = vmatpush1.xpose.msra.mxu0 0.0
  %289 = vmatprep.subr.mxu0 0.0
  %290 = vmatpush1.xpose.msra.mxu0 0.0
  %291 = vmatprep.subr.mxu0 0.0
  %292 = vmatpush1.xpose.msra.mxu0 0.0
  %293 = vmatprep.subr.mxu0 0.0
  %294 = vmatpush1.xpose.msra.mxu0 0.0
  %295 = vmatprep.subr.mxu0 0.0
  %296 = vmatpush1.xpose.msra.mxu0 0.0
  %297 = vmatprep.subr.mxu0 0.0
  %298 = vmatpush1.xpose.msra.mxu0 0.0
  %299 = vmatprep.subr.mxu0 0.0
  %300 = vmatpush1.xpose.msra.mxu0 0.0
  %301 = vmatprep.subr.mxu0 0.0
  %302 = vmatpush1.xpose.msra.mxu0 0.0
  %303 = vmatprep.subr.mxu0 0.0
  %304 = vmatpush1.xpose.msra.mxu0 0.0
  %305 = vmatprep.subr.mxu0 0.0
  %306 = vmatpush1.xpose.msra.mxu0 0.0
  %307 = vmatprep.mubr.f32.mxu0 0.0
  %308 = vmatmul.mubr.f32.gmra.mrb[0].mxu0 %v239
  %v309 = vpop.f32.mrb[0].mxu0
  %v310 = vadd.f32 0.0, %v309
  %v311 = vpop.f32.mrb[0].mxu0
  %312 = vdwg.mxu0
  %313 = vrot.lane.b32.xlu0 %v214, 96
  %v314 = vpop.permute.xlu0 %313
  %v315 = vsel %vm238, %v214, 0
  %v317 = vsel %vm238, %v314, 0
  %319 = vmatprep.subr.mxu0 0.0
  %320 = vmatpush1.xpose.msra.mxu0 %v317
  %321 = vmatprep.subr.mxu0 0.0
  %322 = vmatpush1.xpose.msra.mxu0 0.0
  %323 = vmatprep.subr.mxu0 0.0
  %324 = vmatpush1.xpose.msra.mxu0 0.0
  %325 = vmatprep.subr.mxu0 0.0
  %326 = vmatpush1.xpose.msra.mxu0 0.0
  %327 = vmatprep.subr.mxu0 0.0
  %328 = vmatpush1.xpose.msra.mxu0 0.0
  %329 = vmatprep.subr.mxu0 0.0
  %330 = vmatpush1.xpose.msra.mxu0 0.0
  %331 = vmatprep.subr.mxu0 0.0
  %332 = vmatpush1.xpose.msra.mxu0 0.0
  %333 = vmatprep.subr.mxu0 0.0
  %334 = vmatpush1.xpose.msra.mxu0 0.0
  %335 = vmatprep.subr.mxu0 0.0
  %336 = vmatpush1.xpose.msra.mxu0 0.0
  %337 = vmatprep.subr.mxu0 0.0
  %338 = vmatpush1.xpose.msra.mxu0 0.0
  %339 = vmatprep.subr.mxu0 0.0
  %340 = vmatpush1.xpose.msra.mxu0 0.0
  %341 = vmatprep.subr.mxu0 0.0
  %342 = vmatpush1.xpose.msra.mxu0 0.0
  %343 = vmatprep.subr.mxu0 0.0
  %344 = vmatpush1.xpose.msra.mxu0 0.0
  %345 = vmatprep.subr.mxu0 0.0
  %346 = vmatpush1.xpose.msra.mxu0 0.0
  %347 = vmatprep.subr.mxu0 0.0
  %348 = vmatpush1.xpose.msra.mxu0 0.0
  %349 = vmatprep.subr.mxu0 0.0
  %350 = vmatpush1.xpose.msra.mxu0 0.0
  %351 = vmatprep.subr.mxu0 0.0
  %352 = vmatpush1.xpose.msra.mxu0 0.0
  %353 = vmatprep.subr.mxu0 0.0
  %354 = vmatpush1.xpose.msra.mxu0 0.0
  %355 = vmatprep.subr.mxu0 0.0
  %356 = vmatpush1.xpose.msra.mxu0 0.0
  %357 = vmatprep.subr.mxu0 0.0
  %358 = vmatpush1.xpose.msra.mxu0 0.0
  %359 = vmatprep.subr.mxu0 0.0
  %360 = vmatpush1.xpose.msra.mxu0 0.0
  %361 = vmatprep.subr.mxu0 0.0
  %362 = vmatpush1.xpose.msra.mxu0 0.0
  %363 = vmatprep.subr.mxu0 0.0
  %364 = vmatpush1.xpose.msra.mxu0 0.0
  %365 = vmatprep.subr.mxu0 0.0
  %366 = vmatpush1.xpose.msra.mxu0 0.0
  %367 = vmatprep.subr.mxu0 0.0
  %368 = vmatpush1.xpose.msra.mxu0 0.0
  %369 = vmatprep.subr.mxu0 0.0
  %370 = vmatpush1.xpose.msra.mxu0 0.0
  %371 = vmatprep.subr.mxu0 0.0
  %372 = vmatpush1.xpose.msra.mxu0 0.0
  %373 = vmatprep.subr.mxu0 0.0
  %374 = vmatpush1.xpose.msra.mxu0 0.0
  %375 = vmatprep.subr.mxu0 0.0
  %376 = vmatpush1.xpose.msra.mxu0 0.0
  %377 = vmatprep.subr.mxu0 0.0
  %378 = vmatpush1.xpose.msra.mxu0 0.0
  %379 = vmatprep.subr.mxu0 0.0
  %380 = vmatpush1.xpose.msra.mxu0 0.0
  %381 = vmatprep.subr.mxu0 0.0
  %382 = vmatpush1.xpose.msra.mxu0 0.0
  %383 = vmatprep.mubr.f32.mxu0 0.0
  %384 = vmatmul.mubr.f32.gmra.mrb[0].mxu0 %v315
  %v385 = vpop.f32.mrb[0].mxu0
  %v386 = vadd.f32 0.0, %v385
  %v387 = vpop.f32.mrb[0].mxu0
  %388 = vdwg.mxu0
  %389 = vrot.lane.b32.xlu0 %v225, 96
  %v390 = vpop.permute.xlu0 %389
  %v391 = vsel %vm238, %v225, 0
  %v393 = vsel %vm238, %v390, 0
  %395 = vmatprep.subr.mxu0 0.0
  %396 = vmatpush1.xpose.msra.mxu0 %v393
  %397 = vmatprep.subr.mxu0 0.0
  %398 = vmatpush1.xpose.msra.mxu0 0.0
  %399 = vmatprep.subr.mxu0 0.0
  %400 = vmatpush1.xpose.msra.mxu0 0.0
  %401 = vmatprep.subr.mxu0 0.0
  %402 = vmatpush1.xpose.msra.mxu0 0.0
  %403 = vmatprep.subr.mxu0 0.0
  %404 = vmatpush1.xpose.msra.mxu0 0.0
  %405 = vmatprep.subr.mxu0 0.0
  %406 = vmatpush1.xpose.msra.mxu0 0.0
  %407 = vmatprep.subr.mxu0 0.0
  %408 = vmatpush1.xpose.msra.mxu0 0.0
  %409 = vmatprep.subr.mxu0 0.0
  %410 = vmatpush1.xpose.msra.mxu0 0.0
  %411 = vmatprep.subr.mxu0 0.0
  %412 = vmatpush1.xpose.msra.mxu0 0.0
  %413 = vmatprep.subr.mxu0 0.0
  %414 = vmatpush1.xpose.msra.mxu0 0.0
  %415 = vmatprep.subr.mxu0 0.0
  %416 = vmatpush1.xpose.msra.mxu0 0.0
  %417 = vmatprep.subr.mxu0 0.0
  %418 = vmatpush1.xpose.msra.mxu0 0.0
  %419 = vmatprep.subr.mxu0 0.0
  %420 = vmatpush1.xpose.msra.mxu0 0.0
  %421 = vmatprep.subr.mxu0 0.0
  %422 = vmatpush1.xpose.msra.mxu0 0.0
  %423 = vmatprep.subr.mxu0 0.0
  %424 = vmatpush1.xpose.msra.mxu0 0.0
  %425 = vmatprep.subr.mxu0 0.0
  %426 = vmatpush1.xpose.msra.mxu0 0.0
  %427 = vmatprep.subr.mxu0 0.0
  %428 = vmatpush1.xpose.msra.mxu0 0.0
  %429 = vmatprep.subr.mxu0 0.0
  %430 = vmatpush1.xpose.msra.mxu0 0.0
  %431 = vmatprep.subr.mxu0 0.0
  %432 = vmatpush1.xpose.msra.mxu0 0.0
  %433 = vmatprep.subr.mxu0 0.0
  %434 = vmatpush1.xpose.msra.mxu0 0.0
  %435 = vmatprep.subr.mxu0 0.0
  %436 = vmatpush1.xpose.msra.mxu0 0.0
  %437 = vmatprep.subr.mxu0 0.0
  %438 = vmatpush1.xpose.msra.mxu0 0.0
  %439 = vmatprep.subr.mxu0 0.0
  %440 = vmatpush1.xpose.msra.mxu0 0.0
  %441 = vmatprep.subr.mxu0 0.0
  %442 = vmatpush1.xpose.msra.mxu0 0.0
  %443 = vmatprep.subr.mxu0 0.0
  %444 = vmatpush1.xpose.msra.mxu0 0.0
  %445 = vmatprep.subr.mxu0 0.0
  %446 = vmatpush1.xpose.msra.mxu0 0.0
  %447 = vmatprep.subr.mxu0 0.0
  %448 = vmatpush1.xpose.msra.mxu0 0.0
  %449 = vmatprep.subr.mxu0 0.0
  %450 = vmatpush1.xpose.msra.mxu0 0.0
  %451 = vmatprep.subr.mxu0 0.0
  %452 = vmatpush1.xpose.msra.mxu0 0.0
  %453 = vmatprep.subr.mxu0 0.0
  %454 = vmatpush1.xpose.msra.mxu0 0.0
  %455 = vmatprep.subr.mxu0 0.0
  %456 = vmatpush1.xpose.msra.mxu0 0.0
  %457 = vmatprep.subr.mxu0 0.0
  %458 = vmatpush1.xpose.msra.mxu0 0.0
  %459 = vmatprep.mubr.f32.mxu0 0.0
  %460 = vmatmul.mubr.f32.gmra.mrb[0].mxu0 %v391
  %v461 = vpop.f32.mrb[0].mxu0
  %v462 = vadd.f32 0.0, %v461
  %v463 = vpop.f32.mrb[0].mxu0
  %464 = vdwg.mxu0
  %465 = vrot.lane.b32.xlu0 %v227, 96
  %v466 = vpop.permute.xlu0 %465
  %v467 = vsel %vm238, %v227, 0
  %v469 = vsel %vm238, %v466, 0
  %471 = vmatprep.subr.mxu0 0.0
  %472 = vmatpush1.xpose.msra.mxu0 %v469
  %473 = vmatprep.subr.mxu0 0.0
  %474 = vmatpush1.xpose.msra.mxu0 0.0
  %475 = vmatprep.subr.mxu0 0.0
  %476 = vmatpush1.xpose.msra.mxu0 0.0
  %477 = vmatprep.subr.mxu0 0.0
  %478 = vmatpush1.xpose.msra.mxu0 0.0
  %479 = vmatprep.subr.mxu0 0.0
  %480 = vmatpush1.xpose.msra.mxu0 0.0
  %481 = vmatprep.subr.mxu0 0.0
  %482 = vmatpush1.xpose.msra.mxu0 0.0
  %483 = vmatprep.subr.mxu0 0.0
  %484 = vmatpush1.xpose.msra.mxu0 0.0
  %485 = vmatprep.subr.mxu0 0.0
  %486 = vmatpush1.xpose.msra.mxu0 0.0
  %487 = vmatprep.subr.mxu0 0.0
  %488 = vmatpush1.xpose.msra.mxu0 0.0
  %489 = vmatprep.subr.mxu0 0.0
  %490 = vmatpush1.xpose.msra.mxu0 0.0
  %491 = vmatprep.subr.mxu0 0.0
  %492 = vmatpush1.xpose.msra.mxu0 0.0
  %493 = vmatprep.subr.mxu0 0.0
  %494 = vmatpush1.xpose.msra.mxu0 0.0
  %495 = vmatprep.subr.mxu0 0.0
  %496 = vmatpush1.xpose.msra.mxu0 0.0
  %497 = vmatprep.subr.mxu0 0.0
  %498 = vmatpush1.xpose.msra.mxu0 0.0
  %499 = vmatprep.subr.mxu0 0.0
  %500 = vmatpush1.xpose.msra.mxu0 0.0
  %501 = vmatprep.subr.mxu0 0.0
  %502 = vmatpush1.xpose.msra.mxu0 0.0
  %503 = vmatprep.subr.mxu0 0.0
  %504 = vmatpush1.xpose.msra.mxu0 0.0
  %505 = vmatprep.subr.mxu0 0.0
  %506 = vmatpush1.xpose.msra.mxu0 0.0
  %507 = vmatprep.subr.mxu0 0.0
  %508 = vmatpush1.xpose.msra.mxu0 0.0
  %509 = vmatprep.subr.mxu0 0.0
  %510 = vmatpush1.xpose.msra.mxu0 0.0
  %511 = vmatprep.subr.mxu0 0.0
  %512 = vmatpush1.xpose.msra.mxu0 0.0
  %513 = vmatprep.subr.mxu0 0.0
  %514 = vmatpush1.xpose.msra.mxu0 0.0
  %515 = vmatprep.subr.mxu0 0.0
  %516 = vmatpush1.xpose.msra.mxu0 0.0
  %517 = vmatprep.subr.mxu0 0.0
  %518 = vmatpush1.xpose.msra.mxu0 0.0
  %519 = vmatprep.subr.mxu0 0.0
  %520 = vmatpush1.xpose.msra.mxu0 0.0
  %521 = vmatprep.subr.mxu0 0.0
  %522 = vmatpush1.xpose.msra.mxu0 0.0
  %523 = vmatprep.subr.mxu0 0.0
  %524 = vmatpush1.xpose.msra.mxu0 0.0
  %525 = vmatprep.subr.mxu0 0.0
  %526 = vmatpush1.xpose.msra.mxu0 0.0
  %527 = vmatprep.subr.mxu0 0.0
  %528 = vmatpush1.xpose.msra.mxu0 0.0
  %529 = vmatprep.subr.mxu0 0.0
  %530 = vmatpush1.xpose.msra.mxu0 0.0
  %531 = vmatprep.subr.mxu0 0.0
  %532 = vmatpush1.xpose.msra.mxu0 0.0
  %533 = vmatprep.subr.mxu0 0.0
  %534 = vmatpush1.xpose.msra.mxu0 0.0
  %535 = vmatprep.mubr.f32.mxu0 0.0
  %536 = vmatmul.mubr.f32.gmra.mrb[0].mxu0 %v467
  %v537 = vpop.f32.mrb[0].mxu0
  %v538 = vadd.f32 0.0, %v537
  %v539 = vpop.f32.mrb[0].mxu0
  %540 = vdwg.mxu0
  %541 = vrot.lane.b32.xlu0 %v229, 96
  %v542 = vpop.permute.xlu0 %541
  %v543 = vsel %vm238, %v229, 0
  %v545 = vsel %vm238, %v542, 0
  %547 = vmatprep.subr.mxu0 0.0
  %548 = vmatpush1.xpose.msra.mxu0 %v545
  %549 = vmatprep.subr.mxu0 0.0
  %550 = vmatpush1.xpose.msra.mxu0 0.0
  %551 = vmatprep.subr.mxu0 0.0
  %552 = vmatpush1.xpose.msra.mxu0 0.0
  %553 = vmatprep.subr.mxu0 0.0
  %554 = vmatpush1.xpose.msra.mxu0 0.0
  %555 = vmatprep.subr.mxu0 0.0
  %556 = vmatpush1.xpose.msra.mxu0 0.0
  %557 = vmatprep.subr.mxu0 0.0
  %558 = vmatpush1.xpose.msra.mxu0 0.0
  %559 = vmatprep.subr.mxu0 0.0
  %560 = vmatpush1.xpose.msra.mxu0 0.0
  %561 = vmatprep.subr.mxu0 0.0
  %562 = vmatpush1.xpose.msra.mxu0 0.0
  %563 = vmatprep.subr.mxu0 0.0
  %564 = vmatpush1.xpose.msra.mxu0 0.0
  %565 = vmatprep.subr.mxu0 0.0
  %566 = vmatpush1.xpose.msra.mxu0 0.0
  %567 = vmatprep.subr.mxu0 0.0
  %568 = vmatpush1.xpose.msra.mxu0 0.0
  %569 = vmatprep.subr.mxu0 0.0
  %570 = vmatpush1.xpose.msra.mxu0 0.0
  %571 = vmatprep.subr.mxu0 0.0
  %572 = vmatpush1.xpose.msra.mxu0 0.0
  %573 = vmatprep.subr.mxu0 0.0
  %574 = vmatpush1.xpose.msra.mxu0 0.0
  %575 = vmatprep.subr.mxu0 0.0
  %576 = vmatpush1.xpose.msra.mxu0 0.0
  %577 = vmatprep.subr.mxu0 0.0
  %578 = vmatpush1.xpose.msra.mxu0 0.0
  %579 = vmatprep.subr.mxu0 0.0
  %580 = vmatpush1.xpose.msra.mxu0 0.0
  %581 = vmatprep.subr.mxu0 0.0
  %582 = vmatpush1.xpose.msra.mxu0 0.0
  %583 = vmatprep.subr.mxu0 0.0
  %584 = vmatpush1.xpose.msra.mxu0 0.0
  %585 = vmatprep.subr.mxu0 0.0
  %586 = vmatpush1.xpose.msra.mxu0 0.0
  %587 = vmatprep.subr.mxu0 0.0
  %588 = vmatpush1.xpose.msra.mxu0 0.0
  %589 = vmatprep.subr.mxu0 0.0
  %590 = vmatpush1.xpose.msra.mxu0 0.0
  %591 = vmatprep.subr.mxu0 0.0
  %592 = vmatpush1.xpose.msra.mxu0 0.0
  %593 = vmatprep.subr.mxu0 0.0
  %594 = vmatpush1.xpose.msra.mxu0 0.0
  %595 = vmatprep.subr.mxu0 0.0
  %596 = vmatpush1.xpose.msra.mxu0 0.0
  %597 = vmatprep.subr.mxu0 0.0
  %598 = vmatpush1.xpose.msra.mxu0 0.0
  %599 = vmatprep.subr.mxu0 0.0
  %600 = vmatpush1.xpose.msra.mxu0 0.0
  %601 = vmatprep.subr.mxu0 0.0
  %602 = vmatpush1.xpose.msra.mxu0 0.0
  %603 = vmatprep.subr.mxu0 0.0
  %604 = vmatpush1.xpose.msra.mxu0 0.0
  %605 = vmatprep.subr.mxu0 0.0
  %606 = vmatpush1.xpose.msra.mxu0 0.0
  %607 = vmatprep.subr.mxu0 0.0
  %608 = vmatpush1.xpose.msra.mxu0 0.0
  %609 = vmatprep.subr.mxu0 0.0
  %610 = vmatpush1.xpose.msra.mxu0 0.0
  %611 = vmatprep.mubr.f32.mxu0 0.0
  %612 = vmatmul.mubr.f32.gmra.mrb[0].mxu0 %v543
  %v613 = vpop.f32.mrb[0].mxu0
  %v614 = vadd.f32 0.0, %v613
  %v615 = vpop.f32.mrb[0].mxu0
  %616 = vdwg.mxu0
  %617 = vrot.lane.b32.xlu0 %v231, 96
  %v618 = vpop.permute.xlu0 %617
  %v619 = vsel %vm238, %v231, 0
  %v621 = vsel %vm238, %v618, 0
  %623 = vmatprep.subr.mxu0 0.0
  %624 = vmatpush1.xpose.msra.mxu0 %v621
  %625 = vmatprep.subr.mxu0 0.0
  %626 = vmatpush1.xpose.msra.mxu0 0.0
  %627 = vmatprep.subr.mxu0 0.0
  %628 = vmatpush1.xpose.msra.mxu0 0.0
  %629 = vmatprep.subr.mxu0 0.0
  %630 = vmatpush1.xpose.msra.mxu0 0.0
  %631 = vmatprep.subr.mxu0 0.0
  %632 = vmatpush1.xpose.msra.mxu0 0.0
  %633 = vmatprep.subr.mxu0 0.0
  %634 = vmatpush1.xpose.msra.mxu0 0.0
  %635 = vmatprep.subr.mxu0 0.0
  %636 = vmatpush1.xpose.msra.mxu0 0.0
  %637 = vmatprep.subr.mxu0 0.0
  %638 = vmatpush1.xpose.msra.mxu0 0.0
  %639 = vmatprep.subr.mxu0 0.0
  %640 = vmatpush1.xpose.msra.mxu0 0.0
  %641 = vmatprep.subr.mxu0 0.0
  %642 = vmatpush1.xpose.msra.mxu0 0.0
  %643 = vmatprep.subr.mxu0 0.0
  %644 = vmatpush1.xpose.msra.mxu0 0.0
  %645 = vmatprep.subr.mxu0 0.0
  %646 = vmatpush1.xpose.msra.mxu0 0.0
  %647 = vmatprep.subr.mxu0 0.0
  %648 = vmatpush1.xpose.msra.mxu0 0.0
  %649 = vmatprep.subr.mxu0 0.0
  %650 = vmatpush1.xpose.msra.mxu0 0.0
  %651 = vmatprep.subr.mxu0 0.0
  %652 = vmatpush1.xpose.msra.mxu0 0.0
  %653 = vmatprep.subr.mxu0 0.0
  %654 = vmatpush1.xpose.msra.mxu0 0.0
  %655 = vmatprep.subr.mxu0 0.0
  %656 = vmatpush1.xpose.msra.mxu0 0.0
  %657 = vmatprep.subr.mxu0 0.0
  %658 = vmatpush1.xpose.msra.mxu0 0.0
  %659 = vmatprep.subr.mxu0 0.0
  %660 = vmatpush1.xpose.msra.mxu0 0.0
  %661 = vmatprep.subr.mxu0 0.0
  %662 = vmatpush1.xpose.msra.mxu0 0.0
  %663 = vmatprep.subr.mxu0 0.0
  %664 = vmatpush1.xpose.msra.mxu0 0.0
  %665 = vmatprep.subr.mxu0 0.0
  %666 = vmatpush1.xpose.msra.mxu0 0.0
  %667 = vmatprep.subr.mxu0 0.0
  %668 = vmatpush1.xpose.msra.mxu0 0.0
  %669 = vmatprep.subr.mxu0 0.0
  %670 = vmatpush1.xpose.msra.mxu0 0.0
  %671 = vmatprep.subr.mxu0 0.0
  %672 = vmatpush1.xpose.msra.mxu0 0.0
  %673 = vmatprep.subr.mxu0 0.0
  %674 = vmatpush1.xpose.msra.mxu0 0.0
  %675 = vmatprep.subr.mxu0 0.0
  %676 = vmatpush1.xpose.msra.mxu0 0.0
  %677 = vmatprep.subr.mxu0 0.0
  %678 = vmatpush1.xpose.msra.mxu0 0.0
  %679 = vmatprep.subr.mxu0 0.0
  %680 = vmatpush1.xpose.msra.mxu0 0.0
  %681 = vmatprep.subr.mxu0 0.0
  %682 = vmatpush1.xpose.msra.mxu0 0.0
  %683 = vmatprep.subr.mxu0 0.0
  %684 = vmatpush1.xpose.msra.mxu0 0.0
  %685 = vmatprep.subr.mxu0 0.0
  %686 = vmatpush1.xpose.msra.mxu0 0.0
  %687 = vmatprep.mubr.f32.mxu0 0.0
  %688 = vmatmul.mubr.f32.gmra.mrb[0].mxu0 %v619
  %v689 = vpop.f32.mrb[0].mxu0
  %v690 = vadd.f32 0.0, %v689
  %v691 = vpop.f32.mrb[0].mxu0
  %692 = vdwg.mxu0
  %693 = vrot.lane.b32.xlu0 %v233, 96
  %v694 = vpop.permute.xlu0 %693
  %v695 = vsel %vm238, %v233, 0
  %v697 = vsel %vm238, %v694, 0
  %699 = vmatprep.subr.mxu0 0.0
  %700 = vmatpush1.xpose.msra.mxu0 %v697
  %701 = vmatprep.subr.mxu0 0.0
  %702 = vmatpush1.xpose.msra.mxu0 0.0
  %703 = vmatprep.subr.mxu0 0.0
  %704 = vmatpush1.xpose.msra.mxu0 0.0
  %705 = vmatprep.subr.mxu0 0.0
  %706 = vmatpush1.xpose.msra.mxu0 0.0
  %707 = vmatprep.subr.mxu0 0.0
  %708 = vmatpush1.xpose.msra.mxu0 0.0
  %709 = vmatprep.subr.mxu0 0.0
  %710 = vmatpush1.xpose.msra.mxu0 0.0
  %711 = vmatprep.subr.mxu0 0.0
  %712 = vmatpush1.xpose.msra.mxu0 0.0
  %713 = vmatprep.subr.mxu0 0.0
  %714 = vmatpush1.xpose.msra.mxu0 0.0
  %715 = vmatprep.subr.mxu0 0.0
  %716 = vmatpush1.xpose.msra.mxu0 0.0
  %717 = vmatprep.subr.mxu0 0.0
  %718 = vmatpush1.xpose.msra.mxu0 0.0
  %719 = vmatprep.subr.mxu0 0.0
  %720 = vmatpush1.xpose.msra.mxu0 0.0
  %721 = vmatprep.subr.mxu0 0.0
  %722 = vmatpush1.xpose.msra.mxu0 0.0
  %723 = vmatprep.subr.mxu0 0.0
  %724 = vmatpush1.xpose.msra.mxu0 0.0
  %725 = vmatprep.subr.mxu0 0.0
  %726 = vmatpush1.xpose.msra.mxu0 0.0
  %727 = vmatprep.subr.mxu0 0.0
  %728 = vmatpush1.xpose.msra.mxu0 0.0
  %729 = vmatprep.subr.mxu0 0.0
  %730 = vmatpush1.xpose.msra.mxu0 0.0
  %731 = vmatprep.subr.mxu0 0.0
  %732 = vmatpush1.xpose.msra.mxu0 0.0
  %733 = vmatprep.subr.mxu0 0.0
  %734 = vmatpush1.xpose.msra.mxu0 0.0
  %735 = vmatprep.subr.mxu0 0.0
  %736 = vmatpush1.xpose.msra.mxu0 0.0
  %737 = vmatprep.subr.mxu0 0.0
  %738 = vmatpush1.xpose.msra.mxu0 0.0
  %739 = vmatprep.subr.mxu0 0.0
  %740 = vmatpush1.xpose.msra.mxu0 0.0
  %741 = vmatprep.subr.mxu0 0.0
  %742 = vmatpush1.xpose.msra.mxu0 0.0
  %743 = vmatprep.subr.mxu0 0.0
  %744 = vmatpush1.xpose.msra.mxu0 0.0
  %745 = vmatprep.subr.mxu0 0.0
  %746 = vmatpush1.xpose.msra.mxu0 0.0
  %747 = vmatprep.subr.mxu0 0.0
  %748 = vmatpush1.xpose.msra.mxu0 0.0
  %749 = vmatprep.subr.mxu0 0.0
  %750 = vmatpush1.xpose.msra.mxu0 0.0
  %751 = vmatprep.subr.mxu0 0.0
  %752 = vmatpush1.xpose.msra.mxu0 0.0
  %753 = vmatprep.subr.mxu0 0.0
  %754 = vmatpush1.xpose.msra.mxu0 0.0
  %755 = vmatprep.subr.mxu0 0.0
  %756 = vmatpush1.xpose.msra.mxu0 0.0
  %757 = vmatprep.subr.mxu0 0.0
  %758 = vmatpush1.xpose.msra.mxu0 0.0
  %759 = vmatprep.subr.mxu0 0.0
  %760 = vmatpush1.xpose.msra.mxu0 0.0
  %761 = vmatprep.subr.mxu0 0.0
  %762 = vmatpush1.xpose.msra.mxu0 0.0
  %763 = vmatprep.mubr.f32.mxu0 0.0
  %764 = vmatmul.mubr.f32.gmra.mrb[0].mxu0 %v695
  %v765 = vpop.f32.mrb[0].mxu0
  %v766 = vadd.f32 0.0, %v765
  %v767 = vpop.f32.mrb[0].mxu0
  %768 = vdwg.mxu0
  %769 = vrot.lane.b32.xlu0 %v235, 96
  %v770 = vpop.permute.xlu0 %769
  %v771 = vsel %vm238, %v235, 0
  %v773 = vsel %vm238, %v770, 0
  %775 = vmatprep.subr.mxu0 0.0
  %776 = vmatpush1.xpose.msra.mxu0 %v773
  %777 = vmatprep.subr.mxu0 0.0
  %778 = vmatpush1.xpose.msra.mxu0 0.0
  %779 = vmatprep.subr.mxu0 0.0
  %780 = vmatpush1.xpose.msra.mxu0 0.0
  %781 = vmatprep.subr.mxu0 0.0
  %782 = vmatpush1.xpose.msra.mxu0 0.0
  %783 = vmatprep.subr.mxu0 0.0
  %784 = vmatpush1.xpose.msra.mxu0 0.0
  %785 = vmatprep.subr.mxu0 0.0
  %786 = vmatpush1.xpose.msra.mxu0 0.0
  %787 = vmatprep.subr.mxu0 0.0
  %788 = vmatpush1.xpose.msra.mxu0 0.0
  %789 = vmatprep.subr.mxu0 0.0
  %790 = vmatpush1.xpose.msra.mxu0 0.0
  %791 = vmatprep.subr.mxu0 0.0
  %792 = vmatpush1.xpose.msra.mxu0 0.0
  %793 = vmatprep.subr.mxu0 0.0
  %794 = vmatpush1.xpose.msra.mxu0 0.0
  %795 = vmatprep.subr.mxu0 0.0
  %796 = vmatpush1.xpose.msra.mxu0 0.0
  %797 = vmatprep.subr.mxu0 0.0
  %798 = vmatpush1.xpose.msra.mxu0 0.0
  %799 = vmatprep.subr.mxu0 0.0
  %800 = vmatpush1.xpose.msra.mxu0 0.0
  %801 = vmatprep.subr.mxu0 0.0
  %802 = vmatpush1.xpose.msra.mxu0 0.0
  %803 = vmatprep.subr.mxu0 0.0
  %804 = vmatpush1.xpose.msra.mxu0 0.0
  %805 = vmatprep.subr.mxu0 0.0
  %806 = vmatpush1.xpose.msra.mxu0 0.0
  %807 = vmatprep.subr.mxu0 0.0
  %808 = vmatpush1.xpose.msra.mxu0 0.0
  %809 = vmatprep.subr.mxu0 0.0
  %810 = vmatpush1.xpose.msra.mxu0 0.0
  %811 = vmatprep.subr.mxu0 0.0
  %812 = vmatpush1.xpose.msra.mxu0 0.0
  %813 = vmatprep.subr.mxu0 0.0
  %814 = vmatpush1.xpose.msra.mxu0 0.0
  %815 = vmatprep.subr.mxu0 0.0
  %816 = vmatpush1.xpose.msra.mxu0 0.0
  %817 = vmatprep.subr.mxu0 0.0
  %818 = vmatpush1.xpose.msra.mxu0 0.0
  %819 = vmatprep.subr.mxu0 0.0
  %820 = vmatpush1.xpose.msra.mxu0 0.0
  %821 = vmatprep.subr.mxu0 0.0
  %822 = vmatpush1.xpose.msra.mxu0 0.0
  %823 = vmatprep.subr.mxu0 0.0
  %824 = vmatpush1.xpose.msra.mxu0 0.0
  %825 = vmatprep.subr.mxu0 0.0
  %826 = vmatpush1.xpose.msra.mxu0 0.0
  %827 = vmatprep.subr.mxu0 0.0
  %828 = vmatpush1.xpose.msra.mxu0 0.0
  %829 = vmatprep.subr.mxu0 0.0
  %830 = vmatpush1.xpose.msra.mxu0 0.0
  %831 = vmatprep.subr.mxu0 0.0
  %832 = vmatpush1.xpose.msra.mxu0 0.0
  %833 = vmatprep.subr.mxu0 0.0
  %834 = vmatpush1.xpose.msra.mxu0 0.0
  %835 = vmatprep.subr.mxu0 0.0
  %836 = vmatpush1.xpose.msra.mxu0 0.0
  %837 = vmatprep.subr.mxu0 0.0
  %838 = vmatpush1.xpose.msra.mxu0 0.0
  %839 = vmatprep.mubr.f32.mxu0 0.0
  %840 = vmatmul.mubr.f32.gmra.mrb[0].mxu0 %v771
  %v841 = vpop.f32.mrb[0].mxu0
  %v842 = vadd.f32 0.0, %v841
  %v843 = vpop.f32.mrb[0].mxu0
  %844 = vdwg.mxu0
  %v845 = vmul.f32 %v310, 0.35355338
  %v846 = vmul.f32 %v386, 0.35355338
  %v847 = vmul.f32 %v462, 0.35355338
  %v848 = vmul.f32 %v538, 0.35355338
  %v849 = vmul.f32 %v614, 0.35355338
  %v850 = vmul.f32 %v690, 0.35355338
  %v851 = vmul.f32 %v766, 0.35355338
  %v852 = vmul.f32 %v842, 0.35355338
  %v853 = vadd.f32 %v845, %v123
  %v854 = vadd.f32 %v846, %v123
  %v855 = vadd.f32 %v847, %v123
  %v856 = vadd.f32 %v848, %v123
  %v857 = vadd.f32 %v849, %v123
  %v858 = vadd.f32 %v850, %v123
  %v859 = vadd.f32 %v851, %v123
  %v860 = vadd.f32 %v852, %v123
  %v861 = vsel %vm238, %v853, -inf
  %862 = vmax.xlane.f32.xlu0 %v861
  %v863 = vpop.xlane.xlu0 %862
  %v864 = vsel %vm238, %v854, -inf
  %865 = vmax.xlane.f32.xlu0 %v864
  %v866 = vpop.xlane.xlu0 %865
  %v867 = vsel %vm238, %v855, -inf
  %868 = vmax.xlane.f32.xlu0 %v867
  %v869 = vpop.xlane.xlu0 %868
  %v870 = vsel %vm238, %v856, -inf
  %871 = vmax.xlane.f32.xlu0 %v870
  %v872 = vpop.xlane.xlu0 %871
  %v873 = vsel %vm238, %v857, -inf
  %874 = vmax.xlane.f32.xlu0 %v873
  %v875 = vpop.xlane.xlu0 %874
  %v876 = vsel %vm238, %v858, -inf
  %877 = vmax.xlane.f32.xlu0 %v876
  %v878 = vpop.xlane.xlu0 %877
  %v879 = vsel %vm238, %v859, -inf
  %880 = vmax.xlane.f32.xlu0 %v879
  %v881 = vpop.xlane.xlu0 %880
  %v882 = vsel %vm238, %v860, -inf
  %883 = vmax.xlane.f32.xlu0 %v882
  %v884 = vpop.xlane.xlu0 %883
  %v885 = vsub.f32 %v853, %v863
  %v886 = vsub.f32 %v854, %v866
  %v887 = vsub.f32 %v855, %v869
  %v888 = vsub.f32 %v856, %v872
  %v889 = vsub.f32 %v857, %v875
  %v890 = vsub.f32 %v858, %v878
  %v891 = vsub.f32 %v859, %v881
  %v892 = vsub.f32 %v860, %v884
  %v893 = vmul.f32 %v885, 1.442695
  %v894 = vpow.pop %v893
  %v895 = vmul.f32 %v886, 1.442695
  %v896 = vpow.pop %v895
  %v897 = vmul.f32 %v887, 1.442695
  %v898 = vpow.pop %v897
  %v899 = vmul.f32 %v888, 1.442695
  %v900 = vpow.pop %v899
  %v901 = vmul.f32 %v889, 1.442695
  %v902 = vpow.pop %v901
  %v903 = vmul.f32 %v890, 1.442695
  %v904 = vpow.pop %v903
  %v905 = vmul.f32 %v891, 1.442695
  %v906 = vpow.pop %v905
  %v907 = vmul.f32 %v892, 1.442695
  %v908 = vpow.pop %v907
  %v909 = vsel %vm238, %v894, 0.0
  %910 = vadd.xlane.f32.xlu0 %v909
  %v911 = vpop.xlane.xlu0 %910
  %v912 = vsel %vm238, %v896, 0.0
  %913 = vadd.xlane.f32.xlu0 %v912
  %v914 = vpop.xlane.xlu0 %913
  %v915 = vsel %vm238, %v898, 0.0
  %916 = vadd.xlane.f32.xlu0 %v915
  %v917 = vpop.xlane.xlu0 %916
  %v918 = vsel %vm238, %v900, 0.0
  %919 = vadd.xlane.f32.xlu0 %v918
  %v920 = vpop.xlane.xlu0 %919
  %v921 = vsel %vm238, %v902, 0.0
  %922 = vadd.xlane.f32.xlu0 %v921
  %v923 = vpop.xlane.xlu0 %922
  %v924 = vsel %vm238, %v904, 0.0
  %925 = vadd.xlane.f32.xlu0 %v924
  %v926 = vpop.xlane.xlu0 %925
  %v927 = vsel %vm238, %v906, 0.0
  %928 = vadd.xlane.f32.xlu0 %v927
  %v929 = vpop.xlane.xlu0 %928
  %v930 = vsel %vm238, %v908, 0.0
  %931 = vadd.xlane.f32.xlu0 %v930
  %v932 = vpop.xlane.xlu0 %931
  %v933 = vrcp.pop %v911
  %v934 = vrcp.pop %v914
  %v935 = vrcp.pop %v917
  %v936 = vrcp.pop %v920
  %v937 = vrcp.pop %v923
  %v938 = vrcp.pop %v926
  %v939 = vrcp.pop %v929
  %v940 = vrcp.pop %v932
  %v941 = vmul.f32 %v894, %v933
  %v942 = vmul.f32 %v896, %v934
  %v943 = vmul.f32 %v898, %v935
  %v944 = vmul.f32 %v900, %v936
  %v945 = vmul.f32 %v902, %v937
  %v946 = vmul.f32 %v904, %v938
  %v947 = vmul.f32 %v906, %v939
  %v948 = vmul.f32 %v908, %v940
  %949 = vrot.lane.b32.xlu0 %v209, 64
  %v950 = vpop.permute.xlu0 %949
  %v953 = vsel %vm238, %v941, 0
  %955 = vmatprep.subr.mxu0 0.0
  %956 = vmatpush1.msra.mxu0 %v950
  %957 = vmatprep.subr.mxu0 0.0
  %958 = vmatpush1.msra.mxu0 0.0
  %959 = vmatprep.subr.mxu0 0.0
  %960 = vmatpush1.msra.mxu0 0.0
  %961 = vmatprep.subr.mxu0 0.0
  %962 = vmatpush1.msra.mxu0 0.0
  %963 = vmatprep.subr.mxu0 0.0
  %964 = vmatpush1.msra.mxu0 0.0
  %965 = vmatprep.subr.mxu0 0.0
  %966 = vmatpush1.msra.mxu0 0.0
  %967 = vmatprep.subr.mxu0 0.0
  %968 = vmatpush1.msra.mxu0 0.0
  %969 = vmatprep.subr.mxu0 0.0
  %970 = vmatpush1.msra.mxu0 0.0
  %971 = vmatprep.subr.mxu0 0.0
  %972 = vmatpush1.msra.mxu0 0.0
  %973 = vmatprep.subr.mxu0 0.0
  %974 = vmatpush1.msra.mxu0 0.0
  %975 = vmatprep.subr.mxu0 0.0
  %976 = vmatpush1.msra.mxu0 0.0
  %977 = vmatprep.subr.mxu0 0.0
  %978 = vmatpush1.msra.mxu0 0.0
  %979 = vmatprep.subr.mxu0 0.0
  %980 = vmatpush1.msra.mxu0 0.0
  %981 = vmatprep.subr.mxu0 0.0
  %982 = vmatpush1.msra.mxu0 0.0
  %983 = vmatprep.subr.mxu0 0.0
  %984 = vmatpush1.msra.mxu0 0.0
  %985 = vmatprep.subr.mxu0 0.0
  %986 = vmatpush1.msra.mxu0 0.0
  %987 = vmatprep.subr.mxu0 0.0
  %988 = vmatpush1.msra.mxu0 0.0
  %989 = vmatprep.subr.mxu0 0.0
  %990 = vmatpush1.msra.mxu0 0.0
  %991 = vmatprep.subr.mxu0 0.0
  %992 = vmatpush1.msra.mxu0 0.0
  %993 = vmatprep.subr.mxu0 0.0
  %994 = vmatpush1.msra.mxu0 0.0
  %995 = vmatprep.subr.mxu0 0.0
  %996 = vmatpush1.msra.mxu0 0.0
  %997 = vmatprep.subr.mxu0 0.0
  %998 = vmatpush1.msra.mxu0 0.0
  %999 = vmatprep.subr.mxu0 0.0
  %1000 = vmatpush1.msra.mxu0 0.0
  %1001 = vmatprep.subr.mxu0 0.0
  %1002 = vmatpush1.msra.mxu0 0.0
  %1003 = vmatprep.subr.mxu0 0.0
  %1004 = vmatpush1.msra.mxu0 0.0
  %1005 = vmatprep.subr.mxu0 0.0
  %1006 = vmatpush1.msra.mxu0 0.0
  %1007 = vmatprep.subr.mxu0 0.0
  %1008 = vmatpush1.msra.mxu0 0.0
  %1009 = vmatprep.subr.mxu0 0.0
  %1010 = vmatpush1.msra.mxu0 0.0
  %1011 = vmatprep.subr.mxu0 0.0
  %1012 = vmatpush1.msra.mxu0 0.0
  %1013 = vmatprep.subr.mxu0 0.0
  %1014 = vmatpush1.msra.mxu0 0.0
  %1015 = vmatprep.subr.mxu0 0.0
  %1016 = vmatpush1.msra.mxu0 0.0
  %1017 = vmatprep.subr.mxu0 0.0
  %1018 = vmatpush1.msra.mxu0 0.0
  %1019 = vmatprep.mubr.f32.mxu0 0.0
  %1020 = vmatmul.mubr.f32.gmra.mrb[0].mxu0 %v953
  %v1021 = vpop.f32.mrb[0].mxu0
  %v1022 = vadd.f32 0.0, %v1021
  %v1023 = vpop.f32.mrb[0].mxu0
  %1024 = vdwg.mxu0
  %1025 = vrot.lane.b32.xlu0 %v214, 64
  %v1026 = vpop.permute.xlu0 %1025
  %v1029 = vsel %vm238, %v942, 0
  %1031 = vmatprep.subr.mxu0 0.0
  %1032 = vmatpush1.msra.mxu0 %v1026
  %1033 = vmatprep.subr.mxu0 0.0
  %1034 = vmatpush1.msra.mxu0 0.0
  %1035 = vmatprep.subr.mxu0 0.0
  %1036 = vmatpush1.msra.mxu0 0.0
  %1037 = vmatprep.subr.mxu0 0.0
  %1038 = vmatpush1.msra.mxu0 0.0
  %1039 = vmatprep.subr.mxu0 0.0
  %1040 = vmatpush1.msra.mxu0 0.0
  %1041 = vmatprep.subr.mxu0 0.0
  %1042 = vmatpush1.msra.mxu0 0.0
  %1043 = vmatprep.subr.mxu0 0.0
  %1044 = vmatpush1.msra.mxu0 0.0
  %1045 = vmatprep.subr.mxu0 0.0
  %1046 = vmatpush1.msra.mxu0 0.0
  %1047 = vmatprep.subr.mxu0 0.0
  %1048 = vmatpush1.msra.mxu0 0.0
  %1049 = vmatprep.subr.mxu0 0.0
  %1050 = vmatpush1.msra.mxu0 0.0
  %1051 = vmatprep.subr.mxu0 0.0
  %1052 = vmatpush1.msra.mxu0 0.0
  %1053 = vmatprep.subr.mxu0 0.0
  %1054 = vmatpush1.msra.mxu0 0.0
  %1055 = vmatprep.subr.mxu0 0.0
  %1056 = vmatpush1.msra.mxu0 0.0
  %1057 = vmatprep.subr.mxu0 0.0
  %1058 = vmatpush1.msra.mxu0 0.0
  %1059 = vmatprep.subr.mxu0 0.0
  %1060 = vmatpush1.msra.mxu0 0.0
  %1061 = vmatprep.subr.mxu0 0.0
  %1062 = vmatpush1.msra.mxu0 0.0
  %1063 = vmatprep.subr.mxu0 0.0
  %1064 = vmatpush1.msra.mxu0 0.0
  %1065 = vmatprep.subr.mxu0 0.0
  %1066 = vmatpush1.msra.mxu0 0.0
  %1067 = vmatprep.subr.mxu0 0.0
  %1068 = vmatpush1.msra.mxu0 0.0
  %1069 = vmatprep.subr.mxu0 0.0
  %1070 = vmatpush1.msra.mxu0 0.0
  %1071 = vmatprep.subr.mxu0 0.0
  %1072 = vmatpush1.msra.mxu0 0.0
  %1073 = vmatprep.subr.mxu0 0.0
  %1074 = vmatpush1.msra.mxu0 0.0
  %1075 = vmatprep.subr.mxu0 0.0
  %1076 = vmatpush1.msra.mxu0 0.0
  %1077 = vmatprep.subr.mxu0 0.0
  %1078 = vmatpush1.msra.mxu0 0.0
  %1079 = vmatprep.subr.mxu0 0.0
  %1080 = vmatpush1.msra.mxu0 0.0
  %1081 = vmatprep.subr.mxu0 0.0
  %1082 = vmatpush1.msra.mxu0 0.0
  %1083 = vmatprep.subr.mxu0 0.0
  %1084 = vmatpush1.msra.mxu0 0.0
  %1085 = vmatprep.subr.mxu0 0.0
  %1086 = vmatpush1.msra.mxu0 0.0
  %1087 = vmatprep.subr.mxu0 0.0
  %1088 = vmatpush1.msra.mxu0 0.0
  %1089 = vmatprep.subr.mxu0 0.0
  %1090 = vmatpush1.msra.mxu0 0.0
  %1091 = vmatprep.subr.mxu0 0.0
  %1092 = vmatpush1.msra.mxu0 0.0
  %1093 = vmatprep.subr.mxu0 0.0
  %1094 = vmatpush1.msra.mxu0 0.0
  %1095 = vmatprep.mubr.f32.mxu0 0.0
  %1096 = vmatmul.mubr.f32.gmra.mrb[0].mxu0 %v1029
  %v1097 = vpop.f32.mrb[0].mxu0
  %v1098 = vadd.f32 0.0, %v1097
  %v1099 = vpop.f32.mrb[0].mxu0
  %1100 = vdwg.mxu0
  %1101 = vrot.lane.b32.xlu0 %v225, 64
  %v1102 = vpop.permute.xlu0 %1101
  %v1105 = vsel %vm238, %v943, 0
  %1107 = vmatprep.subr.mxu0 0.0
  %1108 = vmatpush1.msra.mxu0 %v1102
  %1109 = vmatprep.subr.mxu0 0.0
  %1110 = vmatpush1.msra.mxu0 0.0
  %1111 = vmatprep.subr.mxu0 0.0
  %1112 = vmatpush1.msra.mxu0 0.0
  %1113 = vmatprep.subr.mxu0 0.0
  %1114 = vmatpush1.msra.mxu0 0.0
  %1115 = vmatprep.subr.mxu0 0.0
  %1116 = vmatpush1.msra.mxu0 0.0
  %1117 = vmatprep.subr.mxu0 0.0
  %1118 = vmatpush1.msra.mxu0 0.0
  %1119 = vmatprep.subr.mxu0 0.0
  %1120 = vmatpush1.msra.mxu0 0.0
  %1121 = vmatprep.subr.mxu0 0.0
  %1122 = vmatpush1.msra.mxu0 0.0
  %1123 = vmatprep.subr.mxu0 0.0
  %1124 = vmatpush1.msra.mxu0 0.0
  %1125 = vmatprep.subr.mxu0 0.0
  %1126 = vmatpush1.msra.mxu0 0.0
  %1127 = vmatprep.subr.mxu0 0.0
  %1128 = vmatpush1.msra.mxu0 0.0
  %1129 = vmatprep.subr.mxu0 0.0
  %1130 = vmatpush1.msra.mxu0 0.0
  %1131 = vmatprep.subr.mxu0 0.0
  %1132 = vmatpush1.msra.mxu0 0.0
  %1133 = vmatprep.subr.mxu0 0.0
  %1134 = vmatpush1.msra.mxu0 0.0
  %1135 = vmatprep.subr.mxu0 0.0
  %1136 = vmatpush1.msra.mxu0 0.0
  %1137 = vmatprep.subr.mxu0 0.0
  %1138 = vmatpush1.msra.mxu0 0.0
  %1139 = vmatprep.subr.mxu0 0.0
  %1140 = vmatpush1.msra.mxu0 0.0
  %1141 = vmatprep.subr.mxu0 0.0
  %1142 = vmatpush1.msra.mxu0 0.0
  %1143 = vmatprep.subr.mxu0 0.0
  %1144 = vmatpush1.msra.mxu0 0.0
  %1145 = vmatprep.subr.mxu0 0.0
  %1146 = vmatpush1.msra.mxu0 0.0
  %1147 = vmatprep.subr.mxu0 0.0
  %1148 = vmatpush1.msra.mxu0 0.0
  %1149 = vmatprep.subr.mxu0 0.0
  %1150 = vmatpush1.msra.mxu0 0.0
  %1151 = vmatprep.subr.mxu0 0.0
  %1152 = vmatpush1.msra.mxu0 0.0
  %1153 = vmatprep.subr.mxu0 0.0
  %1154 = vmatpush1.msra.mxu0 0.0
  %1155 = vmatprep.subr.mxu0 0.0
  %1156 = vmatpush1.msra.mxu0 0.0
  %1157 = vmatprep.subr.mxu0 0.0
  %1158 = vmatpush1.msra.mxu0 0.0
  %1159 = vmatprep.subr.mxu0 0.0
  %1160 = vmatpush1.msra.mxu0 0.0
  %1161 = vmatprep.subr.mxu0 0.0
  %1162 = vmatpush1.msra.mxu0 0.0
  %1163 = vmatprep.subr.mxu0 0.0
  %1164 = vmatpush1.msra.mxu0 0.0
  %1165 = vmatprep.subr.mxu0 0.0
  %1166 = vmatpush1.msra.mxu0 0.0
  %1167 = vmatprep.subr.mxu0 0.0
  %1168 = vmatpush1.msra.mxu0 0.0
  %1169 = vmatprep.subr.mxu0 0.0
  %1170 = vmatpush1.msra.mxu0 0.0
  %1171 = vmatprep.mubr.f32.mxu0 0.0
  %1172 = vmatmul.mubr.f32.gmra.mrb[0].mxu0 %v1105
  %v1173 = vpop.f32.mrb[0].mxu0
  %v1174 = vadd.f32 0.0, %v1173
  %v1175 = vpop.f32.mrb[0].mxu0
  %1176 = vdwg.mxu0
  %1177 = vrot.lane.b32.xlu0 %v227, 64
  %v1178 = vpop.permute.xlu0 %1177
  %v1181 = vsel %vm238, %v944, 0
  %1183 = vmatprep.subr.mxu0 0.0
  %1184 = vmatpush1.msra.mxu0 %v1178
  %1185 = vmatprep.subr.mxu0 0.0
  %1186 = vmatpush1.msra.mxu0 0.0
  %1187 = vmatprep.subr.mxu0 0.0
  %1188 = vmatpush1.msra.mxu0 0.0
  %1189 = vmatprep.subr.mxu0 0.0
  %1190 = vmatpush1.msra.mxu0 0.0
  %1191 = vmatprep.subr.mxu0 0.0
  %1192 = vmatpush1.msra.mxu0 0.0
  %1193 = vmatprep.subr.mxu0 0.0
  %1194 = vmatpush1.msra.mxu0 0.0
  %1195 = vmatprep.subr.mxu0 0.0
  %1196 = vmatpush1.msra.mxu0 0.0
  %1197 = vmatprep.subr.mxu0 0.0
  %1198 = vmatpush1.msra.mxu0 0.0
  %1199 = vmatprep.subr.mxu0 0.0
  %1200 = vmatpush1.msra.mxu0 0.0
  %1201 = vmatprep.subr.mxu0 0.0
  %1202 = vmatpush1.msra.mxu0 0.0
  %1203 = vmatprep.subr.mxu0 0.0
  %1204 = vmatpush1.msra.mxu0 0.0
  %1205 = vmatprep.subr.mxu0 0.0
  %1206 = vmatpush1.msra.mxu0 0.0
  %1207 = vmatprep.subr.mxu0 0.0
  %1208 = vmatpush1.msra.mxu0 0.0
  %1209 = vmatprep.subr.mxu0 0.0
  %1210 = vmatpush1.msra.mxu0 0.0
  %1211 = vmatprep.subr.mxu0 0.0
  %1212 = vmatpush1.msra.mxu0 0.0
  %1213 = vmatprep.subr.mxu0 0.0
  %1214 = vmatpush1.msra.mxu0 0.0
  %1215 = vmatprep.subr.mxu0 0.0
  %1216 = vmatpush1.msra.mxu0 0.0
  %1217 = vmatprep.subr.mxu0 0.0
  %1218 = vmatpush1.msra.mxu0 0.0
  %1219 = vmatprep.subr.mxu0 0.0
  %1220 = vmatpush1.msra.mxu0 0.0
  %1221 = vmatprep.subr.mxu0 0.0
  %1222 = vmatpush1.msra.mxu0 0.0
  %1223 = vmatprep.subr.mxu0 0.0
  %1224 = vmatpush1.msra.mxu0 0.0
  %1225 = vmatprep.subr.mxu0 0.0
  %1226 = vmatpush1.msra.mxu0 0.0
  %1227 = vmatprep.subr.mxu0 0.0
  %1228 = vmatpush1.msra.mxu0 0.0
  %1229 = vmatprep.subr.mxu0 0.0
  %1230 = vmatpush1.msra.mxu0 0.0
  %1231 = vmatprep.subr.mxu0 0.0
  %1232 = vmatpush1.msra.mxu0 0.0
  %1233 = vmatprep.subr.mxu0 0.0
  %1234 = vmatpush1.msra.mxu0 0.0
  %1235 = vmatprep.subr.mxu0 0.0
  %1236 = vmatpush1.msra.mxu0 0.0
  %1237 = vmatprep.subr.mxu0 0.0
  %1238 = vmatpush1.msra.mxu0 0.0
  %1239 = vmatprep.subr.mxu0 0.0
  %1240 = vmatpush1.msra.mxu0 0.0
  %1241 = vmatprep.subr.mxu0 0.0
  %1242 = vmatpush1.msra.mxu0 0.0
  %1243 = vmatprep.subr.mxu0 0.0
  %1244 = vmatpush1.msra.mxu0 0.0
  %1245 = vmatprep.subr.mxu0 0.0
  %1246 = vmatpush1.msra.mxu0 0.0
  %1247 = vmatprep.mubr.f32.mxu0 0.0
  %1248 = vmatmul.mubr.f32.gmra.mrb[0].mxu0 %v1181
  %v1249 = vpop.f32.mrb[0].mxu0
  %v1250 = vadd.f32 0.0, %v1249
  %v1251 = vpop.f32.mrb[0].mxu0
  %1252 = vdwg.mxu0
  %1253 = vrot.lane.b32.xlu0 %v229, 64
  %v1254 = vpop.permute.xlu0 %1253
  %v1257 = vsel %vm238, %v945, 0
  %1259 = vmatprep.subr.mxu0 0.0
  %1260 = vmatpush1.msra.mxu0 %v1254
  %1261 = vmatprep.subr.mxu0 0.0
  %1262 = vmatpush1.msra.mxu0 0.0
  %1263 = vmatprep.subr.mxu0 0.0
  %1264 = vmatpush1.msra.mxu0 0.0
  %1265 = vmatprep.subr.mxu0 0.0
  %1266 = vmatpush1.msra.mxu0 0.0
  %1267 = vmatprep.subr.mxu0 0.0
  %1268 = vmatpush1.msra.mxu0 0.0
  %1269 = vmatprep.subr.mxu0 0.0
  %1270 = vmatpush1.msra.mxu0 0.0
  %1271 = vmatprep.subr.mxu0 0.0
  %1272 = vmatpush1.msra.mxu0 0.0
  %1273 = vmatprep.subr.mxu0 0.0
  %1274 = vmatpush1.msra.mxu0 0.0
  %1275 = vmatprep.subr.mxu0 0.0
  %1276 = vmatpush1.msra.mxu0 0.0
  %1277 = vmatprep.subr.mxu0 0.0
  %1278 = vmatpush1.msra.mxu0 0.0
  %1279 = vmatprep.subr.mxu0 0.0
  %1280 = vmatpush1.msra.mxu0 0.0
  %1281 = vmatprep.subr.mxu0 0.0
  %1282 = vmatpush1.msra.mxu0 0.0
  %1283 = vmatprep.subr.mxu0 0.0
  %1284 = vmatpush1.msra.mxu0 0.0
  %1285 = vmatprep.subr.mxu0 0.0
  %1286 = vmatpush1.msra.mxu0 0.0
  %1287 = vmatprep.subr.mxu0 0.0
  %1288 = vmatpush1.msra.mxu0 0.0
  %1289 = vmatprep.subr.mxu0 0.0
  %1290 = vmatpush1.msra.mxu0 0.0
  %1291 = vmatprep.subr.mxu0 0.0
  %1292 = vmatpush1.msra.mxu0 0.0
  %1293 = vmatprep.subr.mxu0 0.0
  %1294 = vmatpush1.msra.mxu0 0.0
  %1295 = vmatprep.subr.mxu0 0.0
  %1296 = vmatpush1.msra.mxu0 0.0
  %1297 = vmatprep.subr.mxu0 0.0
  %1298 = vmatpush1.msra.mxu0 0.0
  %1299 = vmatprep.subr.mxu0 0.0
  %1300 = vmatpush1.msra.mxu0 0.0
  %1301 = vmatprep.subr.mxu0 0.0
  %1302 = vmatpush1.msra.mxu0 0.0
  %1303 = vmatprep.subr.mxu0 0.0
  %1304 = vmatpush1.msra.mxu0 0.0
  %1305 = vmatprep.subr.mxu0 0.0
  %1306 = vmatpush1.msra.mxu0 0.0
  %1307 = vmatprep.subr.mxu0 0.0
  %1308 = vmatpush1.msra.mxu0 0.0
  %1309 = vmatprep.subr.mxu0 0.0
  %1310 = vmatpush1.msra.mxu0 0.0
  %1311 = vmatprep.subr.mxu0 0.0
  %1312 = vmatpush1.msra.mxu0 0.0
  %1313 = vmatprep.subr.mxu0 0.0
  %1314 = vmatpush1.msra.mxu0 0.0
  %1315 = vmatprep.subr.mxu0 0.0
  %1316 = vmatpush1.msra.mxu0 0.0
  %1317 = vmatprep.subr.mxu0 0.0
  %1318 = vmatpush1.msra.mxu0 0.0
  %1319 = vmatprep.subr.mxu0 0.0
  %1320 = vmatpush1.msra.mxu0 0.0
  %1321 = vmatprep.subr.mxu0 0.0
  %1322 = vmatpush1.msra.mxu0 0.0
  %1323 = vmatprep.mubr.f32.mxu0 0.0
  %1324 = vmatmul.mubr.f32.gmra.mrb[0].mxu0 %v1257
  %v1325 = vpop.f32.mrb[0].mxu0
  %v1326 = vadd.f32 0.0, %v1325
  %v1327 = vpop.f32.mrb[0].mxu0
  %1328 = vdwg.mxu0
  %1329 = vrot.lane.b32.xlu0 %v231, 64
  %v1330 = vpop.permute.xlu0 %1329
  %v1333 = vsel %vm238, %v946, 0
  %1335 = vmatprep.subr.mxu0 0.0
  %1336 = vmatpush1.msra.mxu0 %v1330
  %1337 = vmatprep.subr.mxu0 0.0
  %1338 = vmatpush1.msra.mxu0 0.0
  %1339 = vmatprep.subr.mxu0 0.0
  %1340 = vmatpush1.msra.mxu0 0.0
  %1341 = vmatprep.subr.mxu0 0.0
  %1342 = vmatpush1.msra.mxu0 0.0
  %1343 = vmatprep.subr.mxu0 0.0
  %1344 = vmatpush1.msra.mxu0 0.0
  %1345 = vmatprep.subr.mxu0 0.0
  %1346 = vmatpush1.msra.mxu0 0.0
  %1347 = vmatprep.subr.mxu0 0.0
  %1348 = vmatpush1.msra.mxu0 0.0
  %1349 = vmatprep.subr.mxu0 0.0
  %1350 = vmatpush1.msra.mxu0 0.0
  %1351 = vmatprep.subr.mxu0 0.0
  %1352 = vmatpush1.msra.mxu0 0.0
  %1353 = vmatprep.subr.mxu0 0.0
  %1354 = vmatpush1.msra.mxu0 0.0
  %1355 = vmatprep.subr.mxu0 0.0
  %1356 = vmatpush1.msra.mxu0 0.0
  %1357 = vmatprep.subr.mxu0 0.0
  %1358 = vmatpush1.msra.mxu0 0.0
  %1359 = vmatprep.subr.mxu0 0.0
  %1360 = vmatpush1.msra.mxu0 0.0
  %1361 = vmatprep.subr.mxu0 0.0
  %1362 = vmatpush1.msra.mxu0 0.0
  %1363 = vmatprep.subr.mxu0 0.0
  %1364 = vmatpush1.msra.mxu0 0.0
  %1365 = vmatprep.subr.mxu0 0.0
  %1366 = vmatpush1.msra.mxu0 0.0
  %1367 = vmatprep.subr.mxu0 0.0
  %1368 = vmatpush1.msra.mxu0 0.0
  %1369 = vmatprep.subr.mxu0 0.0
  %1370 = vmatpush1.msra.mxu0 0.0
  %1371 = vmatprep.subr.mxu0 0.0
  %1372 = vmatpush1.msra.mxu0 0.0
  %1373 = vmatprep.subr.mxu0 0.0
  %1374 = vmatpush1.msra.mxu0 0.0
  %1375 = vmatprep.subr.mxu0 0.0
  %1376 = vmatpush1.msra.mxu0 0.0
  %1377 = vmatprep.subr.mxu0 0.0
  %1378 = vmatpush1.msra.mxu0 0.0
  %1379 = vmatprep.subr.mxu0 0.0
  %1380 = vmatpush1.msra.mxu0 0.0
  %1381 = vmatprep.subr.mxu0 0.0
  %1382 = vmatpush1.msra.mxu0 0.0
  %1383 = vmatprep.subr.mxu0 0.0
  %1384 = vmatpush1.msra.mxu0 0.0
  %1385 = vmatprep.subr.mxu0 0.0
  %1386 = vmatpush1.msra.mxu0 0.0
  %1387 = vmatprep.subr.mxu0 0.0
  %1388 = vmatpush1.msra.mxu0 0.0
  %1389 = vmatprep.subr.mxu0 0.0
  %1390 = vmatpush1.msra.mxu0 0.0
  %1391 = vmatprep.subr.mxu0 0.0
  %1392 = vmatpush1.msra.mxu0 0.0
  %1393 = vmatprep.subr.mxu0 0.0
  %1394 = vmatpush1.msra.mxu0 0.0
  %1395 = vmatprep.subr.mxu0 0.0
  %1396 = vmatpush1.msra.mxu0 0.0
  %1397 = vmatprep.subr.mxu0 0.0
  %1398 = vmatpush1.msra.mxu0 0.0
  %1399 = vmatprep.mubr.f32.mxu0 0.0
  %1400 = vmatmul.mubr.f32.gmra.mrb[0].mxu0 %v1333
  %v1401 = vpop.f32.mrb[0].mxu0
  %v1402 = vadd.f32 0.0, %v1401
  %v1403 = vpop.f32.mrb[0].mxu0
  %1404 = vdwg.mxu0
  %1405 = vrot.lane.b32.xlu0 %v233, 64
  %v1406 = vpop.permute.xlu0 %1405
  %v1409 = vsel %vm238, %v947, 0
  %1411 = vmatprep.subr.mxu0 0.0
  %1412 = vmatpush1.msra.mxu0 %v1406
  %1413 = vmatprep.subr.mxu0 0.0
  %1414 = vmatpush1.msra.mxu0 0.0
  %1415 = vmatprep.subr.mxu0 0.0
  %1416 = vmatpush1.msra.mxu0 0.0
  %1417 = vmatprep.subr.mxu0 0.0
  %1418 = vmatpush1.msra.mxu0 0.0
  %1419 = vmatprep.subr.mxu0 0.0
  %1420 = vmatpush1.msra.mxu0 0.0
  %1421 = vmatprep.subr.mxu0 0.0
  %1422 = vmatpush1.msra.mxu0 0.0
  %1423 = vmatprep.subr.mxu0 0.0
  %1424 = vmatpush1.msra.mxu0 0.0
  %1425 = vmatprep.subr.mxu0 0.0
  %1426 = vmatpush1.msra.mxu0 0.0
  %1427 = vmatprep.subr.mxu0 0.0
  %1428 = vmatpush1.msra.mxu0 0.0
  %1429 = vmatprep.subr.mxu0 0.0
  %1430 = vmatpush1.msra.mxu0 0.0
  %1431 = vmatprep.subr.mxu0 0.0
  %1432 = vmatpush1.msra.mxu0 0.0
  %1433 = vmatprep.subr.mxu0 0.0
  %1434 = vmatpush1.msra.mxu0 0.0
  %1435 = vmatprep.subr.mxu0 0.0
  %1436 = vmatpush1.msra.mxu0 0.0
  %1437 = vmatprep.subr.mxu0 0.0
  %1438 = vmatpush1.msra.mxu0 0.0
  %1439 = vmatprep.subr.mxu0 0.0
  %1440 = vmatpush1.msra.mxu0 0.0
  %1441 = vmatprep.subr.mxu0 0.0
  %1442 = vmatpush1.msra.mxu0 0.0
  %1443 = vmatprep.subr.mxu0 0.0
  %1444 = vmatpush1.msra.mxu0 0.0
  %1445 = vmatprep.subr.mxu0 0.0
  %1446 = vmatpush1.msra.mxu0 0.0
  %1447 = vmatprep.subr.mxu0 0.0
  %1448 = vmatpush1.msra.mxu0 0.0
  %1449 = vmatprep.subr.mxu0 0.0
  %1450 = vmatpush1.msra.mxu0 0.0
  %1451 = vmatprep.subr.mxu0 0.0
  %1452 = vmatpush1.msra.mxu0 0.0
  %1453 = vmatprep.subr.mxu0 0.0
  %1454 = vmatpush1.msra.mxu0 0.0
  %1455 = vmatprep.subr.mxu0 0.0
  %1456 = vmatpush1.msra.mxu0 0.0
  %1457 = vmatprep.subr.mxu0 0.0
  %1458 = vmatpush1.msra.mxu0 0.0
  %1459 = vmatprep.subr.mxu0 0.0
  %1460 = vmatpush1.msra.mxu0 0.0
  %1461 = vmatprep.subr.mxu0 0.0
  %1462 = vmatpush1.msra.mxu0 0.0
  %1463 = vmatprep.subr.mxu0 0.0
  %1464 = vmatpush1.msra.mxu0 0.0
  %1465 = vmatprep.subr.mxu0 0.0
  %1466 = vmatpush1.msra.mxu0 0.0
  %1467 = vmatprep.subr.mxu0 0.0
  %1468 = vmatpush1.msra.mxu0 0.0
  %1469 = vmatprep.subr.mxu0 0.0
  %1470 = vmatpush1.msra.mxu0 0.0
  %1471 = vmatprep.subr.mxu0 0.0
  %1472 = vmatpush1.msra.mxu0 0.0
  %1473 = vmatprep.subr.mxu0 0.0
  %1474 = vmatpush1.msra.mxu0 0.0
  %1475 = vmatprep.mubr.f32.mxu0 0.0
  %1476 = vmatmul.mubr.f32.gmra.mrb[0].mxu0 %v1409
  %v1477 = vpop.f32.mrb[0].mxu0
  %v1478 = vadd.f32 0.0, %v1477
  %v1479 = vpop.f32.mrb[0].mxu0
  %1480 = vdwg.mxu0
  %1481 = vrot.lane.b32.xlu0 %v235, 64
  %v1482 = vpop.permute.xlu0 %1481
  %v1485 = vsel %vm238, %v948, 0
  %1487 = vmatprep.subr.mxu0 0.0
  %1488 = vmatpush1.msra.mxu0 %v1482
  %1489 = vmatprep.subr.mxu0 0.0
  %1490 = vmatpush1.msra.mxu0 0.0
  %1491 = vmatprep.subr.mxu0 0.0
  %1492 = vmatpush1.msra.mxu0 0.0
  %1493 = vmatprep.subr.mxu0 0.0
  %1494 = vmatpush1.msra.mxu0 0.0
  %1495 = vmatprep.subr.mxu0 0.0
  %1496 = vmatpush1.msra.mxu0 0.0
  %1497 = vmatprep.subr.mxu0 0.0
  %1498 = vmatpush1.msra.mxu0 0.0
  %1499 = vmatprep.subr.mxu0 0.0
  %1500 = vmatpush1.msra.mxu0 0.0
  %1501 = vmatprep.subr.mxu0 0.0
  %1502 = vmatpush1.msra.mxu0 0.0
  %1503 = vmatprep.subr.mxu0 0.0
  %1504 = vmatpush1.msra.mxu0 0.0
  %1505 = vmatprep.subr.mxu0 0.0
  %1506 = vmatpush1.msra.mxu0 0.0
  %1507 = vmatprep.subr.mxu0 0.0
  %1508 = vmatpush1.msra.mxu0 0.0
  %1509 = vmatprep.subr.mxu0 0.0
  %1510 = vmatpush1.msra.mxu0 0.0
  %1511 = vmatprep.subr.mxu0 0.0
  %1512 = vmatpush1.msra.mxu0 0.0
  %1513 = vmatprep.subr.mxu0 0.0
  %1514 = vmatpush1.msra.mxu0 0.0
  %1515 = vmatprep.subr.mxu0 0.0
  %1516 = vmatpush1.msra.mxu0 0.0
  %1517 = vmatprep.subr.mxu0 0.0
  %1518 = vmatpush1.msra.mxu0 0.0
  %1519 = vmatprep.subr.mxu0 0.0
  %1520 = vmatpush1.msra.mxu0 0.0
  %1521 = vmatprep.subr.mxu0 0.0
  %1522 = vmatpush1.msra.mxu0 0.0
  %1523 = vmatprep.subr.mxu0 0.0
  %1524 = vmatpush1.msra.mxu0 0.0
  %1525 = vmatprep.subr.mxu0 0.0
  %1526 = vmatpush1.msra.mxu0 0.0
  %1527 = vmatprep.subr.mxu0 0.0
  %1528 = vmatpush1.msra.mxu0 0.0
  %1529 = vmatprep.subr.mxu0 0.0
  %1530 = vmatpush1.msra.mxu0 0.0
  %1531 = vmatprep.subr.mxu0 0.0
  %1532 = vmatpush1.msra.mxu0 0.0
  %1533 = vmatprep.subr.mxu0 0.0
  %1534 = vmatpush1.msra.mxu0 0.0
  %1535 = vmatprep.subr.mxu0 0.0
  %1536 = vmatpush1.msra.mxu0 0.0
  %1537 = vmatprep.subr.mxu0 0.0
  %1538 = vmatpush1.msra.mxu0 0.0
  %1539 = vmatprep.subr.mxu0 0.0
  %1540 = vmatpush1.msra.mxu0 0.0
  %1541 = vmatprep.subr.mxu0 0.0
  %1542 = vmatpush1.msra.mxu0 0.0
  %1543 = vmatprep.subr.mxu0 0.0
  %1544 = vmatpush1.msra.mxu0 0.0
  %1545 = vmatprep.subr.mxu0 0.0
  %1546 = vmatpush1.msra.mxu0 0.0
  %1547 = vmatprep.subr.mxu0 0.0
  %1548 = vmatpush1.msra.mxu0 0.0
  %1549 = vmatprep.subr.mxu0 0.0
  %1550 = vmatpush1.msra.mxu0 0.0
  %1551 = vmatprep.mubr.f32.mxu0 0.0
  %1552 = vmatmul.mubr.f32.gmra.mrb[0].mxu0 %v1485
  %v1553 = vpop.f32.mrb[0].mxu0
  %v1554 = vadd.f32 0.0, %v1553
  %v1555 = vpop.f32.mrb[0].mxu0
  %1556 = vdwg.mxu0
  %1559 = vrot.lane.b32.xlu0 %v1174, 8
  %v1560 = vpop.permute.xlu0 %1559
  %1561 = vrot.lane.b32.xlu0 %v1250, 8
  %v1562 = vpop.permute.xlu0 %1561
  %1567 = vrot.lane.b32.xlu0 %v1326, 16
  %v1568 = vpop.permute.xlu0 %1567
  %1569 = vrot.lane.b32.xlu0 %v1402, 16
  %v1570 = vpop.permute.xlu0 %1569
  %1575 = vrot.lane.b32.xlu0 %v1478, 24
  %v1576 = vpop.permute.xlu0 %1575
  %1577 = vrot.lane.b32.xlu0 %v1554, 24
  %v1578 = vpop.permute.xlu0 %1577
  %v1581 = vsel %vm238, %v1022, %v1560
  %v1582 = vsel %vm238, %v1098, %v1562
  %vm1583 = vcmask 130048
  %v1584 = vsel %vm1583, %v1581, %v1568
  %v1585 = vsel %vm1583, %v1582, %v1570
  %vm1586 = vcmask 195584
  %v1587 = vsel %vm1586, %v1584, %v1576
  %v1588 = vsel %vm1586, %v1585, %v1578
  %v1590 = vlaneseq
  %v1591 = vshrl.u32 %v1590, 7
  %v1592 = vsub.s32 0, %v1591
  %v1593 = vrot.slane %v221, %v1592
  %v1596 = vsel %vm135, %v1587, 0
  %v1599 = vsel %vm135, %v1588, 0
  %1601 = vmatprep.subr.mxu0 0.0
  %1602 = vmatpush1.msra.mxu0 %v217
  %1603 = vmatprep.subr.mxu0 0.0
  %1604 = vmatpush1.msra.mxu0 %v218
  %1605 = vmatprep.subr.mxu0 0.0
  %1606 = vmatpush1.msra.mxu0 %v219
  %1607 = vmatprep.subr.mxu0 0.0
  %1608 = vmatpush1.msra.mxu0 %v220
  %1609 = vmatprep.subr.mxu0 0.0
  %1610 = vmatpush1.msra.mxu0 0.0
  %1611 = vmatprep.subr.mxu0 0.0
  %1612 = vmatpush1.msra.mxu0 0.0
  %1613 = vmatprep.subr.mxu0 0.0
  %1614 = vmatpush1.msra.mxu0 0.0
  %1615 = vmatprep.subr.mxu0 0.0
  %1616 = vmatpush1.msra.mxu0 0.0
  %1617 = vmatprep.subr.mxu0 0.0
  %1618 = vmatpush1.msra.mxu0 0.0
  %1619 = vmatprep.subr.mxu0 0.0
  %1620 = vmatpush1.msra.mxu0 0.0
  %1621 = vmatprep.subr.mxu0 0.0
  %1622 = vmatpush1.msra.mxu0 0.0
  %1623 = vmatprep.subr.mxu0 0.0
  %1624 = vmatpush1.msra.mxu0 0.0
  %1625 = vmatprep.subr.mxu0 0.0
  %1626 = vmatpush1.msra.mxu0 0.0
  %1627 = vmatprep.subr.mxu0 0.0
  %1628 = vmatpush1.msra.mxu0 0.0
  %1629 = vmatprep.subr.mxu0 0.0
  %1630 = vmatpush1.msra.mxu0 0.0
  %1631 = vmatprep.subr.mxu0 0.0
  %1632 = vmatpush1.msra.mxu0 0.0
  %1633 = vmatprep.subr.mxu0 0.0
  %1634 = vmatpush1.msra.mxu0 0.0
  %1635 = vmatprep.subr.mxu0 0.0
  %1636 = vmatpush1.msra.mxu0 0.0
  %1637 = vmatprep.subr.mxu0 0.0
  %1638 = vmatpush1.msra.mxu0 0.0
  %1639 = vmatprep.subr.mxu0 0.0
  %1640 = vmatpush1.msra.mxu0 0.0
  %1641 = vmatprep.subr.mxu0 0.0
  %1642 = vmatpush1.msra.mxu0 0.0
  %1643 = vmatprep.subr.mxu0 0.0
  %1644 = vmatpush1.msra.mxu0 0.0
  %1645 = vmatprep.subr.mxu0 0.0
  %1646 = vmatpush1.msra.mxu0 0.0
  %1647 = vmatprep.subr.mxu0 0.0
  %1648 = vmatpush1.msra.mxu0 0.0
  %1649 = vmatprep.subr.mxu0 0.0
  %1650 = vmatpush1.msra.mxu0 0.0
  %1651 = vmatprep.subr.mxu0 0.0
  %1652 = vmatpush1.msra.mxu0 0.0
  %1653 = vmatprep.subr.mxu0 0.0
  %1654 = vmatpush1.msra.mxu0 0.0
  %1655 = vmatprep.subr.mxu0 0.0
  %1656 = vmatpush1.msra.mxu0 0.0
  %1657 = vmatprep.subr.mxu0 0.0
  %1658 = vmatpush1.msra.mxu0 0.0
  %1659 = vmatprep.subr.mxu0 0.0
  %1660 = vmatpush1.msra.mxu0 0.0
  %1661 = vmatprep.subr.mxu0 0.0
  %1662 = vmatpush1.msra.mxu0 0.0
  %1663 = vmatprep.subr.mxu0 0.0
  %1664 = vmatpush1.msra.mxu0 0.0
  %1665 = vmatprep.mubr.f32.mxu0 0.0
  %1666 = vmatmul.mubr.f32.gmra.mrb[0].mxu0 %v1596
  %v1667 = vpop.f32.mrb[0].mxu0
  %v1668 = vadd.f32 %v1593, %v1667
  %v1669 = vpop.f32.mrb[0].mxu0
  %1670 = vmatprep.mubr.f32.mxu0 0.0
  %1671 = vmatmul.mubr.f32.gmra.mrb[0].mxu0 %v1599
  %v1672 = vpop.f32.mrb[0].mxu0
  %v1673 = vadd.f32 %v1593, %v1672
  %v1674 = vpop.f32.mrb[0].mxu0
  %1675 = vdwg.mxu0
  %v1676 = vadd.f32 %v119, %v1668
  %v1677 = vadd.f32 %v120, %v1673
  %v1678 = vld [vmem:[%s10] sm:$0x1]
  %v1679 = vld [vmem:[%s11] sm:$0x1]
  %v1680 = vsel %vm135, %v1676, 0.0
  %1681 = vadd.xlane.f32.xlu0 %v1680
  %v1682 = vpop.xlane.xlu0 %1681
  %v1683 = vsel %vm135, %v1677, 0.0
  %1684 = vadd.xlane.f32.xlu0 %v1683
  %v1685 = vpop.xlane.xlu0 %1684
  %v1686 = vrcp.pop 32.0
  %v1687 = vmul.f32 %v1682, %v1686
  %v1688 = vmul.f32 %v1685, %v1686
  %v1689 = vsub.f32 %v1676, %v1687
  %v1690 = vsub.f32 %v1677, %v1688
  %v1691 = vmul.f32 %v1689, %v1689
  %v1692 = vmul.f32 %v1690, %v1690
  %v1693 = vsel %vm135, %v1691, 0.0
  %1694 = vadd.xlane.f32.xlu0 %v1693
  %v1695 = vpop.xlane.xlu0 %1694
  %v1696 = vsel %vm135, %v1692, 0.0
  %1697 = vadd.xlane.f32.xlu0 %v1696
  %v1698 = vpop.xlane.xlu0 %1697
  %v1699 = vmul.f32 %v1695, %v1686
  %v1700 = vmul.f32 %v1698, %v1686
  %v1701 = vadd.f32 %v1699, 1e-05
  %v1702 = vadd.f32 %v1700, 1e-05
  %v1703 = vrsqrt.pop %v1701
  %v1704 = vrsqrt.pop %v1702
  %v1705 = vmul.f32 %v1689, %v1703
  %v1706 = vmul.f32 %v1690, %v1704
  %v1708 = vlaneseq
  %v1709 = vshrl.u32 %v1708, 7
  %v1710 = vsub.s32 0, %v1709
  %v1711 = vrot.slane %v1678, %v1710
  %v1713 = vmul.f32 %v1705, %v1711
  %v1714 = vmul.f32 %v1706, %v1711
  %v1716 = vlaneseq
  %v1717 = vshrl.u32 %v1716, 7
  %v1718 = vsub.s32 0, %v1717
  %v1719 = vrot.slane %v1679, %v1718
  %v1721 = vadd.f32 %v1713, %v1719
  %v1722 = vadd.f32 %v1714, %v1719
  %v1723 = vld [vmem:[%s12] sm:$0xff]
  %v1724 = vld [vmem:[%s12 + $0x8] sm:$0xff]
  %v1725 = vld [vmem:[%s12 + $0x10] sm:$0xff]
  %v1726 = vld [vmem:[%s12 + $0x18] sm:$0xff]
  %v1727 = vld [vmem:[%s13] sm:$0x1]
  %v1729 = vlaneseq
  %v1730 = vshrl.u32 %v1729, 7
  %v1731 = vsub.s32 0, %v1730
  %v1732 = vrot.slane %v1727, %v1731
  %v1735 = vsel %vm135, %v1721, 0
  %v1738 = vsel %vm135, %v1722, 0
  %1740 = vmatprep.subr.mxu0 0.0
  %1741 = vmatpush1.msra.mxu0 %v1723
  %1742 = vmatprep.subr.mxu0 0.0
  %1743 = vmatpush1.msra.mxu0 %v1724
  %1744 = vmatprep.subr.mxu0 0.0
  %1745 = vmatpush1.msra.mxu0 %v1725
  %1746 = vmatprep.subr.mxu0 0.0
  %1747 = vmatpush1.msra.mxu0 %v1726
  %1748 = vmatprep.subr.mxu0 0.0
  %1749 = vmatpush1.msra.mxu0 0.0
  %1750 = vmatprep.subr.mxu0 0.0
  %1751 = vmatpush1.msra.mxu0 0.0
  %1752 = vmatprep.subr.mxu0 0.0
  %1753 = vmatpush1.msra.mxu0 0.0
  %1754 = vmatprep.subr.mxu0 0.0
  %1755 = vmatpush1.msra.mxu0 0.0
  %1756 = vmatprep.subr.mxu0 0.0
  %1757 = vmatpush1.msra.mxu0 0.0
  %1758 = vmatprep.subr.mxu0 0.0
  %1759 = vmatpush1.msra.mxu0 0.0
  %1760 = vmatprep.subr.mxu0 0.0
  %1761 = vmatpush1.msra.mxu0 0.0
  %1762 = vmatprep.subr.mxu0 0.0
  %1763 = vmatpush1.msra.mxu0 0.0
  %1764 = vmatprep.subr.mxu0 0.0
  %1765 = vmatpush1.msra.mxu0 0.0
  %1766 = vmatprep.subr.mxu0 0.0
  %1767 = vmatpush1.msra.mxu0 0.0
  %1768 = vmatprep.subr.mxu0 0.0
  %1769 = vmatpush1.msra.mxu0 0.0
  %1770 = vmatprep.subr.mxu0 0.0
  %1771 = vmatpush1.msra.mxu0 0.0
  %1772 = vmatprep.subr.mxu0 0.0
  %1773 = vmatpush1.msra.mxu0 0.0
  %1774 = vmatprep.subr.mxu0 0.0
  %1775 = vmatpush1.msra.mxu0 0.0
  %1776 = vmatprep.subr.mxu0 0.0
  %1777 = vmatpush1.msra.mxu0 0.0
  %1778 = vmatprep.subr.mxu0 0.0
  %1779 = vmatpush1.msra.mxu0 0.0
  %1780 = vmatprep.subr.mxu0 0.0
  %1781 = vmatpush1.msra.mxu0 0.0
  %1782 = vmatprep.subr.mxu0 0.0
  %1783 = vmatpush1.msra.mxu0 0.0
  %1784 = vmatprep.subr.mxu0 0.0
  %1785 = vmatpush1.msra.mxu0 0.0
  %1786 = vmatprep.subr.mxu0 0.0
  %1787 = vmatpush1.msra.mxu0 0.0
  %1788 = vmatprep.subr.mxu0 0.0
  %1789 = vmatpush1.msra.mxu0 0.0
  %1790 = vmatprep.subr.mxu0 0.0
  %1791 = vmatpush1.msra.mxu0 0.0
  %1792 = vmatprep.subr.mxu0 0.0
  %1793 = vmatpush1.msra.mxu0 0.0
  %1794 = vmatprep.subr.mxu0 0.0
  %1795 = vmatpush1.msra.mxu0 0.0
  %1796 = vmatprep.subr.mxu0 0.0
  %1797 = vmatpush1.msra.mxu0 0.0
  %1798 = vmatprep.subr.mxu0 0.0
  %1799 = vmatpush1.msra.mxu0 0.0
  %1800 = vmatprep.subr.mxu0 0.0
  %1801 = vmatpush1.msra.mxu0 0.0
  %1802 = vmatprep.subr.mxu0 0.0
  %1803 = vmatpush1.msra.mxu0 0.0
  %1804 = vmatprep.mubr.f32.mxu0 0.0
  %1805 = vmatmul.mubr.f32.gmra.mrb[0].mxu0 %v1735
  %v1806 = vpop.f32.mrb[0].mxu0
  %v1807 = vadd.f32 %v1732, %v1806
  %v1808 = vpop.f32.mrb[0].mxu0
  %1809 = vmatprep.mubr.f32.mxu0 0.0
  %1810 = vmatmul.mubr.f32.gmra.mrb[0].mxu0 %v1738
  %v1811 = vpop.f32.mrb[0].mxu0
  %v1812 = vadd.f32 %v1732, %v1811
  %v1813 = vpop.f32.mrb[0].mxu0
  %1814 = vdwg.mxu0
  %v1815 = vld [vmem:[%s14] sm:$0xff]
  %v1816 = vld [vmem:[%s14 + $0x8] sm:$0xff]
  %v1817 = vld [vmem:[%s14 + $0x10] sm:$0xff]
  %v1818 = vld [vmem:[%s14 + $0x18] sm:$0xff]
  %v1819 = vld [vmem:[%s15] sm:$0x1]
  %v1821 = vlaneseq
  %v1822 = vshrl.u32 %v1821, 7
  %v1823 = vsub.s32 0, %v1822
  %v1824 = vrot.slane %v1819, %v1823
  %v1827 = vsel %vm135, %v121, 0
  %v1830 = vsel %vm135, %v122, 0
  %1832 = vmatprep.subr.mxu0 0.0
  %1833 = vmatpush1.msra.mxu0 %v1815
  %1834 = vmatprep.subr.mxu0 0.0
  %1835 = vmatpush1.msra.mxu0 %v1816
  %1836 = vmatprep.subr.mxu0 0.0
  %1837 = vmatpush1.msra.mxu0 %v1817
  %1838 = vmatprep.subr.mxu0 0.0
  %1839 = vmatpush1.msra.mxu0 %v1818
  %1840 = vmatprep.subr.mxu0 0.0
  %1841 = vmatpush1.msra.mxu0 0.0
  %1842 = vmatprep.subr.mxu0 0.0
  %1843 = vmatpush1.msra.mxu0 0.0
  %1844 = vmatprep.subr.mxu0 0.0
  %1845 = vmatpush1.msra.mxu0 0.0
  %1846 = vmatprep.subr.mxu0 0.0
  %1847 = vmatpush1.msra.mxu0 0.0
  %1848 = vmatprep.subr.mxu0 0.0
  %1849 = vmatpush1.msra.mxu0 0.0
  %1850 = vmatprep.subr.mxu0 0.0
  %1851 = vmatpush1.msra.mxu0 0.0
  %1852 = vmatprep.subr.mxu0 0.0
  %1853 = vmatpush1.msra.mxu0 0.0
  %1854 = vmatprep.subr.mxu0 0.0
  %1855 = vmatpush1.msra.mxu0 0.0
  %1856 = vmatprep.subr.mxu0 0.0
  %1857 = vmatpush1.msra.mxu0 0.0
  %1858 = vmatprep.subr.mxu0 0.0
  %1859 = vmatpush1.msra.mxu0 0.0
  %1860 = vmatprep.subr.mxu0 0.0
  %1861 = vmatpush1.msra.mxu0 0.0
  %1862 = vmatprep.subr.mxu0 0.0
  %1863 = vmatpush1.msra.mxu0 0.0
  %1864 = vmatprep.subr.mxu0 0.0
  %1865 = vmatpush1.msra.mxu0 0.0
  %1866 = vmatprep.subr.mxu0 0.0
  %1867 = vmatpush1.msra.mxu0 0.0
  %1868 = vmatprep.subr.mxu0 0.0
  %1869 = vmatpush1.msra.mxu0 0.0
  %1870 = vmatprep.subr.mxu0 0.0
  %1871 = vmatpush1.msra.mxu0 0.0
  %1872 = vmatprep.subr.mxu0 0.0
  %1873 = vmatpush1.msra.mxu0 0.0
  %1874 = vmatprep.subr.mxu0 0.0
  %1875 = vmatpush1.msra.mxu0 0.0
  %1876 = vmatprep.subr.mxu0 0.0
  %1877 = vmatpush1.msra.mxu0 0.0
  %1878 = vmatprep.subr.mxu0 0.0
  %1879 = vmatpush1.msra.mxu0 0.0
  %1880 = vmatprep.subr.mxu0 0.0
  %1881 = vmatpush1.msra.mxu0 0.0
  %1882 = vmatprep.subr.mxu0 0.0
  %1883 = vmatpush1.msra.mxu0 0.0
  %1884 = vmatprep.subr.mxu0 0.0
  %1885 = vmatpush1.msra.mxu0 0.0
  %1886 = vmatprep.subr.mxu0 0.0
  %1887 = vmatpush1.msra.mxu0 0.0
  %1888 = vmatprep.subr.mxu0 0.0
  %1889 = vmatpush1.msra.mxu0 0.0
  %1890 = vmatprep.subr.mxu0 0.0
  %1891 = vmatpush1.msra.mxu0 0.0
  %1892 = vmatprep.subr.mxu0 0.0
  %1893 = vmatpush1.msra.mxu0 0.0
  %1894 = vmatprep.subr.mxu0 0.0
  %1895 = vmatpush1.msra.mxu0 0.0
  %1896 = vmatprep.mubr.f32.mxu0 0.0
  %1897 = vmatmul.mubr.f32.gmra.mrb[0].mxu0 %v1827
  %v1898 = vpop.f32.mrb[0].mxu0
  %v1899 = vadd.f32 %v1824, %v1898
  %v1900 = vpop.f32.mrb[0].mxu0
  %1901 = vmatprep.mubr.f32.mxu0 0.0
  %1902 = vmatmul.mubr.f32.gmra.mrb[0].mxu0 %v1830
  %v1903 = vpop.f32.mrb[0].mxu0
  %v1904 = vadd.f32 %v1824, %v1903
  %v1905 = vpop.f32.mrb[0].mxu0
  %1906 = vdwg.mxu0
  %v1907 = vld [vmem:[%s16] sm:$0xff]
  %v1908 = vld [vmem:[%s16 + $0x8] sm:$0xff]
  %v1909 = vld [vmem:[%s16 + $0x10] sm:$0xff]
  %v1910 = vld [vmem:[%s16 + $0x18] sm:$0xff]
  %v1911 = vld [vmem:[%s17] sm:$0x1]
  %1914 = vrot.lane.b32.xlu0 %v1807, 120
  %v1915 = vpop.permute.xlu0 %1914
  %1916 = vrot.lane.b32.xlu0 %v1812, 120
  %v1917 = vpop.permute.xlu0 %1916
  %1918 = vrot.lane.b32.xlu0 %v1807, 112
  %v1919 = vpop.permute.xlu0 %1918
  %1920 = vrot.lane.b32.xlu0 %v1812, 112
  %v1921 = vpop.permute.xlu0 %1920
  %1922 = vrot.lane.b32.xlu0 %v1807, 104
  %v1923 = vpop.permute.xlu0 %1922
  %1924 = vrot.lane.b32.xlu0 %v1812, 104
  %v1925 = vpop.permute.xlu0 %1924
  %1928 = vrot.lane.b32.xlu0 %v1899, 120
  %v1929 = vpop.permute.xlu0 %1928
  %1930 = vrot.lane.b32.xlu0 %v1904, 120
  %v1931 = vpop.permute.xlu0 %1930
  %1932 = vrot.lane.b32.xlu0 %v1899, 112
  %v1933 = vpop.permute.xlu0 %1932
  %1934 = vrot.lane.b32.xlu0 %v1904, 112
  %v1935 = vpop.permute.xlu0 %1934
  %1936 = vrot.lane.b32.xlu0 %v1899, 104
  %v1937 = vpop.permute.xlu0 %1936
  %1938 = vrot.lane.b32.xlu0 %v1904, 104
  %v1939 = vpop.permute.xlu0 %1938
  %v1940 = vsel %vm238, %v1807, 0
  %v1942 = vsel %vm238, %v1899, 0
  %1944 = vmatprep.subr.mxu0 0.0
  %1945 = vmatpush1.xpose.msra.mxu0 %v1942
  %1946 = vmatprep.subr.mxu0 0.0
  %1947 = vmatpush1.xpose.msra.mxu0 0.0
  %1948 = vmatprep.subr.mxu0 0.0
  %1949 = vmatpush1.xpose.msra.mxu0 0.0
  %1950 = vmatprep.subr.mxu0 0.0
  %1951 = vmatpush1.xpose.msra.mxu0 0.0
  %1952 = vmatprep.subr.mxu0 0.0
  %1953 = vmatpush1.xpose.msra.mxu0 0.0
  %1954 = vmatprep.subr.mxu0 0.0
  %1955 = vmatpush1.xpose.msra.mxu0 0.0
  %1956 = vmatprep.subr.mxu0 0.0
  %1957 = vmatpush1.xpose.msra.mxu0 0.0
  %1958 = vmatprep.subr.mxu0 0.0
  %1959 = vmatpush1.xpose.msra.mxu0 0.0
  %1960 = vmatprep.subr.mxu0 0.0
  %1961 = vmatpush1.xpose.msra.mxu0 0.0
  %1962 = vmatprep.subr.mxu0 0.0
  %1963 = vmatpush1.xpose.msra.mxu0 0.0
  %1964 = vmatprep.subr.mxu0 0.0
  %1965 = vmatpush1.xpose.msra.mxu0 0.0
  %1966 = vmatprep.subr.mxu0 0.0
  %1967 = vmatpush1.xpose.msra.mxu0 0.0
  %1968 = vmatprep.subr.mxu0 0.0
  %1969 = vmatpush1.xpose.msra.mxu0 0.0
  %1970 = vmatprep.subr.mxu0 0.0
  %1971 = vmatpush1.xpose.msra.mxu0 0.0
  %1972 = vmatprep.subr.mxu0 0.0
  %1973 = vmatpush1.xpose.msra.mxu0 0.0
  %1974 = vmatprep.subr.mxu0 0.0
  %1975 = vmatpush1.xpose.msra.mxu0 0.0
  %1976 = vmatprep.subr.mxu0 0.0
  %1977 = vmatpush1.xpose.msra.mxu0 0.0
  %1978 = vmatprep.subr.mxu0 0.0
  %1979 = vmatpush1.xpose.msra.mxu0 0.0
  %1980 = vmatprep.subr.mxu0 0.0
  %1981 = vmatpush1.xpose.msra.mxu0 0.0
  %1982 = vmatprep.subr.mxu0 0.0
  %1983 = vmatpush1.xpose.msra.mxu0 0.0
  %1984 = vmatprep.subr.mxu0 0.0
  %1985 = vmatpush1.xpose.msra.mxu0 0.0
  %1986 = vmatprep.subr.mxu0 0.0
  %1987 = vmatpush1.xpose.msra.mxu0 0.0
  %1988 = vmatprep.subr.mxu0 0.0
  %1989 = vmatpush1.xpose.msra.mxu0 0.0
  %1990 = vmatprep.subr.mxu0 0.0
  %1991 = vmatpush1.xpose.msra.mxu0 0.0
  %1992 = vmatprep.subr.mxu0 0.0
  %1993 = vmatpush1.xpose.msra.mxu0 0.0
  %1994 = vmatprep.subr.mxu0 0.0
  %1995 = vmatpush1.xpose.msra.mxu0 0.0
  %1996 = vmatprep.subr.mxu0 0.0
  %1997 = vmatpush1.xpose.msra.mxu0 0.0
  %1998 = vmatprep.subr.mxu0 0.0
  %1999 = vmatpush1.xpose.msra.mxu0 0.0
  %2000 = vmatprep.subr.mxu0 0.0
  %2001 = vmatpush1.xpose.msra.mxu0 0.0
  %2002 = vmatprep.subr.mxu0 0.0
  %2003 = vmatpush1.xpose.msra.mxu0 0.0
  %2004 = vmatprep.subr.mxu0 0.0
  %2005 = vmatpush1.xpose.msra.mxu0 0.0
  %2006 = vmatprep.subr.mxu0 0.0
  %2007 = vmatpush1.xpose.msra.mxu0 0.0
  %2008 = vmatprep.mubr.f32.mxu0 0.0
  %2009 = vmatmul.mubr.f32.gmra.mrb[0].mxu0 %v1940
  %v2010 = vpop.f32.mrb[0].mxu0
  %v2011 = vadd.f32 0.0, %v2010
  %v2012 = vpop.f32.mrb[0].mxu0
  %2013 = vdwg.mxu0
  %v2014 = vsel %vm238, %v1812, 0
  %v2016 = vsel %vm238, %v1904, 0
  %2018 = vmatprep.subr.mxu0 0.0
  %2019 = vmatpush1.xpose.msra.mxu0 %v2016
  %2020 = vmatprep.subr.mxu0 0.0
  %2021 = vmatpush1.xpose.msra.mxu0 0.0
  %2022 = vmatprep.subr.mxu0 0.0
  %2023 = vmatpush1.xpose.msra.mxu0 0.0
  %2024 = vmatprep.subr.mxu0 0.0
  %2025 = vmatpush1.xpose.msra.mxu0 0.0
  %2026 = vmatprep.subr.mxu0 0.0
  %2027 = vmatpush1.xpose.msra.mxu0 0.0
  %2028 = vmatprep.subr.mxu0 0.0
  %2029 = vmatpush1.xpose.msra.mxu0 0.0
  %2030 = vmatprep.subr.mxu0 0.0
  %2031 = vmatpush1.xpose.msra.mxu0 0.0
  %2032 = vmatprep.subr.mxu0 0.0
  %2033 = vmatpush1.xpose.msra.mxu0 0.0
  %2034 = vmatprep.subr.mxu0 0.0
  %2035 = vmatpush1.xpose.msra.mxu0 0.0
  %2036 = vmatprep.subr.mxu0 0.0
  %2037 = vmatpush1.xpose.msra.mxu0 0.0
  %2038 = vmatprep.subr.mxu0 0.0
  %2039 = vmatpush1.xpose.msra.mxu0 0.0
  %2040 = vmatprep.subr.mxu0 0.0
  %2041 = vmatpush1.xpose.msra.mxu0 0.0
  %2042 = vmatprep.subr.mxu0 0.0
  %2043 = vmatpush1.xpose.msra.mxu0 0.0
  %2044 = vmatprep.subr.mxu0 0.0
  %2045 = vmatpush1.xpose.msra.mxu0 0.0
  %2046 = vmatprep.subr.mxu0 0.0
  %2047 = vmatpush1.xpose.msra.mxu0 0.0
  %2048 = vmatprep.subr.mxu0 0.0
  %2049 = vmatpush1.xpose.msra.mxu0 0.0
  %2050 = vmatprep.subr.mxu0 0.0
  %2051 = vmatpush1.xpose.msra.mxu0 0.0
  %2052 = vmatprep.subr.mxu0 0.0
  %2053 = vmatpush1.xpose.msra.mxu0 0.0
  %2054 = vmatprep.subr.mxu0 0.0
  %2055 = vmatpush1.xpose.msra.mxu0 0.0
  %2056 = vmatprep.subr.mxu0 0.0
  %2057 = vmatpush1.xpose.msra.mxu0 0.0
  %2058 = vmatprep.subr.mxu0 0.0
  %2059 = vmatpush1.xpose.msra.mxu0 0.0
  %2060 = vmatprep.subr.mxu0 0.0
  %2061 = vmatpush1.xpose.msra.mxu0 0.0
  %2062 = vmatprep.subr.mxu0 0.0
  %2063 = vmatpush1.xpose.msra.mxu0 0.0
  %2064 = vmatprep.subr.mxu0 0.0
  %2065 = vmatpush1.xpose.msra.mxu0 0.0
  %2066 = vmatprep.subr.mxu0 0.0
  %2067 = vmatpush1.xpose.msra.mxu0 0.0
  %2068 = vmatprep.subr.mxu0 0.0
  %2069 = vmatpush1.xpose.msra.mxu0 0.0
  %2070 = vmatprep.subr.mxu0 0.0
  %2071 = vmatpush1.xpose.msra.mxu0 0.0
  %2072 = vmatprep.subr.mxu0 0.0
  %2073 = vmatpush1.xpose.msra.mxu0 0.0
  %2074 = vmatprep.subr.mxu0 0.0
  %2075 = vmatpush1.xpose.msra.mxu0 0.0
  %2076 = vmatprep.subr.mxu0 0.0
  %2077 = vmatpush1.xpose.msra.mxu0 0.0
  %2078 = vmatprep.subr.mxu0 0.0
  %2079 = vmatpush1.xpose.msra.mxu0 0.0
  %2080 = vmatprep.subr.mxu0 0.0
  %2081 = vmatpush1.xpose.msra.mxu0 0.0
  %2082 = vmatprep.mubr.f32.mxu0 0.0
  %2083 = vmatmul.mubr.f32.gmra.mrb[0].mxu0 %v2014
  %v2084 = vpop.f32.mrb[0].mxu0
  %v2085 = vadd.f32 0.0, %v2084
  %v2086 = vpop.f32.mrb[0].mxu0
  %2087 = vdwg.mxu0
  %v2088 = vsel %vm238, %v1915, 0
  %v2090 = vsel %vm238, %v1929, 0
  %2092 = vmatprep.subr.mxu0 0.0
  %2093 = vmatpush1.xpose.msra.mxu0 %v2090
  %2094 = vmatprep.subr.mxu0 0.0
  %2095 = vmatpush1.xpose.msra.mxu0 0.0
  %2096 = vmatprep.subr.mxu0 0.0
  %2097 = vmatpush1.xpose.msra.mxu0 0.0
  %2098 = vmatprep.subr.mxu0 0.0
  %2099 = vmatpush1.xpose.msra.mxu0 0.0
  %2100 = vmatprep.subr.mxu0 0.0
  %2101 = vmatpush1.xpose.msra.mxu0 0.0
  %2102 = vmatprep.subr.mxu0 0.0
  %2103 = vmatpush1.xpose.msra.mxu0 0.0
  %2104 = vmatprep.subr.mxu0 0.0
  %2105 = vmatpush1.xpose.msra.mxu0 0.0
  %2106 = vmatprep.subr.mxu0 0.0
  %2107 = vmatpush1.xpose.msra.mxu0 0.0
  %2108 = vmatprep.subr.mxu0 0.0
  %2109 = vmatpush1.xpose.msra.mxu0 0.0
  %2110 = vmatprep.subr.mxu0 0.0
  %2111 = vmatpush1.xpose.msra.mxu0 0.0
  %2112 = vmatprep.subr.mxu0 0.0
  %2113 = vmatpush1.xpose.msra.mxu0 0.0
  %2114 = vmatprep.subr.mxu0 0.0
  %2115 = vmatpush1.xpose.msra.mxu0 0.0
  %2116 = vmatprep.subr.mxu0 0.0
  %2117 = vmatpush1.xpose.msra.mxu0 0.0
  %2118 = vmatprep.subr.mxu0 0.0
  %2119 = vmatpush1.xpose.msra.mxu0 0.0
  %2120 = vmatprep.subr.mxu0 0.0
  %2121 = vmatpush1.xpose.msra.mxu0 0.0
  %2122 = vmatprep.subr.mxu0 0.0
  %2123 = vmatpush1.xpose.msra.mxu0 0.0
  %2124 = vmatprep.subr.mxu0 0.0
  %2125 = vmatpush1.xpose.msra.mxu0 0.0
  %2126 = vmatprep.subr.mxu0 0.0
  %2127 = vmatpush1.xpose.msra.mxu0 0.0
  %2128 = vmatprep.subr.mxu0 0.0
  %2129 = vmatpush1.xpose.msra.mxu0 0.0
  %2130 = vmatprep.subr.mxu0 0.0
  %2131 = vmatpush1.xpose.msra.mxu0 0.0
  %2132 = vmatprep.subr.mxu0 0.0
  %2133 = vmatpush1.xpose.msra.mxu0 0.0
  %2134 = vmatprep.subr.mxu0 0.0
  %2135 = vmatpush1.xpose.msra.mxu0 0.0
  %2136 = vmatprep.subr.mxu0 0.0
  %2137 = vmatpush1.xpose.msra.mxu0 0.0
  %2138 = vmatprep.subr.mxu0 0.0
  %2139 = vmatpush1.xpose.msra.mxu0 0.0
  %2140 = vmatprep.subr.mxu0 0.0
  %2141 = vmatpush1.xpose.msra.mxu0 0.0
  %2142 = vmatprep.subr.mxu0 0.0
  %2143 = vmatpush1.xpose.msra.mxu0 0.0
  %2144 = vmatprep.subr.mxu0 0.0
  %2145 = vmatpush1.xpose.msra.mxu0 0.0
  %2146 = vmatprep.subr.mxu0 0.0
  %2147 = vmatpush1.xpose.msra.mxu0 0.0
  %2148 = vmatprep.subr.mxu0 0.0
  %2149 = vmatpush1.xpose.msra.mxu0 0.0
  %2150 = vmatprep.subr.mxu0 0.0
  %2151 = vmatpush1.xpose.msra.mxu0 0.0
  %2152 = vmatprep.subr.mxu0 0.0
  %2153 = vmatpush1.xpose.msra.mxu0 0.0
  %2154 = vmatprep.subr.mxu0 0.0
  %2155 = vmatpush1.xpose.msra.mxu0 0.0
  %2156 = vmatprep.mubr.f32.mxu0 0.0
  %2157 = vmatmul.mubr.f32.gmra.mrb[0].mxu0 %v2088
  %v2158 = vpop.f32.mrb[0].mxu0
  %v2159 = vadd.f32 0.0, %v2158
  %v2160 = vpop.f32.mrb[0].mxu0
  %2161 = vdwg.mxu0
  %v2162 = vsel %vm238, %v1917, 0
  %v2164 = vsel %vm238, %v1931, 0
  %2166 = vmatprep.subr.mxu0 0.0
  %2167 = vmatpush1.xpose.msra.mxu0 %v2164
  %2168 = vmatprep.subr.mxu0 0.0
  %2169 = vmatpush1.xpose.msra.mxu0 0.0
  %2170 = vmatprep.subr.mxu0 0.0
  %2171 = vmatpush1.xpose.msra.mxu0 0.0
  %2172 = vmatprep.subr.mxu0 0.0
  %2173 = vmatpush1.xpose.msra.mxu0 0.0
  %2174 = vmatprep.subr.mxu0 0.0
  %2175 = vmatpush1.xpose.msra.mxu0 0.0
  %2176 = vmatprep.subr.mxu0 0.0
  %2177 = vmatpush1.xpose.msra.mxu0 0.0
  %2178 = vmatprep.subr.mxu0 0.0
  %2179 = vmatpush1.xpose.msra.mxu0 0.0
  %2180 = vmatprep.subr.mxu0 0.0
  %2181 = vmatpush1.xpose.msra.mxu0 0.0
  %2182 = vmatprep.subr.mxu0 0.0
  %2183 = vmatpush1.xpose.msra.mxu0 0.0
  %2184 = vmatprep.subr.mxu0 0.0
  %2185 = vmatpush1.xpose.msra.mxu0 0.0
  %2186 = vmatprep.subr.mxu0 0.0
  %2187 = vmatpush1.xpose.msra.mxu0 0.0
  %2188 = vmatprep.subr.mxu0 0.0
  %2189 = vmatpush1.xpose.msra.mxu0 0.0
  %2190 = vmatprep.subr.mxu0 0.0
  %2191 = vmatpush1.xpose.msra.mxu0 0.0
  %2192 = vmatprep.subr.mxu0 0.0
  %2193 = vmatpush1.xpose.msra.mxu0 0.0
  %2194 = vmatprep.subr.mxu0 0.0
  %2195 = vmatpush1.xpose.msra.mxu0 0.0
  %2196 = vmatprep.subr.mxu0 0.0
  %2197 = vmatpush1.xpose.msra.mxu0 0.0
  %2198 = vmatprep.subr.mxu0 0.0
  %2199 = vmatpush1.xpose.msra.mxu0 0.0
  %2200 = vmatprep.subr.mxu0 0.0
  %2201 = vmatpush1.xpose.msra.mxu0 0.0
  %2202 = vmatprep.subr.mxu0 0.0
  %2203 = vmatpush1.xpose.msra.mxu0 0.0
  %2204 = vmatprep.subr.mxu0 0.0
  %2205 = vmatpush1.xpose.msra.mxu0 0.0
  %2206 = vmatprep.subr.mxu0 0.0
  %2207 = vmatpush1.xpose.msra.mxu0 0.0
  %2208 = vmatprep.subr.mxu0 0.0
  %2209 = vmatpush1.xpose.msra.mxu0 0.0
  %2210 = vmatprep.subr.mxu0 0.0
  %2211 = vmatpush1.xpose.msra.mxu0 0.0
  %2212 = vmatprep.subr.mxu0 0.0
  %2213 = vmatpush1.xpose.msra.mxu0 0.0
  %2214 = vmatprep.subr.mxu0 0.0
  %2215 = vmatpush1.xpose.msra.mxu0 0.0
  %2216 = vmatprep.subr.mxu0 0.0
  %2217 = vmatpush1.xpose.msra.mxu0 0.0
  %2218 = vmatprep.subr.mxu0 0.0
  %2219 = vmatpush1.xpose.msra.mxu0 0.0
  %2220 = vmatprep.subr.mxu0 0.0
  %2221 = vmatpush1.xpose.msra.mxu0 0.0
  %2222 = vmatprep.subr.mxu0 0.0
  %2223 = vmatpush1.xpose.msra.mxu0 0.0
  %2224 = vmatprep.subr.mxu0 0.0
  %2225 = vmatpush1.xpose.msra.mxu0 0.0
  %2226 = vmatprep.subr.mxu0 0.0
  %2227 = vmatpush1.xpose.msra.mxu0 0.0
  %2228 = vmatprep.subr.mxu0 0.0
  %2229 = vmatpush1.xpose.msra.mxu0 0.0
  %2230 = vmatprep.mubr.f32.mxu0 0.0
  %2231 = vmatmul.mubr.f32.gmra.mrb[0].mxu0 %v2162
  %v2232 = vpop.f32.mrb[0].mxu0
  %v2233 = vadd.f32 0.0, %v2232
  %v2234 = vpop.f32.mrb[0].mxu0
  %2235 = vdwg.mxu0
  %v2236 = vsel %vm238, %v1919, 0
  %v2238 = vsel %vm238, %v1933, 0
  %2240 = vmatprep.subr.mxu0 0.0
  %2241 = vmatpush1.xpose.msra.mxu0 %v2238
  %2242 = vmatprep.subr.mxu0 0.0
  %2243 = vmatpush1.xpose.msra.mxu0 0.0
  %2244 = vmatprep.subr.mxu0 0.0
  %2245 = vmatpush1.xpose.msra.mxu0 0.0
  %2246 = vmatprep.subr.mxu0 0.0
  %2247 = vmatpush1.xpose.msra.mxu0 0.0
  %2248 = vmatprep.subr.mxu0 0.0
  %2249 = vmatpush1.xpose.msra.mxu0 0.0
  %2250 = vmatprep.subr.mxu0 0.0
  %2251 = vmatpush1.xpose.msra.mxu0 0.0
  %2252 = vmatprep.subr.mxu0 0.0
  %2253 = vmatpush1.xpose.msra.mxu0 0.0
  %2254 = vmatprep.subr.mxu0 0.0
  %2255 = vmatpush1.xpose.msra.mxu0 0.0
  %2256 = vmatprep.subr.mxu0 0.0
  %2257 = vmatpush1.xpose.msra.mxu0 0.0
  %2258 = vmatprep.subr.mxu0 0.0
  %2259 = vmatpush1.xpose.msra.mxu0 0.0
  %2260 = vmatprep.subr.mxu0 0.0
  %2261 = vmatpush1.xpose.msra.mxu0 0.0
  %2262 = vmatprep.subr.mxu0 0.0
  %2263 = vmatpush1.xpose.msra.mxu0 0.0
  %2264 = vmatprep.subr.mxu0 0.0
  %2265 = vmatpush1.xpose.msra.mxu0 0.0
  %2266 = vmatprep.subr.mxu0 0.0
  %2267 = vmatpush1.xpose.msra.mxu0 0.0
  %2268 = vmatprep.subr.mxu0 0.0
  %2269 = vmatpush1.xpose.msra.mxu0 0.0
  %2270 = vmatprep.subr.mxu0 0.0
  %2271 = vmatpush1.xpose.msra.mxu0 0.0
  %2272 = vmatprep.subr.mxu0 0.0
  %2273 = vmatpush1.xpose.msra.mxu0 0.0
  %2274 = vmatprep.subr.mxu0 0.0
  %2275 = vmatpush1.xpose.msra.mxu0 0.0
  %2276 = vmatprep.subr.mxu0 0.0
  %2277 = vmatpush1.xpose.msra.mxu0 0.0
  %2278 = vmatprep.subr.mxu0 0.0
  %2279 = vmatpush1.xpose.msra.mxu0 0.0
  %2280 = vmatprep.subr.mxu0 0.0
  %2281 = vmatpush1.xpose.msra.mxu0 0.0
  %2282 = vmatprep.subr.mxu0 0.0
  %2283 = vmatpush1.xpose.msra.mxu0 0.0
  %2284 = vmatprep.subr.mxu0 0.0
  %2285 = vmatpush1.xpose.msra.mxu0 0.0
  %2286 = vmatprep.subr.mxu0 0.0
  %2287 = vmatpush1.xpose.msra.mxu0 0.0
  %2288 = vmatprep.subr.mxu0 0.0
  %2289 = vmatpush1.xpose.msra.mxu0 0.0
  %2290 = vmatprep.subr.mxu0 0.0
  %2291 = vmatpush1.xpose.msra.mxu0 0.0
  %2292 = vmatprep.subr.mxu0 0.0
  %2293 = vmatpush1.xpose.msra.mxu0 0.0
  %2294 = vmatprep.subr.mxu0 0.0
  %2295 = vmatpush1.xpose.msra.mxu0 0.0
  %2296 = vmatprep.subr.mxu0 0.0
  %2297 = vmatpush1.xpose.msra.mxu0 0.0
  %2298 = vmatprep.subr.mxu0 0.0
  %2299 = vmatpush1.xpose.msra.mxu0 0.0
  %2300 = vmatprep.subr.mxu0 0.0
  %2301 = vmatpush1.xpose.msra.mxu0 0.0
  %2302 = vmatprep.subr.mxu0 0.0
  %2303 = vmatpush1.xpose.msra.mxu0 0.0
  %2304 = vmatprep.mubr.f32.mxu0 0.0
  %2305 = vmatmul.mubr.f32.gmra.mrb[0].mxu0 %v2236
  %v2306 = vpop.f32.mrb[0].mxu0
  %v2307 = vadd.f32 0.0, %v2306
  %v2308 = vpop.f32.mrb[0].mxu0
  %2309 = vdwg.mxu0
  %v2310 = vsel %vm238, %v1921, 0
  %v2312 = vsel %vm238, %v1935, 0
  %2314 = vmatprep.subr.mxu0 0.0
  %2315 = vmatpush1.xpose.msra.mxu0 %v2312
  %2316 = vmatprep.subr.mxu0 0.0
  %2317 = vmatpush1.xpose.msra.mxu0 0.0
  %2318 = vmatprep.subr.mxu0 0.0
  %2319 = vmatpush1.xpose.msra.mxu0 0.0
  %2320 = vmatprep.subr.mxu0 0.0
  %2321 = vmatpush1.xpose.msra.mxu0 0.0
  %2322 = vmatprep.subr.mxu0 0.0
  %2323 = vmatpush1.xpose.msra.mxu0 0.0
  %2324 = vmatprep.subr.mxu0 0.0
  %2325 = vmatpush1.xpose.msra.mxu0 0.0
  %2326 = vmatprep.subr.mxu0 0.0
  %2327 = vmatpush1.xpose.msra.mxu0 0.0
  %2328 = vmatprep.subr.mxu0 0.0
  %2329 = vmatpush1.xpose.msra.mxu0 0.0
  %2330 = vmatprep.subr.mxu0 0.0
  %2331 = vmatpush1.xpose.msra.mxu0 0.0
  %2332 = vmatprep.subr.mxu0 0.0
  %2333 = vmatpush1.xpose.msra.mxu0 0.0
  %2334 = vmatprep.subr.mxu0 0.0
  %2335 = vmatpush1.xpose.msra.mxu0 0.0
  %2336 = vmatprep.subr.mxu0 0.0
  %2337 = vmatpush1.xpose.msra.mxu0 0.0
  %2338 = vmatprep.subr.mxu0 0.0
  %2339 = vmatpush1.xpose.msra.mxu0 0.0
  %2340 = vmatprep.subr.mxu0 0.0
  %2341 = vmatpush1.xpose.msra.mxu0 0.0
  %2342 = vmatprep.subr.mxu0 0.0
  %2343 = vmatpush1.xpose.msra.mxu0 0.0
  %2344 = vmatprep.subr.mxu0 0.0
  %2345 = vmatpush1.xpose.msra.mxu0 0.0
  %2346 = vmatprep.subr.mxu0 0.0
  %2347 = vmatpush1.xpose.msra.mxu0 0.0
  %2348 = vmatprep.subr.mxu0 0.0
  %2349 = vmatpush1.xpose.msra.mxu0 0.0
  %2350 = vmatprep.subr.mxu0 0.0
  %2351 = vmatpush1.xpose.msra.mxu0 0.0
  %2352 = vmatprep.subr.mxu0 0.0
  %2353 = vmatpush1.xpose.msra.mxu0 0.0
  %2354 = vmatprep.subr.mxu0 0.0
  %2355 = vmatpush1.xpose.msra.mxu0 0.0
  %2356 = vmatprep.subr.mxu0 0.0
  %2357 = vmatpush1.xpose.msra.mxu0 0.0
  %2358 = vmatprep.subr.mxu0 0.0
  %2359 = vmatpush1.xpose.msra.mxu0 0.0
  %2360 = vmatprep.subr.mxu0 0.0
  %2361 = vmatpush1.xpose.msra.mxu0 0.0
  %2362 = vmatprep.subr.mxu0 0.0
  %2363 = vmatpush1.xpose.msra.mxu0 0.0
  %2364 = vmatprep.subr.mxu0 0.0
  %2365 = vmatpush1.xpose.msra.mxu0 0.0
  %2366 = vmatprep.subr.mxu0 0.0
  %2367 = vmatpush1.xpose.msra.mxu0 0.0
  %2368 = vmatprep.subr.mxu0 0.0
  %2369 = vmatpush1.xpose.msra.mxu0 0.0
  %2370 = vmatprep.subr.mxu0 0.0
  %2371 = vmatpush1.xpose.msra.mxu0 0.0
  %2372 = vmatprep.subr.mxu0 0.0
  %2373 = vmatpush1.xpose.msra.mxu0 0.0
  %2374 = vmatprep.subr.mxu0 0.0
  %2375 = vmatpush1.xpose.msra.mxu0 0.0
  %2376 = vmatprep.subr.mxu0 0.0
  %2377 = vmatpush1.xpose.msra.mxu0 0.0
  %2378 = vmatprep.mubr.f32.mxu0 0.0
  %2379 = vmatmul.mubr.f32.gmra.mrb[0].mxu0 %v2310
  %v2380 = vpop.f32.mrb[0].mxu0
  %v2381 = vadd.f32 0.0, %v2380
  %v2382 = vpop.f32.mrb[0].mxu0
  %2383 = vdwg.mxu0
  %v2384 = vsel %vm238, %v1923, 0
  %v2386 = vsel %vm238, %v1937, 0
  %2388 = vmatprep.subr.mxu0 0.0
  %2389 = vmatpush1.xpose.msra.mxu0 %v2386
  %2390 = vmatprep.subr.mxu0 0.0
  %2391 = vmatpush1.xpose.msra.mxu0 0.0
  %2392 = vmatprep.subr.mxu0 0.0
  %2393 = vmatpush1.xpose.msra.mxu0 0.0
  %2394 = vmatprep.subr.mxu0 0.0
  %2395 = vmatpush1.xpose.msra.mxu0 0.0
  %2396 = vmatprep.subr.mxu0 0.0
  %2397 = vmatpush1.xpose.msra.mxu0 0.0
  %2398 = vmatprep.subr.mxu0 0.0
  %2399 = vmatpush1.xpose.msra.mxu0 0.0
  %2400 = vmatprep.subr.mxu0 0.0
  %2401 = vmatpush1.xpose.msra.mxu0 0.0
  %2402 = vmatprep.subr.mxu0 0.0
  %2403 = vmatpush1.xpose.msra.mxu0 0.0
  %2404 = vmatprep.subr.mxu0 0.0
  %2405 = vmatpush1.xpose.msra.mxu0 0.0
  %2406 = vmatprep.subr.mxu0 0.0
  %2407 = vmatpush1.xpose.msra.mxu0 0.0
  %2408 = vmatprep.subr.mxu0 0.0
  %2409 = vmatpush1.xpose.msra.mxu0 0.0
  %2410 = vmatprep.subr.mxu0 0.0
  %2411 = vmatpush1.xpose.msra.mxu0 0.0
  %2412 = vmatprep.subr.mxu0 0.0
  %2413 = vmatpush1.xpose.msra.mxu0 0.0
  %2414 = vmatprep.subr.mxu0 0.0
  %2415 = vmatpush1.xpose.msra.mxu0 0.0
  %2416 = vmatprep.subr.mxu0 0.0
  %2417 = vmatpush1.xpose.msra.mxu0 0.0
  %2418 = vmatprep.subr.mxu0 0.0
  %2419 = vmatpush1.xpose.msra.mxu0 0.0
  %2420 = vmatprep.subr.mxu0 0.0
  %2421 = vmatpush1.xpose.msra.mxu0 0.0
  %2422 = vmatprep.subr.mxu0 0.0
  %2423 = vmatpush1.xpose.msra.mxu0 0.0
  %2424 = vmatprep.subr.mxu0 0.0
  %2425 = vmatpush1.xpose.msra.mxu0 0.0
  %2426 = vmatprep.subr.mxu0 0.0
  %2427 = vmatpush1.xpose.msra.mxu0 0.0
  %2428 = vmatprep.subr.mxu0 0.0
  %2429 = vmatpush1.xpose.msra.mxu0 0.0
  %2430 = vmatprep.subr.mxu0 0.0
  %2431 = vmatpush1.xpose.msra.mxu0 0.0
  %2432 = vmatprep.subr.mxu0 0.0
  %2433 = vmatpush1.xpose.msra.mxu0 0.0
  %2434 = vmatprep.subr.mxu0 0.0
  %2435 = vmatpush1.xpose.msra.mxu0 0.0
  %2436 = vmatprep.subr.mxu0 0.0
  %2437 = vmatpush1.xpose.msra.mxu0 0.0
  %2438 = vmatprep.subr.mxu0 0.0
  %2439 = vmatpush1.xpose.msra.mxu0 0.0
  %2440 = vmatprep.subr.mxu0 0.0
  %2441 = vmatpush1.xpose.msra.mxu0 0.0
  %2442 = vmatprep.subr.mxu0 0.0
  %2443 = vmatpush1.xpose.msra.mxu0 0.0
  %2444 = vmatprep.subr.mxu0 0.0
  %2445 = vmatpush1.xpose.msra.mxu0 0.0
  %2446 = vmatprep.subr.mxu0 0.0
  %2447 = vmatpush1.xpose.msra.mxu0 0.0
  %2448 = vmatprep.subr.mxu0 0.0
  %2449 = vmatpush1.xpose.msra.mxu0 0.0
  %2450 = vmatprep.subr.mxu0 0.0
  %2451 = vmatpush1.xpose.msra.mxu0 0.0
  %2452 = vmatprep.mubr.f32.mxu0 0.0
  %2453 = vmatmul.mubr.f32.gmra.mrb[0].mxu0 %v2384
  %v2454 = vpop.f32.mrb[0].mxu0
  %v2455 = vadd.f32 0.0, %v2454
  %v2456 = vpop.f32.mrb[0].mxu0
  %2457 = vdwg.mxu0
  %v2458 = vsel %vm238, %v1925, 0
  %v2460 = vsel %vm238, %v1939, 0
  %2462 = vmatprep.subr.mxu0 0.0
  %2463 = vmatpush1.xpose.msra.mxu0 %v2460
  %2464 = vmatprep.subr.mxu0 0.0
  %2465 = vmatpush1.xpose.msra.mxu0 0.0
  %2466 = vmatprep.subr.mxu0 0.0
  %2467 = vmatpush1.xpose.msra.mxu0 0.0
  %2468 = vmatprep.subr.mxu0 0.0
  %2469 = vmatpush1.xpose.msra.mxu0 0.0
  %2470 = vmatprep.subr.mxu0 0.0
  %2471 = vmatpush1.xpose.msra.mxu0 0.0
  %2472 = vmatprep.subr.mxu0 0.0
  %2473 = vmatpush1.xpose.msra.mxu0 0.0
  %2474 = vmatprep.subr.mxu0 0.0
  %2475 = vmatpush1.xpose.msra.mxu0 0.0
  %2476 = vmatprep.subr.mxu0 0.0
  %2477 = vmatpush1.xpose.msra.mxu0 0.0
  %2478 = vmatprep.subr.mxu0 0.0
  %2479 = vmatpush1.xpose.msra.mxu0 0.0
  %2480 = vmatprep.subr.mxu0 0.0
  %2481 = vmatpush1.xpose.msra.mxu0 0.0
  %2482 = vmatprep.subr.mxu0 0.0
  %2483 = vmatpush1.xpose.msra.mxu0 0.0
  %2484 = vmatprep.subr.mxu0 0.0
  %2485 = vmatpush1.xpose.msra.mxu0 0.0
  %2486 = vmatprep.subr.mxu0 0.0
  %2487 = vmatpush1.xpose.msra.mxu0 0.0
  %2488 = vmatprep.subr.mxu0 0.0
  %2489 = vmatpush1.xpose.msra.mxu0 0.0
  %2490 = vmatprep.subr.mxu0 0.0
  %2491 = vmatpush1.xpose.msra.mxu0 0.0
  %2492 = vmatprep.subr.mxu0 0.0
  %2493 = vmatpush1.xpose.msra.mxu0 0.0
  %2494 = vmatprep.subr.mxu0 0.0
  %2495 = vmatpush1.xpose.msra.mxu0 0.0
  %2496 = vmatprep.subr.mxu0 0.0
  %2497 = vmatpush1.xpose.msra.mxu0 0.0
  %2498 = vmatprep.subr.mxu0 0.0
  %2499 = vmatpush1.xpose.msra.mxu0 0.0
  %2500 = vmatprep.subr.mxu0 0.0
  %2501 = vmatpush1.xpose.msra.mxu0 0.0
  %2502 = vmatprep.subr.mxu0 0.0
  %2503 = vmatpush1.xpose.msra.mxu0 0.0
  %2504 = vmatprep.subr.mxu0 0.0
  %2505 = vmatpush1.xpose.msra.mxu0 0.0
  %2506 = vmatprep.subr.mxu0 0.0
  %2507 = vmatpush1.xpose.msra.mxu0 0.0
  %2508 = vmatprep.subr.mxu0 0.0
  %2509 = vmatpush1.xpose.msra.mxu0 0.0
  %2510 = vmatprep.subr.mxu0 0.0
  %2511 = vmatpush1.xpose.msra.mxu0 0.0
  %2512 = vmatprep.subr.mxu0 0.0
  %2513 = vmatpush1.xpose.msra.mxu0 0.0
  %2514 = vmatprep.subr.mxu0 0.0
  %2515 = vmatpush1.xpose.msra.mxu0 0.0
  %2516 = vmatprep.subr.mxu0 0.0
  %2517 = vmatpush1.xpose.msra.mxu0 0.0
  %2518 = vmatprep.subr.mxu0 0.0
  %2519 = vmatpush1.xpose.msra.mxu0 0.0
  %2520 = vmatprep.subr.mxu0 0.0
  %2521 = vmatpush1.xpose.msra.mxu0 0.0
  %2522 = vmatprep.subr.mxu0 0.0
  %2523 = vmatpush1.xpose.msra.mxu0 0.0
  %2524 = vmatprep.subr.mxu0 0.0
  %2525 = vmatpush1.xpose.msra.mxu0 0.0
  %2526 = vmatprep.mubr.f32.mxu0 0.0
  %2527 = vmatmul.mubr.f32.gmra.mrb[0].mxu0 %v2458
  %v2528 = vpop.f32.mrb[0].mxu0
  %v2529 = vadd.f32 0.0, %v2528
  %v2530 = vpop.f32.mrb[0].mxu0
  %2531 = vdwg.mxu0
  %v2532 = vmul.f32 %v2011, 0.35355338
  %v2533 = vmul.f32 %v2085, 0.35355338
  %v2534 = vmul.f32 %v2159, 0.35355338
  %v2535 = vmul.f32 %v2233, 0.35355338
  %v2536 = vmul.f32 %v2307, 0.35355338
  %v2537 = vmul.f32 %v2381, 0.35355338
  %v2538 = vmul.f32 %v2455, 0.35355338
  %v2539 = vmul.f32 %v2529, 0.35355338
  %v2540 = vsel %vm238, %v2532, -inf
  %2541 = vmax.xlane.f32.xlu0 %v2540
  %v2542 = vpop.xlane.xlu0 %2541
  %v2543 = vsel %vm238, %v2533, -inf
  %2544 = vmax.xlane.f32.xlu0 %v2543
  %v2545 = vpop.xlane.xlu0 %2544
  %v2546 = vsel %vm238, %v2534, -inf
  %2547 = vmax.xlane.f32.xlu0 %v2546
  %v2548 = vpop.xlane.xlu0 %2547
  %v2549 = vsel %vm238, %v2535, -inf
  %2550 = vmax.xlane.f32.xlu0 %v2549
  %v2551 = vpop.xlane.xlu0 %2550
  %v2552 = vsel %vm238, %v2536, -inf
  %2553 = vmax.xlane.f32.xlu0 %v2552
  %v2554 = vpop.xlane.xlu0 %2553
  %v2555 = vsel %vm238, %v2537, -inf
  %2556 = vmax.xlane.f32.xlu0 %v2555
  %v2557 = vpop.xlane.xlu0 %2556
  %v2558 = vsel %vm238, %v2538, -inf
  %2559 = vmax.xlane.f32.xlu0 %v2558
  %v2560 = vpop.xlane.xlu0 %2559
  %v2561 = vsel %vm238, %v2539, -inf
  %2562 = vmax.xlane.f32.xlu0 %v2561
  %v2563 = vpop.xlane.xlu0 %2562
  %v2564 = vsub.f32 %v2532, %v2542
  %v2565 = vsub.f32 %v2533, %v2545
  %v2566 = vsub.f32 %v2534, %v2548
  %v2567 = vsub.f32 %v2535, %v2551
  %v2568 = vsub.f32 %v2536, %v2554
  %v2569 = vsub.f32 %v2537, %v2557
  %v2570 = vsub.f32 %v2538, %v2560
  %v2571 = vsub.f32 %v2539, %v2563
  %v2572 = vmul.f32 %v2564, 1.442695
  %v2573 = vpow.pop %v2572
  %v2574 = vmul.f32 %v2565, 1.442695
  %v2575 = vpow.pop %v2574
  %v2576 = vmul.f32 %v2566, 1.442695
  %v2577 = vpow.pop %v2576
  %v2578 = vmul.f32 %v2567, 1.442695
  %v2579 = vpow.pop %v2578
  %v2580 = vmul.f32 %v2568, 1.442695
  %v2581 = vpow.pop %v2580
  %v2582 = vmul.f32 %v2569, 1.442695
  %v2583 = vpow.pop %v2582
  %v2584 = vmul.f32 %v2570, 1.442695
  %v2585 = vpow.pop %v2584
  %v2586 = vmul.f32 %v2571, 1.442695
  %v2587 = vpow.pop %v2586
  %v2588 = vsel %vm238, %v2573, 0.0
  %2589 = vadd.xlane.f32.xlu0 %v2588
  %v2590 = vpop.xlane.xlu0 %2589
  %v2591 = vsel %vm238, %v2575, 0.0
  %2592 = vadd.xlane.f32.xlu0 %v2591
  %v2593 = vpop.xlane.xlu0 %2592
  %v2594 = vsel %vm238, %v2577, 0.0
  %2595 = vadd.xlane.f32.xlu0 %v2594
  %v2596 = vpop.xlane.xlu0 %2595
  %v2597 = vsel %vm238, %v2579, 0.0
  %2598 = vadd.xlane.f32.xlu0 %v2597
  %v2599 = vpop.xlane.xlu0 %2598
  %v2600 = vsel %vm238, %v2581, 0.0
  %2601 = vadd.xlane.f32.xlu0 %v2600
  %v2602 = vpop.xlane.xlu0 %2601
  %v2603 = vsel %vm238, %v2583, 0.0
  %2604 = vadd.xlane.f32.xlu0 %v2603
  %v2605 = vpop.xlane.xlu0 %2604
  %v2606 = vsel %vm238, %v2585, 0.0
  %2607 = vadd.xlane.f32.xlu0 %v2606
  %v2608 = vpop.xlane.xlu0 %2607
  %v2609 = vsel %vm238, %v2587, 0.0
  %2610 = vadd.xlane.f32.xlu0 %v2609
  %v2611 = vpop.xlane.xlu0 %2610
  %v2612 = vrcp.pop %v2590
  %v2613 = vrcp.pop %v2593
  %v2614 = vrcp.pop %v2596
  %v2615 = vrcp.pop %v2599
  %v2616 = vrcp.pop %v2602
  %v2617 = vrcp.pop %v2605
  %v2618 = vrcp.pop %v2608
  %v2619 = vrcp.pop %v2611
  %v2620 = vmul.f32 %v2573, %v2612
  %v2621 = vmul.f32 %v2575, %v2613
  %v2622 = vmul.f32 %v2577, %v2614
  %v2623 = vmul.f32 %v2579, %v2615
  %v2624 = vmul.f32 %v2581, %v2616
  %v2625 = vmul.f32 %v2583, %v2617
  %v2626 = vmul.f32 %v2585, %v2618
  %v2627 = vmul.f32 %v2587, %v2619
  %2628 = vrot.lane.b32.xlu0 %v1899, 96
  %v2629 = vpop.permute.xlu0 %2628
  %v2632 = vsel %vm238, %v2620, 0
  %2634 = vmatprep.subr.mxu0 0.0
  %2635 = vmatpush1.msra.mxu0 %v2629
  %2636 = vmatprep.subr.mxu0 0.0
  %2637 = vmatpush1.msra.mxu0 0.0
  %2638 = vmatprep.subr.mxu0 0.0
  %2639 = vmatpush1.msra.mxu0 0.0
  %2640 = vmatprep.subr.mxu0 0.0
  %2641 = vmatpush1.msra.mxu0 0.0
  %2642 = vmatprep.subr.mxu0 0.0
  %2643 = vmatpush1.msra.mxu0 0.0
  %2644 = vmatprep.subr.mxu0 0.0
  %2645 = vmatpush1.msra.mxu0 0.0
  %2646 = vmatprep.subr.mxu0 0.0
  %2647 = vmatpush1.msra.mxu0 0.0
  %2648 = vmatprep.subr.mxu0 0.0
  %2649 = vmatpush1.msra.mxu0 0.0
  %2650 = vmatprep.subr.mxu0 0.0
  %2651 = vmatpush1.msra.mxu0 0.0
  %2652 = vmatprep.subr.mxu0 0.0
  %2653 = vmatpush1.msra.mxu0 0.0
  %2654 = vmatprep.subr.mxu0 0.0
  %2655 = vmatpush1.msra.mxu0 0.0
  %2656 = vmatprep.subr.mxu0 0.0
  %2657 = vmatpush1.msra.mxu0 0.0
  %2658 = vmatprep.subr.mxu0 0.0
  %2659 = vmatpush1.msra.mxu0 0.0
  %2660 = vmatprep.subr.mxu0 0.0
  %2661 = vmatpush1.msra.mxu0 0.0
  %2662 = vmatprep.subr.mxu0 0.0
  %2663 = vmatpush1.msra.mxu0 0.0
  %2664 = vmatprep.subr.mxu0 0.0
  %2665 = vmatpush1.msra.mxu0 0.0
  %2666 = vmatprep.subr.mxu0 0.0
  %2667 = vmatpush1.msra.mxu0 0.0
  %2668 = vmatprep.subr.mxu0 0.0
  %2669 = vmatpush1.msra.mxu0 0.0
  %2670 = vmatprep.subr.mxu0 0.0
  %2671 = vmatpush1.msra.mxu0 0.0
  %2672 = vmatprep.subr.mxu0 0.0
  %2673 = vmatpush1.msra.mxu0 0.0
  %2674 = vmatprep.subr.mxu0 0.0
  %2675 = vmatpush1.msra.mxu0 0.0
  %2676 = vmatprep.subr.mxu0 0.0
  %2677 = vmatpush1.msra.mxu0 0.0
  %2678 = vmatprep.subr.mxu0 0.0
  %2679 = vmatpush1.msra.mxu0 0.0
  %2680 = vmatprep.subr.mxu0 0.0
  %2681 = vmatpush1.msra.mxu0 0.0
  %2682 = vmatprep.subr.mxu0 0.0
  %2683 = vmatpush1.msra.mxu0 0.0
  %2684 = vmatprep.subr.mxu0 0.0
  %2685 = vmatpush1.msra.mxu0 0.0
  %2686 = vmatprep.subr.mxu0 0.0
  %2687 = vmatpush1.msra.mxu0 0.0
  %2688 = vmatprep.subr.mxu0 0.0
  %2689 = vmatpush1.msra.mxu0 0.0
  %2690 = vmatprep.subr.mxu0 0.0
  %2691 = vmatpush1.msra.mxu0 0.0
  %2692 = vmatprep.subr.mxu0 0.0
  %2693 = vmatpush1.msra.mxu0 0.0
  %2694 = vmatprep.subr.mxu0 0.0
  %2695 = vmatpush1.msra.mxu0 0.0
  %2696 = vmatprep.subr.mxu0 0.0
  %2697 = vmatpush1.msra.mxu0 0.0
  %2698 = vmatprep.mubr.f32.mxu0 0.0
  %2699 = vmatmul.mubr.f32.gmra.mrb[0].mxu0 %v2632
  %v2700 = vpop.f32.mrb[0].mxu0
  %v2701 = vadd.f32 0.0, %v2700
  %v2702 = vpop.f32.mrb[0].mxu0
  %2703 = vdwg.mxu0
  %2704 = vrot.lane.b32.xlu0 %v1904, 96
  %v2705 = vpop.permute.xlu0 %2704
  %v2708 = vsel %vm238, %v2621, 0
  %2710 = vmatprep.subr.mxu0 0.0
  %2711 = vmatpush1.msra.mxu0 %v2705
  %2712 = vmatprep.subr.mxu0 0.0
  %2713 = vmatpush1.msra.mxu0 0.0
  %2714 = vmatprep.subr.mxu0 0.0
  %2715 = vmatpush1.msra.mxu0 0.0
  %2716 = vmatprep.subr.mxu0 0.0
  %2717 = vmatpush1.msra.mxu0 0.0
  %2718 = vmatprep.subr.mxu0 0.0
  %2719 = vmatpush1.msra.mxu0 0.0
  %2720 = vmatprep.subr.mxu0 0.0
  %2721 = vmatpush1.msra.mxu0 0.0
  %2722 = vmatprep.subr.mxu0 0.0
  %2723 = vmatpush1.msra.mxu0 0.0
  %2724 = vmatprep.subr.mxu0 0.0
  %2725 = vmatpush1.msra.mxu0 0.0
  %2726 = vmatprep.subr.mxu0 0.0
  %2727 = vmatpush1.msra.mxu0 0.0
  %2728 = vmatprep.subr.mxu0 0.0
  %2729 = vmatpush1.msra.mxu0 0.0
  %2730 = vmatprep.subr.mxu0 0.0
  %2731 = vmatpush1.msra.mxu0 0.0
  %2732 = vmatprep.subr.mxu0 0.0
  %2733 = vmatpush1.msra.mxu0 0.0
  %2734 = vmatprep.subr.mxu0 0.0
  %2735 = vmatpush1.msra.mxu0 0.0
  %2736 = vmatprep.subr.mxu0 0.0
  %2737 = vmatpush1.msra.mxu0 0.0
  %2738 = vmatprep.subr.mxu0 0.0
  %2739 = vmatpush1.msra.mxu0 0.0
  %2740 = vmatprep.subr.mxu0 0.0
  %2741 = vmatpush1.msra.mxu0 0.0
  %2742 = vmatprep.subr.mxu0 0.0
  %2743 = vmatpush1.msra.mxu0 0.0
  %2744 = vmatprep.subr.mxu0 0.0
  %2745 = vmatpush1.msra.mxu0 0.0
  %2746 = vmatprep.subr.mxu0 0.0
  %2747 = vmatpush1.msra.mxu0 0.0
  %2748 = vmatprep.subr.mxu0 0.0
  %2749 = vmatpush1.msra.mxu0 0.0
  %2750 = vmatprep.subr.mxu0 0.0
  %2751 = vmatpush1.msra.mxu0 0.0
  %2752 = vmatprep.subr.mxu0 0.0
  %2753 = vmatpush1.msra.mxu0 0.0
  %2754 = vmatprep.subr.mxu0 0.0
  %2755 = vmatpush1.msra.mxu0 0.0
  %2756 = vmatprep.subr.mxu0 0.0
  %2757 = vmatpush1.msra.mxu0 0.0
  %2758 = vmatprep.subr.mxu0 0.0
  %2759 = vmatpush1.msra.mxu0 0.0
  %2760 = vmatprep.subr.mxu0 0.0
  %2761 = vmatpush1.msra.mxu0 0.0
  %2762 = vmatprep.subr.mxu0 0.0
  %2763 = vmatpush1.msra.mxu0 0.0
  %2764 = vmatprep.subr.mxu0 0.0
  %2765 = vmatpush1.msra.mxu0 0.0
  %2766 = vmatprep.subr.mxu0 0.0
  %2767 = vmatpush1.msra.mxu0 0.0
  %2768 = vmatprep.subr.mxu0 0.0
  %2769 = vmatpush1.msra.mxu0 0.0
  %2770 = vmatprep.subr.mxu0 0.0
  %2771 = vmatpush1.msra.mxu0 0.0
  %2772 = vmatprep.subr.mxu0 0.0
  %2773 = vmatpush1.msra.mxu0 0.0
  %2774 = vmatprep.mubr.f32.mxu0 0.0
  %2775 = vmatmul.mubr.f32.gmra.mrb[0].mxu0 %v2708
  %v2776 = vpop.f32.mrb[0].mxu0
  %v2777 = vadd.f32 0.0, %v2776
  %v2778 = vpop.f32.mrb[0].mxu0
  %2779 = vdwg.mxu0
  %2780 = vrot.lane.b32.xlu0 %v1929, 96
  %v2781 = vpop.permute.xlu0 %2780
  %v2784 = vsel %vm238, %v2622, 0
  %2786 = vmatprep.subr.mxu0 0.0
  %2787 = vmatpush1.msra.mxu0 %v2781
  %2788 = vmatprep.subr.mxu0 0.0
  %2789 = vmatpush1.msra.mxu0 0.0
  %2790 = vmatprep.subr.mxu0 0.0
  %2791 = vmatpush1.msra.mxu0 0.0
  %2792 = vmatprep.subr.mxu0 0.0
  %2793 = vmatpush1.msra.mxu0 0.0
  %2794 = vmatprep.subr.mxu0 0.0
  %2795 = vmatpush1.msra.mxu0 0.0
  %2796 = vmatprep.subr.mxu0 0.0
  %2797 = vmatpush1.msra.mxu0 0.0
  %2798 = vmatprep.subr.mxu0 0.0
  %2799 = vmatpush1.msra.mxu0 0.0
  %2800 = vmatprep.subr.mxu0 0.0
  %2801 = vmatpush1.msra.mxu0 0.0
  %2802 = vmatprep.subr.mxu0 0.0
  %2803 = vmatpush1.msra.mxu0 0.0
  %2804 = vmatprep.subr.mxu0 0.0
  %2805 = vmatpush1.msra.mxu0 0.0
  %2806 = vmatprep.subr.mxu0 0.0
  %2807 = vmatpush1.msra.mxu0 0.0
  %2808 = vmatprep.subr.mxu0 0.0
  %2809 = vmatpush1.msra.mxu0 0.0
  %2810 = vmatprep.subr.mxu0 0.0
  %2811 = vmatpush1.msra.mxu0 0.0
  %2812 = vmatprep.subr.mxu0 0.0
  %2813 = vmatpush1.msra.mxu0 0.0
  %2814 = vmatprep.subr.mxu0 0.0
  %2815 = vmatpush1.msra.mxu0 0.0
  %2816 = vmatprep.subr.mxu0 0.0
  %2817 = vmatpush1.msra.mxu0 0.0
  %2818 = vmatprep.subr.mxu0 0.0
  %2819 = vmatpush1.msra.mxu0 0.0
  %2820 = vmatprep.subr.mxu0 0.0
  %2821 = vmatpush1.msra.mxu0 0.0
  %2822 = vmatprep.subr.mxu0 0.0
  %2823 = vmatpush1.msra.mxu0 0.0
  %2824 = vmatprep.subr.mxu0 0.0
  %2825 = vmatpush1.msra.mxu0 0.0
  %2826 = vmatprep.subr.mxu0 0.0
  %2827 = vmatpush1.msra.mxu0 0.0
  %2828 = vmatprep.subr.mxu0 0.0
  %2829 = vmatpush1.msra.mxu0 0.0
  %2830 = vmatprep.subr.mxu0 0.0
  %2831 = vmatpush1.msra.mxu0 0.0
  %2832 = vmatprep.subr.mxu0 0.0
  %2833 = vmatpush1.msra.mxu0 0.0
  %2834 = vmatprep.subr.mxu0 0.0
  %2835 = vmatpush1.msra.mxu0 0.0
  %2836 = vmatprep.subr.mxu0 0.0
  %2837 = vmatpush1.msra.mxu0 0.0
  %2838 = vmatprep.subr.mxu0 0.0
  %2839 = vmatpush1.msra.mxu0 0.0
  %2840 = vmatprep.subr.mxu0 0.0
  %2841 = vmatpush1.msra.mxu0 0.0
  %2842 = vmatprep.subr.mxu0 0.0
  %2843 = vmatpush1.msra.mxu0 0.0
  %2844 = vmatprep.subr.mxu0 0.0
  %2845 = vmatpush1.msra.mxu0 0.0
  %2846 = vmatprep.subr.mxu0 0.0
  %2847 = vmatpush1.msra.mxu0 0.0
  %2848 = vmatprep.subr.mxu0 0.0
  %2849 = vmatpush1.msra.mxu0 0.0
  %2850 = vmatprep.mubr.f32.mxu0 0.0
  %2851 = vmatmul.mubr.f32.gmra.mrb[0].mxu0 %v2784
  %v2852 = vpop.f32.mrb[0].mxu0
  %v2853 = vadd.f32 0.0, %v2852
  %v2854 = vpop.f32.mrb[0].mxu0
  %2855 = vdwg.mxu0
  %2856 = vrot.lane.b32.xlu0 %v1931, 96
  %v2857 = vpop.permute.xlu0 %2856
  %v2860 = vsel %vm238, %v2623, 0
  %2862 = vmatprep.subr.mxu0 0.0
  %2863 = vmatpush1.msra.mxu0 %v2857
  %2864 = vmatprep.subr.mxu0 0.0
  %2865 = vmatpush1.msra.mxu0 0.0
  %2866 = vmatprep.subr.mxu0 0.0
  %2867 = vmatpush1.msra.mxu0 0.0
  %2868 = vmatprep.subr.mxu0 0.0
  %2869 = vmatpush1.msra.mxu0 0.0
  %2870 = vmatprep.subr.mxu0 0.0
  %2871 = vmatpush1.msra.mxu0 0.0
  %2872 = vmatprep.subr.mxu0 0.0
  %2873 = vmatpush1.msra.mxu0 0.0
  %2874 = vmatprep.subr.mxu0 0.0
  %2875 = vmatpush1.msra.mxu0 0.0
  %2876 = vmatprep.subr.mxu0 0.0
  %2877 = vmatpush1.msra.mxu0 0.0
  %2878 = vmatprep.subr.mxu0 0.0
  %2879 = vmatpush1.msra.mxu0 0.0
  %2880 = vmatprep.subr.mxu0 0.0
  %2881 = vmatpush1.msra.mxu0 0.0
  %2882 = vmatprep.subr.mxu0 0.0
  %2883 = vmatpush1.msra.mxu0 0.0
  %2884 = vmatprep.subr.mxu0 0.0
  %2885 = vmatpush1.msra.mxu0 0.0
  %2886 = vmatprep.subr.mxu0 0.0
  %2887 = vmatpush1.msra.mxu0 0.0
  %2888 = vmatprep.subr.mxu0 0.0
  %2889 = vmatpush1.msra.mxu0 0.0
  %2890 = vmatprep.subr.mxu0 0.0
  %2891 = vmatpush1.msra.mxu0 0.0
  %2892 = vmatprep.subr.mxu0 0.0
  %2893 = vmatpush1.msra.mxu0 0.0
  %2894 = vmatprep.subr.mxu0 0.0
  %2895 = vmatpush1.msra.mxu0 0.0
  %2896 = vmatprep.subr.mxu0 0.0
  %2897 = vmatpush1.msra.mxu0 0.0
  %2898 = vmatprep.subr.mxu0 0.0
  %2899 = vmatpush1.msra.mxu0 0.0
  %2900 = vmatprep.subr.mxu0 0.0
  %2901 = vmatpush1.msra.mxu0 0.0
  %2902 = vmatprep.subr.mxu0 0.0
  %2903 = vmatpush1.msra.mxu0 0.0
  %2904 = vmatprep.subr.mxu0 0.0
  %2905 = vmatpush1.msra.mxu0 0.0
  %2906 = vmatprep.subr.mxu0 0.0
  %2907 = vmatpush1.msra.mxu0 0.0
  %2908 = vmatprep.subr.mxu0 0.0
  %2909 = vmatpush1.msra.mxu0 0.0
  %2910 = vmatprep.subr.mxu0 0.0
  %2911 = vmatpush1.msra.mxu0 0.0
  %2912 = vmatprep.subr.mxu0 0.0
  %2913 = vmatpush1.msra.mxu0 0.0
  %2914 = vmatprep.subr.mxu0 0.0
  %2915 = vmatpush1.msra.mxu0 0.0
  %2916 = vmatprep.subr.mxu0 0.0
  %2917 = vmatpush1.msra.mxu0 0.0
  %2918 = vmatprep.subr.mxu0 0.0
  %2919 = vmatpush1.msra.mxu0 0.0
  %2920 = vmatprep.subr.mxu0 0.0
  %2921 = vmatpush1.msra.mxu0 0.0
  %2922 = vmatprep.subr.mxu0 0.0
  %2923 = vmatpush1.msra.mxu0 0.0
  %2924 = vmatprep.subr.mxu0 0.0
  %2925 = vmatpush1.msra.mxu0 0.0
  %2926 = vmatprep.mubr.f32.mxu0 0.0
  %2927 = vmatmul.mubr.f32.gmra.mrb[0].mxu0 %v2860
  %v2928 = vpop.f32.mrb[0].mxu0
  %v2929 = vadd.f32 0.0, %v2928
  %v2930 = vpop.f32.mrb[0].mxu0
  %2931 = vdwg.mxu0
  %2932 = vrot.lane.b32.xlu0 %v1933, 96
  %v2933 = vpop.permute.xlu0 %2932
  %v2936 = vsel %vm238, %v2624, 0
  %2938 = vmatprep.subr.mxu0 0.0
  %2939 = vmatpush1.msra.mxu0 %v2933
  %2940 = vmatprep.subr.mxu0 0.0
  %2941 = vmatpush1.msra.mxu0 0.0
  %2942 = vmatprep.subr.mxu0 0.0
  %2943 = vmatpush1.msra.mxu0 0.0
  %2944 = vmatprep.subr.mxu0 0.0
  %2945 = vmatpush1.msra.mxu0 0.0
  %2946 = vmatprep.subr.mxu0 0.0
  %2947 = vmatpush1.msra.mxu0 0.0
  %2948 = vmatprep.subr.mxu0 0.0
  %2949 = vmatpush1.msra.mxu0 0.0
  %2950 = vmatprep.subr.mxu0 0.0
  %2951 = vmatpush1.msra.mxu0 0.0
  %2952 = vmatprep.subr.mxu0 0.0
  %2953 = vmatpush1.msra.mxu0 0.0
  %2954 = vmatprep.subr.mxu0 0.0
  %2955 = vmatpush1.msra.mxu0 0.0
  %2956 = vmatprep.subr.mxu0 0.0
  %2957 = vmatpush1.msra.mxu0 0.0
  %2958 = vmatprep.subr.mxu0 0.0
  %2959 = vmatpush1.msra.mxu0 0.0
  %2960 = vmatprep.subr.mxu0 0.0
  %2961 = vmatpush1.msra.mxu0 0.0
  %2962 = vmatprep.subr.mxu0 0.0
  %2963 = vmatpush1.msra.mxu0 0.0
  %2964 = vmatprep.subr.mxu0 0.0
  %2965 = vmatpush1.msra.mxu0 0.0
  %2966 = vmatprep.subr.mxu0 0.0
  %2967 = vmatpush1.msra.mxu0 0.0
  %2968 = vmatprep.subr.mxu0 0.0
  %2969 = vmatpush1.msra.mxu0 0.0
  %2970 = vmatprep.subr.mxu0 0.0
  %2971 = vmatpush1.msra.mxu0 0.0
  %2972 = vmatprep.subr.mxu0 0.0
  %2973 = vmatpush1.msra.mxu0 0.0
  %2974 = vmatprep.subr.mxu0 0.0
  %2975 = vmatpush1.msra.mxu0 0.0
  %2976 = vmatprep.subr.mxu0 0.0
  %2977 = vmatpush1.msra.mxu0 0.0
  %2978 = vmatprep.subr.mxu0 0.0
  %2979 = vmatpush1.msra.mxu0 0.0
  %2980 = vmatprep.subr.mxu0 0.0
  %2981 = vmatpush1.msra.mxu0 0.0
  %2982 = vmatprep.subr.mxu0 0.0
  %2983 = vmatpush1.msra.mxu0 0.0
  %2984 = vmatprep.subr.mxu0 0.0
  %2985 = vmatpush1.msra.mxu0 0.0
  %2986 = vmatprep.subr.mxu0 0.0
  %2987 = vmatpush1.msra.mxu0 0.0
  %2988 = vmatprep.subr.mxu0 0.0
  %2989 = vmatpush1.msra.mxu0 0.0
  %2990 = vmatprep.subr.mxu0 0.0
  %2991 = vmatpush1.msra.mxu0 0.0
  %2992 = vmatprep.subr.mxu0 0.0
  %2993 = vmatpush1.msra.mxu0 0.0
  %2994 = vmatprep.subr.mxu0 0.0
  %2995 = vmatpush1.msra.mxu0 0.0
  %2996 = vmatprep.subr.mxu0 0.0
  %2997 = vmatpush1.msra.mxu0 0.0
  %2998 = vmatprep.subr.mxu0 0.0
  %2999 = vmatpush1.msra.mxu0 0.0
  %3000 = vmatprep.subr.mxu0 0.0
  %3001 = vmatpush1.msra.mxu0 0.0
  %3002 = vmatprep.mubr.f32.mxu0 0.0
  %3003 = vmatmul.mubr.f32.gmra.mrb[0].mxu0 %v2936
  %v3004 = vpop.f32.mrb[0].mxu0
  %v3005 = vadd.f32 0.0, %v3004
  %v3006 = vpop.f32.mrb[0].mxu0
  %3007 = vdwg.mxu0
  %3008 = vrot.lane.b32.xlu0 %v1935, 96
  %v3009 = vpop.permute.xlu0 %3008
  %v3012 = vsel %vm238, %v2625, 0
  %3014 = vmatprep.subr.mxu0 0.0
  %3015 = vmatpush1.msra.mxu0 %v3009
  %3016 = vmatprep.subr.mxu0 0.0
  %3017 = vmatpush1.msra.mxu0 0.0
  %3018 = vmatprep.subr.mxu0 0.0
  %3019 = vmatpush1.msra.mxu0 0.0
  %3020 = vmatprep.subr.mxu0 0.0
  %3021 = vmatpush1.msra.mxu0 0.0
  %3022 = vmatprep.subr.mxu0 0.0
  %3023 = vmatpush1.msra.mxu0 0.0
  %3024 = vmatprep.subr.mxu0 0.0
  %3025 = vmatpush1.msra.mxu0 0.0
  %3026 = vmatprep.subr.mxu0 0.0
  %3027 = vmatpush1.msra.mxu0 0.0
  %3028 = vmatprep.subr.mxu0 0.0
  %3029 = vmatpush1.msra.mxu0 0.0
  %3030 = vmatprep.subr.mxu0 0.0
  %3031 = vmatpush1.msra.mxu0 0.0
  %3032 = vmatprep.subr.mxu0 0.0
  %3033 = vmatpush1.msra.mxu0 0.0
  %3034 = vmatprep.subr.mxu0 0.0
  %3035 = vmatpush1.msra.mxu0 0.0
  %3036 = vmatprep.subr.mxu0 0.0
  %3037 = vmatpush1.msra.mxu0 0.0
  %3038 = vmatprep.subr.mxu0 0.0
  %3039 = vmatpush1.msra.mxu0 0.0
  %3040 = vmatprep.subr.mxu0 0.0
  %3041 = vmatpush1.msra.mxu0 0.0
  %3042 = vmatprep.subr.mxu0 0.0
  %3043 = vmatpush1.msra.mxu0 0.0
  %3044 = vmatprep.subr.mxu0 0.0
  %3045 = vmatpush1.msra.mxu0 0.0
  %3046 = vmatprep.subr.mxu0 0.0
  %3047 = vmatpush1.msra.mxu0 0.0
  %3048 = vmatprep.subr.mxu0 0.0
  %3049 = vmatpush1.msra.mxu0 0.0
  %3050 = vmatprep.subr.mxu0 0.0
  %3051 = vmatpush1.msra.mxu0 0.0
  %3052 = vmatprep.subr.mxu0 0.0
  %3053 = vmatpush1.msra.mxu0 0.0
  %3054 = vmatprep.subr.mxu0 0.0
  %3055 = vmatpush1.msra.mxu0 0.0
  %3056 = vmatprep.subr.mxu0 0.0
  %3057 = vmatpush1.msra.mxu0 0.0
  %3058 = vmatprep.subr.mxu0 0.0
  %3059 = vmatpush1.msra.mxu0 0.0
  %3060 = vmatprep.subr.mxu0 0.0
  %3061 = vmatpush1.msra.mxu0 0.0
  %3062 = vmatprep.subr.mxu0 0.0
  %3063 = vmatpush1.msra.mxu0 0.0
  %3064 = vmatprep.subr.mxu0 0.0
  %3065 = vmatpush1.msra.mxu0 0.0
  %3066 = vmatprep.subr.mxu0 0.0
  %3067 = vmatpush1.msra.mxu0 0.0
  %3068 = vmatprep.subr.mxu0 0.0
  %3069 = vmatpush1.msra.mxu0 0.0
  %3070 = vmatprep.subr.mxu0 0.0
  %3071 = vmatpush1.msra.mxu0 0.0
  %3072 = vmatprep.subr.mxu0 0.0
  %3073 = vmatpush1.msra.mxu0 0.0
  %3074 = vmatprep.subr.mxu0 0.0
  %3075 = vmatpush1.msra.mxu0 0.0
  %3076 = vmatprep.subr.mxu0 0.0
  %3077 = vmatpush1.msra.mxu0 0.0
  %3078 = vmatprep.mubr.f32.mxu0 0.0
  %3079 = vmatmul.mubr.f32.gmra.mrb[0].mxu0 %v3012
  %v3080 = vpop.f32.mrb[0].mxu0
  %v3081 = vadd.f32 0.0, %v3080
  %v3082 = vpop.f32.mrb[0].mxu0
  %3083 = vdwg.mxu0
  %3084 = vrot.lane.b32.xlu0 %v1937, 96
  %v3085 = vpop.permute.xlu0 %3084
  %v3088 = vsel %vm238, %v2626, 0
  %3090 = vmatprep.subr.mxu0 0.0
  %3091 = vmatpush1.msra.mxu0 %v3085
  %3092 = vmatprep.subr.mxu0 0.0
  %3093 = vmatpush1.msra.mxu0 0.0
  %3094 = vmatprep.subr.mxu0 0.0
  %3095 = vmatpush1.msra.mxu0 0.0
  %3096 = vmatprep.subr.mxu0 0.0
  %3097 = vmatpush1.msra.mxu0 0.0
  %3098 = vmatprep.subr.mxu0 0.0
  %3099 = vmatpush1.msra.mxu0 0.0
  %3100 = vmatprep.subr.mxu0 0.0
  %3101 = vmatpush1.msra.mxu0 0.0
  %3102 = vmatprep.subr.mxu0 0.0
  %3103 = vmatpush1.msra.mxu0 0.0
  %3104 = vmatprep.subr.mxu0 0.0
  %3105 = vmatpush1.msra.mxu0 0.0
  %3106 = vmatprep.subr.mxu0 0.0
  %3107 = vmatpush1.msra.mxu0 0.0
  %3108 = vmatprep.subr.mxu0 0.0
  %3109 = vmatpush1.msra.mxu0 0.0
  %3110 = vmatprep.subr.mxu0 0.0
  %3111 = vmatpush1.msra.mxu0 0.0
  %3112 = vmatprep.subr.mxu0 0.0
  %3113 = vmatpush1.msra.mxu0 0.0
  %3114 = vmatprep.subr.mxu0 0.0
  %3115 = vmatpush1.msra.mxu0 0.0
  %3116 = vmatprep.subr.mxu0 0.0
  %3117 = vmatpush1.msra.mxu0 0.0
  %3118 = vmatprep.subr.mxu0 0.0
  %3119 = vmatpush1.msra.mxu0 0.0
  %3120 = vmatprep.subr.mxu0 0.0
  %3121 = vmatpush1.msra.mxu0 0.0
  %3122 = vmatprep.subr.mxu0 0.0
  %3123 = vmatpush1.msra.mxu0 0.0
  %3124 = vmatprep.subr.mxu0 0.0
  %3125 = vmatpush1.msra.mxu0 0.0
  %3126 = vmatprep.subr.mxu0 0.0
  %3127 = vmatpush1.msra.mxu0 0.0
  %3128 = vmatprep.subr.mxu0 0.0
  %3129 = vmatpush1.msra.mxu0 0.0
  %3130 = vmatprep.subr.mxu0 0.0
  %3131 = vmatpush1.msra.mxu0 0.0
  %3132 = vmatprep.subr.mxu0 0.0
  %3133 = vmatpush1.msra.mxu0 0.0
  %3134 = vmatprep.subr.mxu0 0.0
  %3135 = vmatpush1.msra.mxu0 0.0
  %3136 = vmatprep.subr.mxu0 0.0
  %3137 = vmatpush1.msra.mxu0 0.0
  %3138 = vmatprep.subr.mxu0 0.0
  %3139 = vmatpush1.msra.mxu0 0.0
  %3140 = vmatprep.subr.mxu0 0.0
  %3141 = vmatpush1.msra.mxu0 0.0
  %3142 = vmatprep.subr.mxu0 0.0
  %3143 = vmatpush1.msra.mxu0 0.0
  %3144 = vmatprep.subr.mxu0 0.0
  %3145 = vmatpush1.msra.mxu0 0.0
  %3146 = vmatprep.subr.mxu0 0.0
  %3147 = vmatpush1.msra.mxu0 0.0
  %3148 = vmatprep.subr.mxu0 0.0
  %3149 = vmatpush1.msra.mxu0 0.0
  %3150 = vmatprep.subr.mxu0 0.0
  %3151 = vmatpush1.msra.mxu0 0.0
  %3152 = vmatprep.subr.mxu0 0.0
  %3153 = vmatpush1.msra.mxu0 0.0
  %3154 = vmatprep.mubr.f32.mxu0 0.0
  %3155 = vmatmul.mubr.f32.gmra.mrb[0].mxu0 %v3088
  %v3156 = vpop.f32.mrb[0].mxu0
  %v3157 = vadd.f32 0.0, %v3156
  %v3158 = vpop.f32.mrb[0].mxu0
  %3159 = vdwg.mxu0
  %3160 = vrot.lane.b32.xlu0 %v1939, 96
  %v3161 = vpop.permute.xlu0 %3160
  %v3164 = vsel %vm238, %v2627, 0
  %3166 = vmatprep.subr.mxu0 0.0
  %3167 = vmatpush1.msra.mxu0 %v3161
  %3168 = vmatprep.subr.mxu0 0.0
  %3169 = vmatpush1.msra.mxu0 0.0
  %3170 = vmatprep.subr.mxu0 0.0
  %3171 = vmatpush1.msra.mxu0 0.0
  %3172 = vmatprep.subr.mxu0 0.0
  %3173 = vmatpush1.msra.mxu0 0.0
  %3174 = vmatprep.subr.mxu0 0.0
  %3175 = vmatpush1.msra.mxu0 0.0
  %3176 = vmatprep.subr.mxu0 0.0
  %3177 = vmatpush1.msra.mxu0 0.0
  %3178 = vmatprep.subr.mxu0 0.0
  %3179 = vmatpush1.msra.mxu0 0.0
  %3180 = vmatprep.subr.mxu0 0.0
  %3181 = vmatpush1.msra.mxu0 0.0
  %3182 = vmatprep.subr.mxu0 0.0
  %3183 = vmatpush1.msra.mxu0 0.0
  %3184 = vmatprep.subr.mxu0 0.0
  %3185 = vmatpush1.msra.mxu0 0.0
  %3186 = vmatprep.subr.mxu0 0.0
  %3187 = vmatpush1.msra.mxu0 0.0
  %3188 = vmatprep.subr.mxu0 0.0
  %3189 = vmatpush1.msra.mxu0 0.0
  %3190 = vmatprep.subr.mxu0 0.0
  %3191 = vmatpush1.msra.mxu0 0.0
  %3192 = vmatprep.subr.mxu0 0.0
  %3193 = vmatpush1.msra.mxu0 0.0
  %3194 = vmatprep.subr.mxu0 0.0
  %3195 = vmatpush1.msra.mxu0 0.0
  %3196 = vmatprep.subr.mxu0 0.0
  %3197 = vmatpush1.msra.mxu0 0.0
  %3198 = vmatprep.subr.mxu0 0.0
  %3199 = vmatpush1.msra.mxu0 0.0
  %3200 = vmatprep.subr.mxu0 0.0
  %3201 = vmatpush1.msra.mxu0 0.0
  %3202 = vmatprep.subr.mxu0 0.0
  %3203 = vmatpush1.msra.mxu0 0.0
  %3204 = vmatprep.subr.mxu0 0.0
  %3205 = vmatpush1.msra.mxu0 0.0
  %3206 = vmatprep.subr.mxu0 0.0
  %3207 = vmatpush1.msra.mxu0 0.0
  %3208 = vmatprep.subr.mxu0 0.0
  %3209 = vmatpush1.msra.mxu0 0.0
  %3210 = vmatprep.subr.mxu0 0.0
  %3211 = vmatpush1.msra.mxu0 0.0
  %3212 = vmatprep.subr.mxu0 0.0
  %3213 = vmatpush1.msra.mxu0 0.0
  %3214 = vmatprep.subr.mxu0 0.0
  %3215 = vmatpush1.msra.mxu0 0.0
  %3216 = vmatprep.subr.mxu0 0.0
  %3217 = vmatpush1.msra.mxu0 0.0
  %3218 = vmatprep.subr.mxu0 0.0
  %3219 = vmatpush1.msra.mxu0 0.0
  %3220 = vmatprep.subr.mxu0 0.0
  %3221 = vmatpush1.msra.mxu0 0.0
  %3222 = vmatprep.subr.mxu0 0.0
  %3223 = vmatpush1.msra.mxu0 0.0
  %3224 = vmatprep.subr.mxu0 0.0
  %3225 = vmatpush1.msra.mxu0 0.0
  %3226 = vmatprep.subr.mxu0 0.0
  %3227 = vmatpush1.msra.mxu0 0.0
  %3228 = vmatprep.subr.mxu0 0.0
  %3229 = vmatpush1.msra.mxu0 0.0
  %3230 = vmatprep.mubr.f32.mxu0 0.0
  %3231 = vmatmul.mubr.f32.gmra.mrb[0].mxu0 %v3164
  %v3232 = vpop.f32.mrb[0].mxu0
  %v3233 = vadd.f32 0.0, %v3232
  %v3234 = vpop.f32.mrb[0].mxu0
  %3235 = vdwg.mxu0
  %3238 = vrot.lane.b32.xlu0 %v2853, 8
  %v3239 = vpop.permute.xlu0 %3238
  %3240 = vrot.lane.b32.xlu0 %v2929, 8
  %v3241 = vpop.permute.xlu0 %3240
  %3246 = vrot.lane.b32.xlu0 %v3005, 16
  %v3247 = vpop.permute.xlu0 %3246
  %3248 = vrot.lane.b32.xlu0 %v3081, 16
  %v3249 = vpop.permute.xlu0 %3248
  %3254 = vrot.lane.b32.xlu0 %v3157, 24
  %v3255 = vpop.permute.xlu0 %3254
  %3256 = vrot.lane.b32.xlu0 %v3233, 24
  %v3257 = vpop.permute.xlu0 %3256
  %v3260 = vsel %vm238, %v2701, %v3239
  %v3261 = vsel %vm238, %v2777, %v3241
  %v3262 = vsel %vm1583, %v3260, %v3247
  %v3263 = vsel %vm1583, %v3261, %v3249
  %v3264 = vsel %vm1586, %v3262, %v3255
  %v3265 = vsel %vm1586, %v3263, %v3257
  %v3267 = vlaneseq
  %v3268 = vshrl.u32 %v3267, 7
  %v3269 = vsub.s32 0, %v3268
  %v3270 = vrot.slane %v1911, %v3269
  %v3273 = vsel %vm135, %v3264, 0
  %v3276 = vsel %vm135, %v3265, 0
  %3278 = vmatprep.subr.mxu0 0.0
  %3279 = vmatpush1.msra.mxu0 %v1907
  %3280 = vmatprep.subr.mxu0 0.0
  %3281 = vmatpush1.msra.mxu0 %v1908
  %3282 = vmatprep.subr.mxu0 0.0
  %3283 = vmatpush1.msra.mxu0 %v1909
  %3284 = vmatprep.subr.mxu0 0.0
  %3285 = vmatpush1.msra.mxu0 %v1910
  %3286 = vmatprep.subr.mxu0 0.0
  %3287 = vmatpush1.msra.mxu0 0.0
  %3288 = vmatprep.subr.mxu0 0.0
  %3289 = vmatpush1.msra.mxu0 0.0
  %3290 = vmatprep.subr.mxu0 0.0
  %3291 = vmatpush1.msra.mxu0 0.0
  %3292 = vmatprep.subr.mxu0 0.0
  %3293 = vmatpush1.msra.mxu0 0.0
  %3294 = vmatprep.subr.mxu0 0.0
  %3295 = vmatpush1.msra.mxu0 0.0
  %3296 = vmatprep.subr.mxu0 0.0
  %3297 = vmatpush1.msra.mxu0 0.0
  %3298 = vmatprep.subr.mxu0 0.0
  %3299 = vmatpush1.msra.mxu0 0.0
  %3300 = vmatprep.subr.mxu0 0.0
  %3301 = vmatpush1.msra.mxu0 0.0
  %3302 = vmatprep.subr.mxu0 0.0
  %3303 = vmatpush1.msra.mxu0 0.0
  %3304 = vmatprep.subr.mxu0 0.0
  %3305 = vmatpush1.msra.mxu0 0.0
  %3306 = vmatprep.subr.mxu0 0.0
  %3307 = vmatpush1.msra.mxu0 0.0
  %3308 = vmatprep.subr.mxu0 0.0
  %3309 = vmatpush1.msra.mxu0 0.0
  %3310 = vmatprep.subr.mxu0 0.0
  %3311 = vmatpush1.msra.mxu0 0.0
  %3312 = vmatprep.subr.mxu0 0.0
  %3313 = vmatpush1.msra.mxu0 0.0
  %3314 = vmatprep.subr.mxu0 0.0
  %3315 = vmatpush1.msra.mxu0 0.0
  %3316 = vmatprep.subr.mxu0 0.0
  %3317 = vmatpush1.msra.mxu0 0.0
  %3318 = vmatprep.subr.mxu0 0.0
  %3319 = vmatpush1.msra.mxu0 0.0
  %3320 = vmatprep.subr.mxu0 0.0
  %3321 = vmatpush1.msra.mxu0 0.0
  %3322 = vmatprep.subr.mxu0 0.0
  %3323 = vmatpush1.msra.mxu0 0.0
  %3324 = vmatprep.subr.mxu0 0.0
  %3325 = vmatpush1.msra.mxu0 0.0
  %3326 = vmatprep.subr.mxu0 0.0
  %3327 = vmatpush1.msra.mxu0 0.0
  %3328 = vmatprep.subr.mxu0 0.0
  %3329 = vmatpush1.msra.mxu0 0.0
  %3330 = vmatprep.subr.mxu0 0.0
  %3331 = vmatpush1.msra.mxu0 0.0
  %3332 = vmatprep.subr.mxu0 0.0
  %3333 = vmatpush1.msra.mxu0 0.0
  %3334 = vmatprep.subr.mxu0 0.0
  %3335 = vmatpush1.msra.mxu0 0.0
  %3336 = vmatprep.subr.mxu0 0.0
  %3337 = vmatpush1.msra.mxu0 0.0
  %3338 = vmatprep.subr.mxu0 0.0
  %3339 = vmatpush1.msra.mxu0 0.0
  %3340 = vmatprep.subr.mxu0 0.0
  %3341 = vmatpush1.msra.mxu0 0.0
  %3342 = vmatprep.mubr.f32.mxu0 0.0
  %3343 = vmatmul.mubr.f32.gmra.mrb[0].mxu0 %v3273
  %v3344 = vpop.f32.mrb[0].mxu0
  %v3345 = vadd.f32 %v3270, %v3344
  %v3346 = vpop.f32.mrb[0].mxu0
  %3347 = vmatprep.mubr.f32.mxu0 0.0
  %3348 = vmatmul.mubr.f32.gmra.mrb[0].mxu0 %v3276
  %v3349 = vpop.f32.mrb[0].mxu0
  %v3350 = vadd.f32 %v3270, %v3349
  %v3351 = vpop.f32.mrb[0].mxu0
  %3352 = vdwg.mxu0
  %v3353 = vadd.f32 %v1721, %v3345
  %v3354 = vadd.f32 %v1722, %v3350
  %v3355 = vld [vmem:[%s18] sm:$0x1]
  %v3356 = vld [vmem:[%s19] sm:$0x1]
  %v3357 = vsel %vm135, %v3353, 0.0
  %3358 = vadd.xlane.f32.xlu0 %v3357
  %v3359 = vpop.xlane.xlu0 %3358
  %v3360 = vsel %vm135, %v3354, 0.0
  %3361 = vadd.xlane.f32.xlu0 %v3360
  %v3362 = vpop.xlane.xlu0 %3361
  %v3363 = vmul.f32 %v3359, %v1686
  %v3364 = vmul.f32 %v3362, %v1686
  %v3365 = vsub.f32 %v3353, %v3363
  %v3366 = vsub.f32 %v3354, %v3364
  %v3367 = vmul.f32 %v3365, %v3365
  %v3368 = vmul.f32 %v3366, %v3366
  %v3369 = vsel %vm135, %v3367, 0.0
  %3370 = vadd.xlane.f32.xlu0 %v3369
  %v3371 = vpop.xlane.xlu0 %3370
  %v3372 = vsel %vm135, %v3368, 0.0
  %3373 = vadd.xlane.f32.xlu0 %v3372
  %v3374 = vpop.xlane.xlu0 %3373
  %v3375 = vmul.f32 %v3371, %v1686
  %v3376 = vmul.f32 %v3374, %v1686
  %v3377 = vadd.f32 %v3375, 1e-05
  %v3378 = vadd.f32 %v3376, 1e-05
  %v3379 = vrsqrt.pop %v3377
  %v3380 = vrsqrt.pop %v3378
  %v3381 = vmul.f32 %v3365, %v3379
  %v3382 = vmul.f32 %v3366, %v3380
  %v3384 = vlaneseq
  %v3385 = vshrl.u32 %v3384, 7
  %v3386 = vsub.s32 0, %v3385
  %v3387 = vrot.slane %v3355, %v3386
  %v3389 = vmul.f32 %v3381, %v3387
  %v3390 = vmul.f32 %v3382, %v3387
  %v3392 = vlaneseq
  %v3393 = vshrl.u32 %v3392, 7
  %v3394 = vsub.s32 0, %v3393
  %v3395 = vrot.slane %v3356, %v3394
  %v3397 = vadd.f32 %v3389, %v3395
  %v3398 = vadd.f32 %v3390, %v3395
  %v3399 = vld [vmem:[%s20] sm:$0xff]
  %v3400 = vld [vmem:[%s20 + $0x8] sm:$0xff]
  %v3401 = vld [vmem:[%s20 + $0x10] sm:$0xff]
  %v3402 = vld [vmem:[%s20 + $0x18] sm:$0xff]
  %v3403 = vld [vmem:[%s21] sm:$0x1]
  %v3405 = vlaneseq
  %v3406 = vshrl.u32 %v3405, 7
  %v3407 = vsub.s32 0, %v3406
  %v3408 = vrot.slane %v3403, %v3407
  %v3411 = vsel %vm135, %v3397, 0
  %v3414 = vsel %vm135, %v3398, 0
  %3416 = vmatprep.subr.mxu0 0.0
  %3417 = vmatpush1.msra.mxu0 %v3399
  %3418 = vmatprep.subr.mxu0 0.0
  %3419 = vmatpush1.msra.mxu0 %v3400
  %3420 = vmatprep.subr.mxu0 0.0
  %3421 = vmatpush1.msra.mxu0 %v3401
  %3422 = vmatprep.subr.mxu0 0.0
  %3423 = vmatpush1.msra.mxu0 %v3402
  %3424 = vmatprep.subr.mxu0 0.0
  %3425 = vmatpush1.msra.mxu0 0.0
  %3426 = vmatprep.subr.mxu0 0.0
  %3427 = vmatpush1.msra.mxu0 0.0
  %3428 = vmatprep.subr.mxu0 0.0
  %3429 = vmatpush1.msra.mxu0 0.0
  %3430 = vmatprep.subr.mxu0 0.0
  %3431 = vmatpush1.msra.mxu0 0.0
  %3432 = vmatprep.subr.mxu0 0.0
  %3433 = vmatpush1.msra.mxu0 0.0
  %3434 = vmatprep.subr.mxu0 0.0
  %3435 = vmatpush1.msra.mxu0 0.0
  %3436 = vmatprep.subr.mxu0 0.0
  %3437 = vmatpush1.msra.mxu0 0.0
  %3438 = vmatprep.subr.mxu0 0.0
  %3439 = vmatpush1.msra.mxu0 0.0
  %3440 = vmatprep.subr.mxu0 0.0
  %3441 = vmatpush1.msra.mxu0 0.0
  %3442 = vmatprep.subr.mxu0 0.0
  %3443 = vmatpush1.msra.mxu0 0.0
  %3444 = vmatprep.subr.mxu0 0.0
  %3445 = vmatpush1.msra.mxu0 0.0
  %3446 = vmatprep.subr.mxu0 0.0
  %3447 = vmatpush1.msra.mxu0 0.0
  %3448 = vmatprep.subr.mxu0 0.0
  %3449 = vmatpush1.msra.mxu0 0.0
  %3450 = vmatprep.subr.mxu0 0.0
  %3451 = vmatpush1.msra.mxu0 0.0
  %3452 = vmatprep.subr.mxu0 0.0
  %3453 = vmatpush1.msra.mxu0 0.0
  %3454 = vmatprep.subr.mxu0 0.0
  %3455 = vmatpush1.msra.mxu0 0.0
  %3456 = vmatprep.subr.mxu0 0.0
  %3457 = vmatpush1.msra.mxu0 0.0
  %3458 = vmatprep.subr.mxu0 0.0
  %3459 = vmatpush1.msra.mxu0 0.0
  %3460 = vmatprep.subr.mxu0 0.0
  %3461 = vmatpush1.msra.mxu0 0.0
  %3462 = vmatprep.subr.mxu0 0.0
  %3463 = vmatpush1.msra.mxu0 0.0
  %3464 = vmatprep.subr.mxu0 0.0
  %3465 = vmatpush1.msra.mxu0 0.0
  %3466 = vmatprep.subr.mxu0 0.0
  %3467 = vmatpush1.msra.mxu0 0.0
  %3468 = vmatprep.subr.mxu0 0.0
  %3469 = vmatpush1.msra.mxu0 0.0
  %3470 = vmatprep.subr.mxu0 0.0
  %3471 = vmatpush1.msra.mxu0 0.0
  %3472 = vmatprep.subr.mxu0 0.0
  %3473 = vmatpush1.msra.mxu0 0.0
  %3474 = vmatprep.subr.mxu0 0.0
  %3475 = vmatpush1.msra.mxu0 0.0
  %3476 = vmatprep.subr.mxu0 0.0
  %3477 = vmatpush1.msra.mxu0 0.0
  %3478 = vmatprep.subr.mxu0 0.0
  %3479 = vmatpush1.msra.mxu0 0.0
  %3480 = vmatprep.mubr.f32.mxu0 0.0
  %3481 = vmatmul.mubr.f32.gmra.mrb[0].mxu0 %v3411
  %v3482 = vpop.f32.mrb[0].mxu0
  %v3483 = vadd.f32 %v3408, %v3482
  %v3484 = vpop.f32.mrb[0].mxu0
  %3485 = vmatprep.mubr.f32.mxu0 0.0
  %3486 = vmatmul.mubr.f32.gmra.mrb[0].mxu0 %v3414
  %v3487 = vpop.f32.mrb[0].mxu0
  %v3488 = vadd.f32 %v3408, %v3487
  %v3489 = vpop.f32.mrb[0].mxu0
  %3490 = vdwg.mxu0
  %v3491 = vmax.f32 %v3483, 0.0
  %v3492 = vmax.f32 %v3488, 0.0
  %v3493 = vld [vmem:[%s22] sm:$0xff]
  %v3494 = vld [vmem:[%s22 + $0x8] sm:$0xff]
  %v3495 = vld [vmem:[%s22 + $0x10] sm:$0xff]
  %v3496 = vld [vmem:[%s22 + $0x18] sm:$0xff]
  %v3497 = vld [vmem:[%s22 + $0x20] sm:$0xff]
  %v3498 = vld [vmem:[%s22 + $0x28] sm:$0xff]
  %v3499 = vld [vmem:[%s22 + $0x30] sm:$0xff]
  %v3500 = vld [vmem:[%s22 + $0x38] sm:$0xff]
  %v3501 = vld [vmem:[%s23] sm:$0x1]
  %v3503 = vlaneseq
  %v3504 = vshrl.u32 %v3503, 7
  %v3505 = vsub.s32 0, %v3504
  %v3506 = vrot.slane %v3501, %v3505
  %vm3508 = vcmask 523264
  %v3510 = vsel %vm3508, %v3491, 0
  %v3513 = vsel %vm3508, %v3492, 0
  %3515 = vmatprep.subr.mxu0 0.0
  %3516 = vmatpush1.msra.mxu0 %v3493
  %3517 = vmatprep.subr.mxu0 0.0
  %3518 = vmatpush1.msra.mxu0 %v3494
  %3519 = vmatprep.subr.mxu0 0.0
  %3520 = vmatpush1.msra.mxu0 %v3495
  %3521 = vmatprep.subr.mxu0 0.0
  %3522 = vmatpush1.msra.mxu0 %v3496
  %3523 = vmatprep.subr.mxu0 0.0
  %3524 = vmatpush1.msra.mxu0 %v3497
  %3525 = vmatprep.subr.mxu0 0.0
  %3526 = vmatpush1.msra.mxu0 %v3498
  %3527 = vmatprep.subr.mxu0 0.0
  %3528 = vmatpush1.msra.mxu0 %v3499
  %3529 = vmatprep.subr.mxu0 0.0
  %3530 = vmatpush1.msra.mxu0 %v3500
  %3531 = vmatprep.subr.mxu0 0.0
  %3532 = vmatpush1.msra.mxu0 0.0
  %3533 = vmatprep.subr.mxu0 0.0
  %3534 = vmatpush1.msra.mxu0 0.0
  %3535 = vmatprep.subr.mxu0 0.0
  %3536 = vmatpush1.msra.mxu0 0.0
  %3537 = vmatprep.subr.mxu0 0.0
  %3538 = vmatpush1.msra.mxu0 0.0
  %3539 = vmatprep.subr.mxu0 0.0
  %3540 = vmatpush1.msra.mxu0 0.0
  %3541 = vmatprep.subr.mxu0 0.0
  %3542 = vmatpush1.msra.mxu0 0.0
  %3543 = vmatprep.subr.mxu0 0.0
  %3544 = vmatpush1.msra.mxu0 0.0
  %3545 = vmatprep.subr.mxu0 0.0
  %3546 = vmatpush1.msra.mxu0 0.0
  %3547 = vmatprep.subr.mxu0 0.0
  %3548 = vmatpush1.msra.mxu0 0.0
  %3549 = vmatprep.subr.mxu0 0.0
  %3550 = vmatpush1.msra.mxu0 0.0
  %3551 = vmatprep.subr.mxu0 0.0
  %3552 = vmatpush1.msra.mxu0 0.0
  %3553 = vmatprep.subr.mxu0 0.0
  %3554 = vmatpush1.msra.mxu0 0.0
  %3555 = vmatprep.subr.mxu0 0.0
  %3556 = vmatpush1.msra.mxu0 0.0
  %3557 = vmatprep.subr.mxu0 0.0
  %3558 = vmatpush1.msra.mxu0 0.0
  %3559 = vmatprep.subr.mxu0 0.0
  %3560 = vmatpush1.msra.mxu0 0.0
  %3561 = vmatprep.subr.mxu0 0.0
  %3562 = vmatpush1.msra.mxu0 0.0
  %3563 = vmatprep.subr.mxu0 0.0
  %3564 = vmatpush1.msra.mxu0 0.0
  %3565 = vmatprep.subr.mxu0 0.0
  %3566 = vmatpush1.msra.mxu0 0.0
  %3567 = vmatprep.subr.mxu0 0.0
  %3568 = vmatpush1.msra.mxu0 0.0
  %3569 = vmatprep.subr.mxu0 0.0
  %3570 = vmatpush1.msra.mxu0 0.0
  %3571 = vmatprep.subr.mxu0 0.0
  %3572 = vmatpush1.msra.mxu0 0.0
  %3573 = vmatprep.subr.mxu0 0.0
  %3574 = vmatpush1.msra.mxu0 0.0
  %3575 = vmatprep.subr.mxu0 0.0
  %3576 = vmatpush1.msra.mxu0 0.0
  %3577 = vmatprep.subr.mxu0 0.0
  %3578 = vmatpush1.msra.mxu0 0.0
  %3579 = vmatprep.mubr.f32.mxu0 0.0
  %3580 = vmatmul.mubr.f32.gmra.mrb[0].mxu0 %v3510
  %v3581 = vpop.f32.mrb[0].mxu0
  %v3582 = vadd.f32 %v3506, %v3581
  %v3583 = vpop.f32.mrb[0].mxu0
  %3584 = vmatprep.mubr.f32.mxu0 0.0
  %3585 = vmatmul.mubr.f32.gmra.mrb[0].mxu0 %v3513
  %v3586 = vpop.f32.mrb[0].mxu0
  %v3587 = vadd.f32 %v3506, %v3586
  %v3588 = vpop.f32.mrb[0].mxu0
  %3589 = vdwg.mxu0
  %v3590 = vadd.f32 %v3397, %v3582
  %v3591 = vadd.f32 %v3398, %v3587
  %v3592 = vld [vmem:[%s24] sm:$0x1]
  %v3593 = vld [vmem:[%s25] sm:$0x1]
  %v3594 = vsel %vm135, %v3590, 0.0
  %3595 = vadd.xlane.f32.xlu0 %v3594
  %v3596 = vpop.xlane.xlu0 %3595
  %v3597 = vsel %vm135, %v3591, 0.0
  %3598 = vadd.xlane.f32.xlu0 %v3597
  %v3599 = vpop.xlane.xlu0 %3598
  %v3600 = vmul.f32 %v3596, %v1686
  %v3601 = vmul.f32 %v3599, %v1686
  %v3602 = vsub.f32 %v3590, %v3600
  %v3603 = vsub.f32 %v3591, %v3601
  %v3604 = vmul.f32 %v3602, %v3602
  %v3605 = vmul.f32 %v3603, %v3603
  %v3606 = vsel %vm135, %v3604, 0.0
  %3607 = vadd.xlane.f32.xlu0 %v3606
  %v3608 = vpop.xlane.xlu0 %3607
  %v3609 = vsel %vm135, %v3605, 0.0
  %3610 = vadd.xlane.f32.xlu0 %v3609
  %v3611 = vpop.xlane.xlu0 %3610
  %v3612 = vmul.f32 %v3608, %v1686
  %v3613 = vmul.f32 %v3611, %v1686
  %v3614 = vadd.f32 %v3612, 1e-05
  %v3615 = vadd.f32 %v3613, 1e-05
  %v3616 = vrsqrt.pop %v3614
  %v3617 = vrsqrt.pop %v3615
  %v3618 = vmul.f32 %v3602, %v3616
  %v3619 = vmul.f32 %v3603, %v3617
  %v3621 = vlaneseq
  %v3622 = vshrl.u32 %v3621, 7
  %v3623 = vsub.s32 0, %v3622
  %v3624 = vrot.slane %v3592, %v3623
  %v3626 = vmul.f32 %v3618, %v3624
  %v3627 = vmul.f32 %v3619, %v3624
  %v3629 = vlaneseq
  %v3630 = vshrl.u32 %v3629, 7
  %v3631 = vsub.s32 0, %v3630
  %v3632 = vrot.slane %v3593, %v3631
  %v3634 = vadd.f32 %v3626, %v3632
  %v3635 = vadd.f32 %v3627, %v3632
  %s3636 = scalar_lea.vmem %s6, 32
  %v3637 = vld [vmem:[%s3636] sm:$0xff]
  %v3638 = vld [vmem:[%s3636 + $0x8] sm:$0xff]
  %v3639 = vld [vmem:[%s3636 + $0x10] sm:$0xff]
  %v3640 = vld [vmem:[%s3636 + $0x18] sm:$0xff]
  %s3641 = scalar_lea.vmem %s7, 1
  %v3642 = vld [vmem:[%s3641] sm:$0x1]
  %v3644 = vlaneseq
  %v3645 = vshrl.u32 %v3644, 7
  %v3646 = vsub.s32 0, %v3645
  %v3647 = vrot.slane %v3642, %v3646
  %v3650 = vsel %vm135, %v3634, 0
  %v3653 = vsel %vm135, %v3635, 0
  %3655 = vmatprep.subr.mxu0 0.0
  %3656 = vmatpush1.msra.mxu0 %v3637
  %3657 = vmatprep.subr.mxu0 0.0
  %3658 = vmatpush1.msra.mxu0 %v3638
  %3659 = vmatprep.subr.mxu0 0.0
  %3660 = vmatpush1.msra.mxu0 %v3639
  %3661 = vmatprep.subr.mxu0 0.0
  %3662 = vmatpush1.msra.mxu0 %v3640
  %3663 = vmatprep.subr.mxu0 0.0
  %3664 = vmatpush1.msra.mxu0 0.0
  %3665 = vmatprep.subr.mxu0 0.0
  %3666 = vmatpush1.msra.mxu0 0.0
  %3667 = vmatprep.subr.mxu0 0.0
  %3668 = vmatpush1.msra.mxu0 0.0
  %3669 = vmatprep.subr.mxu0 0.0
  %3670 = vmatpush1.msra.mxu0 0.0
  %3671 = vmatprep.subr.mxu0 0.0
  %3672 = vmatpush1.msra.mxu0 0.0
  %3673 = vmatprep.subr.mxu0 0.0
  %3674 = vmatpush1.msra.mxu0 0.0
  %3675 = vmatprep.subr.mxu0 0.0
  %3676 = vmatpush1.msra.mxu0 0.0
  %3677 = vmatprep.subr.mxu0 0.0
  %3678 = vmatpush1.msra.mxu0 0.0
  %3679 = vmatprep.subr.mxu0 0.0
  %3680 = vmatpush1.msra.mxu0 0.0
  %3681 = vmatprep.subr.mxu0 0.0
  %3682 = vmatpush1.msra.mxu0 0.0
  %3683 = vmatprep.subr.mxu0 0.0
  %3684 = vmatpush1.msra.mxu0 0.0
  %3685 = vmatprep.subr.mxu0 0.0
  %3686 = vmatpush1.msra.mxu0 0.0
  %3687 = vmatprep.subr.mxu0 0.0
  %3688 = vmatpush1.msra.mxu0 0.0
  %3689 = vmatprep.subr.mxu0 0.0
  %3690 = vmatpush1.msra.mxu0 0.0
  %3691 = vmatprep.subr.mxu0 0.0
  %3692 = vmatpush1.msra.mxu0 0.0
  %3693 = vmatprep.subr.mxu0 0.0
  %3694 = vmatpush1.msra.mxu0 0.0
  %3695 = vmatprep.subr.mxu0 0.0
  %3696 = vmatpush1.msra.mxu0 0.0
  %3697 = vmatprep.subr.mxu0 0.0
  %3698 = vmatpush1.msra.mxu0 0.0
  %3699 = vmatprep.subr.mxu0 0.0
  %3700 = vmatpush1.msra.mxu0 0.0
  %3701 = vmatprep.subr.mxu0 0.0
  %3702 = vmatpush1.msra.mxu0 0.0
  %3703 = vmatprep.subr.mxu0 0.0
  %3704 = vmatpush1.msra.mxu0 0.0
  %3705 = vmatprep.subr.mxu0 0.0
  %3706 = vmatpush1.msra.mxu0 0.0
  %3707 = vmatprep.subr.mxu0 0.0
  %3708 = vmatpush1.msra.mxu0 0.0
  %3709 = vmatprep.subr.mxu0 0.0
  %3710 = vmatpush1.msra.mxu0 0.0
  %3711 = vmatprep.subr.mxu0 0.0
  %3712 = vmatpush1.msra.mxu0 0.0
  %3713 = vmatprep.subr.mxu0 0.0
  %3714 = vmatpush1.msra.mxu0 0.0
  %3715 = vmatprep.subr.mxu0 0.0
  %3716 = vmatpush1.msra.mxu0 0.0
  %3717 = vmatprep.subr.mxu0 0.0
  %3718 = vmatpush1.msra.mxu0 0.0
  %3719 = vmatprep.mubr.f32.mxu0 0.0
  %3720 = vmatmul.mubr.f32.gmra.mrb[0].mxu0 %v3650
  %v3721 = vpop.f32.mrb[0].mxu0
  %v3722 = vadd.f32 %v3647, %v3721
  %v3723 = vpop.f32.mrb[0].mxu0
  %3724 = vmatprep.mubr.f32.mxu0 0.0
  %3725 = vmatmul.mubr.f32.gmra.mrb[0].mxu0 %v3653
  %v3726 = vpop.f32.mrb[0].mxu0
  %v3727 = vadd.f32 %v3647, %v3726
  %v3728 = vpop.f32.mrb[0].mxu0
  %3729 = vdwg.mxu0
  %s3730 = scalar_lea.vmem %s8, 32
  %v3731 = vld [vmem:[%s3730] sm:$0xff]
  %v3732 = vld [vmem:[%s3730 + $0x8] sm:$0xff]
  %v3733 = vld [vmem:[%s3730 + $0x10] sm:$0xff]
  %v3734 = vld [vmem:[%s3730 + $0x18] sm:$0xff]
  %s3735 = scalar_lea.vmem %s9, 1
  %v3736 = vld [vmem:[%s3735] sm:$0x1]
  %3739 = vrot.lane.b32.xlu0 %v3722, 120
  %v3740 = vpop.permute.xlu0 %3739
  %3741 = vrot.lane.b32.xlu0 %v3727, 120
  %v3742 = vpop.permute.xlu0 %3741
  %3743 = vrot.lane.b32.xlu0 %v3722, 112
  %v3744 = vpop.permute.xlu0 %3743
  %3745 = vrot.lane.b32.xlu0 %v3727, 112
  %v3746 = vpop.permute.xlu0 %3745
  %3747 = vrot.lane.b32.xlu0 %v3722, 104
  %v3748 = vpop.permute.xlu0 %3747
  %3749 = vrot.lane.b32.xlu0 %v3727, 104
  %v3750 = vpop.permute.xlu0 %3749
  %3751 = vrot.lane.b32.xlu0 %v3722, 96
  %v3752 = vpop.permute.xlu0 %3751
  %v3753 = vsel %vm238, %v3722, 0
  %v3755 = vsel %vm238, %v3752, 0
  %3757 = vmatprep.subr.mxu0 0.0
  %3758 = vmatpush1.xpose.msra.mxu0 %v3755
  %3759 = vmatprep.subr.mxu0 0.0
  %3760 = vmatpush1.xpose.msra.mxu0 0.0
  %3761 = vmatprep.subr.mxu0 0.0
  %3762 = vmatpush1.xpose.msra.mxu0 0.0
  %3763 = vmatprep.subr.mxu0 0.0
  %3764 = vmatpush1.xpose.msra.mxu0 0.0
  %3765 = vmatprep.subr.mxu0 0.0
  %3766 = vmatpush1.xpose.msra.mxu0 0.0
  %3767 = vmatprep.subr.mxu0 0.0
  %3768 = vmatpush1.xpose.msra.mxu0 0.0
  %3769 = vmatprep.subr.mxu0 0.0
  %3770 = vmatpush1.xpose.msra.mxu0 0.0
  %3771 = vmatprep.subr.mxu0 0.0
  %3772 = vmatpush1.xpose.msra.mxu0 0.0
  %3773 = vmatprep.subr.mxu0 0.0
  %3774 = vmatpush1.xpose.msra.mxu0 0.0
  %3775 = vmatprep.subr.mxu0 0.0
  %3776 = vmatpush1.xpose.msra.mxu0 0.0
  %3777 = vmatprep.subr.mxu0 0.0
  %3778 = vmatpush1.xpose.msra.mxu0 0.0
  %3779 = vmatprep.subr.mxu0 0.0
  %3780 = vmatpush1.xpose.msra.mxu0 0.0
  %3781 = vmatprep.subr.mxu0 0.0
  %3782 = vmatpush1.xpose.msra.mxu0 0.0
  %3783 = vmatprep.subr.mxu0 0.0
  %3784 = vmatpush1.xpose.msra.mxu0 0.0
  %3785 = vmatprep.subr.mxu0 0.0
  %3786 = vmatpush1.xpose.msra.mxu0 0.0
  %3787 = vmatprep.subr.mxu0 0.0
  %3788 = vmatpush1.xpose.msra.mxu0 0.0
  %3789 = vmatprep.subr.mxu0 0.0
  %3790 = vmatpush1.xpose.msra.mxu0 0.0
  %3791 = vmatprep.subr.mxu0 0.0
  %3792 = vmatpush1.xpose.msra.mxu0 0.0
  %3793 = vmatprep.subr.mxu0 0.0
  %3794 = vmatpush1.xpose.msra.mxu0 0.0
  %3795 = vmatprep.subr.mxu0 0.0
  %3796 = vmatpush1.xpose.msra.mxu0 0.0
  %3797 = vmatprep.subr.mxu0 0.0
  %3798 = vmatpush1.xpose.msra.mxu0 0.0
  %3799 = vmatprep.subr.mxu0 0.0
  %3800 = vmatpush1.xpose.msra.mxu0 0.0
  %3801 = vmatprep.subr.mxu0 0.0
  %3802 = vmatpush1.xpose.msra.mxu0 0.0
  %3803 = vmatprep.subr.mxu0 0.0
  %3804 = vmatpush1.xpose.msra.mxu0 0.0
  %3805 = vmatprep.subr.mxu0 0.0
  %3806 = vmatpush1.xpose.msra.mxu0 0.0
  %3807 = vmatprep.subr.mxu0 0.0
  %3808 = vmatpush1.xpose.msra.mxu0 0.0
  %3809 = vmatprep.subr.mxu0 0.0
  %3810 = vmatpush1.xpose.msra.mxu0 0.0
  %3811 = vmatprep.subr.mxu0 0.0
  %3812 = vmatpush1.xpose.msra.mxu0 0.0
  %3813 = vmatprep.subr.mxu0 0.0
  %3814 = vmatpush1.xpose.msra.mxu0 0.0
  %3815 = vmatprep.subr.mxu0 0.0
  %3816 = vmatpush1.xpose.msra.mxu0 0.0
  %3817 = vmatprep.subr.mxu0 0.0
  %3818 = vmatpush1.xpose.msra.mxu0 0.0
  %3819 = vmatprep.subr.mxu0 0.0
  %3820 = vmatpush1.xpose.msra.mxu0 0.0
  %3821 = vmatprep.mubr.f32.mxu0 0.0
  %3822 = vmatmul.mubr.f32.gmra.mrb[0].mxu0 %v3753
  %v3823 = vpop.f32.mrb[0].mxu0
  %v3824 = vadd.f32 0.0, %v3823
  %v3825 = vpop.f32.mrb[0].mxu0
  %3826 = vdwg.mxu0
  %3827 = vrot.lane.b32.xlu0 %v3727, 96
  %v3828 = vpop.permute.xlu0 %3827
  %v3829 = vsel %vm238, %v3727, 0
  %v3831 = vsel %vm238, %v3828, 0
  %3833 = vmatprep.subr.mxu0 0.0
  %3834 = vmatpush1.xpose.msra.mxu0 %v3831
  %3835 = vmatprep.subr.mxu0 0.0
  %3836 = vmatpush1.xpose.msra.mxu0 0.0
  %3837 = vmatprep.subr.mxu0 0.0
  %3838 = vmatpush1.xpose.msra.mxu0 0.0
  %3839 = vmatprep.subr.mxu0 0.0
  %3840 = vmatpush1.xpose.msra.mxu0 0.0
  %3841 = vmatprep.subr.mxu0 0.0
  %3842 = vmatpush1.xpose.msra.mxu0 0.0
  %3843 = vmatprep.subr.mxu0 0.0
  %3844 = vmatpush1.xpose.msra.mxu0 0.0
  %3845 = vmatprep.subr.mxu0 0.0
  %3846 = vmatpush1.xpose.msra.mxu0 0.0
  %3847 = vmatprep.subr.mxu0 0.0
  %3848 = vmatpush1.xpose.msra.mxu0 0.0
  %3849 = vmatprep.subr.mxu0 0.0
  %3850 = vmatpush1.xpose.msra.mxu0 0.0
  %3851 = vmatprep.subr.mxu0 0.0
  %3852 = vmatpush1.xpose.msra.mxu0 0.0
  %3853 = vmatprep.subr.mxu0 0.0
  %3854 = vmatpush1.xpose.msra.mxu0 0.0
  %3855 = vmatprep.subr.mxu0 0.0
  %3856 = vmatpush1.xpose.msra.mxu0 0.0
  %3857 = vmatprep.subr.mxu0 0.0
  %3858 = vmatpush1.xpose.msra.mxu0 0.0
  %3859 = vmatprep.subr.mxu0 0.0
  %3860 = vmatpush1.xpose.msra.mxu0 0.0
  %3861 = vmatprep.subr.mxu0 0.0
  %3862 = vmatpush1.xpose.msra.mxu0 0.0
  %3863 = vmatprep.subr.mxu0 0.0
  %3864 = vmatpush1.xpose.msra.mxu0 0.0
  %3865 = vmatprep.subr.mxu0 0.0
  %3866 = vmatpush1.xpose.msra.mxu0 0.0
  %3867 = vmatprep.subr.mxu0 0.0
  %3868 = vmatpush1.xpose.msra.mxu0 0.0
  %3869 = vmatprep.subr.mxu0 0.0
  %3870 = vmatpush1.xpose.msra.mxu0 0.0
  %3871 = vmatprep.subr.mxu0 0.0
  %3872 = vmatpush1.xpose.msra.mxu0 0.0
  %3873 = vmatprep.subr.mxu0 0.0
  %3874 = vmatpush1.xpose.msra.mxu0 0.0
  %3875 = vmatprep.subr.mxu0 0.0
  %3876 = vmatpush1.xpose.msra.mxu0 0.0
  %3877 = vmatprep.subr.mxu0 0.0
  %3878 = vmatpush1.xpose.msra.mxu0 0.0
  %3879 = vmatprep.subr.mxu0 0.0
  %3880 = vmatpush1.xpose.msra.mxu0 0.0
  %3881 = vmatprep.subr.mxu0 0.0
  %3882 = vmatpush1.xpose.msra.mxu0 0.0
  %3883 = vmatprep.subr.mxu0 0.0
  %3884 = vmatpush1.xpose.msra.mxu0 0.0
  %3885 = vmatprep.subr.mxu0 0.0
  %3886 = vmatpush1.xpose.msra.mxu0 0.0
  %3887 = vmatprep.subr.mxu0 0.0
  %3888 = vmatpush1.xpose.msra.mxu0 0.0
  %3889 = vmatprep.subr.mxu0 0.0
  %3890 = vmatpush1.xpose.msra.mxu0 0.0
  %3891 = vmatprep.subr.mxu0 0.0
  %3892 = vmatpush1.xpose.msra.mxu0 0.0
  %3893 = vmatprep.subr.mxu0 0.0
  %3894 = vmatpush1.xpose.msra.mxu0 0.0
  %3895 = vmatprep.subr.mxu0 0.0
  %3896 = vmatpush1.xpose.msra.mxu0 0.0
  %3897 = vmatprep.mubr.f32.mxu0 0.0
  %3898 = vmatmul.mubr.f32.gmra.mrb[0].mxu0 %v3829
  %v3899 = vpop.f32.mrb[0].mxu0
  %v3900 = vadd.f32 0.0, %v3899
  %v3901 = vpop.f32.mrb[0].mxu0
  %3902 = vdwg.mxu0
  %3903 = vrot.lane.b32.xlu0 %v3740, 96
  %v3904 = vpop.permute.xlu0 %3903
  %v3905 = vsel %vm238, %v3740, 0
  %v3907 = vsel %vm238, %v3904, 0
  %3909 = vmatprep.subr.mxu0 0.0
  %3910 = vmatpush1.xpose.msra.mxu0 %v3907
  %3911 = vmatprep.subr.mxu0 0.0
  %3912 = vmatpush1.xpose.msra.mxu0 0.0
  %3913 = vmatprep.subr.mxu0 0.0
  %3914 = vmatpush1.xpose.msra.mxu0 0.0
  %3915 = vmatprep.subr.mxu0 0.0
  %3916 = vmatpush1.xpose.msra.mxu0 0.0
  %3917 = vmatprep.subr.mxu0 0.0
  %3918 = vmatpush1.xpose.msra.mxu0 0.0
  %3919 = vmatprep.subr.mxu0 0.0
  %3920 = vmatpush1.xpose.msra.mxu0 0.0
  %3921 = vmatprep.subr.mxu0 0.0
  %3922 = vmatpush1.xpose.msra.mxu0 0.0
  %3923 = vmatprep.subr.mxu0 0.0
  %3924 = vmatpush1.xpose.msra.mxu0 0.0
  %3925 = vmatprep.subr.mxu0 0.0
  %3926 = vmatpush1.xpose.msra.mxu0 0.0
  %3927 = vmatprep.subr.mxu0 0.0
  %3928 = vmatpush1.xpose.msra.mxu0 0.0
  %3929 = vmatprep.subr.mxu0 0.0
  %3930 = vmatpush1.xpose.msra.mxu0 0.0
  %3931 = vmatprep.subr.mxu0 0.0
  %3932 = vmatpush1.xpose.msra.mxu0 0.0
  %3933 = vmatprep.subr.mxu0 0.0
  %3934 = vmatpush1.xpose.msra.mxu0 0.0
  %3935 = vmatprep.subr.mxu0 0.0
  %3936 = vmatpush1.xpose.msra.mxu0 0.0
  %3937 = vmatprep.subr.mxu0 0.0
  %3938 = vmatpush1.xpose.msra.mxu0 0.0
  %3939 = vmatprep.subr.mxu0 0.0
  %3940 = vmatpush1.xpose.msra.mxu0 0.0
  %3941 = vmatprep.subr.mxu0 0.0
  %3942 = vmatpush1.xpose.msra.mxu0 0.0
  %3943 = vmatprep.subr.mxu0 0.0
  %3944 = vmatpush1.xpose.msra.mxu0 0.0
  %3945 = vmatprep.subr.mxu0 0.0
  %3946 = vmatpush1.xpose.msra.mxu0 0.0
  %3947 = vmatprep.subr.mxu0 0.0
  %3948 = vmatpush1.xpose.msra.mxu0 0.0
  %3949 = vmatprep.subr.mxu0 0.0
  %3950 = vmatpush1.xpose.msra.mxu0 0.0
  %3951 = vmatprep.subr.mxu0 0.0
  %3952 = vmatpush1.xpose.msra.mxu0 0.0
  %3953 = vmatprep.subr.mxu0 0.0
  %3954 = vmatpush1.xpose.msra.mxu0 0.0
  %3955 = vmatprep.subr.mxu0 0.0
  %3956 = vmatpush1.xpose.msra.mxu0 0.0
  %3957 = vmatprep.subr.mxu0 0.0
  %3958 = vmatpush1.xpose.msra.mxu0 0.0
  %3959 = vmatprep.subr.mxu0 0.0
  %3960 = vmatpush1.xpose.msra.mxu0 0.0
  %3961 = vmatprep.subr.mxu0 0.0
  %3962 = vmatpush1.xpose.msra.mxu0 0.0
  %3963 = vmatprep.subr.mxu0 0.0
  %3964 = vmatpush1.xpose.msra.mxu0 0.0
  %3965 = vmatprep.subr.mxu0 0.0
  %3966 = vmatpush1.xpose.msra.mxu0 0.0
  %3967 = vmatprep.subr.mxu0 0.0
  %3968 = vmatpush1.xpose.msra.mxu0 0.0
  %3969 = vmatprep.subr.mxu0 0.0
  %3970 = vmatpush1.xpose.msra.mxu0 0.0
  %3971 = vmatprep.subr.mxu0 0.0
  %3972 = vmatpush1.xpose.msra.mxu0 0.0
  %3973 = vmatprep.mubr.f32.mxu0 0.0
  %3974 = vmatmul.mubr.f32.gmra.mrb[0].mxu0 %v3905
  %v3975 = vpop.f32.mrb[0].mxu0
  %v3976 = vadd.f32 0.0, %v3975
  %v3977 = vpop.f32.mrb[0].mxu0
  %3978 = vdwg.mxu0
  %3979 = vrot.lane.b32.xlu0 %v3742, 96
  %v3980 = vpop.permute.xlu0 %3979
  %v3981 = vsel %vm238, %v3742, 0
  %v3983 = vsel %vm238, %v3980, 0
  %3985 = vmatprep.subr.mxu0 0.0
  %3986 = vmatpush1.xpose.msra.mxu0 %v3983
  %3987 = vmatprep.subr.mxu0 0.0
  %3988 = vmatpush1.xpose.msra.mxu0 0.0
  %3989 = vmatprep.subr.mxu0 0.0
  %3990 = vmatpush1.xpose.msra.mxu0 0.0
  %3991 = vmatprep.subr.mxu0 0.0
  %3992 = vmatpush1.xpose.msra.mxu0 0.0
  %3993 = vmatprep.subr.mxu0 0.0
  %3994 = vmatpush1.xpose.msra.mxu0 0.0
  %3995 = vmatprep.subr.mxu0 0.0
  %3996 = vmatpush1.xpose.msra.mxu0 0.0
  %3997 = vmatprep.subr.mxu0 0.0
  %3998 = vmatpush1.xpose.msra.mxu0 0.0
  %3999 = vmatprep.subr.mxu0 0.0
  %4000 = vmatpush1.xpose.msra.mxu0 0.0
  %4001 = vmatprep.subr.mxu0 0.0
  %4002 = vmatpush1.xpose.msra.mxu0 0.0
  %4003 = vmatprep.subr.mxu0 0.0
  %4004 = vmatpush1.xpose.msra.mxu0 0.0
  %4005 = vmatprep.subr.mxu0 0.0
  %4006 = vmatpush1.xpose.msra.mxu0 0.0
  %4007 = vmatprep.subr.mxu0 0.0
  %4008 = vmatpush1.xpose.msra.mxu0 0.0
  %4009 = vmatprep.subr.mxu0 0.0
  %4010 = vmatpush1.xpose.msra.mxu0 0.0
  %4011 = vmatprep.subr.mxu0 0.0
  %4012 = vmatpush1.xpose.msra.mxu0 0.0
  %4013 = vmatprep.subr.mxu0 0.0
  %4014 = vmatpush1.xpose.msra.mxu0 0.0
  %4015 = vmatprep.subr.mxu0 0.0
  %4016 = vmatpush1.xpose.msra.mxu0 0.0
  %4017 = vmatprep.subr.mxu0 0.0
  %4018 = vmatpush1.xpose.msra.mxu0 0.0
  %4019 = vmatprep.subr.mxu0 0.0
  %4020 = vmatpush1.xpose.msra.mxu0 0.0
  %4021 = vmatprep.subr.mxu0 0.0
  %4022 = vmatpush1.xpose.msra.mxu0 0.0
  %4023 = vmatprep.subr.mxu0 0.0
  %4024 = vmatpush1.xpose.msra.mxu0 0.0
  %4025 = vmatprep.subr.mxu0 0.0
  %4026 = vmatpush1.xpose.msra.mxu0 0.0
  %4027 = vmatprep.subr.mxu0 0.0
  %4028 = vmatpush1.xpose.msra.mxu0 0.0
  %4029 = vmatprep.subr.mxu0 0.0
  %4030 = vmatpush1.xpose.msra.mxu0 0.0
  %4031 = vmatprep.subr.mxu0 0.0
  %4032 = vmatpush1.xpose.msra.mxu0 0.0
  %4033 = vmatprep.subr.mxu0 0.0
  %4034 = vmatpush1.xpose.msra.mxu0 0.0
  %4035 = vmatprep.subr.mxu0 0.0
  %4036 = vmatpush1.xpose.msra.mxu0 0.0
  %4037 = vmatprep.subr.mxu0 0.0
  %4038 = vmatpush1.xpose.msra.mxu0 0.0
  %4039 = vmatprep.subr.mxu0 0.0
  %4040 = vmatpush1.xpose.msra.mxu0 0.0
  %4041 = vmatprep.subr.mxu0 0.0
  %4042 = vmatpush1.xpose.msra.mxu0 0.0
  %4043 = vmatprep.subr.mxu0 0.0
  %4044 = vmatpush1.xpose.msra.mxu0 0.0
  %4045 = vmatprep.subr.mxu0 0.0
  %4046 = vmatpush1.xpose.msra.mxu0 0.0
  %4047 = vmatprep.subr.mxu0 0.0
  %4048 = vmatpush1.xpose.msra.mxu0 0.0
  %4049 = vmatprep.mubr.f32.mxu0 0.0
  %4050 = vmatmul.mubr.f32.gmra.mrb[0].mxu0 %v3981
  %v4051 = vpop.f32.mrb[0].mxu0
  %v4052 = vadd.f32 0.0, %v4051
  %v4053 = vpop.f32.mrb[0].mxu0
  %4054 = vdwg.mxu0
  %4055 = vrot.lane.b32.xlu0 %v3744, 96
  %v4056 = vpop.permute.xlu0 %4055
  %v4057 = vsel %vm238, %v3744, 0
  %v4059 = vsel %vm238, %v4056, 0
  %4061 = vmatprep.subr.mxu0 0.0
  %4062 = vmatpush1.xpose.msra.mxu0 %v4059
  %4063 = vmatprep.subr.mxu0 0.0
  %4064 = vmatpush1.xpose.msra.mxu0 0.0
  %4065 = vmatprep.subr.mxu0 0.0
  %4066 = vmatpush1.xpose.msra.mxu0 0.0
  %4067 = vmatprep.subr.mxu0 0.0
  %4068 = vmatpush1.xpose.msra.mxu0 0.0
  %4069 = vmatprep.subr.mxu0 0.0
  %4070 = vmatpush1.xpose.msra.mxu0 0.0
  %4071 = vmatprep.subr.mxu0 0.0
  %4072 = vmatpush1.xpose.msra.mxu0 0.0
  %4073 = vmatprep.subr.mxu0 0.0
  %4074 = vmatpush1.xpose.msra.mxu0 0.0
  %4075 = vmatprep.subr.mxu0 0.0
  %4076 = vmatpush1.xpose.msra.mxu0 0.0
  %4077 = vmatprep.subr.mxu0 0.0
  %4078 = vmatpush1.xpose.msra.mxu0 0.0
  %4079 = vmatprep.subr.mxu0 0.0
  %4080 = vmatpush1.xpose.msra.mxu0 0.0
  %4081 = vmatprep.subr.mxu0 0.0
  %4082 = vmatpush1.xpose.msra.mxu0 0.0
  %4083 = vmatprep.subr.mxu0 0.0
  %4084 = vmatpush1.xpose.msra.mxu0 0.0
  %4085 = vmatprep.subr.mxu0 0.0
  %4086 = vmatpush1.xpose.msra.mxu0 0.0
  %4087 = vmatprep.subr.mxu0 0.0
  %4088 = vmatpush1.xpose.msra.mxu0 0.0
  %4089 = vmatprep.subr.mxu0 0.0
  %4090 = vmatpush1.xpose.msra.mxu0 0.0
  %4091 = vmatprep.subr.mxu0 0.0
  %4092 = vmatpush1.xpose.msra.mxu0 0.0
  %4093 = vmatprep.subr.mxu0 0.0
  %4094 = vmatpush1.xpose.msra.mxu0 0.0
  %4095 = vmatprep.subr.mxu0 0.0
  %4096 = vmatpush1.xpose.msra.mxu0 0.0
  %4097 = vmatprep.subr.mxu0 0.0
  %4098 = vmatpush1.xpose.msra.mxu0 0.0
  %4099 = vmatprep.subr.mxu0 0.0
  %4100 = vmatpush1.xpose.msra.mxu0 0.0
  %4101 = vmatprep.subr.mxu0 0.0
  %4102 = vmatpush1.xpose.msra.mxu0 0.0
  %4103 = vmatprep.subr.mxu0 0.0
  %4104 = vmatpush1.xpose.msra.mxu0 0.0
  %4105 = vmatprep.subr.mxu0 0.0
  %4106 = vmatpush1.xpose.msra.mxu0 0.0
  %4107 = vmatprep.subr.mxu0 0.0
  %4108 = vmatpush1.xpose.msra.mxu0 0.0
  %4109 = vmatprep.subr.mxu0 0.0
  %4110 = vmatpush1.xpose.msra.mxu0 0.0
  %4111 = vmatprep.subr.mxu0 0.0
  %4112 = vmatpush1.xpose.msra.mxu0 0.0
  %4113 = vmatprep.subr.mxu0 0.0
  %4114 = vmatpush1.xpose.msra.mxu0 0.0
  %4115 = vmatprep.subr.mxu0 0.0
  %4116 = vmatpush1.xpose.msra.mxu0 0.0
  %4117 = vmatprep.subr.mxu0 0.0
  %4118 = vmatpush1.xpose.msra.mxu0 0.0
  %4119 = vmatprep.subr.mxu0 0.0
  %4120 = vmatpush1.xpose.msra.mxu0 0.0
  %4121 = vmatprep.subr.mxu0 0.0
  %4122 = vmatpush1.xpose.msra.mxu0 0.0
  %4123 = vmatprep.subr.mxu0 0.0
  %4124 = vmatpush1.xpose.msra.mxu0 0.0
  %4125 = vmatprep.mubr.f32.mxu0 0.0
  %4126 = vmatmul.mubr.f32.gmra.mrb[0].mxu0 %v4057
  %v4127 = vpop.f32.mrb[0].mxu0
  %v4128 = vadd.f32 0.0, %v4127
  %v4129 = vpop.f32.mrb[0].mxu0
  %4130 = vdwg.mxu0
  %4131 = vrot.lane.b32.xlu0 %v3746, 96
  %v4132 = vpop.permute.xlu0 %4131
  %v4133 = vsel %vm238, %v3746, 0
  %v4135 = vsel %vm238, %v4132, 0
  %4137 = vmatprep.subr.mxu0 0.0
  %4138 = vmatpush1.xpose.msra.mxu0 %v4135
  %4139 = vmatprep.subr.mxu0 0.0
  %4140 = vmatpush1.xpose.msra.mxu0 0.0
  %4141 = vmatprep.subr.mxu0 0.0
  %4142 = vmatpush1.xpose.msra.mxu0 0.0
  %4143 = vmatprep.subr.mxu0 0.0
  %4144 = vmatpush1.xpose.msra.mxu0 0.0
  %4145 = vmatprep.subr.mxu0 0.0
  %4146 = vmatpush1.xpose.msra.mxu0 0.0
  %4147 = vmatprep.subr.mxu0 0.0
  %4148 = vmatpush1.xpose.msra.mxu0 0.0
  %4149 = vmatprep.subr.mxu0 0.0
  %4150 = vmatpush1.xpose.msra.mxu0 0.0
  %4151 = vmatprep.subr.mxu0 0.0
  %4152 = vmatpush1.xpose.msra.mxu0 0.0
  %4153 = vmatprep.subr.mxu0 0.0
  %4154 = vmatpush1.xpose.msra.mxu0 0.0
  %4155 = vmatprep.subr.mxu0 0.0
  %4156 = vmatpush1.xpose.msra.mxu0 0.0
  %4157 = vmatprep.subr.mxu0 0.0
  %4158 = vmatpush1.xpose.msra.mxu0 0.0
  %4159 = vmatprep.subr.mxu0 0.0
  %4160 = vmatpush1.xpose.msra.mxu0 0.0
  %4161 = vmatprep.subr.mxu0 0.0
  %4162 = vmatpush1.xpose.msra.mxu0 0.0
  %4163 = vmatprep.subr.mxu0 0.0
  %4164 = vmatpush1.xpose.msra.mxu0 0.0
  %4165 = vmatprep.subr.mxu0 0.0
  %4166 = vmatpush1.xpose.msra.mxu0 0.0
  %4167 = vmatprep.subr.mxu0 0.0
  %4168 = vmatpush1.xpose.msra.mxu0 0.0
  %4169 = vmatprep.subr.mxu0 0.0
  %4170 = vmatpush1.xpose.msra.mxu0 0.0
  %4171 = vmatprep.subr.mxu0 0.0
  %4172 = vmatpush1.xpose.msra.mxu0 0.0
  %4173 = vmatprep.subr.mxu0 0.0
  %4174 = vmatpush1.xpose.msra.mxu0 0.0
  %4175 = vmatprep.subr.mxu0 0.0
  %4176 = vmatpush1.xpose.msra.mxu0 0.0
  %4177 = vmatprep.subr.mxu0 0.0
  %4178 = vmatpush1.xpose.msra.mxu0 0.0
  %4179 = vmatprep.subr.mxu0 0.0
  %4180 = vmatpush1.xpose.msra.mxu0 0.0
  %4181 = vmatprep.subr.mxu0 0.0
  %4182 = vmatpush1.xpose.msra.mxu0 0.0
  %4183 = vmatprep.subr.mxu0 0.0
  %4184 = vmatpush1.xpose.msra.mxu0 0.0
  %4185 = vmatprep.subr.mxu0 0.0
  %4186 = vmatpush1.xpose.msra.mxu0 0.0
  %4187 = vmatprep.subr.mxu0 0.0
  %4188 = vmatpush1.xpose.msra.mxu0 0.0
  %4189 = vmatprep.subr.mxu0 0.0
  %4190 = vmatpush1.xpose.msra.mxu0 0.0
  %4191 = vmatprep.subr.mxu0 0.0
  %4192 = vmatpush1.xpose.msra.mxu0 0.0
  %4193 = vmatprep.subr.mxu0 0.0
  %4194 = vmatpush1.xpose.msra.mxu0 0.0
  %4195 = vmatprep.subr.mxu0 0.0
  %4196 = vmatpush1.xpose.msra.mxu0 0.0
  %4197 = vmatprep.subr.mxu0 0.0
  %4198 = vmatpush1.xpose.msra.mxu0 0.0
  %4199 = vmatprep.subr.mxu0 0.0
  %4200 = vmatpush1.xpose.msra.mxu0 0.0
  %4201 = vmatprep.mubr.f32.mxu0 0.0
  %4202 = vmatmul.mubr.f32.gmra.mrb[0].mxu0 %v4133
  %v4203 = vpop.f32.mrb[0].mxu0
  %v4204 = vadd.f32 0.0, %v4203
  %v4205 = vpop.f32.mrb[0].mxu0
  %4206 = vdwg.mxu0
  %4207 = vrot.lane.b32.xlu0 %v3748, 96
  %v4208 = vpop.permute.xlu0 %4207
  %v4209 = vsel %vm238, %v3748, 0
  %v4211 = vsel %vm238, %v4208, 0
  %4213 = vmatprep.subr.mxu0 0.0
  %4214 = vmatpush1.xpose.msra.mxu0 %v4211
  %4215 = vmatprep.subr.mxu0 0.0
  %4216 = vmatpush1.xpose.msra.mxu0 0.0
  %4217 = vmatprep.subr.mxu0 0.0
  %4218 = vmatpush1.xpose.msra.mxu0 0.0
  %4219 = vmatprep.subr.mxu0 0.0
  %4220 = vmatpush1.xpose.msra.mxu0 0.0
  %4221 = vmatprep.subr.mxu0 0.0
  %4222 = vmatpush1.xpose.msra.mxu0 0.0
  %4223 = vmatprep.subr.mxu0 0.0
  %4224 = vmatpush1.xpose.msra.mxu0 0.0
  %4225 = vmatprep.subr.mxu0 0.0
  %4226 = vmatpush1.xpose.msra.mxu0 0.0
  %4227 = vmatprep.subr.mxu0 0.0
  %4228 = vmatpush1.xpose.msra.mxu0 0.0
  %4229 = vmatprep.subr.mxu0 0.0
  %4230 = vmatpush1.xpose.msra.mxu0 0.0
  %4231 = vmatprep.subr.mxu0 0.0
  %4232 = vmatpush1.xpose.msra.mxu0 0.0
  %4233 = vmatprep.subr.mxu0 0.0
  %4234 = vmatpush1.xpose.msra.mxu0 0.0
  %4235 = vmatprep.subr.mxu0 0.0
  %4236 = vmatpush1.xpose.msra.mxu0 0.0
  %4237 = vmatprep.subr.mxu0 0.0
  %4238 = vmatpush1.xpose.msra.mxu0 0.0
  %4239 = vmatprep.subr.mxu0 0.0
  %4240 = vmatpush1.xpose.msra.mxu0 0.0
  %4241 = vmatprep.subr.mxu0 0.0
  %4242 = vmatpush1.xpose.msra.mxu0 0.0
  %4243 = vmatprep.subr.mxu0 0.0
  %4244 = vmatpush1.xpose.msra.mxu0 0.0
  %4245 = vmatprep.subr.mxu0 0.0
  %4246 = vmatpush1.xpose.msra.mxu0 0.0
  %4247 = vmatprep.subr.mxu0 0.0
  %4248 = vmatpush1.xpose.msra.mxu0 0.0
  %4249 = vmatprep.subr.mxu0 0.0
  %4250 = vmatpush1.xpose.msra.mxu0 0.0
  %4251 = vmatprep.subr.mxu0 0.0
  %4252 = vmatpush1.xpose.msra.mxu0 0.0
  %4253 = vmatprep.subr.mxu0 0.0
  %4254 = vmatpush1.xpose.msra.mxu0 0.0
  %4255 = vmatprep.subr.mxu0 0.0
  %4256 = vmatpush1.xpose.msra.mxu0 0.0
  %4257 = vmatprep.subr.mxu0 0.0
  %4258 = vmatpush1.xpose.msra.mxu0 0.0
  %4259 = vmatprep.subr.mxu0 0.0
  %4260 = vmatpush1.xpose.msra.mxu0 0.0
  %4261 = vmatprep.subr.mxu0 0.0
  %4262 = vmatpush1.xpose.msra.mxu0 0.0
  %4263 = vmatprep.subr.mxu0 0.0
  %4264 = vmatpush1.xpose.msra.mxu0 0.0
  %4265 = vmatprep.subr.mxu0 0.0
  %4266 = vmatpush1.xpose.msra.mxu0 0.0
  %4267 = vmatprep.subr.mxu0 0.0
  %4268 = vmatpush1.xpose.msra.mxu0 0.0
  %4269 = vmatprep.subr.mxu0 0.0
  %4270 = vmatpush1.xpose.msra.mxu0 0.0
  %4271 = vmatprep.subr.mxu0 0.0
  %4272 = vmatpush1.xpose.msra.mxu0 0.0
  %4273 = vmatprep.subr.mxu0 0.0
  %4274 = vmatpush1.xpose.msra.mxu0 0.0
  %4275 = vmatprep.subr.mxu0 0.0
  %4276 = vmatpush1.xpose.msra.mxu0 0.0
  %4277 = vmatprep.mubr.f32.mxu0 0.0
  %4278 = vmatmul.mubr.f32.gmra.mrb[0].mxu0 %v4209
  %v4279 = vpop.f32.mrb[0].mxu0
  %v4280 = vadd.f32 0.0, %v4279
  %v4281 = vpop.f32.mrb[0].mxu0
  %4282 = vdwg.mxu0
  %4283 = vrot.lane.b32.xlu0 %v3750, 96
  %v4284 = vpop.permute.xlu0 %4283
  %v4285 = vsel %vm238, %v3750, 0
  %v4287 = vsel %vm238, %v4284, 0
  %4289 = vmatprep.subr.mxu0 0.0
  %4290 = vmatpush1.xpose.msra.mxu0 %v4287
  %4291 = vmatprep.subr.mxu0 0.0
  %4292 = vmatpush1.xpose.msra.mxu0 0.0
  %4293 = vmatprep.subr.mxu0 0.0
  %4294 = vmatpush1.xpose.msra.mxu0 0.0
  %4295 = vmatprep.subr.mxu0 0.0
  %4296 = vmatpush1.xpose.msra.mxu0 0.0
  %4297 = vmatprep.subr.mxu0 0.0
  %4298 = vmatpush1.xpose.msra.mxu0 0.0
  %4299 = vmatprep.subr.mxu0 0.0
  %4300 = vmatpush1.xpose.msra.mxu0 0.0
  %4301 = vmatprep.subr.mxu0 0.0
  %4302 = vmatpush1.xpose.msra.mxu0 0.0
  %4303 = vmatprep.subr.mxu0 0.0
  %4304 = vmatpush1.xpose.msra.mxu0 0.0
  %4305 = vmatprep.subr.mxu0 0.0
  %4306 = vmatpush1.xpose.msra.mxu0 0.0
  %4307 = vmatprep.subr.mxu0 0.0
  %4308 = vmatpush1.xpose.msra.mxu0 0.0
  %4309 = vmatprep.subr.mxu0 0.0
  %4310 = vmatpush1.xpose.msra.mxu0 0.0
  %4311 = vmatprep.subr.mxu0 0.0
  %4312 = vmatpush1.xpose.msra.mxu0 0.0
  %4313 = vmatprep.subr.mxu0 0.0
  %4314 = vmatpush1.xpose.msra.mxu0 0.0
  %4315 = vmatprep.subr.mxu0 0.0
  %4316 = vmatpush1.xpose.msra.mxu0 0.0
  %4317 = vmatprep.subr.mxu0 0.0
  %4318 = vmatpush1.xpose.msra.mxu0 0.0
  %4319 = vmatprep.subr.mxu0 0.0
  %4320 = vmatpush1.xpose.msra.mxu0 0.0
  %4321 = vmatprep.subr.mxu0 0.0
  %4322 = vmatpush1.xpose.msra.mxu0 0.0
  %4323 = vmatprep.subr.mxu0 0.0
  %4324 = vmatpush1.xpose.msra.mxu0 0.0
  %4325 = vmatprep.subr.mxu0 0.0
  %4326 = vmatpush1.xpose.msra.mxu0 0.0
  %4327 = vmatprep.subr.mxu0 0.0
  %4328 = vmatpush1.xpose.msra.mxu0 0.0
  %4329 = vmatprep.subr.mxu0 0.0
  %4330 = vmatpush1.xpose.msra.mxu0 0.0
  %4331 = vmatprep.subr.mxu0 0.0
  %4332 = vmatpush1.xpose.msra.mxu0 0.0
  %4333 = vmatprep.subr.mxu0 0.0
  %4334 = vmatpush1.xpose.msra.mxu0 0.0
  %4335 = vmatprep.subr.mxu0 0.0
  %4336 = vmatpush1.xpose.msra.mxu0 0.0
  %4337 = vmatprep.subr.mxu0 0.0
  %4338 = vmatpush1.xpose.msra.mxu0 0.0
  %4339 = vmatprep.subr.mxu0 0.0
  %4340 = vmatpush1.xpose.msra.mxu0 0.0
  %4341 = vmatprep.subr.mxu0 0.0
  %4342 = vmatpush1.xpose.msra.mxu0 0.0
  %4343 = vmatprep.subr.mxu0 0.0
  %4344 = vmatpush1.xpose.msra.mxu0 0.0
  %4345 = vmatprep.subr.mxu0 0.0
  %4346 = vmatpush1.xpose.msra.mxu0 0.0
  %4347 = vmatprep.subr.mxu0 0.0
  %4348 = vmatpush1.xpose.msra.mxu0 0.0
  %4349 = vmatprep.subr.mxu0 0.0
  %4350 = vmatpush1.xpose.msra.mxu0 0.0
  %4351 = vmatprep.subr.mxu0 0.0
  %4352 = vmatpush1.xpose.msra.mxu0 0.0
  %4353 = vmatprep.mubr.f32.mxu0 0.0
  %4354 = vmatmul.mubr.f32.gmra.mrb[0].mxu0 %v4285
  %v4355 = vpop.f32.mrb[0].mxu0
  %v4356 = vadd.f32 0.0, %v4355
  %v4357 = vpop.f32.mrb[0].mxu0
  %4358 = vdwg.mxu0
  %v4359 = vmul.f32 %v3824, 0.35355338
  %v4360 = vmul.f32 %v3900, 0.35355338
  %v4361 = vmul.f32 %v3976, 0.35355338
  %v4362 = vmul.f32 %v4052, 0.35355338
  %v4363 = vmul.f32 %v4128, 0.35355338
  %v4364 = vmul.f32 %v4204, 0.35355338
  %v4365 = vmul.f32 %v4280, 0.35355338
  %v4366 = vmul.f32 %v4356, 0.35355338
  %v4367 = vadd.f32 %v4359, %v123
  %v4368 = vadd.f32 %v4360, %v123
  %v4369 = vadd.f32 %v4361, %v123
  %v4370 = vadd.f32 %v4362, %v123
  %v4371 = vadd.f32 %v4363, %v123
  %v4372 = vadd.f32 %v4364, %v123
  %v4373 = vadd.f32 %v4365, %v123
  %v4374 = vadd.f32 %v4366, %v123
  %v4375 = vsel %vm238, %v4367, -inf
  %4376 = vmax.xlane.f32.xlu0 %v4375
  %v4377 = vpop.xlane.xlu0 %4376
  %v4378 = vsel %vm238, %v4368, -inf
  %4379 = vmax.xlane.f32.xlu0 %v4378
  %v4380 = vpop.xlane.xlu0 %4379
  %v4381 = vsel %vm238, %v4369, -inf
  %4382 = vmax.xlane.f32.xlu0 %v4381
  %v4383 = vpop.xlane.xlu0 %4382
  %v4384 = vsel %vm238, %v4370, -inf
  %4385 = vmax.xlane.f32.xlu0 %v4384
  %v4386 = vpop.xlane.xlu0 %4385
  %v4387 = vsel %vm238, %v4371, -inf
  %4388 = vmax.xlane.f32.xlu0 %v4387
  %v4389 = vpop.xlane.xlu0 %4388
  %v4390 = vsel %vm238, %v4372, -inf
  %4391 = vmax.xlane.f32.xlu0 %v4390
  %v4392 = vpop.xlane.xlu0 %4391
  %v4393 = vsel %vm238, %v4373, -inf
  %4394 = vmax.xlane.f32.xlu0 %v4393
  %v4395 = vpop.xlane.xlu0 %4394
  %v4396 = vsel %vm238, %v4374, -inf
  %4397 = vmax.xlane.f32.xlu0 %v4396
  %v4398 = vpop.xlane.xlu0 %4397
  %v4399 = vsub.f32 %v4367, %v4377
  %v4400 = vsub.f32 %v4368, %v4380
  %v4401 = vsub.f32 %v4369, %v4383
  %v4402 = vsub.f32 %v4370, %v4386
  %v4403 = vsub.f32 %v4371, %v4389
  %v4404 = vsub.f32 %v4372, %v4392
  %v4405 = vsub.f32 %v4373, %v4395
  %v4406 = vsub.f32 %v4374, %v4398
  %v4407 = vmul.f32 %v4399, 1.442695
  %v4408 = vpow.pop %v4407
  %v4409 = vmul.f32 %v4400, 1.442695
  %v4410 = vpow.pop %v4409
  %v4411 = vmul.f32 %v4401, 1.442695
  %v4412 = vpow.pop %v4411
  %v4413 = vmul.f32 %v4402, 1.442695
  %v4414 = vpow.pop %v4413
  %v4415 = vmul.f32 %v4403, 1.442695
  %v4416 = vpow.pop %v4415
  %v4417 = vmul.f32 %v4404, 1.442695
  %v4418 = vpow.pop %v4417
  %v4419 = vmul.f32 %v4405, 1.442695
  %v4420 = vpow.pop %v4419
  %v4421 = vmul.f32 %v4406, 1.442695
  %v4422 = vpow.pop %v4421
  %v4423 = vsel %vm238, %v4408, 0.0
  %4424 = vadd.xlane.f32.xlu0 %v4423
  %v4425 = vpop.xlane.xlu0 %4424
  %v4426 = vsel %vm238, %v4410, 0.0
  %4427 = vadd.xlane.f32.xlu0 %v4426
  %v4428 = vpop.xlane.xlu0 %4427
  %v4429 = vsel %vm238, %v4412, 0.0
  %4430 = vadd.xlane.f32.xlu0 %v4429
  %v4431 = vpop.xlane.xlu0 %4430
  %v4432 = vsel %vm238, %v4414, 0.0
  %4433 = vadd.xlane.f32.xlu0 %v4432
  %v4434 = vpop.xlane.xlu0 %4433
  %v4435 = vsel %vm238, %v4416, 0.0
  %4436 = vadd.xlane.f32.xlu0 %v4435
  %v4437 = vpop.xlane.xlu0 %4436
  %v4438 = vsel %vm238, %v4418, 0.0
  %4439 = vadd.xlane.f32.xlu0 %v4438
  %v4440 = vpop.xlane.xlu0 %4439
  %v4441 = vsel %vm238, %v4420, 0.0
  %4442 = vadd.xlane.f32.xlu0 %v4441
  %v4443 = vpop.xlane.xlu0 %4442
  %v4444 = vsel %vm238, %v4422, 0.0
  %4445 = vadd.xlane.f32.xlu0 %v4444
  %v4446 = vpop.xlane.xlu0 %4445
  %v4447 = vrcp.pop %v4425
  %v4448 = vrcp.pop %v4428
  %v4449 = vrcp.pop %v4431
  %v4450 = vrcp.pop %v4434
  %v4451 = vrcp.pop %v4437
  %v4452 = vrcp.pop %v4440
  %v4453 = vrcp.pop %v4443
  %v4454 = vrcp.pop %v4446
  %v4455 = vmul.f32 %v4408, %v4447
  %v4456 = vmul.f32 %v4410, %v4448
  %v4457 = vmul.f32 %v4412, %v4449
  %v4458 = vmul.f32 %v4414, %v4450
  %v4459 = vmul.f32 %v4416, %v4451
  %v4460 = vmul.f32 %v4418, %v4452
  %v4461 = vmul.f32 %v4420, %v4453
  %v4462 = vmul.f32 %v4422, %v4454
  %4463 = vrot.lane.b32.xlu0 %v3722, 64
  %v4464 = vpop.permute.xlu0 %4463
  %v4467 = vsel %vm238, %v4455, 0
  %4469 = vmatprep.subr.mxu0 0.0
  %4470 = vmatpush1.msra.mxu0 %v4464
  %4471 = vmatprep.subr.mxu0 0.0
  %4472 = vmatpush1.msra.mxu0 0.0
  %4473 = vmatprep.subr.mxu0 0.0
  %4474 = vmatpush1.msra.mxu0 0.0
  %4475 = vmatprep.subr.mxu0 0.0
  %4476 = vmatpush1.msra.mxu0 0.0
  %4477 = vmatprep.subr.mxu0 0.0
  %4478 = vmatpush1.msra.mxu0 0.0
  %4479 = vmatprep.subr.mxu0 0.0
  %4480 = vmatpush1.msra.mxu0 0.0
  %4481 = vmatprep.subr.mxu0 0.0
  %4482 = vmatpush1.msra.mxu0 0.0
  %4483 = vmatprep.subr.mxu0 0.0
  %4484 = vmatpush1.msra.mxu0 0.0
  %4485 = vmatprep.subr.mxu0 0.0
  %4486 = vmatpush1.msra.mxu0 0.0
  %4487 = vmatprep.subr.mxu0 0.0
  %4488 = vmatpush1.msra.mxu0 0.0
  %4489 = vmatprep.subr.mxu0 0.0
  %4490 = vmatpush1.msra.mxu0 0.0
  %4491 = vmatprep.subr.mxu0 0.0
  %4492 = vmatpush1.msra.mxu0 0.0
  %4493 = vmatprep.subr.mxu0 0.0
  %4494 = vmatpush1.msra.mxu0 0.0
  %4495 = vmatprep.subr.mxu0 0.0
  %4496 = vmatpush1.msra.mxu0 0.0
  %4497 = vmatprep.subr.mxu0 0.0
  %4498 = vmatpush1.msra.mxu0 0.0
  %4499 = vmatprep.subr.mxu0 0.0
  %4500 = vmatpush1.msra.mxu0 0.0
  %4501 = vmatprep.subr.mxu0 0.0
  %4502 = vmatpush1.msra.mxu0 0.0
  %4503 = vmatprep.subr.mxu0 0.0
  %4504 = vmatpush1.msra.mxu0 0.0
  %4505 = vmatprep.subr.mxu0 0.0
  %4506 = vmatpush1.msra.mxu0 0.0
  %4507 = vmatprep.subr.mxu0 0.0
  %4508 = vmatpush1.msra.mxu0 0.0
  %4509 = vmatprep.subr.mxu0 0.0
  %4510 = vmatpush1.msra.mxu0 0.0
  %4511 = vmatprep.subr.mxu0 0.0
  %4512 = vmatpush1.msra.mxu0 0.0
  %4513 = vmatprep.subr.mxu0 0.0
  %4514 = vmatpush1.msra.mxu0 0.0
  %4515 = vmatprep.subr.mxu0 0.0
  %4516 = vmatpush1.msra.mxu0 0.0
  %4517 = vmatprep.subr.mxu0 0.0
  %4518 = vmatpush1.msra.mxu0 0.0
  %4519 = vmatprep.subr.mxu0 0.0
  %4520 = vmatpush1.msra.mxu0 0.0
  %4521 = vmatprep.subr.mxu0 0.0
  %4522 = vmatpush1.msra.mxu0 0.0
  %4523 = vmatprep.subr.mxu0 0.0
  %4524 = vmatpush1.msra.mxu0 0.0
  %4525 = vmatprep.subr.mxu0 0.0
  %4526 = vmatpush1.msra.mxu0 0.0
  %4527 = vmatprep.subr.mxu0 0.0
  %4528 = vmatpush1.msra.mxu0 0.0
  %4529 = vmatprep.subr.mxu0 0.0
  %4530 = vmatpush1.msra.mxu0 0.0
  %4531 = vmatprep.subr.mxu0 0.0
  %4532 = vmatpush1.msra.mxu0 0.0
  %4533 = vmatprep.mubr.f32.mxu0 0.0
  %4534 = vmatmul.mubr.f32.gmra.mrb[0].mxu0 %v4467
  %v4535 = vpop.f32.mrb[0].mxu0
  %v4536 = vadd.f32 0.0, %v4535
  %v4537 = vpop.f32.mrb[0].mxu0
  %4538 = vdwg.mxu0
  %4539 = vrot.lane.b32.xlu0 %v3727, 64
  %v4540 = vpop.permute.xlu0 %4539
  %v4543 = vsel %vm238, %v4456, 0
  %4545 = vmatprep.subr.mxu0 0.0
  %4546 = vmatpush1.msra.mxu0 %v4540
  %4547 = vmatprep.subr.mxu0 0.0
  %4548 = vmatpush1.msra.mxu0 0.0
  %4549 = vmatprep.subr.mxu0 0.0
  %4550 = vmatpush1.msra.mxu0 0.0
  %4551 = vmatprep.subr.mxu0 0.0
  %4552 = vmatpush1.msra.mxu0 0.0
  %4553 = vmatprep.subr.mxu0 0.0
  %4554 = vmatpush1.msra.mxu0 0.0
  %4555 = vmatprep.subr.mxu0 0.0
  %4556 = vmatpush1.msra.mxu0 0.0
  %4557 = vmatprep.subr.mxu0 0.0
  %4558 = vmatpush1.msra.mxu0 0.0
  %4559 = vmatprep.subr.mxu0 0.0
  %4560 = vmatpush1.msra.mxu0 0.0
  %4561 = vmatprep.subr.mxu0 0.0
  %4562 = vmatpush1.msra.mxu0 0.0
  %4563 = vmatprep.subr.mxu0 0.0
  %4564 = vmatpush1.msra.mxu0 0.0
  %4565 = vmatprep.subr.mxu0 0.0
  %4566 = vmatpush1.msra.mxu0 0.0
  %4567 = vmatprep.subr.mxu0 0.0
  %4568 = vmatpush1.msra.mxu0 0.0
  %4569 = vmatprep.subr.mxu0 0.0
  %4570 = vmatpush1.msra.mxu0 0.0
  %4571 = vmatprep.subr.mxu0 0.0
  %4572 = vmatpush1.msra.mxu0 0.0
  %4573 = vmatprep.subr.mxu0 0.0
  %4574 = vmatpush1.msra.mxu0 0.0
  %4575 = vmatprep.subr.mxu0 0.0
  %4576 = vmatpush1.msra.mxu0 0.0
  %4577 = vmatprep.subr.mxu0 0.0
  %4578 = vmatpush1.msra.mxu0 0.0
  %4579 = vmatprep.subr.mxu0 0.0
  %4580 = vmatpush1.msra.mxu0 0.0
  %4581 = vmatprep.subr.mxu0 0.0
  %4582 = vmatpush1.msra.mxu0 0.0
  %4583 = vmatprep.subr.mxu0 0.0
  %4584 = vmatpush1.msra.mxu0 0.0
  %4585 = vmatprep.subr.mxu0 0.0
  %4586 = vmatpush1.msra.mxu0 0.0
  %4587 = vmatprep.subr.mxu0 0.0
  %4588 = vmatpush1.msra.mxu0 0.0
  %4589 = vmatprep.subr.mxu0 0.0
  %4590 = vmatpush1.msra.mxu0 0.0
  %4591 = vmatprep.subr.mxu0 0.0
  %4592 = vmatpush1.msra.mxu0 0.0
  %4593 = vmatprep.subr.mxu0 0.0
  %4594 = vmatpush1.msra.mxu0 0.0
  %4595 = vmatprep.subr.mxu0 0.0
  %4596 = vmatpush1.msra.mxu0 0.0
  %4597 = vmatprep.subr.mxu0 0.0
  %4598 = vmatpush1.msra.mxu0 0.0
  %4599 = vmatprep.subr.mxu0 0.0
  %4600 = vmatpush1.msra.mxu0 0.0
  %4601 = vmatprep.subr.mxu0 0.0
  %4602 = vmatpush1.msra.mxu0 0.0
  %4603 = vmatprep.subr.mxu0 0.0
  %4604 = vmatpush1.msra.mxu0 0.0
  %4605 = vmatprep.subr.mxu0 0.0
  %4606 = vmatpush1.msra.mxu0 0.0
  %4607 = vmatprep.subr.mxu0 0.0
  %4608 = vmatpush1.msra.mxu0 0.0
  %4609 = vmatprep.mubr.f32.mxu0 0.0
  %4610 = vmatmul.mubr.f32.gmra.mrb[0].mxu0 %v4543
  %v4611 = vpop.f32.mrb[0].mxu0
  %v4612 = vadd.f32 0.0, %v4611
  %v4613 = vpop.f32.mrb[0].mxu0
  %4614 = vdwg.mxu0
  %4615 = vrot.lane.b32.xlu0 %v3740, 64
  %v4616 = vpop.permute.xlu0 %4615
  %v4619 = vsel %vm238, %v4457, 0
  %4621 = vmatprep.subr.mxu0 0.0
  %4622 = vmatpush1.msra.mxu0 %v4616
  %4623 = vmatprep.subr.mxu0 0.0
  %4624 = vmatpush1.msra.mxu0 0.0
  %4625 = vmatprep.subr.mxu0 0.0
  %4626 = vmatpush1.msra.mxu0 0.0
  %4627 = vmatprep.subr.mxu0 0.0
  %4628 = vmatpush1.msra.mxu0 0.0
  %4629 = vmatprep.subr.mxu0 0.0
  %4630 = vmatpush1.msra.mxu0 0.0
  %4631 = vmatprep.subr.mxu0 0.0
  %4632 = vmatpush1.msra.mxu0 0.0
  %4633 = vmatprep.subr.mxu0 0.0
  %4634 = vmatpush1.msra.mxu0 0.0
  %4635 = vmatprep.subr.mxu0 0.0
  %4636 = vmatpush1.msra.mxu0 0.0
  %4637 = vmatprep.subr.mxu0 0.0
  %4638 = vmatpush1.msra.mxu0 0.0
  %4639 = vmatprep.subr.mxu0 0.0
  %4640 = vmatpush1.msra.mxu0 0.0
  %4641 = vmatprep.subr.mxu0 0.0
  %4642 = vmatpush1.msra.mxu0 0.0
  %4643 = vmatprep.subr.mxu0 0.0
  %4644 = vmatpush1.msra.mxu0 0.0
  %4645 = vmatprep.subr.mxu0 0.0
  %4646 = vmatpush1.msra.mxu0 0.0
  %4647 = vmatprep.subr.mxu0 0.0
  %4648 = vmatpush1.msra.mxu0 0.0
  %4649 = vmatprep.subr.mxu0 0.0
  %4650 = vmatpush1.msra.mxu0 0.0
  %4651 = vmatprep.subr.mxu0 0.0
  %4652 = vmatpush1.msra.mxu0 0.0
  %4653 = vmatprep.subr.mxu0 0.0
  %4654 = vmatpush1.msra.mxu0 0.0
  %4655 = vmatprep.subr.mxu0 0.0
  %4656 = vmatpush1.msra.mxu0 0.0
  %4657 = vmatprep.subr.mxu0 0.0
  %4658 = vmatpush1.msra.mxu0 0.0
  %4659 = vmatprep.subr.mxu0 0.0
  %4660 = vmatpush1.msra.mxu0 0.0
  %4661 = vmatprep.subr.mxu0 0.0
  %4662 = vmatpush1.msra.mxu0 0.0
  %4663 = vmatprep.subr.mxu0 0.0
  %4664 = vmatpush1.msra.mxu0 0.0
  %4665 = vmatprep.subr.mxu0 0.0
  %4666 = vmatpush1.msra.mxu0 0.0
  %4667 = vmatprep.subr.mxu0 0.0
  %4668 = vmatpush1.msra.mxu0 0.0
  %4669 = vmatprep.subr.mxu0 0.0
  %4670 = vmatpush1.msra.mxu0 0.0
  %4671 = vmatprep.subr.mxu0 0.0
  %4672 = vmatpush1.msra.mxu0 0.0
  %4673 = vmatprep.subr.mxu0 0.0
  %4674 = vmatpush1.msra.mxu0 0.0
  %4675 = vmatprep.subr.mxu0 0.0
  %4676 = vmatpush1.msra.mxu0 0.0
  %4677 = vmatprep.subr.mxu0 0.0
  %4678 = vmatpush1.msra.mxu0 0.0
  %4679 = vmatprep.subr.mxu0 0.0
  %4680 = vmatpush1.msra.mxu0 0.0
  %4681 = vmatprep.subr.mxu0 0.0
  %4682 = vmatpush1.msra.mxu0 0.0
  %4683 = vmatprep.subr.mxu0 0.0
  %4684 = vmatpush1.msra.mxu0 0.0
  %4685 = vmatprep.mubr.f32.mxu0 0.0
  %4686 = vmatmul.mubr.f32.gmra.mrb[0].mxu0 %v4619
  %v4687 = vpop.f32.mrb[0].mxu0
  %v4688 = vadd.f32 0.0, %v4687
  %v4689 = vpop.f32.mrb[0].mxu0
  %4690 = vdwg.mxu0
  %4691 = vrot.lane.b32.xlu0 %v3742, 64
  %v4692 = vpop.permute.xlu0 %4691
  %v4695 = vsel %vm238, %v4458, 0
  %4697 = vmatprep.subr.mxu0 0.0
  %4698 = vmatpush1.msra.mxu0 %v4692
  %4699 = vmatprep.subr.mxu0 0.0
  %4700 = vmatpush1.msra.mxu0 0.0
  %4701 = vmatprep.subr.mxu0 0.0
  %4702 = vmatpush1.msra.mxu0 0.0
  %4703 = vmatprep.subr.mxu0 0.0
  %4704 = vmatpush1.msra.mxu0 0.0
  %4705 = vmatprep.subr.mxu0 0.0
  %4706 = vmatpush1.msra.mxu0 0.0
  %4707 = vmatprep.subr.mxu0 0.0
  %4708 = vmatpush1.msra.mxu0 0.0
  %4709 = vmatprep.subr.mxu0 0.0
  %4710 = vmatpush1.msra.mxu0 0.0
  %4711 = vmatprep.subr.mxu0 0.0
  %4712 = vmatpush1.msra.mxu0 0.0
  %4713 = vmatprep.subr.mxu0 0.0
  %4714 = vmatpush1.msra.mxu0 0.0
  %4715 = vmatprep.subr.mxu0 0.0
  %4716 = vmatpush1.msra.mxu0 0.0
  %4717 = vmatprep.subr.mxu0 0.0
  %4718 = vmatpush1.msra.mxu0 0.0
  %4719 = vmatprep.subr.mxu0 0.0
  %4720 = vmatpush1.msra.mxu0 0.0
  %4721 = vmatprep.subr.mxu0 0.0
  %4722 = vmatpush1.msra.mxu0 0.0
  %4723 = vmatprep.subr.mxu0 0.0
  %4724 = vmatpush1.msra.mxu0 0.0
  %4725 = vmatprep.subr.mxu0 0.0
  %4726 = vmatpush1.msra.mxu0 0.0
  %4727 = vmatprep.subr.mxu0 0.0
  %4728 = vmatpush1.msra.mxu0 0.0
  %4729 = vmatprep.subr.mxu0 0.0
  %4730 = vmatpush1.msra.mxu0 0.0
  %4731 = vmatprep.subr.mxu0 0.0
  %4732 = vmatpush1.msra.mxu0 0.0
  %4733 = vmatprep.subr.mxu0 0.0
  %4734 = vmatpush1.msra.mxu0 0.0
  %4735 = vmatprep.subr.mxu0 0.0
  %4736 = vmatpush1.msra.mxu0 0.0
  %4737 = vmatprep.subr.mxu0 0.0
  %4738 = vmatpush1.msra.mxu0 0.0
  %4739 = vmatprep.subr.mxu0 0.0
  %4740 = vmatpush1.msra.mxu0 0.0
  %4741 = vmatprep.subr.mxu0 0.0
  %4742 = vmatpush1.msra.mxu0 0.0
  %4743 = vmatprep.subr.mxu0 0.0
  %4744 = vmatpush1.msra.mxu0 0.0
  %4745 = vmatprep.subr.mxu0 0.0
  %4746 = vmatpush1.msra.mxu0 0.0
  %4747 = vmatprep.subr.mxu0 0.0
  %4748 = vmatpush1.msra.mxu0 0.0
  %4749 = vmatprep.subr.mxu0 0.0
  %4750 = vmatpush1.msra.mxu0 0.0
  %4751 = vmatprep.subr.mxu0 0.0
  %4752 = vmatpush1.msra.mxu0 0.0
  %4753 = vmatprep.subr.mxu0 0.0
  %4754 = vmatpush1.msra.mxu0 0.0
  %4755 = vmatprep.subr.mxu0 0.0
  %4756 = vmatpush1.msra.mxu0 0.0
  %4757 = vmatprep.subr.mxu0 0.0
  %4758 = vmatpush1.msra.mxu0 0.0
  %4759 = vmatprep.subr.mxu0 0.0
  %4760 = vmatpush1.msra.mxu0 0.0
  %4761 = vmatprep.mubr.f32.mxu0 0.0
  %4762 = vmatmul.mubr.f32.gmra.mrb[0].mxu0 %v4695
  %v4763 = vpop.f32.mrb[0].mxu0
  %v4764 = vadd.f32 0.0, %v4763
  %v4765 = vpop.f32.mrb[0].mxu0
  %4766 = vdwg.mxu0
  %4767 = vrot.lane.b32.xlu0 %v3744, 64
  %v4768 = vpop.permute.xlu0 %4767
  %v4771 = vsel %vm238, %v4459, 0
  %4773 = vmatprep.subr.mxu0 0.0
  %4774 = vmatpush1.msra.mxu0 %v4768
  %4775 = vmatprep.subr.mxu0 0.0
  %4776 = vmatpush1.msra.mxu0 0.0
  %4777 = vmatprep.subr.mxu0 0.0
  %4778 = vmatpush1.msra.mxu0 0.0
  %4779 = vmatprep.subr.mxu0 0.0
  %4780 = vmatpush1.msra.mxu0 0.0
  %4781 = vmatprep.subr.mxu0 0.0
  %4782 = vmatpush1.msra.mxu0 0.0
  %4783 = vmatprep.subr.mxu0 0.0
  %4784 = vmatpush1.msra.mxu0 0.0
  %4785 = vmatprep.subr.mxu0 0.0
  %4786 = vmatpush1.msra.mxu0 0.0
  %4787 = vmatprep.subr.mxu0 0.0
  %4788 = vmatpush1.msra.mxu0 0.0
  %4789 = vmatprep.subr.mxu0 0.0
  %4790 = vmatpush1.msra.mxu0 0.0
  %4791 = vmatprep.subr.mxu0 0.0
  %4792 = vmatpush1.msra.mxu0 0.0
  %4793 = vmatprep.subr.mxu0 0.0
  %4794 = vmatpush1.msra.mxu0 0.0
  %4795 = vmatprep.subr.mxu0 0.0
  %4796 = vmatpush1.msra.mxu0 0.0
  %4797 = vmatprep.subr.mxu0 0.0
  %4798 = vmatpush1.msra.mxu0 0.0
  %4799 = vmatprep.subr.mxu0 0.0
  %4800 = vmatpush1.msra.mxu0 0.0
  %4801 = vmatprep.subr.mxu0 0.0
  %4802 = vmatpush1.msra.mxu0 0.0
  %4803 = vmatprep.subr.mxu0 0.0
  %4804 = vmatpush1.msra.mxu0 0.0
  %4805 = vmatprep.subr.mxu0 0.0
  %4806 = vmatpush1.msra.mxu0 0.0
  %4807 = vmatprep.subr.mxu0 0.0
  %4808 = vmatpush1.msra.mxu0 0.0
  %4809 = vmatprep.subr.mxu0 0.0
  %4810 = vmatpush1.msra.mxu0 0.0
  %4811 = vmatprep.subr.mxu0 0.0
  %4812 = vmatpush1.msra.mxu0 0.0
  %4813 = vmatprep.subr.mxu0 0.0
  %4814 = vmatpush1.msra.mxu0 0.0
  %4815 = vmatprep.subr.mxu0 0.0
  %4816 = vmatpush1.msra.mxu0 0.0
  %4817 = vmatprep.subr.mxu0 0.0
  %4818 = vmatpush1.msra.mxu0 0.0
  %4819 = vmatprep.subr.mxu0 0.0
  %4820 = vmatpush1.msra.mxu0 0.0
  %4821 = vmatprep.subr.mxu0 0.0
  %4822 = vmatpush1.msra.mxu0 0.0
  %4823 = vmatprep.subr.mxu0 0.0
  %4824 = vmatpush1.msra.mxu0 0.0
  %4825 = vmatprep.subr.mxu0 0.0
  %4826 = vmatpush1.msra.mxu0 0.0
  %4827 = vmatprep.subr.mxu0 0.0
  %4828 = vmatpush1.msra.mxu0 0.0
  %4829 = vmatprep.subr.mxu0 0.0
  %4830 = vmatpush1.msra.mxu0 0.0
  %4831 = vmatprep.subr.mxu0 0.0
  %4832 = vmatpush1.msra.mxu0 0.0
  %4833 = vmatprep.subr.mxu0 0.0
  %4834 = vmatpush1.msra.mxu0 0.0
  %4835 = vmatprep.subr.mxu0 0.0
  %4836 = vmatpush1.msra.mxu0 0.0
  %4837 = vmatprep.mubr.f32.mxu0 0.0
  %4838 = vmatmul.mubr.f32.gmra.mrb[0].mxu0 %v4771
  %v4839 = vpop.f32.mrb[0].mxu0
  %v4840 = vadd.f32 0.0, %v4839
  %v4841 = vpop.f32.mrb[0].mxu0
  %4842 = vdwg.mxu0
  %4843 = vrot.lane.b32.xlu0 %v3746, 64
  %v4844 = vpop.permute.xlu0 %4843
  %v4847 = vsel %vm238, %v4460, 0
  %4849 = vmatprep.subr.mxu0 0.0
  %4850 = vmatpush1.msra.mxu0 %v4844
  %4851 = vmatprep.subr.mxu0 0.0
  %4852 = vmatpush1.msra.mxu0 0.0
  %4853 = vmatprep.subr.mxu0 0.0
  %4854 = vmatpush1.msra.mxu0 0.0
  %4855 = vmatprep.subr.mxu0 0.0
  %4856 = vmatpush1.msra.mxu0 0.0
  %4857 = vmatprep.subr.mxu0 0.0
  %4858 = vmatpush1.msra.mxu0 0.0
  %4859 = vmatprep.subr.mxu0 0.0
  %4860 = vmatpush1.msra.mxu0 0.0
  %4861 = vmatprep.subr.mxu0 0.0
  %4862 = vmatpush1.msra.mxu0 0.0
  %4863 = vmatprep.subr.mxu0 0.0
  %4864 = vmatpush1.msra.mxu0 0.0
  %4865 = vmatprep.subr.mxu0 0.0
  %4866 = vmatpush1.msra.mxu0 0.0
  %4867 = vmatprep.subr.mxu0 0.0
  %4868 = vmatpush1.msra.mxu0 0.0
  %4869 = vmatprep.subr.mxu0 0.0
  %4870 = vmatpush1.msra.mxu0 0.0
  %4871 = vmatprep.subr.mxu0 0.0
  %4872 = vmatpush1.msra.mxu0 0.0
  %4873 = vmatprep.subr.mxu0 0.0
  %4874 = vmatpush1.msra.mxu0 0.0
  %4875 = vmatprep.subr.mxu0 0.0
  %4876 = vmatpush1.msra.mxu0 0.0
  %4877 = vmatprep.subr.mxu0 0.0
  %4878 = vmatpush1.msra.mxu0 0.0
  %4879 = vmatprep.subr.mxu0 0.0
  %4880 = vmatpush1.msra.mxu0 0.0
  %4881 = vmatprep.subr.mxu0 0.0
  %4882 = vmatpush1.msra.mxu0 0.0
  %4883 = vmatprep.subr.mxu0 0.0
  %4884 = vmatpush1.msra.mxu0 0.0
  %4885 = vmatprep.subr.mxu0 0.0
  %4886 = vmatpush1.msra.mxu0 0.0
  %4887 = vmatprep.subr.mxu0 0.0
  %4888 = vmatpush1.msra.mxu0 0.0
  %4889 = vmatprep.subr.mxu0 0.0
  %4890 = vmatpush1.msra.mxu0 0.0
  %4891 = vmatprep.subr.mxu0 0.0
  %4892 = vmatpush1.msra.mxu0 0.0
  %4893 = vmatprep.subr.mxu0 0.0
  %4894 = vmatpush1.msra.mxu0 0.0
  %4895 = vmatprep.subr.mxu0 0.0
  %4896 = vmatpush1.msra.mxu0 0.0
  %4897 = vmatprep.subr.mxu0 0.0
  %4898 = vmatpush1.msra.mxu0 0.0
  %4899 = vmatprep.subr.mxu0 0.0
  %4900 = vmatpush1.msra.mxu0 0.0
  %4901 = vmatprep.subr.mxu0 0.0
  %4902 = vmatpush1.msra.mxu0 0.0
  %4903 = vmatprep.subr.mxu0 0.0
  %4904 = vmatpush1.msra.mxu0 0.0
  %4905 = vmatprep.subr.mxu0 0.0
  %4906 = vmatpush1.msra.mxu0 0.0
  %4907 = vmatprep.subr.mxu0 0.0
  %4908 = vmatpush1.msra.mxu0 0.0
  %4909 = vmatprep.subr.mxu0 0.0
  %4910 = vmatpush1.msra.mxu0 0.0
  %4911 = vmatprep.subr.mxu0 0.0
  %4912 = vmatpush1.msra.mxu0 0.0
  %4913 = vmatprep.mubr.f32.mxu0 0.0
  %4914 = vmatmul.mubr.f32.gmra.mrb[0].mxu0 %v4847
  %v4915 = vpop.f32.mrb[0].mxu0
  %v4916 = vadd.f32 0.0, %v4915
  %v4917 = vpop.f32.mrb[0].mxu0
  %4918 = vdwg.mxu0
  %4919 = vrot.lane.b32.xlu0 %v3748, 64
  %v4920 = vpop.permute.xlu0 %4919
  %v4923 = vsel %vm238, %v4461, 0
  %4925 = vmatprep.subr.mxu0 0.0
  %4926 = vmatpush1.msra.mxu0 %v4920
  %4927 = vmatprep.subr.mxu0 0.0
  %4928 = vmatpush1.msra.mxu0 0.0
  %4929 = vmatprep.subr.mxu0 0.0
  %4930 = vmatpush1.msra.mxu0 0.0
  %4931 = vmatprep.subr.mxu0 0.0
  %4932 = vmatpush1.msra.mxu0 0.0
  %4933 = vmatprep.subr.mxu0 0.0
  %4934 = vmatpush1.msra.mxu0 0.0
  %4935 = vmatprep.subr.mxu0 0.0
  %4936 = vmatpush1.msra.mxu0 0.0
  %4937 = vmatprep.subr.mxu0 0.0
  %4938 = vmatpush1.msra.mxu0 0.0
  %4939 = vmatprep.subr.mxu0 0.0
  %4940 = vmatpush1.msra.mxu0 0.0
  %4941 = vmatprep.subr.mxu0 0.0
  %4942 = vmatpush1.msra.mxu0 0.0
  %4943 = vmatprep.subr.mxu0 0.0
  %4944 = vmatpush1.msra.mxu0 0.0
  %4945 = vmatprep.subr.mxu0 0.0
  %4946 = vmatpush1.msra.mxu0 0.0
  %4947 = vmatprep.subr.mxu0 0.0
  %4948 = vmatpush1.msra.mxu0 0.0
  %4949 = vmatprep.subr.mxu0 0.0
  %4950 = vmatpush1.msra.mxu0 0.0
  %4951 = vmatprep.subr.mxu0 0.0
  %4952 = vmatpush1.msra.mxu0 0.0
  %4953 = vmatprep.subr.mxu0 0.0
  %4954 = vmatpush1.msra.mxu0 0.0
  %4955 = vmatprep.subr.mxu0 0.0
  %4956 = vmatpush1.msra.mxu0 0.0
  %4957 = vmatprep.subr.mxu0 0.0
  %4958 = vmatpush1.msra.mxu0 0.0
  %4959 = vmatprep.subr.mxu0 0.0
  %4960 = vmatpush1.msra.mxu0 0.0
  %4961 = vmatprep.subr.mxu0 0.0
  %4962 = vmatpush1.msra.mxu0 0.0
  %4963 = vmatprep.subr.mxu0 0.0
  %4964 = vmatpush1.msra.mxu0 0.0
  %4965 = vmatprep.subr.mxu0 0.0
  %4966 = vmatpush1.msra.mxu0 0.0
  %4967 = vmatprep.subr.mxu0 0.0
  %4968 = vmatpush1.msra.mxu0 0.0
  %4969 = vmatprep.subr.mxu0 0.0
  %4970 = vmatpush1.msra.mxu0 0.0
  %4971 = vmatprep.subr.mxu0 0.0
  %4972 = vmatpush1.msra.mxu0 0.0
  %4973 = vmatprep.subr.mxu0 0.0
  %4974 = vmatpush1.msra.mxu0 0.0
  %4975 = vmatprep.subr.mxu0 0.0
  %4976 = vmatpush1.msra.mxu0 0.0
  %4977 = vmatprep.subr.mxu0 0.0
  %4978 = vmatpush1.msra.mxu0 0.0
  %4979 = vmatprep.subr.mxu0 0.0
  %4980 = vmatpush1.msra.mxu0 0.0
  %4981 = vmatprep.subr.mxu0 0.0
  %4982 = vmatpush1.msra.mxu0 0.0
  %4983 = vmatprep.subr.mxu0 0.0
  %4984 = vmatpush1.msra.mxu0 0.0
  %4985 = vmatprep.subr.mxu0 0.0
  %4986 = vmatpush1.msra.mxu0 0.0
  %4987 = vmatprep.subr.mxu0 0.0
  %4988 = vmatpush1.msra.mxu0 0.0
  %4989 = vmatprep.mubr.f32.mxu0 0.0
  %4990 = vmatmul.mubr.f32.gmra.mrb[0].mxu0 %v4923
  %v4991 = vpop.f32.mrb[0].mxu0
  %v4992 = vadd.f32 0.0, %v4991
  %v4993 = vpop.f32.mrb[0].mxu0
  %4994 = vdwg.mxu0
  %4995 = vrot.lane.b32.xlu0 %v3750, 64
  %v4996 = vpop.permute.xlu0 %4995
  %v4999 = vsel %vm238, %v4462, 0
  %5001 = vmatprep.subr.mxu0 0.0
  %5002 = vmatpush1.msra.mxu0 %v4996
  %5003 = vmatprep.subr.mxu0 0.0
  %5004 = vmatpush1.msra.mxu0 0.0
  %5005 = vmatprep.subr.mxu0 0.0
  %5006 = vmatpush1.msra.mxu0 0.0
  %5007 = vmatprep.subr.mxu0 0.0
  %5008 = vmatpush1.msra.mxu0 0.0
  %5009 = vmatprep.subr.mxu0 0.0
  %5010 = vmatpush1.msra.mxu0 0.0
  %5011 = vmatprep.subr.mxu0 0.0
  %5012 = vmatpush1.msra.mxu0 0.0
  %5013 = vmatprep.subr.mxu0 0.0
  %5014 = vmatpush1.msra.mxu0 0.0
  %5015 = vmatprep.subr.mxu0 0.0
  %5016 = vmatpush1.msra.mxu0 0.0
  %5017 = vmatprep.subr.mxu0 0.0
  %5018 = vmatpush1.msra.mxu0 0.0
  %5019 = vmatprep.subr.mxu0 0.0
  %5020 = vmatpush1.msra.mxu0 0.0
  %5021 = vmatprep.subr.mxu0 0.0
  %5022 = vmatpush1.msra.mxu0 0.0
  %5023 = vmatprep.subr.mxu0 0.0
  %5024 = vmatpush1.msra.mxu0 0.0
  %5025 = vmatprep.subr.mxu0 0.0
  %5026 = vmatpush1.msra.mxu0 0.0
  %5027 = vmatprep.subr.mxu0 0.0
  %5028 = vmatpush1.msra.mxu0 0.0
  %5029 = vmatprep.subr.mxu0 0.0
  %5030 = vmatpush1.msra.mxu0 0.0
  %5031 = vmatprep.subr.mxu0 0.0
  %5032 = vmatpush1.msra.mxu0 0.0
  %5033 = vmatprep.subr.mxu0 0.0
  %5034 = vmatpush1.msra.mxu0 0.0
  %5035 = vmatprep.subr.mxu0 0.0
  %5036 = vmatpush1.msra.mxu0 0.0
  %5037 = vmatprep.subr.mxu0 0.0
  %5038 = vmatpush1.msra.mxu0 0.0
  %5039 = vmatprep.subr.mxu0 0.0
  %5040 = vmatpush1.msra.mxu0 0.0
  %5041 = vmatprep.subr.mxu0 0.0
  %5042 = vmatpush1.msra.mxu0 0.0
  %5043 = vmatprep.subr.mxu0 0.0
  %5044 = vmatpush1.msra.mxu0 0.0
  %5045 = vmatprep.subr.mxu0 0.0
  %5046 = vmatpush1.msra.mxu0 0.0
  %5047 = vmatprep.subr.mxu0 0.0
  %5048 = vmatpush1.msra.mxu0 0.0
  %5049 = vmatprep.subr.mxu0 0.0
  %5050 = vmatpush1.msra.mxu0 0.0
  %5051 = vmatprep.subr.mxu0 0.0
  %5052 = vmatpush1.msra.mxu0 0.0
  %5053 = vmatprep.subr.mxu0 0.0
  %5054 = vmatpush1.msra.mxu0 0.0
  %5055 = vmatprep.subr.mxu0 0.0
  %5056 = vmatpush1.msra.mxu0 0.0
  %5057 = vmatprep.subr.mxu0 0.0
  %5058 = vmatpush1.msra.mxu0 0.0
  %5059 = vmatprep.subr.mxu0 0.0
  %5060 = vmatpush1.msra.mxu0 0.0
  %5061 = vmatprep.subr.mxu0 0.0
  %5062 = vmatpush1.msra.mxu0 0.0
  %5063 = vmatprep.subr.mxu0 0.0
  %5064 = vmatpush1.msra.mxu0 0.0
  %5065 = vmatprep.mubr.f32.mxu0 0.0
  %5066 = vmatmul.mubr.f32.gmra.mrb[0].mxu0 %v4999
  %v5067 = vpop.f32.mrb[0].mxu0
  %v5068 = vadd.f32 0.0, %v5067
  %v5069 = vpop.f32.mrb[0].mxu0
  %5070 = vdwg.mxu0
  %5073 = vrot.lane.b32.xlu0 %v4688, 8
  %v5074 = vpop.permute.xlu0 %5073
  %5075 = vrot.lane.b32.xlu0 %v4764, 8
  %v5076 = vpop.permute.xlu0 %5075
  %5081 = vrot.lane.b32.xlu0 %v4840, 16
  %v5082 = vpop.permute.xlu0 %5081
  %5083 = vrot.lane.b32.xlu0 %v4916, 16
  %v5084 = vpop.permute.xlu0 %5083
  %5089 = vrot.lane.b32.xlu0 %v4992, 24
  %v5090 = vpop.permute.xlu0 %5089
  %5091 = vrot.lane.b32.xlu0 %v5068, 24
  %v5092 = vpop.permute.xlu0 %5091
  %v5095 = vsel %vm238, %v4536, %v5074
  %v5096 = vsel %vm238, %v4612, %v5076
  %v5097 = vsel %vm1583, %v5095, %v5082
  %v5098 = vsel %vm1583, %v5096, %v5084
  %v5099 = vsel %vm1586, %v5097, %v5090
  %v5100 = vsel %vm1586, %v5098, %v5092
  %v5102 = vlaneseq
  %v5103 = vshrl.u32 %v5102, 7
  %v5104 = vsub.s32 0, %v5103
  %v5105 = vrot.slane %v3736, %v5104
  %v5108 = vsel %vm135, %v5099, 0
  %v5111 = vsel %vm135, %v5100, 0
  %5113 = vmatprep.subr.mxu0 0.0
  %5114 = vmatpush1.msra.mxu0 %v3731
  %5115 = vmatprep.subr.mxu0 0.0
  %5116 = vmatpush1.msra.mxu0 %v3732
  %5117 = vmatprep.subr.mxu0 0.0
  %5118 = vmatpush1.msra.mxu0 %v3733
  %5119 = vmatprep.subr.mxu0 0.0
  %5120 = vmatpush1.msra.mxu0 %v3734
  %5121 = vmatprep.subr.mxu0 0.0
  %5122 = vmatpush1.msra.mxu0 0.0
  %5123 = vmatprep.subr.mxu0 0.0
  %5124 = vmatpush1.msra.mxu0 0.0
  %5125 = vmatprep.subr.mxu0 0.0
  %5126 = vmatpush1.msra.mxu0 0.0
  %5127 = vmatprep.subr.mxu0 0.0
  %5128 = vmatpush1.msra.mxu0 0.0
  %5129 = vmatprep.subr.mxu0 0.0
  %5130 = vmatpush1.msra.mxu0 0.0
  %5131 = vmatprep.subr.mxu0 0.0
  %5132 = vmatpush1.msra.mxu0 0.0
  %5133 = vmatprep.subr.mxu0 0.0
  %5134 = vmatpush1.msra.mxu0 0.0
  %5135 = vmatprep.subr.mxu0 0.0
  %5136 = vmatpush1.msra.mxu0 0.0
  %5137 = vmatprep.subr.mxu0 0.0
  %5138 = vmatpush1.msra.mxu0 0.0
  %5139 = vmatprep.subr.mxu0 0.0
  %5140 = vmatpush1.msra.mxu0 0.0
  %5141 = vmatprep.subr.mxu0 0.0
  %5142 = vmatpush1.msra.mxu0 0.0
  %5143 = vmatprep.subr.mxu0 0.0
  %5144 = vmatpush1.msra.mxu0 0.0
  %5145 = vmatprep.subr.mxu0 0.0
  %5146 = vmatpush1.msra.mxu0 0.0
  %5147 = vmatprep.subr.mxu0 0.0
  %5148 = vmatpush1.msra.mxu0 0.0
  %5149 = vmatprep.subr.mxu0 0.0
  %5150 = vmatpush1.msra.mxu0 0.0
  %5151 = vmatprep.subr.mxu0 0.0
  %5152 = vmatpush1.msra.mxu0 0.0
  %5153 = vmatprep.subr.mxu0 0.0
  %5154 = vmatpush1.msra.mxu0 0.0
  %5155 = vmatprep.subr.mxu0 0.0
  %5156 = vmatpush1.msra.mxu0 0.0
  %5157 = vmatprep.subr.mxu0 0.0
  %5158 = vmatpush1.msra.mxu0 0.0
  %5159 = vmatprep.subr.mxu0 0.0
  %5160 = vmatpush1.msra.mxu0 0.0
  %5161 = vmatprep.subr.mxu0 0.0
  %5162 = vmatpush1.msra.mxu0 0.0
  %5163 = vmatprep.subr.mxu0 0.0
  %5164 = vmatpush1.msra.mxu0 0.0
  %5165 = vmatprep.subr.mxu0 0.0
  %5166 = vmatpush1.msra.mxu0 0.0
  %5167 = vmatprep.subr.mxu0 0.0
  %5168 = vmatpush1.msra.mxu0 0.0
  %5169 = vmatprep.subr.mxu0 0.0
  %5170 = vmatpush1.msra.mxu0 0.0
  %5171 = vmatprep.subr.mxu0 0.0
  %5172 = vmatpush1.msra.mxu0 0.0
  %5173 = vmatprep.subr.mxu0 0.0
  %5174 = vmatpush1.msra.mxu0 0.0
  %5175 = vmatprep.subr.mxu0 0.0
  %5176 = vmatpush1.msra.mxu0 0.0
  %5177 = vmatprep.mubr.f32.mxu0 0.0
  %5178 = vmatmul.mubr.f32.gmra.mrb[0].mxu0 %v5108
  %v5179 = vpop.f32.mrb[0].mxu0
  %v5180 = vadd.f32 %v5105, %v5179
  %v5181 = vpop.f32.mrb[0].mxu0
  %5182 = vmatprep.mubr.f32.mxu0 0.0
  %5183 = vmatmul.mubr.f32.gmra.mrb[0].mxu0 %v5111
  %v5184 = vpop.f32.mrb[0].mxu0
  %v5185 = vadd.f32 %v5105, %v5184
  %v5186 = vpop.f32.mrb[0].mxu0
  %5187 = vdwg.mxu0
  %v5188 = vadd.f32 %v3634, %v5180
  %v5189 = vadd.f32 %v3635, %v5185
  %s5190 = scalar_lea.vmem %s10, 1
  %v5191 = vld [vmem:[%s5190] sm:$0x1]
  %s5192 = scalar_lea.vmem %s11, 1
  %v5193 = vld [vmem:[%s5192] sm:$0x1]
  %v5194 = vsel %vm135, %v5188, 0.0
  %5195 = vadd.xlane.f32.xlu0 %v5194
  %v5196 = vpop.xlane.xlu0 %5195
  %v5197 = vsel %vm135, %v5189, 0.0
  %5198 = vadd.xlane.f32.xlu0 %v5197
  %v5199 = vpop.xlane.xlu0 %5198
  %v5200 = vmul.f32 %v5196, %v1686
  %v5201 = vmul.f32 %v5199, %v1686
  %v5202 = vsub.f32 %v5188, %v5200
  %v5203 = vsub.f32 %v5189, %v5201
  %v5204 = vmul.f32 %v5202, %v5202
  %v5205 = vmul.f32 %v5203, %v5203
  %v5206 = vsel %vm135, %v5204, 0.0
  %5207 = vadd.xlane.f32.xlu0 %v5206
  %v5208 = vpop.xlane.xlu0 %5207
  %v5209 = vsel %vm135, %v5205, 0.0
  %5210 = vadd.xlane.f32.xlu0 %v5209
  %v5211 = vpop.xlane.xlu0 %5210
  %v5212 = vmul.f32 %v5208, %v1686
  %v5213 = vmul.f32 %v5211, %v1686
  %v5214 = vadd.f32 %v5212, 1e-05
  %v5215 = vadd.f32 %v5213, 1e-05
  %v5216 = vrsqrt.pop %v5214
  %v5217 = vrsqrt.pop %v5215
  %v5218 = vmul.f32 %v5202, %v5216
  %v5219 = vmul.f32 %v5203, %v5217
  %v5221 = vlaneseq
  %v5222 = vshrl.u32 %v5221, 7
  %v5223 = vsub.s32 0, %v5222
  %v5224 = vrot.slane %v5191, %v5223
  %v5226 = vmul.f32 %v5218, %v5224
  %v5227 = vmul.f32 %v5219, %v5224
  %v5229 = vlaneseq
  %v5230 = vshrl.u32 %v5229, 7
  %v5231 = vsub.s32 0, %v5230
  %v5232 = vrot.slane %v5193, %v5231
  %v5234 = vadd.f32 %v5226, %v5232
  %v5235 = vadd.f32 %v5227, %v5232
  %s5236 = scalar_lea.vmem %s12, 32
  %v5237 = vld [vmem:[%s5236] sm:$0xff]
  %v5238 = vld [vmem:[%s5236 + $0x8] sm:$0xff]
  %v5239 = vld [vmem:[%s5236 + $0x10] sm:$0xff]
  %v5240 = vld [vmem:[%s5236 + $0x18] sm:$0xff]
  %s5241 = scalar_lea.vmem %s13, 1
  %v5242 = vld [vmem:[%s5241] sm:$0x1]
  %v5244 = vlaneseq
  %v5245 = vshrl.u32 %v5244, 7
  %v5246 = vsub.s32 0, %v5245
  %v5247 = vrot.slane %v5242, %v5246
  %v5250 = vsel %vm135, %v5234, 0
  %v5253 = vsel %vm135, %v5235, 0
  %5255 = vmatprep.subr.mxu0 0.0
  %5256 = vmatpush1.msra.mxu0 %v5237
  %5257 = vmatprep.subr.mxu0 0.0
  %5258 = vmatpush1.msra.mxu0 %v5238
  %5259 = vmatprep.subr.mxu0 0.0
  %5260 = vmatpush1.msra.mxu0 %v5239
  %5261 = vmatprep.subr.mxu0 0.0
  %5262 = vmatpush1.msra.mxu0 %v5240
  %5263 = vmatprep.subr.mxu0 0.0
  %5264 = vmatpush1.msra.mxu0 0.0
  %5265 = vmatprep.subr.mxu0 0.0
  %5266 = vmatpush1.msra.mxu0 0.0
  %5267 = vmatprep.subr.mxu0 0.0
  %5268 = vmatpush1.msra.mxu0 0.0
  %5269 = vmatprep.subr.mxu0 0.0
  %5270 = vmatpush1.msra.mxu0 0.0
  %5271 = vmatprep.subr.mxu0 0.0
  %5272 = vmatpush1.msra.mxu0 0.0
  %5273 = vmatprep.subr.mxu0 0.0
  %5274 = vmatpush1.msra.mxu0 0.0
  %5275 = vmatprep.subr.mxu0 0.0
  %5276 = vmatpush1.msra.mxu0 0.0
  %5277 = vmatprep.subr.mxu0 0.0
  %5278 = vmatpush1.msra.mxu0 0.0
  %5279 = vmatprep.subr.mxu0 0.0
  %5280 = vmatpush1.msra.mxu0 0.0
  %5281 = vmatprep.subr.mxu0 0.0
  %5282 = vmatpush1.msra.mxu0 0.0
  %5283 = vmatprep.subr.mxu0 0.0
  %5284 = vmatpush1.msra.mxu0 0.0
  %5285 = vmatprep.subr.mxu0 0.0
  %5286 = vmatpush1.msra.mxu0 0.0
  %5287 = vmatprep.subr.mxu0 0.0
  %5288 = vmatpush1.msra.mxu0 0.0
  %5289 = vmatprep.subr.mxu0 0.0
  %5290 = vmatpush1.msra.mxu0 0.0
  %5291 = vmatprep.subr.mxu0 0.0
  %5292 = vmatpush1.msra.mxu0 0.0
  %5293 = vmatprep.subr.mxu0 0.0
  %5294 = vmatpush1.msra.mxu0 0.0
  %5295 = vmatprep.subr.mxu0 0.0
  %5296 = vmatpush1.msra.mxu0 0.0
  %5297 = vmatprep.subr.mxu0 0.0
  %5298 = vmatpush1.msra.mxu0 0.0
  %5299 = vmatprep.subr.mxu0 0.0
  %5300 = vmatpush1.msra.mxu0 0.0
  %5301 = vmatprep.subr.mxu0 0.0
  %5302 = vmatpush1.msra.mxu0 0.0
  %5303 = vmatprep.subr.mxu0 0.0
  %5304 = vmatpush1.msra.mxu0 0.0
  %5305 = vmatprep.subr.mxu0 0.0
  %5306 = vmatpush1.msra.mxu0 0.0
  %5307 = vmatprep.subr.mxu0 0.0
  %5308 = vmatpush1.msra.mxu0 0.0
  %5309 = vmatprep.subr.mxu0 0.0
  %5310 = vmatpush1.msra.mxu0 0.0
  %5311 = vmatprep.subr.mxu0 0.0
  %5312 = vmatpush1.msra.mxu0 0.0
  %5313 = vmatprep.subr.mxu0 0.0
  %5314 = vmatpush1.msra.mxu0 0.0
  %5315 = vmatprep.subr.mxu0 0.0
  %5316 = vmatpush1.msra.mxu0 0.0
  %5317 = vmatprep.subr.mxu0 0.0
  %5318 = vmatpush1.msra.mxu0 0.0
  %5319 = vmatprep.mubr.f32.mxu0 0.0
  %5320 = vmatmul.mubr.f32.gmra.mrb[0].mxu0 %v5250
  %v5321 = vpop.f32.mrb[0].mxu0
  %v5322 = vadd.f32 %v5247, %v5321
  %v5323 = vpop.f32.mrb[0].mxu0
  %5324 = vmatprep.mubr.f32.mxu0 0.0
  %5325 = vmatmul.mubr.f32.gmra.mrb[0].mxu0 %v5253
  %v5326 = vpop.f32.mrb[0].mxu0
  %v5327 = vadd.f32 %v5247, %v5326
  %v5328 = vpop.f32.mrb[0].mxu0
  %5329 = vdwg.mxu0
  %s5330 = scalar_lea.vmem %s14, 32
  %v5331 = vld [vmem:[%s5330] sm:$0xff]
  %v5332 = vld [vmem:[%s5330 + $0x8] sm:$0xff]
  %v5333 = vld [vmem:[%s5330 + $0x10] sm:$0xff]
  %v5334 = vld [vmem:[%s5330 + $0x18] sm:$0xff]
  %s5335 = scalar_lea.vmem %s15, 1
  %v5336 = vld [vmem:[%s5335] sm:$0x1]
  %v5338 = vlaneseq
  %v5339 = vshrl.u32 %v5338, 7
  %v5340 = vsub.s32 0, %v5339
  %v5341 = vrot.slane %v5336, %v5340
  %5343 = vmatprep.subr.mxu0 0.0
  %5344 = vmatpush1.msra.mxu0 %v5331
  %5345 = vmatprep.subr.mxu0 0.0
  %5346 = vmatpush1.msra.mxu0 %v5332
  %5347 = vmatprep.subr.mxu0 0.0
  %5348 = vmatpush1.msra.mxu0 %v5333
  %5349 = vmatprep.subr.mxu0 0.0
  %5350 = vmatpush1.msra.mxu0 %v5334
  %5351 = vmatprep.subr.mxu0 0.0
  %5352 = vmatpush1.msra.mxu0 0.0
  %5353 = vmatprep.subr.mxu0 0.0
  %5354 = vmatpush1.msra.mxu0 0.0
  %5355 = vmatprep.subr.mxu0 0.0
  %5356 = vmatpush1.msra.mxu0 0.0
  %5357 = vmatprep.subr.mxu0 0.0
  %5358 = vmatpush1.msra.mxu0 0.0
  %5359 = vmatprep.subr.mxu0 0.0
  %5360 = vmatpush1.msra.mxu0 0.0
  %5361 = vmatprep.subr.mxu0 0.0
  %5362 = vmatpush1.msra.mxu0 0.0
  %5363 = vmatprep.subr.mxu0 0.0
  %5364 = vmatpush1.msra.mxu0 0.0
  %5365 = vmatprep.subr.mxu0 0.0
  %5366 = vmatpush1.msra.mxu0 0.0
  %5367 = vmatprep.subr.mxu0 0.0
  %5368 = vmatpush1.msra.mxu0 0.0
  %5369 = vmatprep.subr.mxu0 0.0
  %5370 = vmatpush1.msra.mxu0 0.0
  %5371 = vmatprep.subr.mxu0 0.0
  %5372 = vmatpush1.msra.mxu0 0.0
  %5373 = vmatprep.subr.mxu0 0.0
  %5374 = vmatpush1.msra.mxu0 0.0
  %5375 = vmatprep.subr.mxu0 0.0
  %5376 = vmatpush1.msra.mxu0 0.0
  %5377 = vmatprep.subr.mxu0 0.0
  %5378 = vmatpush1.msra.mxu0 0.0
  %5379 = vmatprep.subr.mxu0 0.0
  %5380 = vmatpush1.msra.mxu0 0.0
  %5381 = vmatprep.subr.mxu0 0.0
  %5382 = vmatpush1.msra.mxu0 0.0
  %5383 = vmatprep.subr.mxu0 0.0
  %5384 = vmatpush1.msra.mxu0 0.0
  %5385 = vmatprep.subr.mxu0 0.0
  %5386 = vmatpush1.msra.mxu0 0.0
  %5387 = vmatprep.subr.mxu0 0.0
  %5388 = vmatpush1.msra.mxu0 0.0
  %5389 = vmatprep.subr.mxu0 0.0
  %5390 = vmatpush1.msra.mxu0 0.0
  %5391 = vmatprep.subr.mxu0 0.0
  %5392 = vmatpush1.msra.mxu0 0.0
  %5393 = vmatprep.subr.mxu0 0.0
  %5394 = vmatpush1.msra.mxu0 0.0
  %5395 = vmatprep.subr.mxu0 0.0
  %5396 = vmatpush1.msra.mxu0 0.0
  %5397 = vmatprep.subr.mxu0 0.0
  %5398 = vmatpush1.msra.mxu0 0.0
  %5399 = vmatprep.subr.mxu0 0.0
  %5400 = vmatpush1.msra.mxu0 0.0
  %5401 = vmatprep.subr.mxu0 0.0
  %5402 = vmatpush1.msra.mxu0 0.0
  %5403 = vmatprep.subr.mxu0 0.0
  %5404 = vmatpush1.msra.mxu0 0.0
  %5405 = vmatprep.subr.mxu0 0.0
  %5406 = vmatpush1.msra.mxu0 0.0
  %5407 = vmatprep.mubr.f32.mxu0 0.0
  %5408 = vmatmul.mubr.f32.gmra.mrb[0].mxu0 %v1827
  %v5409 = vpop.f32.mrb[0].mxu0
  %v5410 = vadd.f32 %v5341, %v5409
  %v5411 = vpop.f32.mrb[0].mxu0
  %5412 = vmatprep.mubr.f32.mxu0 0.0
  %5413 = vmatmul.mubr.f32.gmra.mrb[0].mxu0 %v1830
  %v5414 = vpop.f32.mrb[0].mxu0
  %v5415 = vadd.f32 %v5341, %v5414
  %v5416 = vpop.f32.mrb[0].mxu0
  %5417 = vdwg.mxu0
  %s5418 = scalar_lea.vmem %s16, 32
  %v5419 = vld [vmem:[%s5418] sm:$0xff]
  %v5420 = vld [vmem:[%s5418 + $0x8] sm:$0xff]
  %v5421 = vld [vmem:[%s5418 + $0x10] sm:$0xff]
  %v5422 = vld [vmem:[%s5418 + $0x18] sm:$0xff]
  %s5423 = scalar_lea.vmem %s17, 1
  %v5424 = vld [vmem:[%s5423] sm:$0x1]
  %5427 = vrot.lane.b32.xlu0 %v5322, 120
  %v5428 = vpop.permute.xlu0 %5427
  %5429 = vrot.lane.b32.xlu0 %v5327, 120
  %v5430 = vpop.permute.xlu0 %5429
  %5431 = vrot.lane.b32.xlu0 %v5322, 112
  %v5432 = vpop.permute.xlu0 %5431
  %5433 = vrot.lane.b32.xlu0 %v5327, 112
  %v5434 = vpop.permute.xlu0 %5433
  %5435 = vrot.lane.b32.xlu0 %v5322, 104
  %v5436 = vpop.permute.xlu0 %5435
  %5437 = vrot.lane.b32.xlu0 %v5327, 104
  %v5438 = vpop.permute.xlu0 %5437
  %5441 = vrot.lane.b32.xlu0 %v5410, 120
  %v5442 = vpop.permute.xlu0 %5441
  %5443 = vrot.lane.b32.xlu0 %v5415, 120
  %v5444 = vpop.permute.xlu0 %5443
  %5445 = vrot.lane.b32.xlu0 %v5410, 112
  %v5446 = vpop.permute.xlu0 %5445
  %5447 = vrot.lane.b32.xlu0 %v5415, 112
  %v5448 = vpop.permute.xlu0 %5447
  %5449 = vrot.lane.b32.xlu0 %v5410, 104
  %v5450 = vpop.permute.xlu0 %5449
  %5451 = vrot.lane.b32.xlu0 %v5415, 104
  %v5452 = vpop.permute.xlu0 %5451
  %v5453 = vsel %vm238, %v5322, 0
  %v5455 = vsel %vm238, %v5410, 0
  %5457 = vmatprep.subr.mxu0 0.0
  %5458 = vmatpush1.xpose.msra.mxu0 %v5455
  %5459 = vmatprep.subr.mxu0 0.0
  %5460 = vmatpush1.xpose.msra.mxu0 0.0
  %5461 = vmatprep.subr.mxu0 0.0
  %5462 = vmatpush1.xpose.msra.mxu0 0.0
  %5463 = vmatprep.subr.mxu0 0.0
  %5464 = vmatpush1.xpose.msra.mxu0 0.0
  %5465 = vmatprep.subr.mxu0 0.0
  %5466 = vmatpush1.xpose.msra.mxu0 0.0
  %5467 = vmatprep.subr.mxu0 0.0
  %5468 = vmatpush1.xpose.msra.mxu0 0.0
  %5469 = vmatprep.subr.mxu0 0.0
  %5470 = vmatpush1.xpose.msra.mxu0 0.0
  %5471 = vmatprep.subr.mxu0 0.0
  %5472 = vmatpush1.xpose.msra.mxu0 0.0
  %5473 = vmatprep.subr.mxu0 0.0
  %5474 = vmatpush1.xpose.msra.mxu0 0.0
  %5475 = vmatprep.subr.mxu0 0.0
  %5476 = vmatpush1.xpose.msra.mxu0 0.0
  %5477 = vmatprep.subr.mxu0 0.0
  %5478 = vmatpush1.xpose.msra.mxu0 0.0
  %5479 = vmatprep.subr.mxu0 0.0
  %5480 = vmatpush1.xpose.msra.mxu0 0.0
  %5481 = vmatprep.subr.mxu0 0.0
  %5482 = vmatpush1.xpose.msra.mxu0 0.0
  %5483 = vmatprep.subr.mxu0 0.0
  %5484 = vmatpush1.xpose.msra.mxu0 0.0
  %5485 = vmatprep.subr.mxu0 0.0
  %5486 = vmatpush1.xpose.msra.mxu0 0.0
  %5487 = vmatprep.subr.mxu0 0.0
  %5488 = vmatpush1.xpose.msra.mxu0 0.0
  %5489 = vmatprep.subr.mxu0 0.0
  %5490 = vmatpush1.xpose.msra.mxu0 0.0
  %5491 = vmatprep.subr.mxu0 0.0
  %5492 = vmatpush1.xpose.msra.mxu0 0.0
  %5493 = vmatprep.subr.mxu0 0.0
  %5494 = vmatpush1.xpose.msra.mxu0 0.0
  %5495 = vmatprep.subr.mxu0 0.0
  %5496 = vmatpush1.xpose.msra.mxu0 0.0
  %5497 = vmatprep.subr.mxu0 0.0
  %5498 = vmatpush1.xpose.msra.mxu0 0.0
  %5499 = vmatprep.subr.mxu0 0.0
  %5500 = vmatpush1.xpose.msra.mxu0 0.0
  %5501 = vmatprep.subr.mxu0 0.0
  %5502 = vmatpush1.xpose.msra.mxu0 0.0
  %5503 = vmatprep.subr.mxu0 0.0
  %5504 = vmatpush1.xpose.msra.mxu0 0.0
  %5505 = vmatprep.subr.mxu0 0.0
  %5506 = vmatpush1.xpose.msra.mxu0 0.0
  %5507 = vmatprep.subr.mxu0 0.0
  %5508 = vmatpush1.xpose.msra.mxu0 0.0
  %5509 = vmatprep.subr.mxu0 0.0
  %5510 = vmatpush1.xpose.msra.mxu0 0.0
  %5511 = vmatprep.subr.mxu0 0.0
  %5512 = vmatpush1.xpose.msra.mxu0 0.0
  %5513 = vmatprep.subr.mxu0 0.0
  %5514 = vmatpush1.xpose.msra.mxu0 0.0
  %5515 = vmatprep.subr.mxu0 0.0
  %5516 = vmatpush1.xpose.msra.mxu0 0.0
  %5517 = vmatprep.subr.mxu0 0.0
  %5518 = vmatpush1.xpose.msra.mxu0 0.0
  %5519 = vmatprep.subr.mxu0 0.0
  %5520 = vmatpush1.xpose.msra.mxu0 0.0
  %5521 = vmatprep.mubr.f32.mxu0 0.0
  %5522 = vmatmul.mubr.f32.gmra.mrb[0].mxu0 %v5453
  %v5523 = vpop.f32.mrb[0].mxu0
  %v5524 = vadd.f32 0.0, %v5523
  %v5525 = vpop.f32.mrb[0].mxu0
  %5526 = vdwg.mxu0
  %v5527 = vsel %vm238, %v5327, 0
  %v5529 = vsel %vm238, %v5415, 0
  %5531 = vmatprep.subr.mxu0 0.0
  %5532 = vmatpush1.xpose.msra.mxu0 %v5529
  %5533 = vmatprep.subr.mxu0 0.0
  %5534 = vmatpush1.xpose.msra.mxu0 0.0
  %5535 = vmatprep.subr.mxu0 0.0
  %5536 = vmatpush1.xpose.msra.mxu0 0.0
  %5537 = vmatprep.subr.mxu0 0.0
  %5538 = vmatpush1.xpose.msra.mxu0 0.0
  %5539 = vmatprep.subr.mxu0 0.0
  %5540 = vmatpush1.xpose.msra.mxu0 0.0
  %5541 = vmatprep.subr.mxu0 0.0
  %5542 = vmatpush1.xpose.msra.mxu0 0.0
  %5543 = vmatprep.subr.mxu0 0.0
  %5544 = vmatpush1.xpose.msra.mxu0 0.0
  %5545 = vmatprep.subr.mxu0 0.0
  %5546 = vmatpush1.xpose.msra.mxu0 0.0
  %5547 = vmatprep.subr.mxu0 0.0
  %5548 = vmatpush1.xpose.msra.mxu0 0.0
  %5549 = vmatprep.subr.mxu0 0.0
  %5550 = vmatpush1.xpose.msra.mxu0 0.0
  %5551 = vmatprep.subr.mxu0 0.0
  %5552 = vmatpush1.xpose.msra.mxu0 0.0
  %5553 = vmatprep.subr.mxu0 0.0
  %5554 = vmatpush1.xpose.msra.mxu0 0.0
  %5555 = vmatprep.subr.mxu0 0.0
  %5556 = vmatpush1.xpose.msra.mxu0 0.0
  %5557 = vmatprep.subr.mxu0 0.0
  %5558 = vmatpush1.xpose.msra.mxu0 0.0
  %5559 = vmatprep.subr.mxu0 0.0
  %5560 = vmatpush1.xpose.msra.mxu0 0.0
  %5561 = vmatprep.subr.mxu0 0.0
  %5562 = vmatpush1.xpose.msra.mxu0 0.0
  %5563 = vmatprep.subr.mxu0 0.0
  %5564 = vmatpush1.xpose.msra.mxu0 0.0
  %5565 = vmatprep.subr.mxu0 0.0
  %5566 = vmatpush1.xpose.msra.mxu0 0.0
  %5567 = vmatprep.subr.mxu0 0.0
  %5568 = vmatpush1.xpose.msra.mxu0 0.0
  %5569 = vmatprep.subr.mxu0 0.0
  %5570 = vmatpush1.xpose.msra.mxu0 0.0
  %5571 = vmatprep.subr.mxu0 0.0
  %5572 = vmatpush1.xpose.msra.mxu0 0.0
  %5573 = vmatprep.subr.mxu0 0.0
  %5574 = vmatpush1.xpose.msra.mxu0 0.0
  %5575 = vmatprep.subr.mxu0 0.0
  %5576 = vmatpush1.xpose.msra.mxu0 0.0
  %5577 = vmatprep.subr.mxu0 0.0
  %5578 = vmatpush1.xpose.msra.mxu0 0.0
  %5579 = vmatprep.subr.mxu0 0.0
  %5580 = vmatpush1.xpose.msra.mxu0 0.0
  %5581 = vmatprep.subr.mxu0 0.0
  %5582 = vmatpush1.xpose.msra.mxu0 0.0
  %5583 = vmatprep.subr.mxu0 0.0
  %5584 = vmatpush1.xpose.msra.mxu0 0.0
  %5585 = vmatprep.subr.mxu0 0.0
  %5586 = vmatpush1.xpose.msra.mxu0 0.0
  %5587 = vmatprep.subr.mxu0 0.0
  %5588 = vmatpush1.xpose.msra.mxu0 0.0
  %5589 = vmatprep.subr.mxu0 0.0
  %5590 = vmatpush1.xpose.msra.mxu0 0.0
  %5591 = vmatprep.subr.mxu0 0.0
  %5592 = vmatpush1.xpose.msra.mxu0 0.0
  %5593 = vmatprep.subr.mxu0 0.0
  %5594 = vmatpush1.xpose.msra.mxu0 0.0
  %5595 = vmatprep.mubr.f32.mxu0 0.0
  %5596 = vmatmul.mubr.f32.gmra.mrb[0].mxu0 %v5527
  %v5597 = vpop.f32.mrb[0].mxu0
  %v5598 = vadd.f32 0.0, %v5597
  %v5599 = vpop.f32.mrb[0].mxu0
  %5600 = vdwg.mxu0
  %v5601 = vsel %vm238, %v5428, 0
  %v5603 = vsel %vm238, %v5442, 0
  %5605 = vmatprep.subr.mxu0 0.0
  %5606 = vmatpush1.xpose.msra.mxu0 %v5603
  %5607 = vmatprep.subr.mxu0 0.0
  %5608 = vmatpush1.xpose.msra.mxu0 0.0
  %5609 = vmatprep.subr.mxu0 0.0
  %5610 = vmatpush1.xpose.msra.mxu0 0.0
  %5611 = vmatprep.subr.mxu0 0.0
  %5612 = vmatpush1.xpose.msra.mxu0 0.0
  %5613 = vmatprep.subr.mxu0 0.0
  %5614 = vmatpush1.xpose.msra.mxu0 0.0
  %5615 = vmatprep.subr.mxu0 0.0
  %5616 = vmatpush1.xpose.msra.mxu0 0.0
  %5617 = vmatprep.subr.mxu0 0.0
  %5618 = vmatpush1.xpose.msra.mxu0 0.0
  %5619 = vmatprep.subr.mxu0 0.0
  %5620 = vmatpush1.xpose.msra.mxu0 0.0
  %5621 = vmatprep.subr.mxu0 0.0
  %5622 = vmatpush1.xpose.msra.mxu0 0.0
  %5623 = vmatprep.subr.mxu0 0.0
  %5624 = vmatpush1.xpose.msra.mxu0 0.0
  %5625 = vmatprep.subr.mxu0 0.0
  %5626 = vmatpush1.xpose.msra.mxu0 0.0
  %5627 = vmatprep.subr.mxu0 0.0
  %5628 = vmatpush1.xpose.msra.mxu0 0.0
  %5629 = vmatprep.subr.mxu0 0.0
  %5630 = vmatpush1.xpose.msra.mxu0 0.0
  %5631 = vmatprep.subr.mxu0 0.0
  %5632 = vmatpush1.xpose.msra.mxu0 0.0
  %5633 = vmatprep.subr.mxu0 0.0
  %5634 = vmatpush1.xpose.msra.mxu0 0.0
  %5635 = vmatprep.subr.mxu0 0.0
  %5636 = vmatpush1.xpose.msra.mxu0 0.0
  %5637 = vmatprep.subr.mxu0 0.0
  %5638 = vmatpush1.xpose.msra.mxu0 0.0
  %5639 = vmatprep.subr.mxu0 0.0
  %5640 = vmatpush1.xpose.msra.mxu0 0.0
  %5641 = vmatprep.subr.mxu0 0.0
  %5642 = vmatpush1.xpose.msra.mxu0 0.0
  %5643 = vmatprep.subr.mxu0 0.0
  %5644 = vmatpush1.xpose.msra.mxu0 0.0
  %5645 = vmatprep.subr.mxu0 0.0
  %5646 = vmatpush1.xpose.msra.mxu0 0.0
  %5647 = vmatprep.subr.mxu0 0.0
  %5648 = vmatpush1.xpose.msra.mxu0 0.0
  %5649 = vmatprep.subr.mxu0 0.0
  %5650 = vmatpush1.xpose.msra.mxu0 0.0
  %5651 = vmatprep.subr.mxu0 0.0
  %5652 = vmatpush1.xpose.msra.mxu0 0.0
  %5653 = vmatprep.subr.mxu0 0.0
  %5654 = vmatpush1.xpose.msra.mxu0 0.0
  %5655 = vmatprep.subr.mxu0 0.0
  %5656 = vmatpush1.xpose.msra.mxu0 0.0
  %5657 = vmatprep.subr.mxu0 0.0
  %5658 = vmatpush1.xpose.msra.mxu0 0.0
  %5659 = vmatprep.subr.mxu0 0.0
  %5660 = vmatpush1.xpose.msra.mxu0 0.0
  %5661 = vmatprep.subr.mxu0 0.0
  %5662 = vmatpush1.xpose.msra.mxu0 0.0
  %5663 = vmatprep.subr.mxu0 0.0
  %5664 = vmatpush1.xpose.msra.mxu0 0.0
  %5665 = vmatprep.subr.mxu0 0.0
  %5666 = vmatpush1.xpose.msra.mxu0 0.0
  %5667 = vmatprep.subr.mxu0 0.0
  %5668 = vmatpush1.xpose.msra.mxu0 0.0
  %5669 = vmatprep.mubr.f32.mxu0 0.0
  %5670 = vmatmul.mubr.f32.gmra.mrb[0].mxu0 %v5601
  %v5671 = vpop.f32.mrb[0].mxu0
  %v5672 = vadd.f32 0.0, %v5671
  %v5673 = vpop.f32.mrb[0].mxu0
  %5674 = vdwg.mxu0
  %v5675 = vsel %vm238, %v5430, 0
  %v5677 = vsel %vm238, %v5444, 0
  %5679 = vmatprep.subr.mxu0 0.0
  %5680 = vmatpush1.xpose.msra.mxu0 %v5677
  %5681 = vmatprep.subr.mxu0 0.0
  %5682 = vmatpush1.xpose.msra.mxu0 0.0
  %5683 = vmatprep.subr.mxu0 0.0
  %5684 = vmatpush1.xpose.msra.mxu0 0.0
  %5685 = vmatprep.subr.mxu0 0.0
  %5686 = vmatpush1.xpose.msra.mxu0 0.0
  %5687 = vmatprep.subr.mxu0 0.0
  %5688 = vmatpush1.xpose.msra.mxu0 0.0
  %5689 = vmatprep.subr.mxu0 0.0
  %5690 = vmatpush1.xpose.msra.mxu0 0.0
  %5691 = vmatprep.subr.mxu0 0.0
  %5692 = vmatpush1.xpose.msra.mxu0 0.0
  %5693 = vmatprep.subr.mxu0 0.0
  %5694 = vmatpush1.xpose.msra.mxu0 0.0
  %5695 = vmatprep.subr.mxu0 0.0
  %5696 = vmatpush1.xpose.msra.mxu0 0.0
  %5697 = vmatprep.subr.mxu0 0.0
  %5698 = vmatpush1.xpose.msra.mxu0 0.0
  %5699 = vmatprep.subr.mxu0 0.0
  %5700 = vmatpush1.xpose.msra.mxu0 0.0
  %5701 = vmatprep.subr.mxu0 0.0
  %5702 = vmatpush1.xpose.msra.mxu0 0.0
  %5703 = vmatprep.subr.mxu0 0.0
  %5704 = vmatpush1.xpose.msra.mxu0 0.0
  %5705 = vmatprep.subr.mxu0 0.0
  %5706 = vmatpush1.xpose.msra.mxu0 0.0
  %5707 = vmatprep.subr.mxu0 0.0
  %5708 = vmatpush1.xpose.msra.mxu0 0.0
  %5709 = vmatprep.subr.mxu0 0.0
  %5710 = vmatpush1.xpose.msra.mxu0 0.0
  %5711 = vmatprep.subr.mxu0 0.0
  %5712 = vmatpush1.xpose.msra.mxu0 0.0
  %5713 = vmatprep.subr.mxu0 0.0
  %5714 = vmatpush1.xpose.msra.mxu0 0.0
  %5715 = vmatprep.subr.mxu0 0.0
  %5716 = vmatpush1.xpose.msra.mxu0 0.0
  %5717 = vmatprep.subr.mxu0 0.0
  %5718 = vmatpush1.xpose.msra.mxu0 0.0
  %5719 = vmatprep.subr.mxu0 0.0
  %5720 = vmatpush1.xpose.msra.mxu0 0.0
  %5721 = vmatprep.subr.mxu0 0.0
  %5722 = vmatpush1.xpose.msra.mxu0 0.0
  %5723 = vmatprep.subr.mxu0 0.0
  %5724 = vmatpush1.xpose.msra.mxu0 0.0
  %5725 = vmatprep.subr.mxu0 0.0
  %5726 = vmatpush1.xpose.msra.mxu0 0.0
  %5727 = vmatprep.subr.mxu0 0.0
  %5728 = vmatpush1.xpose.msra.mxu0 0.0
  %5729 = vmatprep.subr.mxu0 0.0
  %5730 = vmatpush1.xpose.msra.mxu0 0.0
  %5731 = vmatprep.subr.mxu0 0.0
  %5732 = vmatpush1.xpose.msra.mxu0 0.0
  %5733 = vmatprep.subr.mxu0 0.0
  %5734 = vmatpush1.xpose.msra.mxu0 0.0
  %5735 = vmatprep.subr.mxu0 0.0
  %5736 = vmatpush1.xpose.msra.mxu0 0.0
  %5737 = vmatprep.subr.mxu0 0.0
  %5738 = vmatpush1.xpose.msra.mxu0 0.0
  %5739 = vmatprep.subr.mxu0 0.0
  %5740 = vmatpush1.xpose.msra.mxu0 0.0
  %5741 = vmatprep.subr.mxu0 0.0
  %5742 = vmatpush1.xpose.msra.mxu0 0.0
  %5743 = vmatprep.mubr.f32.mxu0 0.0
  %5744 = vmatmul.mubr.f32.gmra.mrb[0].mxu0 %v5675
  %v5745 = vpop.f32.mrb[0].mxu0
  %v5746 = vadd.f32 0.0, %v5745
  %v5747 = vpop.f32.mrb[0].mxu0
  %5748 = vdwg.mxu0
  %v5749 = vsel %vm238, %v5432, 0
  %v5751 = vsel %vm238, %v5446, 0
  %5753 = vmatprep.subr.mxu0 0.0
  %5754 = vmatpush1.xpose.msra.mxu0 %v5751
  %5755 = vmatprep.subr.mxu0 0.0
  %5756 = vmatpush1.xpose.msra.mxu0 0.0
  %5757 = vmatprep.subr.mxu0 0.0
  %5758 = vmatpush1.xpose.msra.mxu0 0.0
  %5759 = vmatprep.subr.mxu0 0.0
  %5760 = vmatpush1.xpose.msra.mxu0 0.0
  %5761 = vmatprep.subr.mxu0 0.0
  %5762 = vmatpush1.xpose.msra.mxu0 0.0
  %5763 = vmatprep.subr.mxu0 0.0
  %5764 = vmatpush1.xpose.msra.mxu0 0.0
  %5765 = vmatprep.subr.mxu0 0.0
  %5766 = vmatpush1.xpose.msra.mxu0 0.0
  %5767 = vmatprep.subr.mxu0 0.0
  %5768 = vmatpush1.xpose.msra.mxu0 0.0
  %5769 = vmatprep.subr.mxu0 0.0
  %5770 = vmatpush1.xpose.msra.mxu0 0.0
  %5771 = vmatprep.subr.mxu0 0.0
  %5772 = vmatpush1.xpose.msra.mxu0 0.0
  %5773 = vmatprep.subr.mxu0 0.0
  %5774 = vmatpush1.xpose.msra.mxu0 0.0
  %5775 = vmatprep.subr.mxu0 0.0
  %5776 = vmatpush1.xpose.msra.mxu0 0.0
  %5777 = vmatprep.subr.mxu0 0.0
  %5778 = vmatpush1.xpose.msra.mxu0 0.0
  %5779 = vmatprep.subr.mxu0 0.0
  %5780 = vmatpush1.xpose.msra.mxu0 0.0
  %5781 = vmatprep.subr.mxu0 0.0
  %5782 = vmatpush1.xpose.msra.mxu0 0.0
  %5783 = vmatprep.subr.mxu0 0.0
  %5784 = vmatpush1.xpose.msra.mxu0 0.0
  %5785 = vmatprep.subr.mxu0 0.0
  %5786 = vmatpush1.xpose.msra.mxu0 0.0
  %5787 = vmatprep.subr.mxu0 0.0
  %5788 = vmatpush1.xpose.msra.mxu0 0.0
  %5789 = vmatprep.subr.mxu0 0.0
  %5790 = vmatpush1.xpose.msra.mxu0 0.0
  %5791 = vmatprep.subr.mxu0 0.0
  %5792 = vmatpush1.xpose.msra.mxu0 0.0
  %5793 = vmatprep.subr.mxu0 0.0
  %5794 = vmatpush1.xpose.msra.mxu0 0.0
  %5795 = vmatprep.subr.mxu0 0.0
  %5796 = vmatpush1.xpose.msra.mxu0 0.0
  %5797 = vmatprep.subr.mxu0 0.0
  %5798 = vmatpush1.xpose.msra.mxu0 0.0
  %5799 = vmatprep.subr.mxu0 0.0
  %5800 = vmatpush1.xpose.msra.mxu0 0.0
  %5801 = vmatprep.subr.mxu0 0.0
  %5802 = vmatpush1.xpose.msra.mxu0 0.0
  %5803 = vmatprep.subr.mxu0 0.0
  %5804 = vmatpush1.xpose.msra.mxu0 0.0
  %5805 = vmatprep.subr.mxu0 0.0
  %5806 = vmatpush1.xpose.msra.mxu0 0.0
  %5807 = vmatprep.subr.mxu0 0.0
  %5808 = vmatpush1.xpose.msra.mxu0 0.0
  %5809 = vmatprep.subr.mxu0 0.0
  %5810 = vmatpush1.xpose.msra.mxu0 0.0
  %5811 = vmatprep.subr.mxu0 0.0
  %5812 = vmatpush1.xpose.msra.mxu0 0.0
  %5813 = vmatprep.subr.mxu0 0.0
  %5814 = vmatpush1.xpose.msra.mxu0 0.0
  %5815 = vmatprep.subr.mxu0 0.0
  %5816 = vmatpush1.xpose.msra.mxu0 0.0
  %5817 = vmatprep.mubr.f32.mxu0 0.0
  %5818 = vmatmul.mubr.f32.gmra.mrb[0].mxu0 %v5749
  %v5819 = vpop.f32.mrb[0].mxu0
  %v5820 = vadd.f32 0.0, %v5819
  %v5821 = vpop.f32.mrb[0].mxu0
  %5822 = vdwg.mxu0
  %v5823 = vsel %vm238, %v5434, 0
  %v5825 = vsel %vm238, %v5448, 0
  %5827 = vmatprep.subr.mxu0 0.0
  %5828 = vmatpush1.xpose.msra.mxu0 %v5825
  %5829 = vmatprep.subr.mxu0 0.0
  %5830 = vmatpush1.xpose.msra.mxu0 0.0
  %5831 = vmatprep.subr.mxu0 0.0
  %5832 = vmatpush1.xpose.msra.mxu0 0.0
  %5833 = vmatprep.subr.mxu0 0.0
  %5834 = vmatpush1.xpose.msra.mxu0 0.0
  %5835 = vmatprep.subr.mxu0 0.0
  %5836 = vmatpush1.xpose.msra.mxu0 0.0
  %5837 = vmatprep.subr.mxu0 0.0
  %5838 = vmatpush1.xpose.msra.mxu0 0.0
  %5839 = vmatprep.subr.mxu0 0.0
  %5840 = vmatpush1.xpose.msra.mxu0 0.0
  %5841 = vmatprep.subr.mxu0 0.0
  %5842 = vmatpush1.xpose.msra.mxu0 0.0
  %5843 = vmatprep.subr.mxu0 0.0
  %5844 = vmatpush1.xpose.msra.mxu0 0.0
  %5845 = vmatprep.subr.mxu0 0.0
  %5846 = vmatpush1.xpose.msra.mxu0 0.0
  %5847 = vmatprep.subr.mxu0 0.0
  %5848 = vmatpush1.xpose.msra.mxu0 0.0
  %5849 = vmatprep.subr.mxu0 0.0
  %5850 = vmatpush1.xpose.msra.mxu0 0.0
  %5851 = vmatprep.subr.mxu0 0.0
  %5852 = vmatpush1.xpose.msra.mxu0 0.0
  %5853 = vmatprep.subr.mxu0 0.0
  %5854 = vmatpush1.xpose.msra.mxu0 0.0
  %5855 = vmatprep.subr.mxu0 0.0
  %5856 = vmatpush1.xpose.msra.mxu0 0.0
  %5857 = vmatprep.subr.mxu0 0.0
  %5858 = vmatpush1.xpose.msra.mxu0 0.0
  %5859 = vmatprep.subr.mxu0 0.0
  %5860 = vmatpush1.xpose.msra.mxu0 0.0
  %5861 = vmatprep.subr.mxu0 0.0
  %5862 = vmatpush1.xpose.msra.mxu0 0.0
  %5863 = vmatprep.subr.mxu0 0.0
  %5864 = vmatpush1.xpose.msra.mxu0 0.0
  %5865 = vmatprep.subr.mxu0 0.0
  %5866 = vmatpush1.xpose.msra.mxu0 0.0
  %5867 = vmatprep.subr.mxu0 0.0
  %5868 = vmatpush1.xpose.msra.mxu0 0.0
  %5869 = vmatprep.subr.mxu0 0.0
  %5870 = vmatpush1.xpose.msra.mxu0 0.0
  %5871 = vmatprep.subr.mxu0 0.0
  %5872 = vmatpush1.xpose.msra.mxu0 0.0
  %5873 = vmatprep.subr.mxu0 0.0
  %5874 = vmatpush1.xpose.msra.mxu0 0.0
  %5875 = vmatprep.subr.mxu0 0.0
  %5876 = vmatpush1.xpose.msra.mxu0 0.0
  %5877 = vmatprep.subr.mxu0 0.0
  %5878 = vmatpush1.xpose.msra.mxu0 0.0
  %5879 = vmatprep.subr.mxu0 0.0
  %5880 = vmatpush1.xpose.msra.mxu0 0.0
  %5881 = vmatprep.subr.mxu0 0.0
  %5882 = vmatpush1.xpose.msra.mxu0 0.0
  %5883 = vmatprep.subr.mxu0 0.0
  %5884 = vmatpush1.xpose.msra.mxu0 0.0
  %5885 = vmatprep.subr.mxu0 0.0
  %5886 = vmatpush1.xpose.msra.mxu0 0.0
  %5887 = vmatprep.subr.mxu0 0.0
  %5888 = vmatpush1.xpose.msra.mxu0 0.0
  %5889 = vmatprep.subr.mxu0 0.0
  %5890 = vmatpush1.xpose.msra.mxu0 0.0
  %5891 = vmatprep.mubr.f32.mxu0 0.0
  %5892 = vmatmul.mubr.f32.gmra.mrb[0].mxu0 %v5823
  %v5893 = vpop.f32.mrb[0].mxu0
  %v5894 = vadd.f32 0.0, %v5893
  %v5895 = vpop.f32.mrb[0].mxu0
  %5896 = vdwg.mxu0
  %v5897 = vsel %vm238, %v5436, 0
  %v5899 = vsel %vm238, %v5450, 0
  %5901 = vmatprep.subr.mxu0 0.0
  %5902 = vmatpush1.xpose.msra.mxu0 %v5899
  %5903 = vmatprep.subr.mxu0 0.0
  %5904 = vmatpush1.xpose.msra.mxu0 0.0
  %5905 = vmatprep.subr.mxu0 0.0
  %5906 = vmatpush1.xpose.msra.mxu0 0.0
  %5907 = vmatprep.subr.mxu0 0.0
  %5908 = vmatpush1.xpose.msra.mxu0 0.0
  %5909 = vmatprep.subr.mxu0 0.0
  %5910 = vmatpush1.xpose.msra.mxu0 0.0
  %5911 = vmatprep.subr.mxu0 0.0
  %5912 = vmatpush1.xpose.msra.mxu0 0.0
  %5913 = vmatprep.subr.mxu0 0.0
  %5914 = vmatpush1.xpose.msra.mxu0 0.0
  %5915 = vmatprep.subr.mxu0 0.0
  %5916 = vmatpush1.xpose.msra.mxu0 0.0
  %5917 = vmatprep.subr.mxu0 0.0
  %5918 = vmatpush1.xpose.msra.mxu0 0.0
  %5919 = vmatprep.subr.mxu0 0.0
  %5920 = vmatpush1.xpose.msra.mxu0 0.0
  %5921 = vmatprep.subr.mxu0 0.0
  %5922 = vmatpush1.xpose.msra.mxu0 0.0
  %5923 = vmatprep.subr.mxu0 0.0
  %5924 = vmatpush1.xpose.msra.mxu0 0.0
  %5925 = vmatprep.subr.mxu0 0.0
  %5926 = vmatpush1.xpose.msra.mxu0 0.0
  %5927 = vmatprep.subr.mxu0 0.0
  %5928 = vmatpush1.xpose.msra.mxu0 0.0
  %5929 = vmatprep.subr.mxu0 0.0
  %5930 = vmatpush1.xpose.msra.mxu0 0.0
  %5931 = vmatprep.subr.mxu0 0.0
  %5932 = vmatpush1.xpose.msra.mxu0 0.0
  %5933 = vmatprep.subr.mxu0 0.0
  %5934 = vmatpush1.xpose.msra.mxu0 0.0
  %5935 = vmatprep.subr.mxu0 0.0
  %5936 = vmatpush1.xpose.msra.mxu0 0.0
  %5937 = vmatprep.subr.mxu0 0.0
  %5938 = vmatpush1.xpose.msra.mxu0 0.0
  %5939 = vmatprep.subr.mxu0 0.0
  %5940 = vmatpush1.xpose.msra.mxu0 0.0
  %5941 = vmatprep.subr.mxu0 0.0
  %5942 = vmatpush1.xpose.msra.mxu0 0.0
  %5943 = vmatprep.subr.mxu0 0.0
  %5944 = vmatpush1.xpose.msra.mxu0 0.0
  %5945 = vmatprep.subr.mxu0 0.0
  %5946 = vmatpush1.xpose.msra.mxu0 0.0
  %5947 = vmatprep.subr.mxu0 0.0
  %5948 = vmatpush1.xpose.msra.mxu0 0.0
  %5949 = vmatprep.subr.mxu0 0.0
  %5950 = vmatpush1.xpose.msra.mxu0 0.0
  %5951 = vmatprep.subr.mxu0 0.0
  %5952 = vmatpush1.xpose.msra.mxu0 0.0
  %5953 = vmatprep.subr.mxu0 0.0
  %5954 = vmatpush1.xpose.msra.mxu0 0.0
  %5955 = vmatprep.subr.mxu0 0.0
  %5956 = vmatpush1.xpose.msra.mxu0 0.0
  %5957 = vmatprep.subr.mxu0 0.0
  %5958 = vmatpush1.xpose.msra.mxu0 0.0
  %5959 = vmatprep.subr.mxu0 0.0
  %5960 = vmatpush1.xpose.msra.mxu0 0.0
  %5961 = vmatprep.subr.mxu0 0.0
  %5962 = vmatpush1.xpose.msra.mxu0 0.0
  %5963 = vmatprep.subr.mxu0 0.0
  %5964 = vmatpush1.xpose.msra.mxu0 0.0
  %5965 = vmatprep.mubr.f32.mxu0 0.0
  %5966 = vmatmul.mubr.f32.gmra.mrb[0].mxu0 %v5897
  %v5967 = vpop.f32.mrb[0].mxu0
  %v5968 = vadd.f32 0.0, %v5967
  %v5969 = vpop.f32.mrb[0].mxu0
  %5970 = vdwg.mxu0
  %v5971 = vsel %vm238, %v5438, 0
  %v5973 = vsel %vm238, %v5452, 0
  %5975 = vmatprep.subr.mxu0 0.0
  %5976 = vmatpush1.xpose.msra.mxu0 %v5973
  %5977 = vmatprep.subr.mxu0 0.0
  %5978 = vmatpush1.xpose.msra.mxu0 0.0
  %5979 = vmatprep.subr.mxu0 0.0
  %5980 = vmatpush1.xpose.msra.mxu0 0.0
  %5981 = vmatprep.subr.mxu0 0.0
  %5982 = vmatpush1.xpose.msra.mxu0 0.0
  %5983 = vmatprep.subr.mxu0 0.0
  %5984 = vmatpush1.xpose.msra.mxu0 0.0
  %5985 = vmatprep.subr.mxu0 0.0
  %5986 = vmatpush1.xpose.msra.mxu0 0.0
  %5987 = vmatprep.subr.mxu0 0.0
  %5988 = vmatpush1.xpose.msra.mxu0 0.0
  %5989 = vmatprep.subr.mxu0 0.0
  %5990 = vmatpush1.xpose.msra.mxu0 0.0
  %5991 = vmatprep.subr.mxu0 0.0
  %5992 = vmatpush1.xpose.msra.mxu0 0.0
  %5993 = vmatprep.subr.mxu0 0.0
  %5994 = vmatpush1.xpose.msra.mxu0 0.0
  %5995 = vmatprep.subr.mxu0 0.0
  %5996 = vmatpush1.xpose.msra.mxu0 0.0
  %5997 = vmatprep.subr.mxu0 0.0
  %5998 = vmatpush1.xpose.msra.mxu0 0.0
  %5999 = vmatprep.subr.mxu0 0.0
  %6000 = vmatpush1.xpose.msra.mxu0 0.0
  %6001 = vmatprep.subr.mxu0 0.0
  %6002 = vmatpush1.xpose.msra.mxu0 0.0
  %6003 = vmatprep.subr.mxu0 0.0
  %6004 = vmatpush1.xpose.msra.mxu0 0.0
  %6005 = vmatprep.subr.mxu0 0.0
  %6006 = vmatpush1.xpose.msra.mxu0 0.0
  %6007 = vmatprep.subr.mxu0 0.0
  %6008 = vmatpush1.xpose.msra.mxu0 0.0
  %6009 = vmatprep.subr.mxu0 0.0
  %6010 = vmatpush1.xpose.msra.mxu0 0.0
  %6011 = vmatprep.subr.mxu0 0.0
  %6012 = vmatpush1.xpose.msra.mxu0 0.0
  %6013 = vmatprep.subr.mxu0 0.0
  %6014 = vmatpush1.xpose.msra.mxu0 0.0
  %6015 = vmatprep.subr.mxu0 0.0
  %6016 = vmatpush1.xpose.msra.mxu0 0.0
  %6017 = vmatprep.subr.mxu0 0.0
  %6018 = vmatpush1.xpose.msra.mxu0 0.0
  %6019 = vmatprep.subr.mxu0 0.0
  %6020 = vmatpush1.xpose.msra.mxu0 0.0
  %6021 = vmatprep.subr.mxu0 0.0
  %6022 = vmatpush1.xpose.msra.mxu0 0.0
  %6023 = vmatprep.subr.mxu0 0.0
  %6024 = vmatpush1.xpose.msra.mxu0 0.0
  %6025 = vmatprep.subr.mxu0 0.0
  %6026 = vmatpush1.xpose.msra.mxu0 0.0
  %6027 = vmatprep.subr.mxu0 0.0
  %6028 = vmatpush1.xpose.msra.mxu0 0.0
  %6029 = vmatprep.subr.mxu0 0.0
  %6030 = vmatpush1.xpose.msra.mxu0 0.0
  %6031 = vmatprep.subr.mxu0 0.0
  %6032 = vmatpush1.xpose.msra.mxu0 0.0
  %6033 = vmatprep.subr.mxu0 0.0
  %6034 = vmatpush1.xpose.msra.mxu0 0.0
  %6035 = vmatprep.subr.mxu0 0.0
  %6036 = vmatpush1.xpose.msra.mxu0 0.0
  %6037 = vmatprep.subr.mxu0 0.0
  %6038 = vmatpush1.xpose.msra.mxu0 0.0
  %6039 = vmatprep.mubr.f32.mxu0 0.0
  %6040 = vmatmul.mubr.f32.gmra.mrb[0].mxu0 %v5971
  %v6041 = vpop.f32.mrb[0].mxu0
  %v6042 = vadd.f32 0.0, %v6041
  %v6043 = vpop.f32.mrb[0].mxu0
  %6044 = vdwg.mxu0
  %v6045 = vmul.f32 %v5524, 0.35355338
  %v6046 = vmul.f32 %v5598, 0.35355338
  %v6047 = vmul.f32 %v5672, 0.35355338
  %v6048 = vmul.f32 %v5746, 0.35355338
  %v6049 = vmul.f32 %v5820, 0.35355338
  %v6050 = vmul.f32 %v5894, 0.35355338
  %v6051 = vmul.f32 %v5968, 0.35355338
  %v6052 = vmul.f32 %v6042, 0.35355338
  %v6053 = vsel %vm238, %v6045, -inf
  %6054 = vmax.xlane.f32.xlu0 %v6053
  %v6055 = vpop.xlane.xlu0 %6054
  %v6056 = vsel %vm238, %v6046, -inf
  %6057 = vmax.xlane.f32.xlu0 %v6056
  %v6058 = vpop.xlane.xlu0 %6057
  %v6059 = vsel %vm238, %v6047, -inf
  %6060 = vmax.xlane.f32.xlu0 %v6059
  %v6061 = vpop.xlane.xlu0 %6060
  %v6062 = vsel %vm238, %v6048, -inf
  %6063 = vmax.xlane.f32.xlu0 %v6062
  %v6064 = vpop.xlane.xlu0 %6063
  %v6065 = vsel %vm238, %v6049, -inf
  %6066 = vmax.xlane.f32.xlu0 %v6065
  %v6067 = vpop.xlane.xlu0 %6066
  %v6068 = vsel %vm238, %v6050, -inf
  %6069 = vmax.xlane.f32.xlu0 %v6068
  %v6070 = vpop.xlane.xlu0 %6069
  %v6071 = vsel %vm238, %v6051, -inf
  %6072 = vmax.xlane.f32.xlu0 %v6071
  %v6073 = vpop.xlane.xlu0 %6072
  %v6074 = vsel %vm238, %v6052, -inf
  %6075 = vmax.xlane.f32.xlu0 %v6074
  %v6076 = vpop.xlane.xlu0 %6075
  %v6077 = vsub.f32 %v6045, %v6055
  %v6078 = vsub.f32 %v6046, %v6058
  %v6079 = vsub.f32 %v6047, %v6061
  %v6080 = vsub.f32 %v6048, %v6064
  %v6081 = vsub.f32 %v6049, %v6067
  %v6082 = vsub.f32 %v6050, %v6070
  %v6083 = vsub.f32 %v6051, %v6073
  %v6084 = vsub.f32 %v6052, %v6076
  %v6085 = vmul.f32 %v6077, 1.442695
  %v6086 = vpow.pop %v6085
  %v6087 = vmul.f32 %v6078, 1.442695
  %v6088 = vpow.pop %v6087
  %v6089 = vmul.f32 %v6079, 1.442695
  %v6090 = vpow.pop %v6089
  %v6091 = vmul.f32 %v6080, 1.442695
  %v6092 = vpow.pop %v6091
  %v6093 = vmul.f32 %v6081, 1.442695
  %v6094 = vpow.pop %v6093
  %v6095 = vmul.f32 %v6082, 1.442695
  %v6096 = vpow.pop %v6095
  %v6097 = vmul.f32 %v6083, 1.442695
  %v6098 = vpow.pop %v6097
  %v6099 = vmul.f32 %v6084, 1.442695
  %v6100 = vpow.pop %v6099
  %v6101 = vsel %vm238, %v6086, 0.0
  %6102 = vadd.xlane.f32.xlu0 %v6101
  %v6103 = vpop.xlane.xlu0 %6102
  %v6104 = vsel %vm238, %v6088, 0.0
  %6105 = vadd.xlane.f32.xlu0 %v6104
  %v6106 = vpop.xlane.xlu0 %6105
  %v6107 = vsel %vm238, %v6090, 0.0
  %6108 = vadd.xlane.f32.xlu0 %v6107
  %v6109 = vpop.xlane.xlu0 %6108
  %v6110 = vsel %vm238, %v6092, 0.0
  %6111 = vadd.xlane.f32.xlu0 %v6110
  %v6112 = vpop.xlane.xlu0 %6111
  %v6113 = vsel %vm238, %v6094, 0.0
  %6114 = vadd.xlane.f32.xlu0 %v6113
  %v6115 = vpop.xlane.xlu0 %6114
  %v6116 = vsel %vm238, %v6096, 0.0
  %6117 = vadd.xlane.f32.xlu0 %v6116
  %v6118 = vpop.xlane.xlu0 %6117
  %v6119 = vsel %vm238, %v6098, 0.0
  %6120 = vadd.xlane.f32.xlu0 %v6119
  %v6121 = vpop.xlane.xlu0 %6120
  %v6122 = vsel %vm238, %v6100, 0.0
  %6123 = vadd.xlane.f32.xlu0 %v6122
  %v6124 = vpop.xlane.xlu0 %6123
  %v6125 = vrcp.pop %v6103
  %v6126 = vrcp.pop %v6106
  %v6127 = vrcp.pop %v6109
  %v6128 = vrcp.pop %v6112
  %v6129 = vrcp.pop %v6115
  %v6130 = vrcp.pop %v6118
  %v6131 = vrcp.pop %v6121
  %v6132 = vrcp.pop %v6124
  %v6133 = vmul.f32 %v6086, %v6125
  %v6134 = vmul.f32 %v6088, %v6126
  %v6135 = vmul.f32 %v6090, %v6127
  %v6136 = vmul.f32 %v6092, %v6128
  %v6137 = vmul.f32 %v6094, %v6129
  %v6138 = vmul.f32 %v6096, %v6130
  %v6139 = vmul.f32 %v6098, %v6131
  %v6140 = vmul.f32 %v6100, %v6132
  %6141 = vrot.lane.b32.xlu0 %v5410, 96
  %v6142 = vpop.permute.xlu0 %6141
  %v6145 = vsel %vm238, %v6133, 0
  %6147 = vmatprep.subr.mxu0 0.0
  %6148 = vmatpush1.msra.mxu0 %v6142
  %6149 = vmatprep.subr.mxu0 0.0
  %6150 = vmatpush1.msra.mxu0 0.0
  %6151 = vmatprep.subr.mxu0 0.0
  %6152 = vmatpush1.msra.mxu0 0.0
  %6153 = vmatprep.subr.mxu0 0.0
  %6154 = vmatpush1.msra.mxu0 0.0
  %6155 = vmatprep.subr.mxu0 0.0
  %6156 = vmatpush1.msra.mxu0 0.0
  %6157 = vmatprep.subr.mxu0 0.0
  %6158 = vmatpush1.msra.mxu0 0.0
  %6159 = vmatprep.subr.mxu0 0.0
  %6160 = vmatpush1.msra.mxu0 0.0
  %6161 = vmatprep.subr.mxu0 0.0
  %6162 = vmatpush1.msra.mxu0 0.0
  %6163 = vmatprep.subr.mxu0 0.0
  %6164 = vmatpush1.msra.mxu0 0.0
  %6165 = vmatprep.subr.mxu0 0.0
  %6166 = vmatpush1.msra.mxu0 0.0
  %6167 = vmatprep.subr.mxu0 0.0
  %6168 = vmatpush1.msra.mxu0 0.0
  %6169 = vmatprep.subr.mxu0 0.0
  %6170 = vmatpush1.msra.mxu0 0.0
  %6171 = vmatprep.subr.mxu0 0.0
  %6172 = vmatpush1.msra.mxu0 0.0
  %6173 = vmatprep.subr.mxu0 0.0
  %6174 = vmatpush1.msra.mxu0 0.0
  %6175 = vmatprep.subr.mxu0 0.0
  %6176 = vmatpush1.msra.mxu0 0.0
  %6177 = vmatprep.subr.mxu0 0.0
  %6178 = vmatpush1.msra.mxu0 0.0
  %6179 = vmatprep.subr.mxu0 0.0
  %6180 = vmatpush1.msra.mxu0 0.0
  %6181 = vmatprep.subr.mxu0 0.0
  %6182 = vmatpush1.msra.mxu0 0.0
  %6183 = vmatprep.subr.mxu0 0.0
  %6184 = vmatpush1.msra.mxu0 0.0
  %6185 = vmatprep.subr.mxu0 0.0
  %6186 = vmatpush1.msra.mxu0 0.0
  %6187 = vmatprep.subr.mxu0 0.0
  %6188 = vmatpush1.msra.mxu0 0.0
  %6189 = vmatprep.subr.mxu0 0.0
  %6190 = vmatpush1.msra.mxu0 0.0
  %6191 = vmatprep.subr.mxu0 0.0
  %6192 = vmatpush1.msra.mxu0 0.0
  %6193 = vmatprep.subr.mxu0 0.0
  %6194 = vmatpush1.msra.mxu0 0.0
  %6195 = vmatprep.subr.mxu0 0.0
  %6196 = vmatpush1.msra.mxu0 0.0
  %6197 = vmatprep.subr.mxu0 0.0
  %6198 = vmatpush1.msra.mxu0 0.0
  %6199 = vmatprep.subr.mxu0 0.0
  %6200 = vmatpush1.msra.mxu0 0.0
  %6201 = vmatprep.subr.mxu0 0.0
  %6202 = vmatpush1.msra.mxu0 0.0
  %6203 = vmatprep.subr.mxu0 0.0
  %6204 = vmatpush1.msra.mxu0 0.0
  %6205 = vmatprep.subr.mxu0 0.0
  %6206 = vmatpush1.msra.mxu0 0.0
  %6207 = vmatprep.subr.mxu0 0.0
  %6208 = vmatpush1.msra.mxu0 0.0
  %6209 = vmatprep.subr.mxu0 0.0
  %6210 = vmatpush1.msra.mxu0 0.0
  %6211 = vmatprep.mubr.f32.mxu0 0.0
  %6212 = vmatmul.mubr.f32.gmra.mrb[0].mxu0 %v6145
  %v6213 = vpop.f32.mrb[0].mxu0
  %v6214 = vadd.f32 0.0, %v6213
  %v6215 = vpop.f32.mrb[0].mxu0
  %6216 = vdwg.mxu0
  %6217 = vrot.lane.b32.xlu0 %v5415, 96
  %v6218 = vpop.permute.xlu0 %6217
  %v6221 = vsel %vm238, %v6134, 0
  %6223 = vmatprep.subr.mxu0 0.0
  %6224 = vmatpush1.msra.mxu0 %v6218
  %6225 = vmatprep.subr.mxu0 0.0
  %6226 = vmatpush1.msra.mxu0 0.0
  %6227 = vmatprep.subr.mxu0 0.0
  %6228 = vmatpush1.msra.mxu0 0.0
  %6229 = vmatprep.subr.mxu0 0.0
  %6230 = vmatpush1.msra.mxu0 0.0
  %6231 = vmatprep.subr.mxu0 0.0
  %6232 = vmatpush1.msra.mxu0 0.0
  %6233 = vmatprep.subr.mxu0 0.0
  %6234 = vmatpush1.msra.mxu0 0.0
  %6235 = vmatprep.subr.mxu0 0.0
  %6236 = vmatpush1.msra.mxu0 0.0
  %6237 = vmatprep.subr.mxu0 0.0
  %6238 = vmatpush1.msra.mxu0 0.0
  %6239 = vmatprep.subr.mxu0 0.0
  %6240 = vmatpush1.msra.mxu0 0.0
  %6241 = vmatprep.subr.mxu0 0.0
  %6242 = vmatpush1.msra.mxu0 0.0
  %6243 = vmatprep.subr.mxu0 0.0
  %6244 = vmatpush1.msra.mxu0 0.0
  %6245 = vmatprep.subr.mxu0 0.0
  %6246 = vmatpush1.msra.mxu0 0.0
  %6247 = vmatprep.subr.mxu0 0.0
  %6248 = vmatpush1.msra.mxu0 0.0
  %6249 = vmatprep.subr.mxu0 0.0
  %6250 = vmatpush1.msra.mxu0 0.0
  %6251 = vmatprep.subr.mxu0 0.0
  %6252 = vmatpush1.msra.mxu0 0.0
  %6253 = vmatprep.subr.mxu0 0.0
  %6254 = vmatpush1.msra.mxu0 0.0
  %6255 = vmatprep.subr.mxu0 0.0
  %6256 = vmatpush1.msra.mxu0 0.0
  %6257 = vmatprep.subr.mxu0 0.0
  %6258 = vmatpush1.msra.mxu0 0.0
  %6259 = vmatprep.subr.mxu0 0.0
  %6260 = vmatpush1.msra.mxu0 0.0
  %6261 = vmatprep.subr.mxu0 0.0
  %6262 = vmatpush1.msra.mxu0 0.0
  %6263 = vmatprep.subr.mxu0 0.0
  %6264 = vmatpush1.msra.mxu0 0.0
  %6265 = vmatprep.subr.mxu0 0.0
  %6266 = vmatpush1.msra.mxu0 0.0
  %6267 = vmatprep.subr.mxu0 0.0
  %6268 = vmatpush1.msra.mxu0 0.0
  %6269 = vmatprep.subr.mxu0 0.0
  %6270 = vmatpush1.msra.mxu0 0.0
  %6271 = vmatprep.subr.mxu0 0.0
  %6272 = vmatpush1.msra.mxu0 0.0
  %6273 = vmatprep.subr.mxu0 0.0
  %6274 = vmatpush1.msra.mxu0 0.0
  %6275 = vmatprep.subr.mxu0 0.0
  %6276 = vmatpush1.msra.mxu0 0.0
  %6277 = vmatprep.subr.mxu0 0.0
  %6278 = vmatpush1.msra.mxu0 0.0
  %6279 = vmatprep.subr.mxu0 0.0
  %6280 = vmatpush1.msra.mxu0 0.0
  %6281 = vmatprep.subr.mxu0 0.0
  %6282 = vmatpush1.msra.mxu0 0.0
  %6283 = vmatprep.subr.mxu0 0.0
  %6284 = vmatpush1.msra.mxu0 0.0
  %6285 = vmatprep.subr.mxu0 0.0
  %6286 = vmatpush1.msra.mxu0 0.0
  %6287 = vmatprep.mubr.f32.mxu0 0.0
  %6288 = vmatmul.mubr.f32.gmra.mrb[0].mxu0 %v6221
  %v6289 = vpop.f32.mrb[0].mxu0
  %v6290 = vadd.f32 0.0, %v6289
  %v6291 = vpop.f32.mrb[0].mxu0
  %6292 = vdwg.mxu0
  %6293 = vrot.lane.b32.xlu0 %v5442, 96
  %v6294 = vpop.permute.xlu0 %6293
  %v6297 = vsel %vm238, %v6135, 0
  %6299 = vmatprep.subr.mxu0 0.0
  %6300 = vmatpush1.msra.mxu0 %v6294
  %6301 = vmatprep.subr.mxu0 0.0
  %6302 = vmatpush1.msra.mxu0 0.0
  %6303 = vmatprep.subr.mxu0 0.0
  %6304 = vmatpush1.msra.mxu0 0.0
  %6305 = vmatprep.subr.mxu0 0.0
  %6306 = vmatpush1.msra.mxu0 0.0
  %6307 = vmatprep.subr.mxu0 0.0
  %6308 = vmatpush1.msra.mxu0 0.0
  %6309 = vmatprep.subr.mxu0 0.0
  %6310 = vmatpush1.msra.mxu0 0.0
  %6311 = vmatprep.subr.mxu0 0.0
  %6312 = vmatpush1.msra.mxu0 0.0
  %6313 = vmatprep.subr.mxu0 0.0
  %6314 = vmatpush1.msra.mxu0 0.0
  %6315 = vmatprep.subr.mxu0 0.0
  %6316 = vmatpush1.msra.mxu0 0.0
  %6317 = vmatprep.subr.mxu0 0.0
  %6318 = vmatpush1.msra.mxu0 0.0
  %6319 = vmatprep.subr.mxu0 0.0
  %6320 = vmatpush1.msra.mxu0 0.0
  %6321 = vmatprep.subr.mxu0 0.0
  %6322 = vmatpush1.msra.mxu0 0.0
  %6323 = vmatprep.subr.mxu0 0.0
  %6324 = vmatpush1.msra.mxu0 0.0
  %6325 = vmatprep.subr.mxu0 0.0
  %6326 = vmatpush1.msra.mxu0 0.0
  %6327 = vmatprep.subr.mxu0 0.0
  %6328 = vmatpush1.msra.mxu0 0.0
  %6329 = vmatprep.subr.mxu0 0.0
  %6330 = vmatpush1.msra.mxu0 0.0
  %6331 = vmatprep.subr.mxu0 0.0
  %6332 = vmatpush1.msra.mxu0 0.0
  %6333 = vmatprep.subr.mxu0 0.0
  %6334 = vmatpush1.msra.mxu0 0.0
  %6335 = vmatprep.subr.mxu0 0.0
  %6336 = vmatpush1.msra.mxu0 0.0
  %6337 = vmatprep.subr.mxu0 0.0
  %6338 = vmatpush1.msra.mxu0 0.0
  %6339 = vmatprep.subr.mxu0 0.0
  %6340 = vmatpush1.msra.mxu0 0.0
  %6341 = vmatprep.subr.mxu0 0.0
  %6342 = vmatpush1.msra.mxu0 0.0
  %6343 = vmatprep.subr.mxu0 0.0
  %6344 = vmatpush1.msra.mxu0 0.0
  %6345 = vmatprep.subr.mxu0 0.0
  %6346 = vmatpush1.msra.mxu0 0.0
  %6347 = vmatprep.subr.mxu0 0.0
  %6348 = vmatpush1.msra.mxu0 0.0
  %6349 = vmatprep.subr.mxu0 0.0
  %6350 = vmatpush1.msra.mxu0 0.0
  %6351 = vmatprep.subr.mxu0 0.0
  %6352 = vmatpush1.msra.mxu0 0.0
  %6353 = vmatprep.subr.mxu0 0.0
  %6354 = vmatpush1.msra.mxu0 0.0
  %6355 = vmatprep.subr.mxu0 0.0
  %6356 = vmatpush1.msra.mxu0 0.0
  %6357 = vmatprep.subr.mxu0 0.0
  %6358 = vmatpush1.msra.mxu0 0.0
  %6359 = vmatprep.subr.mxu0 0.0
  %6360 = vmatpush1.msra.mxu0 0.0
  %6361 = vmatprep.subr.mxu0 0.0
  %6362 = vmatpush1.msra.mxu0 0.0
  %6363 = vmatprep.mubr.f32.mxu0 0.0
  %6364 = vmatmul.mubr.f32.gmra.mrb[0].mxu0 %v6297
  %v6365 = vpop.f32.mrb[0].mxu0
  %v6366 = vadd.f32 0.0, %v6365
  %v6367 = vpop.f32.mrb[0].mxu0
  %6368 = vdwg.mxu0
  %6369 = vrot.lane.b32.xlu0 %v5444, 96
  %v6370 = vpop.permute.xlu0 %6369
  %v6373 = vsel %vm238, %v6136, 0
  %6375 = vmatprep.subr.mxu0 0.0
  %6376 = vmatpush1.msra.mxu0 %v6370
  %6377 = vmatprep.subr.mxu0 0.0
  %6378 = vmatpush1.msra.mxu0 0.0
  %6379 = vmatprep.subr.mxu0 0.0
  %6380 = vmatpush1.msra.mxu0 0.0
  %6381 = vmatprep.subr.mxu0 0.0
  %6382 = vmatpush1.msra.mxu0 0.0
  %6383 = vmatprep.subr.mxu0 0.0
  %6384 = vmatpush1.msra.mxu0 0.0
  %6385 = vmatprep.subr.mxu0 0.0
  %6386 = vmatpush1.msra.mxu0 0.0
  %6387 = vmatprep.subr.mxu0 0.0
  %6388 = vmatpush1.msra.mxu0 0.0
  %6389 = vmatprep.subr.mxu0 0.0
  %6390 = vmatpush1.msra.mxu0 0.0
  %6391 = vmatprep.subr.mxu0 0.0
  %6392 = vmatpush1.msra.mxu0 0.0
  %6393 = vmatprep.subr.mxu0 0.0
  %6394 = vmatpush1.msra.mxu0 0.0
  %6395 = vmatprep.subr.mxu0 0.0
  %6396 = vmatpush1.msra.mxu0 0.0
  %6397 = vmatprep.subr.mxu0 0.0
  %6398 = vmatpush1.msra.mxu0 0.0
  %6399 = vmatprep.subr.mxu0 0.0
  %6400 = vmatpush1.msra.mxu0 0.0
  %6401 = vmatprep.subr.mxu0 0.0
  %6402 = vmatpush1.msra.mxu0 0.0
  %6403 = vmatprep.subr.mxu0 0.0
  %6404 = vmatpush1.msra.mxu0 0.0
  %6405 = vmatprep.subr.mxu0 0.0
  %6406 = vmatpush1.msra.mxu0 0.0
  %6407 = vmatprep.subr.mxu0 0.0
  %6408 = vmatpush1.msra.mxu0 0.0
  %6409 = vmatprep.subr.mxu0 0.0
  %6410 = vmatpush1.msra.mxu0 0.0
  %6411 = vmatprep.subr.mxu0 0.0
  %6412 = vmatpush1.msra.mxu0 0.0
  %6413 = vmatprep.subr.mxu0 0.0
  %6414 = vmatpush1.msra.mxu0 0.0
  %6415 = vmatprep.subr.mxu0 0.0
  %6416 = vmatpush1.msra.mxu0 0.0
  %6417 = vmatprep.subr.mxu0 0.0
  %6418 = vmatpush1.msra.mxu0 0.0
  %6419 = vmatprep.subr.mxu0 0.0
  %6420 = vmatpush1.msra.mxu0 0.0
  %6421 = vmatprep.subr.mxu0 0.0
  %6422 = vmatpush1.msra.mxu0 0.0
  %6423 = vmatprep.subr.mxu0 0.0
  %6424 = vmatpush1.msra.mxu0 0.0
  %6425 = vmatprep.subr.mxu0 0.0
  %6426 = vmatpush1.msra.mxu0 0.0
  %6427 = vmatprep.subr.mxu0 0.0
  %6428 = vmatpush1.msra.mxu0 0.0
  %6429 = vmatprep.subr.mxu0 0.0
  %6430 = vmatpush1.msra.mxu0 0.0
  %6431 = vmatprep.subr.mxu0 0.0
  %6432 = vmatpush1.msra.mxu0 0.0
  %6433 = vmatprep.subr.mxu0 0.0
  %6434 = vmatpush1.msra.mxu0 0.0
  %6435 = vmatprep.subr.mxu0 0.0
  %6436 = vmatpush1.msra.mxu0 0.0
  %6437 = vmatprep.subr.mxu0 0.0
  %6438 = vmatpush1.msra.mxu0 0.0
  %6439 = vmatprep.mubr.f32.mxu0 0.0
  %6440 = vmatmul.mubr.f32.gmra.mrb[0].mxu0 %v6373
  %v6441 = vpop.f32.mrb[0].mxu0
  %v6442 = vadd.f32 0.0, %v6441
  %v6443 = vpop.f32.mrb[0].mxu0
  %6444 = vdwg.mxu0
  %6445 = vrot.lane.b32.xlu0 %v5446, 96
  %v6446 = vpop.permute.xlu0 %6445
  %v6449 = vsel %vm238, %v6137, 0
  %6451 = vmatprep.subr.mxu0 0.0
  %6452 = vmatpush1.msra.mxu0 %v6446
  %6453 = vmatprep.subr.mxu0 0.0
  %6454 = vmatpush1.msra.mxu0 0.0
  %6455 = vmatprep.subr.mxu0 0.0
  %6456 = vmatpush1.msra.mxu0 0.0
  %6457 = vmatprep.subr.mxu0 0.0
  %6458 = vmatpush1.msra.mxu0 0.0
  %6459 = vmatprep.subr.mxu0 0.0
  %6460 = vmatpush1.msra.mxu0 0.0
  %6461 = vmatprep.subr.mxu0 0.0
  %6462 = vmatpush1.msra.mxu0 0.0
  %6463 = vmatprep.subr.mxu0 0.0
  %6464 = vmatpush1.msra.mxu0 0.0
  %6465 = vmatprep.subr.mxu0 0.0
  %6466 = vmatpush1.msra.mxu0 0.0
  %6467 = vmatprep.subr.mxu0 0.0
  %6468 = vmatpush1.msra.mxu0 0.0
  %6469 = vmatprep.subr.mxu0 0.0
  %6470 = vmatpush1.msra.mxu0 0.0
  %6471 = vmatprep.subr.mxu0 0.0
  %6472 = vmatpush1.msra.mxu0 0.0
  %6473 = vmatprep.subr.mxu0 0.0
  %6474 = vmatpush1.msra.mxu0 0.0
  %6475 = vmatprep.subr.mxu0 0.0
  %6476 = vmatpush1.msra.mxu0 0.0
  %6477 = vmatprep.subr.mxu0 0.0
  %6478 = vmatpush1.msra.mxu0 0.0
  %6479 = vmatprep.subr.mxu0 0.0
  %6480 = vmatpush1.msra.mxu0 0.0
  %6481 = vmatprep.subr.mxu0 0.0
  %6482 = vmatpush1.msra.mxu0 0.0
  %6483 = vmatprep.subr.mxu0 0.0
  %6484 = vmatpush1.msra.mxu0 0.0
  %6485 = vmatprep.subr.mxu0 0.0
  %6486 = vmatpush1.msra.mxu0 0.0
  %6487 = vmatprep.subr.mxu0 0.0
  %6488 = vmatpush1.msra.mxu0 0.0
  %6489 = vmatprep.subr.mxu0 0.0
  %6490 = vmatpush1.msra.mxu0 0.0
  %6491 = vmatprep.subr.mxu0 0.0
  %6492 = vmatpush1.msra.mxu0 0.0
  %6493 = vmatprep.subr.mxu0 0.0
  %6494 = vmatpush1.msra.mxu0 0.0
  %6495 = vmatprep.subr.mxu0 0.0
  %6496 = vmatpush1.msra.mxu0 0.0
  %6497 = vmatprep.subr.mxu0 0.0
  %6498 = vmatpush1.msra.mxu0 0.0
  %6499 = vmatprep.subr.mxu0 0.0
  %6500 = vmatpush1.msra.mxu0 0.0
  %6501 = vmatprep.subr.mxu0 0.0
  %6502 = vmatpush1.msra.mxu0 0.0
  %6503 = vmatprep.subr.mxu0 0.0
  %6504 = vmatpush1.msra.mxu0 0.0
  %6505 = vmatprep.subr.mxu0 0.0
  %6506 = vmatpush1.msra.mxu0 0.0
  %6507 = vmatprep.subr.mxu0 0.0
  %6508 = vmatpush1.msra.mxu0 0.0
  %6509 = vmatprep.subr.mxu0 0.0
  %6510 = vmatpush1.msra.mxu0 0.0
  %6511 = vmatprep.subr.mxu0 0.0
  %6512 = vmatpush1.msra.mxu0 0.0
  %6513 = vmatprep.subr.mxu0 0.0
  %6514 = vmatpush1.msra.mxu0 0.0
  %6515 = vmatprep.mubr.f32.mxu0 0.0
  %6516 = vmatmul.mubr.f32.gmra.mrb[0].mxu0 %v6449
  %v6517 = vpop.f32.mrb[0].mxu0
  %v6518 = vadd.f32 0.0, %v6517
  %v6519 = vpop.f32.mrb[0].mxu0
  %6520 = vdwg.mxu0
  %6521 = vrot.lane.b32.xlu0 %v5448, 96
  %v6522 = vpop.permute.xlu0 %6521
  %v6525 = vsel %vm238, %v6138, 0
  %6527 = vmatprep.subr.mxu0 0.0
  %6528 = vmatpush1.msra.mxu0 %v6522
  %6529 = vmatprep.subr.mxu0 0.0
  %6530 = vmatpush1.msra.mxu0 0.0
  %6531 = vmatprep.subr.mxu0 0.0
  %6532 = vmatpush1.msra.mxu0 0.0
  %6533 = vmatprep.subr.mxu0 0.0
  %6534 = vmatpush1.msra.mxu0 0.0
  %6535 = vmatprep.subr.mxu0 0.0
  %6536 = vmatpush1.msra.mxu0 0.0
  %6537 = vmatprep.subr.mxu0 0.0
  %6538 = vmatpush1.msra.mxu0 0.0
  %6539 = vmatprep.subr.mxu0 0.0
  %6540 = vmatpush1.msra.mxu0 0.0
  %6541 = vmatprep.subr.mxu0 0.0
  %6542 = vmatpush1.msra.mxu0 0.0
  %6543 = vmatprep.subr.mxu0 0.0
  %6544 = vmatpush1.msra.mxu0 0.0
  %6545 = vmatprep.subr.mxu0 0.0
  %6546 = vmatpush1.msra.mxu0 0.0
  %6547 = vmatprep.subr.mxu0 0.0
  %6548 = vmatpush1.msra.mxu0 0.0
  %6549 = vmatprep.subr.mxu0 0.0
  %6550 = vmatpush1.msra.mxu0 0.0
  %6551 = vmatprep.subr.mxu0 0.0
  %6552 = vmatpush1.msra.mxu0 0.0
  %6553 = vmatprep.subr.mxu0 0.0
  %6554 = vmatpush1.msra.mxu0 0.0
  %6555 = vmatprep.subr.mxu0 0.0
  %6556 = vmatpush1.msra.mxu0 0.0
  %6557 = vmatprep.subr.mxu0 0.0
  %6558 = vmatpush1.msra.mxu0 0.0
  %6559 = vmatprep.subr.mxu0 0.0
  %6560 = vmatpush1.msra.mxu0 0.0
  %6561 = vmatprep.subr.mxu0 0.0
  %6562 = vmatpush1.msra.mxu0 0.0
  %6563 = vmatprep.subr.mxu0 0.0
  %6564 = vmatpush1.msra.mxu0 0.0
  %6565 = vmatprep.subr.mxu0 0.0
  %6566 = vmatpush1.msra.mxu0 0.0
  %6567 = vmatprep.subr.mxu0 0.0
  %6568 = vmatpush1.msra.mxu0 0.0
  %6569 = vmatprep.subr.mxu0 0.0
  %6570 = vmatpush1.msra.mxu0 0.0
  %6571 = vmatprep.subr.mxu0 0.0
  %6572 = vmatpush1.msra.mxu0 0.0
  %6573 = vmatprep.subr.mxu0 0.0
  %6574 = vmatpush1.msra.mxu0 0.0
  %6575 = vmatprep.subr.mxu0 0.0
  %6576 = vmatpush1.msra.mxu0 0.0
  %6577 = vmatprep.subr.mxu0 0.0
  %6578 = vmatpush1.msra.mxu0 0.0
  %6579 = vmatprep.subr.mxu0 0.0
  %6580 = vmatpush1.msra.mxu0 0.0
  %6581 = vmatprep.subr.mxu0 0.0
  %6582 = vmatpush1.msra.mxu0 0.0
  %6583 = vmatprep.subr.mxu0 0.0
  %6584 = vmatpush1.msra.mxu0 0.0
  %6585 = vmatprep.subr.mxu0 0.0
  %6586 = vmatpush1.msra.mxu0 0.0
  %6587 = vmatprep.subr.mxu0 0.0
  %6588 = vmatpush1.msra.mxu0 0.0
  %6589 = vmatprep.subr.mxu0 0.0
  %6590 = vmatpush1.msra.mxu0 0.0
  %6591 = vmatprep.mubr.f32.mxu0 0.0
  %6592 = vmatmul.mubr.f32.gmra.mrb[0].mxu0 %v6525
  %v6593 = vpop.f32.mrb[0].mxu0
  %v6594 = vadd.f32 0.0, %v6593
  %v6595 = vpop.f32.mrb[0].mxu0
  %6596 = vdwg.mxu0
  %6597 = vrot.lane.b32.xlu0 %v5450, 96
  %v6598 = vpop.permute.xlu0 %6597
  %v6601 = vsel %vm238, %v6139, 0
  %6603 = vmatprep.subr.mxu0 0.0
  %6604 = vmatpush1.msra.mxu0 %v6598
  %6605 = vmatprep.subr.mxu0 0.0
  %6606 = vmatpush1.msra.mxu0 0.0
  %6607 = vmatprep.subr.mxu0 0.0
  %6608 = vmatpush1.msra.mxu0 0.0
  %6609 = vmatprep.subr.mxu0 0.0
  %6610 = vmatpush1.msra.mxu0 0.0
  %6611 = vmatprep.subr.mxu0 0.0
  %6612 = vmatpush1.msra.mxu0 0.0
  %6613 = vmatprep.subr.mxu0 0.0
  %6614 = vmatpush1.msra.mxu0 0.0
  %6615 = vmatprep.subr.mxu0 0.0
  %6616 = vmatpush1.msra.mxu0 0.0
  %6617 = vmatprep.subr.mxu0 0.0
  %6618 = vmatpush1.msra.mxu0 0.0
  %6619 = vmatprep.subr.mxu0 0.0
  %6620 = vmatpush1.msra.mxu0 0.0
  %6621 = vmatprep.subr.mxu0 0.0
  %6622 = vmatpush1.msra.mxu0 0.0
  %6623 = vmatprep.subr.mxu0 0.0
  %6624 = vmatpush1.msra.mxu0 0.0
  %6625 = vmatprep.subr.mxu0 0.0
  %6626 = vmatpush1.msra.mxu0 0.0
  %6627 = vmatprep.subr.mxu0 0.0
  %6628 = vmatpush1.msra.mxu0 0.0
  %6629 = vmatprep.subr.mxu0 0.0
  %6630 = vmatpush1.msra.mxu0 0.0
  %6631 = vmatprep.subr.mxu0 0.0
  %6632 = vmatpush1.msra.mxu0 0.0
  %6633 = vmatprep.subr.mxu0 0.0
  %6634 = vmatpush1.msra.mxu0 0.0
  %6635 = vmatprep.subr.mxu0 0.0
  %6636 = vmatpush1.msra.mxu0 0.0
  %6637 = vmatprep.subr.mxu0 0.0
  %6638 = vmatpush1.msra.mxu0 0.0
  %6639 = vmatprep.subr.mxu0 0.0
  %6640 = vmatpush1.msra.mxu0 0.0
  %6641 = vmatprep.subr.mxu0 0.0
  %6642 = vmatpush1.msra.mxu0 0.0
  %6643 = vmatprep.subr.mxu0 0.0
  %6644 = vmatpush1.msra.mxu0 0.0
  %6645 = vmatprep.subr.mxu0 0.0
  %6646 = vmatpush1.msra.mxu0 0.0
  %6647 = vmatprep.subr.mxu0 0.0
  %6648 = vmatpush1.msra.mxu0 0.0
  %6649 = vmatprep.subr.mxu0 0.0
  %6650 = vmatpush1.msra.mxu0 0.0
  %6651 = vmatprep.subr.mxu0 0.0
  %6652 = vmatpush1.msra.mxu0 0.0
  %6653 = vmatprep.subr.mxu0 0.0
  %6654 = vmatpush1.msra.mxu0 0.0
  %6655 = vmatprep.subr.mxu0 0.0
  %6656 = vmatpush1.msra.mxu0 0.0
  %6657 = vmatprep.subr.mxu0 0.0
  %6658 = vmatpush1.msra.mxu0 0.0
  %6659 = vmatprep.subr.mxu0 0.0
  %6660 = vmatpush1.msra.mxu0 0.0
  %6661 = vmatprep.subr.mxu0 0.0
  %6662 = vmatpush1.msra.mxu0 0.0
  %6663 = vmatprep.subr.mxu0 0.0
  %6664 = vmatpush1.msra.mxu0 0.0
  %6665 = vmatprep.subr.mxu0 0.0
  %6666 = vmatpush1.msra.mxu0 0.0
  %6667 = vmatprep.mubr.f32.mxu0 0.0
  %6668 = vmatmul.mubr.f32.gmra.mrb[0].mxu0 %v6601
  %v6669 = vpop.f32.mrb[0].mxu0
  %v6670 = vadd.f32 0.0, %v6669
  %v6671 = vpop.f32.mrb[0].mxu0
  %6672 = vdwg.mxu0
  %6673 = vrot.lane.b32.xlu0 %v5452, 96
  %v6674 = vpop.permute.xlu0 %6673
  %v6677 = vsel %vm238, %v6140, 0
  %6679 = vmatprep.subr.mxu0 0.0
  %6680 = vmatpush1.msra.mxu0 %v6674
  %6681 = vmatprep.subr.mxu0 0.0
  %6682 = vmatpush1.msra.mxu0 0.0
  %6683 = vmatprep.subr.mxu0 0.0
  %6684 = vmatpush1.msra.mxu0 0.0
  %6685 = vmatprep.subr.mxu0 0.0
  %6686 = vmatpush1.msra.mxu0 0.0
  %6687 = vmatprep.subr.mxu0 0.0
  %6688 = vmatpush1.msra.mxu0 0.0
  %6689 = vmatprep.subr.mxu0 0.0
  %6690 = vmatpush1.msra.mxu0 0.0
  %6691 = vmatprep.subr.mxu0 0.0
  %6692 = vmatpush1.msra.mxu0 0.0
  %6693 = vmatprep.subr.mxu0 0.0
  %6694 = vmatpush1.msra.mxu0 0.0
  %6695 = vmatprep.subr.mxu0 0.0
  %6696 = vmatpush1.msra.mxu0 0.0
  %6697 = vmatprep.subr.mxu0 0.0
  %6698 = vmatpush1.msra.mxu0 0.0
  %6699 = vmatprep.subr.mxu0 0.0
  %6700 = vmatpush1.msra.mxu0 0.0
  %6701 = vmatprep.subr.mxu0 0.0
  %6702 = vmatpush1.msra.mxu0 0.0
  %6703 = vmatprep.subr.mxu0 0.0
  %6704 = vmatpush1.msra.mxu0 0.0
  %6705 = vmatprep.subr.mxu0 0.0
  %6706 = vmatpush1.msra.mxu0 0.0
  %6707 = vmatprep.subr.mxu0 0.0
  %6708 = vmatpush1.msra.mxu0 0.0
  %6709 = vmatprep.subr.mxu0 0.0
  %6710 = vmatpush1.msra.mxu0 0.0
  %6711 = vmatprep.subr.mxu0 0.0
  %6712 = vmatpush1.msra.mxu0 0.0
  %6713 = vmatprep.subr.mxu0 0.0
  %6714 = vmatpush1.msra.mxu0 0.0
  %6715 = vmatprep.subr.mxu0 0.0
  %6716 = vmatpush1.msra.mxu0 0.0
  %6717 = vmatprep.subr.mxu0 0.0
  %6718 = vmatpush1.msra.mxu0 0.0
  %6719 = vmatprep.subr.mxu0 0.0
  %6720 = vmatpush1.msra.mxu0 0.0
  %6721 = vmatprep.subr.mxu0 0.0
  %6722 = vmatpush1.msra.mxu0 0.0
  %6723 = vmatprep.subr.mxu0 0.0
  %6724 = vmatpush1.msra.mxu0 0.0
  %6725 = vmatprep.subr.mxu0 0.0
  %6726 = vmatpush1.msra.mxu0 0.0
  %6727 = vmatprep.subr.mxu0 0.0
  %6728 = vmatpush1.msra.mxu0 0.0
  %6729 = vmatprep.subr.mxu0 0.0
  %6730 = vmatpush1.msra.mxu0 0.0
  %6731 = vmatprep.subr.mxu0 0.0
  %6732 = vmatpush1.msra.mxu0 0.0
  %6733 = vmatprep.subr.mxu0 0.0
  %6734 = vmatpush1.msra.mxu0 0.0
  %6735 = vmatprep.subr.mxu0 0.0
  %6736 = vmatpush1.msra.mxu0 0.0
  %6737 = vmatprep.subr.mxu0 0.0
  %6738 = vmatpush1.msra.mxu0 0.0
  %6739 = vmatprep.subr.mxu0 0.0
  %6740 = vmatpush1.msra.mxu0 0.0
  %6741 = vmatprep.subr.mxu0 0.0
  %6742 = vmatpush1.msra.mxu0 0.0
  %6743 = vmatprep.mubr.f32.mxu0 0.0
  %6744 = vmatmul.mubr.f32.gmra.mrb[0].mxu0 %v6677
  %v6745 = vpop.f32.mrb[0].mxu0
  %v6746 = vadd.f32 0.0, %v6745
  %v6747 = vpop.f32.mrb[0].mxu0
  %6748 = vdwg.mxu0
  %6751 = vrot.lane.b32.xlu0 %v6366, 8
  %v6752 = vpop.permute.xlu0 %6751
  %6753 = vrot.lane.b32.xlu0 %v6442, 8
  %v6754 = vpop.permute.xlu0 %6753
  %6759 = vrot.lane.b32.xlu0 %v6518, 16
  %v6760 = vpop.permute.xlu0 %6759
  %6761 = vrot.lane.b32.xlu0 %v6594, 16
  %v6762 = vpop.permute.xlu0 %6761
  %6767 = vrot.lane.b32.xlu0 %v6670, 24
  %v6768 = vpop.permute.xlu0 %6767
  %6769 = vrot.lane.b32.xlu0 %v6746, 24
  %v6770 = vpop.permute.xlu0 %6769
  %v6773 = vsel %vm238, %v6214, %v6752
  %v6774 = vsel %vm238, %v6290, %v6754
  %v6775 = vsel %vm1583, %v6773, %v6760
  %v6776 = vsel %vm1583, %v6774, %v6762
  %v6777 = vsel %vm1586, %v6775, %v6768
  %v6778 = vsel %vm1586, %v6776, %v6770
  %v6780 = vlaneseq
  %v6781 = vshrl.u32 %v6780, 7
  %v6782 = vsub.s32 0, %v6781
  %v6783 = vrot.slane %v5424, %v6782
  %v6786 = vsel %vm135, %v6777, 0
  %v6789 = vsel %vm135, %v6778, 0
  %6791 = vmatprep.subr.mxu0 0.0
  %6792 = vmatpush1.msra.mxu0 %v5419
  %6793 = vmatprep.subr.mxu0 0.0
  %6794 = vmatpush1.msra.mxu0 %v5420
  %6795 = vmatprep.subr.mxu0 0.0
  %6796 = vmatpush1.msra.mxu0 %v5421
  %6797 = vmatprep.subr.mxu0 0.0
  %6798 = vmatpush1.msra.mxu0 %v5422
  %6799 = vmatprep.subr.mxu0 0.0
  %6800 = vmatpush1.msra.mxu0 0.0
  %6801 = vmatprep.subr.mxu0 0.0
  %6802 = vmatpush1.msra.mxu0 0.0
  %6803 = vmatprep.subr.mxu0 0.0
  %6804 = vmatpush1.msra.mxu0 0.0
  %6805 = vmatprep.subr.mxu0 0.0
  %6806 = vmatpush1.msra.mxu0 0.0
  %6807 = vmatprep.subr.mxu0 0.0
  %6808 = vmatpush1.msra.mxu0 0.0
  %6809 = vmatprep.subr.mxu0 0.0
  %6810 = vmatpush1.msra.mxu0 0.0
  %6811 = vmatprep.subr.mxu0 0.0
  %6812 = vmatpush1.msra.mxu0 0.0
  %6813 = vmatprep.subr.mxu0 0.0
  %6814 = vmatpush1.msra.mxu0 0.0
  %6815 = vmatprep.subr.mxu0 0.0
  %6816 = vmatpush1.msra.mxu0 0.0
  %6817 = vmatprep.subr.mxu0 0.0
  %6818 = vmatpush1.msra.mxu0 0.0
  %6819 = vmatprep.subr.mxu0 0.0
  %6820 = vmatpush1.msra.mxu0 0.0
  %6821 = vmatprep.subr.mxu0 0.0
  %6822 = vmatpush1.msra.mxu0 0.0
  %6823 = vmatprep.subr.mxu0 0.0
  %6824 = vmatpush1.msra.mxu0 0.0
  %6825 = vmatprep.subr.mxu0 0.0
  %6826 = vmatpush1.msra.mxu0 0.0
  %6827 = vmatprep.subr.mxu0 0.0
  %6828 = vmatpush1.msra.mxu0 0.0
  %6829 = vmatprep.subr.mxu0 0.0
  %6830 = vmatpush1.msra.mxu0 0.0
  %6831 = vmatprep.subr.mxu0 0.0
  %6832 = vmatpush1.msra.mxu0 0.0
  %6833 = vmatprep.subr.mxu0 0.0
  %6834 = vmatpush1.msra.mxu0 0.0
  %6835 = vmatprep.subr.mxu0 0.0
  %6836 = vmatpush1.msra.mxu0 0.0
  %6837 = vmatprep.subr.mxu0 0.0
  %6838 = vmatpush1.msra.mxu0 0.0
  %6839 = vmatprep.subr.mxu0 0.0
  %6840 = vmatpush1.msra.mxu0 0.0
  %6841 = vmatprep.subr.mxu0 0.0
  %6842 = vmatpush1.msra.mxu0 0.0
  %6843 = vmatprep.subr.mxu0 0.0
  %6844 = vmatpush1.msra.mxu0 0.0
  %6845 = vmatprep.subr.mxu0 0.0
  %6846 = vmatpush1.msra.mxu0 0.0
  %6847 = vmatprep.subr.mxu0 0.0
  %6848 = vmatpush1.msra.mxu0 0.0
  %6849 = vmatprep.subr.mxu0 0.0
  %6850 = vmatpush1.msra.mxu0 0.0
  %6851 = vmatprep.subr.mxu0 0.0
  %6852 = vmatpush1.msra.mxu0 0.0
  %6853 = vmatprep.subr.mxu0 0.0
  %6854 = vmatpush1.msra.mxu0 0.0
  %6855 = vmatprep.mubr.f32.mxu0 0.0
  %6856 = vmatmul.mubr.f32.gmra.mrb[0].mxu0 %v6786
  %v6857 = vpop.f32.mrb[0].mxu0
  %v6858 = vadd.f32 %v6783, %v6857
  %v6859 = vpop.f32.mrb[0].mxu0
  %6860 = vmatprep.mubr.f32.mxu0 0.0
  %6861 = vmatmul.mubr.f32.gmra.mrb[0].mxu0 %v6789
  %v6862 = vpop.f32.mrb[0].mxu0
  %v6863 = vadd.f32 %v6783, %v6862
  %v6864 = vpop.f32.mrb[0].mxu0
  %6865 = vdwg.mxu0
  %v6866 = vadd.f32 %v5234, %v6858
  %v6867 = vadd.f32 %v5235, %v6863
  %s6868 = scalar_lea.vmem %s18, 1
  %v6869 = vld [vmem:[%s6868] sm:$0x1]
  %s6870 = scalar_lea.vmem %s19, 1
  %v6871 = vld [vmem:[%s6870] sm:$0x1]
  %v6872 = vsel %vm135, %v6866, 0.0
  %6873 = vadd.xlane.f32.xlu0 %v6872
  %v6874 = vpop.xlane.xlu0 %6873
  %v6875 = vsel %vm135, %v6867, 0.0
  %6876 = vadd.xlane.f32.xlu0 %v6875
  %v6877 = vpop.xlane.xlu0 %6876
  %v6878 = vmul.f32 %v6874, %v1686
  %v6879 = vmul.f32 %v6877, %v1686
  %v6880 = vsub.f32 %v6866, %v6878
  %v6881 = vsub.f32 %v6867, %v6879
  %v6882 = vmul.f32 %v6880, %v6880
  %v6883 = vmul.f32 %v6881, %v6881
  %v6884 = vsel %vm135, %v6882, 0.0
  %6885 = vadd.xlane.f32.xlu0 %v6884
  %v6886 = vpop.xlane.xlu0 %6885
  %v6887 = vsel %vm135, %v6883, 0.0
  %6888 = vadd.xlane.f32.xlu0 %v6887
  %v6889 = vpop.xlane.xlu0 %6888
  %v6890 = vmul.f32 %v6886, %v1686
  %v6891 = vmul.f32 %v6889, %v1686
  %v6892 = vadd.f32 %v6890, 1e-05
  %v6893 = vadd.f32 %v6891, 1e-05
  %v6894 = vrsqrt.pop %v6892
  %v6895 = vrsqrt.pop %v6893
  %v6896 = vmul.f32 %v6880, %v6894
  %v6897 = vmul.f32 %v6881, %v6895
  %v6899 = vlaneseq
  %v6900 = vshrl.u32 %v6899, 7
  %v6901 = vsub.s32 0, %v6900
  %v6902 = vrot.slane %v6869, %v6901
  %v6904 = vmul.f32 %v6896, %v6902
  %v6905 = vmul.f32 %v6897, %v6902
  %v6907 = vlaneseq
  %v6908 = vshrl.u32 %v6907, 7
  %v6909 = vsub.s32 0, %v6908
  %v6910 = vrot.slane %v6871, %v6909
  %v6912 = vadd.f32 %v6904, %v6910
  %v6913 = vadd.f32 %v6905, %v6910
  %s6914 = scalar_lea.vmem %s20, 32
  %v6915 = vld [vmem:[%s6914] sm:$0xff]
  %v6916 = vld [vmem:[%s6914 + $0x8] sm:$0xff]
  %v6917 = vld [vmem:[%s6914 + $0x10] sm:$0xff]
  %v6918 = vld [vmem:[%s6914 + $0x18] sm:$0xff]
  %s6919 = scalar_lea.vmem %s21, 1
  %v6920 = vld [vmem:[%s6919] sm:$0x1]
  %v6922 = vlaneseq
  %v6923 = vshrl.u32 %v6922, 7
  %v6924 = vsub.s32 0, %v6923
  %v6925 = vrot.slane %v6920, %v6924
  %v6928 = vsel %vm135, %v6912, 0
  %v6931 = vsel %vm135, %v6913, 0
  %6933 = vmatprep.subr.mxu0 0.0
  %6934 = vmatpush1.msra.mxu0 %v6915
  %6935 = vmatprep.subr.mxu0 0.0
  %6936 = vmatpush1.msra.mxu0 %v6916
  %6937 = vmatprep.subr.mxu0 0.0
  %6938 = vmatpush1.msra.mxu0 %v6917
  %6939 = vmatprep.subr.mxu0 0.0
  %6940 = vmatpush1.msra.mxu0 %v6918
  %6941 = vmatprep.subr.mxu0 0.0
  %6942 = vmatpush1.msra.mxu0 0.0
  %6943 = vmatprep.subr.mxu0 0.0
  %6944 = vmatpush1.msra.mxu0 0.0
  %6945 = vmatprep.subr.mxu0 0.0
  %6946 = vmatpush1.msra.mxu0 0.0
  %6947 = vmatprep.subr.mxu0 0.0
  %6948 = vmatpush1.msra.mxu0 0.0
  %6949 = vmatprep.subr.mxu0 0.0
  %6950 = vmatpush1.msra.mxu0 0.0
  %6951 = vmatprep.subr.mxu0 0.0
  %6952 = vmatpush1.msra.mxu0 0.0
  %6953 = vmatprep.subr.mxu0 0.0
  %6954 = vmatpush1.msra.mxu0 0.0
  %6955 = vmatprep.subr.mxu0 0.0
  %6956 = vmatpush1.msra.mxu0 0.0
  %6957 = vmatprep.subr.mxu0 0.0
  %6958 = vmatpush1.msra.mxu0 0.0
  %6959 = vmatprep.subr.mxu0 0.0
  %6960 = vmatpush1.msra.mxu0 0.0
  %6961 = vmatprep.subr.mxu0 0.0
  %6962 = vmatpush1.msra.mxu0 0.0
  %6963 = vmatprep.subr.mxu0 0.0
  %6964 = vmatpush1.msra.mxu0 0.0
  %6965 = vmatprep.subr.mxu0 0.0
  %6966 = vmatpush1.msra.mxu0 0.0
  %6967 = vmatprep.subr.mxu0 0.0
  %6968 = vmatpush1.msra.mxu0 0.0
  %6969 = vmatprep.subr.mxu0 0.0
  %6970 = vmatpush1.msra.mxu0 0.0
  %6971 = vmatprep.subr.mxu0 0.0
  %6972 = vmatpush1.msra.mxu0 0.0
  %6973 = vmatprep.subr.mxu0 0.0
  %6974 = vmatpush1.msra.mxu0 0.0
  %6975 = vmatprep.subr.mxu0 0.0
  %6976 = vmatpush1.msra.mxu0 0.0
  %6977 = vmatprep.subr.mxu0 0.0
  %6978 = vmatpush1.msra.mxu0 0.0
  %6979 = vmatprep.subr.mxu0 0.0
  %6980 = vmatpush1.msra.mxu0 0.0
  %6981 = vmatprep.subr.mxu0 0.0
  %6982 = vmatpush1.msra.mxu0 0.0
  %6983 = vmatprep.subr.mxu0 0.0
  %6984 = vmatpush1.msra.mxu0 0.0
  %6985 = vmatprep.subr.mxu0 0.0
  %6986 = vmatpush1.msra.mxu0 0.0
  %6987 = vmatprep.subr.mxu0 0.0
  %6988 = vmatpush1.msra.mxu0 0.0
  %6989 = vmatprep.subr.mxu0 0.0
  %6990 = vmatpush1.msra.mxu0 0.0
  %6991 = vmatprep.subr.mxu0 0.0
  %6992 = vmatpush1.msra.mxu0 0.0
  %6993 = vmatprep.subr.mxu0 0.0
  %6994 = vmatpush1.msra.mxu0 0.0
  %6995 = vmatprep.subr.mxu0 0.0
  %6996 = vmatpush1.msra.mxu0 0.0
  %6997 = vmatprep.mubr.f32.mxu0 0.0
  %6998 = vmatmul.mubr.f32.gmra.mrb[0].mxu0 %v6928
  %v6999 = vpop.f32.mrb[0].mxu0
  %v7000 = vadd.f32 %v6925, %v6999
  %v7001 = vpop.f32.mrb[0].mxu0
  %7002 = vmatprep.mubr.f32.mxu0 0.0
  %7003 = vmatmul.mubr.f32.gmra.mrb[0].mxu0 %v6931
  %v7004 = vpop.f32.mrb[0].mxu0
  %v7005 = vadd.f32 %v6925, %v7004
  %v7006 = vpop.f32.mrb[0].mxu0
  %7007 = vdwg.mxu0
  %v7008 = vmax.f32 %v7000, 0.0
  %v7009 = vmax.f32 %v7005, 0.0
  %s7010 = scalar_lea.vmem %s22, 64
  %v7011 = vld [vmem:[%s7010] sm:$0xff]
  %v7012 = vld [vmem:[%s7010 + $0x8] sm:$0xff]
  %v7013 = vld [vmem:[%s7010 + $0x10] sm:$0xff]
  %v7014 = vld [vmem:[%s7010 + $0x18] sm:$0xff]
  %v7015 = vld [vmem:[%s7010 + $0x20] sm:$0xff]
  %v7016 = vld [vmem:[%s7010 + $0x28] sm:$0xff]
  %v7017 = vld [vmem:[%s7010 + $0x30] sm:$0xff]
  %v7018 = vld [vmem:[%s7010 + $0x38] sm:$0xff]
  %s7019 = scalar_lea.vmem %s23, 1
  %v7020 = vld [vmem:[%s7019] sm:$0x1]
  %v7022 = vlaneseq
  %v7023 = vshrl.u32 %v7022, 7
  %v7024 = vsub.s32 0, %v7023
  %v7025 = vrot.slane %v7020, %v7024
  %v7028 = vsel %vm3508, %v7008, 0
  %v7031 = vsel %vm3508, %v7009, 0
  %7033 = vmatprep.subr.mxu0 0.0
  %7034 = vmatpush1.msra.mxu0 %v7011
  %7035 = vmatprep.subr.mxu0 0.0
  %7036 = vmatpush1.msra.mxu0 %v7012
  %7037 = vmatprep.subr.mxu0 0.0
  %7038 = vmatpush1.msra.mxu0 %v7013
  %7039 = vmatprep.subr.mxu0 0.0
  %7040 = vmatpush1.msra.mxu0 %v7014
  %7041 = vmatprep.subr.mxu0 0.0
  %7042 = vmatpush1.msra.mxu0 %v7015
  %7043 = vmatprep.subr.mxu0 0.0
  %7044 = vmatpush1.msra.mxu0 %v7016
  %7045 = vmatprep.subr.mxu0 0.0
  %7046 = vmatpush1.msra.mxu0 %v7017
  %7047 = vmatprep.subr.mxu0 0.0
  %7048 = vmatpush1.msra.mxu0 %v7018
  %7049 = vmatprep.subr.mxu0 0.0
  %7050 = vmatpush1.msra.mxu0 0.0
  %7051 = vmatprep.subr.mxu0 0.0
  %7052 = vmatpush1.msra.mxu0 0.0
  %7053 = vmatprep.subr.mxu0 0.0
  %7054 = vmatpush1.msra.mxu0 0.0
  %7055 = vmatprep.subr.mxu0 0.0
  %7056 = vmatpush1.msra.mxu0 0.0
  %7057 = vmatprep.subr.mxu0 0.0
  %7058 = vmatpush1.msra.mxu0 0.0
  %7059 = vmatprep.subr.mxu0 0.0
  %7060 = vmatpush1.msra.mxu0 0.0
  %7061 = vmatprep.subr.mxu0 0.0
  %7062 = vmatpush1.msra.mxu0 0.0
  %7063 = vmatprep.subr.mxu0 0.0
  %7064 = vmatpush1.msra.mxu0 0.0
  %7065 = vmatprep.subr.mxu0 0.0
  %7066 = vmatpush1.msra.mxu0 0.0
  %7067 = vmatprep.subr.mxu0 0.0
  %7068 = vmatpush1.msra.mxu0 0.0
  %7069 = vmatprep.subr.mxu0 0.0
  %7070 = vmatpush1.msra.mxu0 0.0
  %7071 = vmatprep.subr.mxu0 0.0
  %7072 = vmatpush1.msra.mxu0 0.0
  %7073 = vmatprep.subr.mxu0 0.0
  %7074 = vmatpush1.msra.mxu0 0.0
  %7075 = vmatprep.subr.mxu0 0.0
  %7076 = vmatpush1.msra.mxu0 0.0
  %7077 = vmatprep.subr.mxu0 0.0
  %7078 = vmatpush1.msra.mxu0 0.0
  %7079 = vmatprep.subr.mxu0 0.0
  %7080 = vmatpush1.msra.mxu0 0.0
  %7081 = vmatprep.subr.mxu0 0.0
  %7082 = vmatpush1.msra.mxu0 0.0
  %7083 = vmatprep.subr.mxu0 0.0
  %7084 = vmatpush1.msra.mxu0 0.0
  %7085 = vmatprep.subr.mxu0 0.0
  %7086 = vmatpush1.msra.mxu0 0.0
  %7087 = vmatprep.subr.mxu0 0.0
  %7088 = vmatpush1.msra.mxu0 0.0
  %7089 = vmatprep.subr.mxu0 0.0
  %7090 = vmatpush1.msra.mxu0 0.0
  %7091 = vmatprep.subr.mxu0 0.0
  %7092 = vmatpush1.msra.mxu0 0.0
  %7093 = vmatprep.subr.mxu0 0.0
  %7094 = vmatpush1.msra.mxu0 0.0
  %7095 = vmatprep.subr.mxu0 0.0
  %7096 = vmatpush1.msra.mxu0 0.0
  %7097 = vmatprep.mubr.f32.mxu0 0.0
  %7098 = vmatmul.mubr.f32.gmra.mrb[0].mxu0 %v7028
  %v7099 = vpop.f32.mrb[0].mxu0
  %v7100 = vadd.f32 %v7025, %v7099
  %v7101 = vpop.f32.mrb[0].mxu0
  %7102 = vmatprep.mubr.f32.mxu0 0.0
  %7103 = vmatmul.mubr.f32.gmra.mrb[0].mxu0 %v7031
  %v7104 = vpop.f32.mrb[0].mxu0
  %v7105 = vadd.f32 %v7025, %v7104
  %v7106 = vpop.f32.mrb[0].mxu0
  %7107 = vdwg.mxu0
  %v7108 = vadd.f32 %v6912, %v7100
  %v7109 = vadd.f32 %v6913, %v7105
  %s7110 = scalar_lea.vmem %s24, 1
  %v7111 = vld [vmem:[%s7110] sm:$0x1]
  %s7112 = scalar_lea.vmem %s25, 1
  %v7113 = vld [vmem:[%s7112] sm:$0x1]
  %v7114 = vsel %vm135, %v7108, 0.0
  %7115 = vadd.xlane.f32.xlu0 %v7114
  %v7116 = vpop.xlane.xlu0 %7115
  %v7117 = vsel %vm135, %v7109, 0.0
  %7118 = vadd.xlane.f32.xlu0 %v7117
  %v7119 = vpop.xlane.xlu0 %7118
  %v7120 = vmul.f32 %v7116, %v1686
  %v7121 = vmul.f32 %v7119, %v1686
  %v7122 = vsub.f32 %v7108, %v7120
  %v7123 = vsub.f32 %v7109, %v7121
  %v7124 = vmul.f32 %v7122, %v7122
  %v7125 = vmul.f32 %v7123, %v7123
  %v7126 = vsel %vm135, %v7124, 0.0
  %7127 = vadd.xlane.f32.xlu0 %v7126
  %v7128 = vpop.xlane.xlu0 %7127
  %v7129 = vsel %vm135, %v7125, 0.0
  %7130 = vadd.xlane.f32.xlu0 %v7129
  %v7131 = vpop.xlane.xlu0 %7130
  %v7132 = vmul.f32 %v7128, %v1686
  %v7133 = vmul.f32 %v7131, %v1686
  %v7134 = vadd.f32 %v7132, 1e-05
  %v7135 = vadd.f32 %v7133, 1e-05
  %v7136 = vrsqrt.pop %v7134
  %v7137 = vrsqrt.pop %v7135
  %v7138 = vmul.f32 %v7122, %v7136
  %v7139 = vmul.f32 %v7123, %v7137
  %v7141 = vlaneseq
  %v7142 = vshrl.u32 %v7141, 7
  %v7143 = vsub.s32 0, %v7142
  %v7144 = vrot.slane %v7111, %v7143
  %v7146 = vmul.f32 %v7138, %v7144
  %v7147 = vmul.f32 %v7139, %v7144
  %v7149 = vlaneseq
  %v7150 = vshrl.u32 %v7149, 7
  %v7151 = vsub.s32 0, %v7150
  %v7152 = vrot.slane %v7113, %v7151
  %v7154 = vadd.f32 %v7146, %v7152
  %v7155 = vadd.f32 %v7147, %v7152
  %v7156 = vld [vmem:[%s26] sm:$0x1]
  %v7158 = vlaneseq
  %v7159 = vshrl.u32 %v7158, 7
  %v7160 = vsub.s32 0, %v7159
  %v7161 = vrot.slane %v7156, %v7160
  %v7163 = vmul.f32 %v7154, %v7161
  %v7164 = vmul.f32 %v7155, %v7161
  %v7165 = vsel %vm135, %v7163, 0.0
  %7166 = vadd.xlane.f32.xlu0 %v7165
  %v7167 = vpop.xlane.xlu0 %7166
  %v7168 = vsel %vm135, %v7164, 0.0
  %7169 = vadd.xlane.f32.xlu0 %v7168
  %v7170 = vpop.xlane.xlu0 %7169
  %v7171 = vld [vmem:[#allocation2] sm:$0x1]
  %v7173 = vlaneseq
  %v7174 = vshrl.u32 %v7173, 7
  %v7175 = vsub.s32 0, %v7174
  %v7176 = vrot.slane %v7171, %v7175
  %v7178 = vadd.f32 %v7167, %v7176
  %v7179 = vadd.f32 %v7170, %v7176
  %vm7180 = vcmask 7168
  %7181 = vst.msk [vmem:[%s28] sm:$0xff] %vm7180, %v7178
  %7182 = vst.msk [vmem:[%s28 + $0x8] sm:$0xff] %vm7180, %v7179
  // Predicated region
  $region114: #{forward.3} parent=0 // pred_check
    _
  $region115: #{forward.3} parent=0 // pred_check_branch
    %7184 = sbr.rel (0) target = $region117
  $region116: #{forward.3} parent=0 // pred_region
    _
  $region117: #{forward.3} parent=0 // pred_fallthru
    _
  // Predicated region
  $region118: #{forward.3} parent=0 // pred_check
    _
  $region119: #{forward.3} parent=0 // pred_check_branch
    %7186 = sbr.rel (0) target = $region121
  $region120: #{forward.3} parent=0 // pred_region
    _
  $region121: #{forward.3} parent=0 // pred_fallthru
    _

</llo_original>
